<compile_context>
chip_gen: v6e
topology: v6e:2x2x1
jax: 0.10.0
libtpu: 0.0.40
codegen_flags: <defaults>
</compile_context>

<pallas_src>
import numpy as np
import jax
import jax.numpy as jnp
from jax import lax
from jax.experimental import pallas as pl
from jax.experimental.pallas import tpu as pltpu

# ----- synthetic CLIP-vision config (small; real model = ViT-L/14, 224px, 1024 hidden) -----
IMG = 32            # resize target (224 in real CLIP)
PATCH = 8           # patch size (14 in real CLIP)
GRID = IMG // PATCH
NUM_PATCHES = GRID * GRID          # 16
SEQ = NUM_PATCHES + 1              # 17 tokens (CLS + patches)
HIDDEN = 32
HEADS = 4
HEAD_DIM = HIDDEN // HEADS
INTER = 64
LAYERS = 2
EPS = 1e-5

TILE_B = 8                         # images per grid step (multiple of 8: f32 sublane tile)
TB_SEQ = SEQ * TILE_B              # 136 token-major activation rows per grid step
ATTN_SCALE = HEAD_DIM ** -0.5

MEAN = np.array([0.48145466, 0.4578275, 0.40821073], np.float32)
STD = np.array([0.26862954, 0.26130258, 0.27577711], np.float32)


# ---------------------------------------------------------------------------
# Bicubic (align_corners=True, a=-0.75) resize expressed as separable matrices.
# ---------------------------------------------------------------------------
def _cubic(x, a=-0.75):
    x = abs(float(x))
    if x <= 1.0:
        return (a + 2.0) * x ** 3 - (a + 3.0) * x ** 2 + 1.0
    if x < 2.0:
        return a * x ** 3 - 5.0 * a * x ** 2 + 8.0 * a * x - 4.0 * a
    return 0.0


def bicubic_matrix_align_corners(n_in, n_out):
    m = np.zeros((n_out, n_in), np.float32)
    if n_out == 1:
        m[0, 0] = 1.0
        return m
    scale = (n_in - 1) / (n_out - 1)
    for i in range(n_out):
        src = i * scale
        f = int(np.floor(src))
        t = src - f
        for k in range(-1, 3):
            idx = min(max(f + k, 0), n_in - 1)
            m[i, idx] += _cubic(k - t)
    return m


# ---------------------------------------------------------------------------
# The single fused model kernel (one grid step = TILE_B images).
# Activation layout is token-major: row = token*TILE_B + image.
# ---------------------------------------------------------------------------
def _clip_model_kernel(
    x_ref,        # (TILE_B, F)            flattened NCHW input pixels, values in [-1, 1]
    gflat_ref,    # (F, SEQ*HIDDEN)        folded resize+normalize+patch-conv (CLS cols = 0)
    gbias_ref,    # (1, SEQ*HIDDEN)        folded bias: cls+pos0 | pos[p]+norm-bias
    mask_ref,     # (TB_SEQ, TB_SEQ)       additive attention mask (0 same-image, -1e30 else)
    preln_ref,    # (2, HIDDEN)            [gamma; beta]
    postln_ref,   # (2, HIDDEN)
    ln1_ref,      # (LAYERS, 2, HIDDEN)
    ln2_ref,      # (LAYERS, 2, HIDDEN)
    qkv_w_ref,    # (LAYERS, HIDDEN, 3*HIDDEN)   (HEAD_DIM**-0.5 folded into Q columns)
    qkv_b_ref,    # (LAYERS, 1, 3*HIDDEN)
    o_w_ref,      # (LAYERS, HIDDEN, HIDDEN)
    o_b_ref,      # (LAYERS, 1, HIDDEN)
    fc1_w_ref,    # (LAYERS, HIDDEN, INTER)
    fc1_b_ref,    # (LAYERS, 1, INTER)
    fc2_w_ref,    # (LAYERS, INTER, HIDDEN)
    fc2_b_ref,    # (LAYERS, 1, HIDDEN)
    out_ref,      # (TILE_B, HIDDEN)       pooled output
    h_s,          # VMEM (SEQ, TILE_B, HIDDEN)   token-major residual stream
):
    f32 = jnp.float32

    def layer_norm(x, gb):
        mu = jnp.mean(x, axis=-1, keepdims=True)
        var = jnp.mean((x - mu) ** 2, axis=-1, keepdims=True)
        return (x - mu) * lax.rsqrt(var + EPS) * gb[0:1, :] + gb[1:2, :]

    # ---- embeddings: ONE matmul gives every token (CLS + 16 patches) for all TILE_B images.
    # gbias already contains cls+pos0 / pos[p]+normalize-bias, so the row writes below are pure
    # stores, each exactly one (TILE_B=8, HIDDEN) sublane tile of the token-major slab.
    emb = jnp.dot(x_ref[...], gflat_ref[...], preferred_element_type=f32) + gbias_ref[...]
    for t in range(SEQ):                       # slicing + tile stores only; no per-patch matmuls
        h_s[t] = emb[:, t * HIDDEN:(t + 1) * HIDDEN]

    # pre layer-norm over the whole [TB_SEQ, HIDDEN] slab (layout-preserving 3D->2D reshape).
    h0 = layer_norm(h_s[...].reshape(TB_SEQ, HIDDEN), preln_ref[...])

    mask_add = mask_ref[...]                   # precomputed additive mask, reused by all heads

    def layer_body(l, h):
        # ----- self-attention block (pre-LN) -----
        xn = layer_norm(h, ln1_ref[l])
        qkv = jnp.dot(xn, qkv_w_ref[l], preferred_element_type=f32) + qkv_b_ref[l]
        o_w_l = o_w_ref[l]
        attn = None
        for hd in range(HEADS):
            q = qkv[:, hd * HEAD_DIM:(hd + 1) * HEAD_DIM]                    # scale pre-folded
            k = qkv[:, HIDDEN + hd * HEAD_DIM: HIDDEN + (hd + 1) * HEAD_DIM]
            v = qkv[:, 2 * HIDDEN + hd * HEAD_DIM: 2 * HIDDEN + (hd + 1) * HEAD_DIM]
            s = lax.dot_general(q, k, (((1,), (1,)), ((), ())),
                                preferred_element_type=f32)                  # [TB_SEQ, TB_SEQ]
            s = s + mask_add                    # cross-image pairs -> -1e30 (exp -> 0), exact
            s = s - jnp.max(s, axis=-1, keepdims=True)
            p = jnp.exp(s)
            p = p * pl.reciprocal(jnp.sum(p, axis=-1, keepdims=True), approx=True)
            o_h = jnp.dot(p, v, preferred_element_type=f32)                  # [TB_SEQ, HEAD_DIM]
            c = jnp.dot(o_h, o_w_l[hd * HEAD_DIM:(hd + 1) * HEAD_DIM, :],
                        preferred_element_type=f32)                          # accumulate o-proj
            attn = c if attn is None else attn + c
        h = h + attn + o_b_ref[l]

        # ----- MLP block (quick_gelu) -----
        xn = layer_norm(h, ln2_ref[l])
        t1 = jnp.dot(xn, fc1_w_ref[l], preferred_element_type=f32) + fc1_b_ref[l]
        t1 = t1 * jax.nn.sigmoid(1.702 * t1)
        h = h + jnp.dot(t1, fc2_w_ref[l], preferred_element_type=f32) + fc2_b_ref[l]
        return h

    h_final = lax.fori_loop(0, LAYERS, layer_body, h0)

    # pooler_output = post_layernorm(CLS token); CLS rows are the first TILE_B rows (token 0).
    out_ref[...] = layer_norm(h_final[0:TILE_B, :], postln_ref[...])


# ---------------------------------------------------------------------------
# wrapper: one pallas_call for the entire forward pass
# ---------------------------------------------------------------------------
def _const_spec(arr):
    """Whole-array, grid-invariant VMEM block.  Single-buffered when supported
    (constants are fetched once, so double-buffering only wastes VMEM)."""
    nd = arr.ndim
    imap = lambda i, _n=nd: (0,) * _n
    try:
        return pl.BlockSpec(arr.shape, imap, pipeline_mode=pl.Buffered(1))
    except Exception:  # older jax without pipeline_mode / Buffered(1): fall back to default
        return pl.BlockSpec(arr.shape, imap)


_CONST_ORDER = ["gflat", "gbias", "attn_mask", "preln", "postln", "ln1", "ln2",
                "qkv_w", "qkv_b", "o_w", "o_b", "fc1_w", "fc1_b", "fc2_w", "fc2_b"]


def frozen_image_to_clip_embedder(x, prep):
    b, c, h, w = x.shape
    assert b % TILE_B == 0, "batch must be a multiple of TILE_B"
    f = c * h * w
    xflat = x.reshape(b, f)          # contiguous reshape, no transpose / no extra HBM pass

    consts = [prep[k] for k in _CONST_ORDER]
    grid_spec = pltpu.PrefetchScalarGridSpec(
        num_scalar_prefetch=0,
        grid=(b // TILE_B,),
        in_specs=[pl.BlockSpec((TILE_B, f), lambda i: (i, 0))]
                 + [_const_spec(a) for a in consts],
        out_specs=pl.BlockSpec((TILE_B, HIDDEN), lambda i: (i, 0)),
        scratch_shapes=[
            pltpu.VMEM((SEQ, TILE_B, HIDDEN), jnp.float32),   # token-major residual stream
        ],
    )
    pooled = pl.pallas_call(
        _clip_model_kernel,
        out_shape=jax.ShapeDtypeStruct((b, HIDDEN), jnp.float32),
        grid_spec=grid_spec,
        compiler_params=pltpu.CompilerParams(
            dimension_semantics=("parallel",),
            vmem_limit_bytes=32 * 1024 * 1024,
        ),
    )(xflat, *consts)
    return pooled


# ---------------------------------------------------------------------------
# parameter preparation (host-side, done once): fold preprocess + patch-conv + pos-emb into a
# single [F, SEQ*HIDDEN] matrix/bias, fold attention scale into Q, stack per-layer weights,
# precompute the additive cross-image attention mask.
# ---------------------------------------------------------------------------
def prepare_params(params, h_in, w_in):
    mh = bicubic_matrix_align_corners(h_in, IMG)              # [IMG, h_in]
    mw = bicubic_matrix_align_corners(w_in, IMG)              # [IMG, w_in]
    scale = 0.5 / STD                                         # fused ((x+1)/2 - mean)/std
    bias = (0.5 - MEAN) / STD
    f = 3 * h_in * w_in

    wc = np.asarray(params["patch_w"]).reshape(3, PATCH, PATCH, HIDDEN)   # (c, ph, pw, hid)
    mh_r = mh.reshape(GRID, PATCH, h_in)                      # (gi, ph, u)
    mw_r = mw.reshape(GRID, PATCH, w_in)                      # (gj, pw, v)
    g = np.einsum("gpu,jqv,cpqh->gjcuvh", mh_r, mw_r, wc, optimize=True)
    g = g * scale[None, None, :, None, None, None]
    g = g.reshape(NUM_PATCHES, f, HIDDEN).astype(np.float32)  # [p, f, hid], f ordered (c,u,v)

    # columns ordered token-major (token, hid); token 0 = CLS (no pixel dependence)
    gfull = np.concatenate([np.zeros((f, 1, HIDDEN), np.float32),
                            np.transpose(g, (1, 0, 2))], axis=1)          # [f, SEQ, hid]
    gflat = gfull.reshape(f, SEQ * HIDDEN)

    # bias columns: token 0 = cls + pos0 ; token 1+p = pos[1+p] + (normalize-bias through conv)
    normbias = (bias[:, None] * wc.sum(axis=(1, 2))).sum(axis=0)          # [HIDDEN]
    cls = np.asarray(params["class_emb"])[0]
    pos = np.asarray(params["pos_emb"])
    gbias = np.zeros((SEQ, HIDDEN), np.float32)
    gbias[0] = cls + pos[0]
    gbias[1:] = pos[1:] + normbias[None, :]
    gbias = gbias.reshape(1, SEQ * HIDDEN)

    # additive attention mask for the token-major slab: row = t*TILE_B + image
    r = np.arange(TB_SEQ)
    same_image = (r[:, None] % TILE_B) == (r[None, :] % TILE_B)
    attn_mask = np.where(same_image, 0.0, -1e30).astype(np.float32)

    def cat_gb(gamma, beta):
        return np.concatenate([np.asarray(gamma), np.asarray(beta)], axis=0)   # [2, HIDDEN]

    layers = params["layers"]
    qkv_w = np.stack([np.concatenate(
        [np.asarray(l["q_w"]) * ATTN_SCALE, np.asarray(l["k_w"]), np.asarray(l["v_w"])],
        axis=1) for l in layers]).astype(np.float32)
    qkv_b = np.stack([np.concatenate(
        [np.asarray(l["q_b"]) * ATTN_SCALE, np.asarray(l["k_b"]), np.asarray(l["v_b"])],
        axis=1) for l in layers]).astype(np.float32)

    return {
        "gflat": jnp.asarray(gflat),
        "gbias": jnp.asarray(gbias),
        "attn_mask": jnp.asarray(attn_mask),
        "preln": jnp.asarray(cat_gb(params["pre_ln_g"], params["pre_ln_b"])),
        "postln": jnp.asarray(cat_gb(params["post_ln_g"], params["post_ln_b"])),
        "ln1": jnp.asarray(np.stack([cat_gb(l["ln1_g"], l["ln1_b"]) for l in layers])),
        "ln2": jnp.asarray(np.stack([cat_gb(l["ln2_g"], l["ln2_b"]) for l in layers])),
        "qkv_w": jnp.asarray(qkv_w),
        "qkv_b": jnp.asarray(qkv_b),
        "o_w": jnp.asarray(np.stack([np.asarray(l["o_w"]) for l in layers])),
        "o_b": jnp.asarray(np.stack([np.asarray(l["o_b"]) for l in layers])),
        "fc1_w": jnp.asarray(np.stack([np.asarray(l["fc1_w"]) for l in layers])),
        "fc1_b": jnp.asarray(np.stack([np.asarray(l["fc1_b"]) for l in layers])),
        "fc2_w": jnp.asarray(np.stack([np.asarray(l["fc2_w"]) for l in layers])),
        "fc2_b": jnp.asarray(np.stack([np.asarray(l["fc2_b"]) for l in layers])),
    }


# ---------------------------------------------------------------------------
# deterministic synthetic parameters (no checkpoint load)
# ---------------------------------------------------------------------------
def init_params(key):
    keys = jax.random.split(key, 3 + LAYERS)

    def norm(k, shape, std=0.02):
        return jax.random.normal(k, shape, jnp.float32) * std

    params = {
        "patch_w": norm(keys[0], (3 * PATCH * PATCH, HIDDEN)),
        "class_emb": norm(keys[1], (1, HIDDEN)),
        "pos_emb": norm(keys[2], (SEQ, HIDDEN)),
        "pre_ln_g": jnp.ones((1, HIDDEN), jnp.float32),
        "pre_ln_b": jnp.zeros((1, HIDDEN), jnp.float32),
        "post_ln_g": jnp.ones((1, HIDDEN), jnp.float32),
        "post_ln_b": jnp.zeros((1, HIDDEN), jnp.float32),
        "layers": [],
    }
    for li in range(LAYERS):
        lk = jax.random.split(keys[3 + li], 6)
        params["layers"].append({
            "ln1_g": jnp.ones((1, HIDDEN), jnp.float32),
            "ln1_b": jnp.zeros((1, HIDDEN), jnp.float32),
            "ln2_g": jnp.ones((1, HIDDEN), jnp.float32),
            "ln2_b": jnp.zeros((1, HIDDEN), jnp.float32),
            "q_w": norm(lk[0], (HIDDEN, HIDDEN)), "q_b": jnp.zeros((1, HIDDEN), jnp.float32),
            "k_w": norm(lk[1], (HIDDEN, HIDDEN)), "k_b": jnp.zeros((1, HIDDEN), jnp.float32),
            "v_w": norm(lk[2], (HIDDEN, HIDDEN)), "v_b": jnp.zeros((1, HIDDEN), jnp.float32),
            "o_w": norm(lk[3], (HIDDEN, HIDDEN)), "o_b": jnp.zeros((1, HIDDEN), jnp.float32),
            "fc1_w": norm(lk[4], (HIDDEN, INTER)), "fc1_b": jnp.zeros((1, INTER), jnp.float32),
            "fc2_w": norm(lk[5], (INTER, HIDDEN)), "fc2_b": jnp.zeros((1, HIDDEN), jnp.float32),
        })
    return params


if __name__ == "__main__":
    key = jax.random.PRNGKey(0)
    pkey, xkey = jax.random.split(key)
    params = init_params(pkey)
    # input image batch, NCHW, values in [-1, 1] (as the module's preprocess expects)
    batch = 2 * TILE_B                                 # 16 images -> grid=(2,), TILE_B=8 each
    x = jax.random.uniform(xkey, (batch, 3, 16, 16), jnp.float32, -1.0, 1.0)

    prep = prepare_params(params, h_in=16, w_in=16)
    fwd = jax.jit(frozen_image_to_clip_embedder)
    out = jax.block_until_ready(fwd(x, prep))

    assert out.shape == (batch, HIDDEN), out.shape
    assert bool(jnp.all(jnp.isfinite(out)))
    print("KERNEL_OK")
</pallas_src>

<mosaic_0001>
module attributes {stable_mosaic.version = 11 : i64} {
  func.func @_clip_model_kernel(%arg0: i32, %arg1: memref<8x768xf32, #tpu.memory_space<vmem>>, %arg2: memref<768x544xf32, #tpu.memory_space<vmem>>, %arg3: memref<1x544xf32, #tpu.memory_space<vmem>>, %arg4: memref<136x136xf32, #tpu.memory_space<vmem>>, %arg5: memref<2x32xf32, #tpu.memory_space<vmem>>, %arg6: memref<2x32xf32, #tpu.memory_space<vmem>>, %arg7: memref<2x2x32xf32, #tpu.memory_space<vmem>>, %arg8: memref<2x2x32xf32, #tpu.memory_space<vmem>>, %arg9: memref<2x32x96xf32, #tpu.memory_space<vmem>>, %arg10: memref<2x1x96xf32, #tpu.memory_space<vmem>>, %arg11: memref<2x32x32xf32, #tpu.memory_space<vmem>>, %arg12: memref<2x1x32xf32, #tpu.memory_space<vmem>>, %arg13: memref<2x32x64xf32, #tpu.memory_space<vmem>>, %arg14: memref<2x1x64xf32, #tpu.memory_space<vmem>>, %arg15: memref<2x64x32xf32, #tpu.memory_space<vmem>>, %arg16: memref<2x1x32xf32, #tpu.memory_space<vmem>>, %arg17: memref<8x32xf32, #tpu.memory_space<vmem>>, %arg18: memref<17x8x32xf32, #tpu.memory_space<vmem>>) attributes {dimension_semantics = [#tpu.dimension_semantics<parallel>], iteration_bounds = array<i64: 2>, scalar_prefetch = 0 : i64, scratch_operands = 1 : i64, tpu.core_type = #tpu.core_type<tc>, window_params = [{transform_indices = @transform_0, window_bounds = array<i64: 8, 768>}, {pipeline_mode = #tpu.pipeline_mode<synchronous>, transform_indices = @transform_1, window_bounds = array<i64: 768, 544>}, {pipeline_mode = #tpu.pipeline_mode<synchronous>, transform_indices = @transform_2, window_bounds = array<i64: 1, 544>}, {pipeline_mode = #tpu.pipeline_mode<synchronous>, transform_indices = @transform_3, window_bounds = array<i64: 136, 136>}, {pipeline_mode = #tpu.pipeline_mode<synchronous>, transform_indices = @transform_4, window_bounds = array<i64: 2, 32>}, {pipeline_mode = #tpu.pipeline_mode<synchronous>, transform_indices = @transform_5, window_bounds = array<i64: 2, 32>}, {pipeline_mode = #tpu.pipeline_mode<synchronous>, transform_indices = @transform_6, window_bounds = array<i64: 2, 2, 32>}, {pipeline_mode = #tpu.pipeline_mode<synchronous>, transform_indices = @transform_7, window_bounds = array<i64: 2, 2, 32>}, {pipeline_mode = #tpu.pipeline_mode<synchronous>, transform_indices = @transform_8, window_bounds = array<i64: 2, 32, 96>}, {pipeline_mode = #tpu.pipeline_mode<synchronous>, transform_indices = @transform_9, window_bounds = array<i64: 2, 1, 96>}, {pipeline_mode = #tpu.pipeline_mode<synchronous>, transform_indices = @transform_10, window_bounds = array<i64: 2, 32, 32>}, {pipeline_mode = #tpu.pipeline_mode<synchronous>, transform_indices = @transform_11, window_bounds = array<i64: 2, 1, 32>}, {pipeline_mode = #tpu.pipeline_mode<synchronous>, transform_indices = @transform_12, window_bounds = array<i64: 2, 32, 64>}, {pipeline_mode = #tpu.pipeline_mode<synchronous>, transform_indices = @transform_13, window_bounds = array<i64: 2, 1, 64>}, {pipeline_mode = #tpu.pipeline_mode<synchronous>, transform_indices = @transform_14, window_bounds = array<i64: 2, 64, 32>}, {pipeline_mode = #tpu.pipeline_mode<synchronous>, transform_indices = @transform_15, window_bounds = array<i64: 2, 1, 32>}, {transform_indices = @transform_16, window_bounds = array<i64: 8, 32>}]} {
    %c0 = arith.constant 0 : index
    %c0_0 = arith.constant 0 : index
    %0 = vector.load %arg1[%c0, %c0_0] : memref<8x768xf32, #tpu.memory_space<vmem>>, vector<8x768xf32>
    %c0_1 = arith.constant 0 : index
    %c0_2 = arith.constant 0 : index
    %1 = vector.load %arg2[%c0_1, %c0_2] : memref<768x544xf32, #tpu.memory_space<vmem>>, vector<768x544xf32>
    %cst = arith.constant dense<0.000000e+00> : vector<8x544xf32>
    %2 = tpu.matmul %0, %1, %cst {dimension_numbers = #tpu.dot_dimension_numbers<[1], [0], [0], [1], [0, 0, 1, 1], [], []>} : vector<8x768xf32>, vector<768x544xf32>, vector<8x544xf32> -> vector<8x544xf32>
    %c0_3 = arith.constant 0 : index
    %c0_4 = arith.constant 0 : index
    %3 = vector.load %arg3[%c0_3, %c0_4] : memref<1x544xf32, #tpu.memory_space<vmem>>, vector<1x544xf32>
    %4 = vector.broadcast %3 : vector<1x544xf32> to vector<8x544xf32>
    %5 = arith.addf %2, %4 : vector<8x544xf32>
    %6 = vector.extract_strided_slice %5 {offsets = [0, 0], sizes = [8, 32], strides = [1, 1]} : vector<8x544xf32> to vector<8x32xf32>
    %c0_5 = arith.constant 0 : index
    %c0_6 = arith.constant 0 : index
    %c0_7 = arith.constant 0 : index
    %7 = vector.load %arg18[%c0_5, %c0_6, %c0_7] : memref<17x8x32xf32, #tpu.memory_space<vmem>>, vector<1x8x32xf32>
    %8 = vector.shape_cast %7 : vector<1x8x32xf32> to vector<8x32xf32>
    %9 = vector.shape_cast %6 : vector<8x32xf32> to vector<1x8x32xf32>
    tpu.vector_store %arg18[%c0_5, %c0_6, %c0_7], %9 {strides = array<i32>} : memref<17x8x32xf32, #tpu.memory_space<vmem>>, vector<1x8x32xf32>,
    %10 = vector.extract_strided_slice %5 {offsets = [0, 32], sizes = [8, 32], strides = [1, 1]} : vector<8x544xf32> to vector<8x32xf32>
    %c1 = arith.constant 1 : index
    %c0_8 = arith.constant 0 : index
    %c0_9 = arith.constant 0 : index
    %11 = vector.load %arg18[%c1, %c0_8, %c0_9] : memref<17x8x32xf32, #tpu.memory_space<vmem>>, vector<1x8x32xf32>
    %12 = vector.shape_cast %11 : vector<1x8x32xf32> to vector<8x32xf32>
    %13 = vector.shape_cast %10 : vector<8x32xf32> to vector<1x8x32xf32>
    tpu.vector_store %arg18[%c1, %c0_8, %c0_9], %13 {strides = array<i32>} : memref<17x8x32xf32, #tpu.memory_space<vmem>>, vector<1x8x32xf32>,
    %14 = vector.extract_strided_slice %5 {offsets = [0, 64], sizes = [8, 32], strides = [1, 1]} : vector<8x544xf32> to vector<8x32xf32>
    %c2 = arith.constant 2 : index
    %c0_10 = arith.constant 0 : index
    %c0_11 = arith.constant 0 : index
    %15 = vector.load %arg18[%c2, %c0_10, %c0_11] : memref<17x8x32xf32, #tpu.memory_space<vmem>>, vector<1x8x32xf32>
    %16 = vector.shape_cast %15 : vector<1x8x32xf32> to vector<8x32xf32>
    %17 = vector.shape_cast %14 : vector<8x32xf32> to vector<1x8x32xf32>
    tpu.vector_store %arg18[%c2, %c0_10, %c0_11], %17 {strides = array<i32>} : memref<17x8x32xf32, #tpu.memory_space<vmem>>, vector<1x8x32xf32>,
    %18 = vector.extract_strided_slice %5 {offsets = [0, 96], sizes = [8, 32], strides = [1, 1]} : vector<8x544xf32> to vector<8x32xf32>
    %c3 = arith.constant 3 : index
    %c0_12 = arith.constant 0 : index
    %c0_13 = arith.constant 0 : index
    %19 = vector.load %arg18[%c3, %c0_12, %c0_13] : memref<17x8x32xf32, #tpu.memory_space<vmem>>, vector<1x8x32xf32>
    %20 = vector.shape_cast %19 : vector<1x8x32xf32> to vector<8x32xf32>
    %21 = vector.shape_cast %18 : vector<8x32xf32> to vector<1x8x32xf32>
    tpu.vector_store %arg18[%c3, %c0_12, %c0_13], %21 {strides = array<i32>} : memref<17x8x32xf32, #tpu.memory_space<vmem>>, vector<1x8x32xf32>,
    %22 = vector.extract_strided_slice %5 {offsets = [0, 128], sizes = [8, 32], strides = [1, 1]} : vector<8x544xf32> to vector<8x32xf32>
    %c4 = arith.constant 4 : index
    %c0_14 = arith.constant 0 : index
    %c0_15 = arith.constant 0 : index
    %23 = vector.load %arg18[%c4, %c0_14, %c0_15] : memref<17x8x32xf32, #tpu.memory_space<vmem>>, vector<1x8x32xf32>
    %24 = vector.shape_cast %23 : vector<1x8x32xf32> to vector<8x32xf32>
    %25 = vector.shape_cast %22 : vector<8x32xf32> to vector<1x8x32xf32>
    tpu.vector_store %arg18[%c4, %c0_14, %c0_15], %25 {strides = array<i32>} : memref<17x8x32xf32, #tpu.memory_space<vmem>>, vector<1x8x32xf32>,
    %26 = vector.extract_strided_slice %5 {offsets = [0, 160], sizes = [8, 32], strides = [1, 1]} : vector<8x544xf32> to vector<8x32xf32>
    %c5 = arith.constant 5 : index
    %c0_16 = arith.constant 0 : index
    %c0_17 = arith.constant 0 : index
    %27 = vector.load %arg18[%c5, %c0_16, %c0_17] : memref<17x8x32xf32, #tpu.memory_space<vmem>>, vector<1x8x32xf32>
    %28 = vector.shape_cast %27 : vector<1x8x32xf32> to vector<8x32xf32>
    %29 = vector.shape_cast %26 : vector<8x32xf32> to vector<1x8x32xf32>
    tpu.vector_store %arg18[%c5, %c0_16, %c0_17], %29 {strides = array<i32>} : memref<17x8x32xf32, #tpu.memory_space<vmem>>, vector<1x8x32xf32>,
    %30 = vector.extract_strided_slice %5 {offsets = [0, 192], sizes = [8, 32], strides = [1, 1]} : vector<8x544xf32> to vector<8x32xf32>
    %c6 = arith.constant 6 : index
    %c0_18 = arith.constant 0 : index
    %c0_19 = arith.constant 0 : index
    %31 = vector.load %arg18[%c6, %c0_18, %c0_19] : memref<17x8x32xf32, #tpu.memory_space<vmem>>, vector<1x8x32xf32>
    %32 = vector.shape_cast %31 : vector<1x8x32xf32> to vector<8x32xf32>
    %33 = vector.shape_cast %30 : vector<8x32xf32> to vector<1x8x32xf32>
    tpu.vector_store %arg18[%c6, %c0_18, %c0_19], %33 {strides = array<i32>} : memref<17x8x32xf32, #tpu.memory_space<vmem>>, vector<1x8x32xf32>,
    %34 = vector.extract_strided_slice %5 {offsets = [0, 224], sizes = [8, 32], strides = [1, 1]} : vector<8x544xf32> to vector<8x32xf32>
    %c7 = arith.constant 7 : index
    %c0_20 = arith.constant 0 : index
    %c0_21 = arith.constant 0 : index
    %35 = vector.load %arg18[%c7, %c0_20, %c0_21] : memref<17x8x32xf32, #tpu.memory_space<vmem>>, vector<1x8x32xf32>
    %36 = vector.shape_cast %35 : vector<1x8x32xf32> to vector<8x32xf32>
    %37 = vector.shape_cast %34 : vector<8x32xf32> to vector<1x8x32xf32>
    tpu.vector_store %arg18[%c7, %c0_20, %c0_21], %37 {strides = array<i32>} : memref<17x8x32xf32, #tpu.memory_space<vmem>>, vector<1x8x32xf32>,
    %38 = vector.extract_strided_slice %5 {offsets = [0, 256], sizes = [8, 32], strides = [1, 1]} : vector<8x544xf32> to vector<8x32xf32>
    %c8 = arith.constant 8 : index
    %c0_22 = arith.constant 0 : index
    %c0_23 = arith.constant 0 : index
    %39 = vector.load %arg18[%c8, %c0_22, %c0_23] : memref<17x8x32xf32, #tpu.memory_space<vmem>>, vector<1x8x32xf32>
    %40 = vector.shape_cast %39 : vector<1x8x32xf32> to vector<8x32xf32>
    %41 = vector.shape_cast %38 : vector<8x32xf32> to vector<1x8x32xf32>
    tpu.vector_store %arg18[%c8, %c0_22, %c0_23], %41 {strides = array<i32>} : memref<17x8x32xf32, #tpu.memory_space<vmem>>, vector<1x8x32xf32>,
    %42 = vector.extract_strided_slice %5 {offsets = [0, 288], sizes = [8, 32], strides = [1, 1]} : vector<8x544xf32> to vector<8x32xf32>
    %c9 = arith.constant 9 : index
    %c0_24 = arith.constant 0 : index
    %c0_25 = arith.constant 0 : index
    %43 = vector.load %arg18[%c9, %c0_24, %c0_25] : memref<17x8x32xf32, #tpu.memory_space<vmem>>, vector<1x8x32xf32>
    %44 = vector.shape_cast %43 : vector<1x8x32xf32> to vector<8x32xf32>
    %45 = vector.shape_cast %42 : vector<8x32xf32> to vector<1x8x32xf32>
    tpu.vector_store %arg18[%c9, %c0_24, %c0_25], %45 {strides = array<i32>} : memref<17x8x32xf32, #tpu.memory_space<vmem>>, vector<1x8x32xf32>,
    %46 = vector.extract_strided_slice %5 {offsets = [0, 320], sizes = [8, 32], strides = [1, 1]} : vector<8x544xf32> to vector<8x32xf32>
    %c10 = arith.constant 10 : index
    %c0_26 = arith.constant 0 : index
    %c0_27 = arith.constant 0 : index
    %47 = vector.load %arg18[%c10, %c0_26, %c0_27] : memref<17x8x32xf32, #tpu.memory_space<vmem>>, vector<1x8x32xf32>
    %48 = vector.shape_cast %47 : vector<1x8x32xf32> to vector<8x32xf32>
    %49 = vector.shape_cast %46 : vector<8x32xf32> to vector<1x8x32xf32>
    tpu.vector_store %arg18[%c10, %c0_26, %c0_27], %49 {strides = array<i32>} : memref<17x8x32xf32, #tpu.memory_space<vmem>>, vector<1x8x32xf32>,
    %50 = vector.extract_strided_slice %5 {offsets = [0, 352], sizes = [8, 32], strides = [1, 1]} : vector<8x544xf32> to vector<8x32xf32>
    %c11 = arith.constant 11 : index
    %c0_28 = arith.constant 0 : index
    %c0_29 = arith.constant 0 : index
    %51 = vector.load %arg18[%c11, %c0_28, %c0_29] : memref<17x8x32xf32, #tpu.memory_space<vmem>>, vector<1x8x32xf32>
    %52 = vector.shape_cast %51 : vector<1x8x32xf32> to vector<8x32xf32>
    %53 = vector.shape_cast %50 : vector<8x32xf32> to vector<1x8x32xf32>
    tpu.vector_store %arg18[%c11, %c0_28, %c0_29], %53 {strides = array<i32>} : memref<17x8x32xf32, #tpu.memory_space<vmem>>, vector<1x8x32xf32>,
    %54 = vector.extract_strided_slice %5 {offsets = [0, 384], sizes = [8, 32], strides = [1, 1]} : vector<8x544xf32> to vector<8x32xf32>
    %c12 = arith.constant 12 : index
    %c0_30 = arith.constant 0 : index
    %c0_31 = arith.constant 0 : index
    %55 = vector.load %arg18[%c12, %c0_30, %c0_31] : memref<17x8x32xf32, #tpu.memory_space<vmem>>, vector<1x8x32xf32>
    %56 = vector.shape_cast %55 : vector<1x8x32xf32> to vector<8x32xf32>
    %57 = vector.shape_cast %54 : vector<8x32xf32> to vector<1x8x32xf32>
    tpu.vector_store %arg18[%c12, %c0_30, %c0_31], %57 {strides = array<i32>} : memref<17x8x32xf32, #tpu.memory_space<vmem>>, vector<1x8x32xf32>,
    %58 = vector.extract_strided_slice %5 {offsets = [0, 416], sizes = [8, 32], strides = [1, 1]} : vector<8x544xf32> to vector<8x32xf32>
    %c13 = arith.constant 13 : index
    %c0_32 = arith.constant 0 : index
    %c0_33 = arith.constant 0 : index
    %59 = vector.load %arg18[%c13, %c0_32, %c0_33] : memref<17x8x32xf32, #tpu.memory_space<vmem>>, vector<1x8x32xf32>
    %60 = vector.shape_cast %59 : vector<1x8x32xf32> to vector<8x32xf32>
    %61 = vector.shape_cast %58 : vector<8x32xf32> to vector<1x8x32xf32>
    tpu.vector_store %arg18[%c13, %c0_32, %c0_33], %61 {strides = array<i32>} : memref<17x8x32xf32, #tpu.memory_space<vmem>>, vector<1x8x32xf32>,
    %62 = vector.extract_strided_slice %5 {offsets = [0, 448], sizes = [8, 32], strides = [1, 1]} : vector<8x544xf32> to vector<8x32xf32>
    %c14 = arith.constant 14 : index
    %c0_34 = arith.constant 0 : index
    %c0_35 = arith.constant 0 : index
    %63 = vector.load %arg18[%c14, %c0_34, %c0_35] : memref<17x8x32xf32, #tpu.memory_space<vmem>>, vector<1x8x32xf32>
    %64 = vector.shape_cast %63 : vector<1x8x32xf32> to vector<8x32xf32>
    %65 = vector.shape_cast %62 : vector<8x32xf32> to vector<1x8x32xf32>
    tpu.vector_store %arg18[%c14, %c0_34, %c0_35], %65 {strides = array<i32>} : memref<17x8x32xf32, #tpu.memory_space<vmem>>, vector<1x8x32xf32>,
    %66 = vector.extract_strided_slice %5 {offsets = [0, 480], sizes = [8, 32], strides = [1, 1]} : vector<8x544xf32> to vector<8x32xf32>
    %c15 = arith.constant 15 : index
    %c0_36 = arith.constant 0 : index
    %c0_37 = arith.constant 0 : index
    %67 = vector.load %arg18[%c15, %c0_36, %c0_37] : memref<17x8x32xf32, #tpu.memory_space<vmem>>, vector<1x8x32xf32>
    %68 = vector.shape_cast %67 : vector<1x8x32xf32> to vector<8x32xf32>
    %69 = vector.shape_cast %66 : vector<8x32xf32> to vector<1x8x32xf32>
    tpu.vector_store %arg18[%c15, %c0_36, %c0_37], %69 {strides = array<i32>} : memref<17x8x32xf32, #tpu.memory_space<vmem>>, vector<1x8x32xf32>,
    %70 = vector.extract_strided_slice %5 {offsets = [0, 512], sizes = [8, 32], strides = [1, 1]} : vector<8x544xf32> to vector<8x32xf32>
    %c16 = arith.constant 16 : index
    %c0_38 = arith.constant 0 : index
    %c0_39 = arith.constant 0 : index
    %71 = vector.load %arg18[%c16, %c0_38, %c0_39] : memref<17x8x32xf32, #tpu.memory_space<vmem>>, vector<1x8x32xf32>
    %72 = vector.shape_cast %71 : vector<1x8x32xf32> to vector<8x32xf32>
    %73 = vector.shape_cast %70 : vector<8x32xf32> to vector<1x8x32xf32>
    tpu.vector_store %arg18[%c16, %c0_38, %c0_39], %73 {strides = array<i32>} : memref<17x8x32xf32, #tpu.memory_space<vmem>>, vector<1x8x32xf32>,
    %c0_40 = arith.constant 0 : index
    %c0_41 = arith.constant 0 : index
    %c0_42 = arith.constant 0 : index
    %74 = vector.load %arg18[%c0_40, %c0_41, %c0_42] : memref<17x8x32xf32, #tpu.memory_space<vmem>>, vector<17x8x32xf32>
    %75 = vector.shape_cast %74 : vector<17x8x32xf32> to vector<136x32xf32>
    %c0_43 = arith.constant 0 : index
    %c0_44 = arith.constant 0 : index
    %76 = vector.load %arg5[%c0_43, %c0_44] : memref<2x32xf32, #tpu.memory_space<vmem>>, vector<2x32xf32>
    %cst_45 = arith.constant dense<0.000000e+00> : vector<136xf32>
    %77 = vector.multi_reduction <add>, %75, %cst_45 [1] : vector<136x32xf32> to vector<136xf32>
    %78 = vector.shape_cast %77 : vector<136xf32> to vector<136x1xf32>
    %cst_46 = arith.constant 3.200000e+01 : f32
    %79 = vector.broadcast %cst_46 : f32 to vector<136x1xf32>
    %80 = arith.divf %78, %79 : vector<136x1xf32>
    %81 = vector.broadcast %80 : vector<136x1xf32> to vector<136x32xf32>
    %82 = arith.subf %75, %81 : vector<136x32xf32>
    %83 = arith.mulf %82, %82 : vector<136x32xf32>
    %cst_47 = arith.constant dense<0.000000e+00> : vector<136xf32>
    %84 = vector.multi_reduction <add>, %83, %cst_47 [1] : vector<136x32xf32> to vector<136xf32>
    %85 = vector.shape_cast %84 : vector<136xf32> to vector<136x1xf32>
    %cst_48 = arith.constant 3.200000e+01 : f32
    %86 = vector.broadcast %cst_48 : f32 to vector<136x1xf32>
    %87 = arith.divf %85, %86 : vector<136x1xf32>
    %88 = vector.broadcast %80 : vector<136x1xf32> to vector<136x32xf32>
    %89 = arith.subf %75, %88 : vector<136x32xf32>
    %cst_49 = arith.constant 9.99999974E-6 : f32
    %90 = vector.broadcast %cst_49 : f32 to vector<136x1xf32>
    %91 = arith.addf %87, %90 : vector<136x1xf32>
    %92 = math.rsqrt %91 : vector<136x1xf32>
    %93 = vector.broadcast %92 : vector<136x1xf32> to vector<136x32xf32>
    %94 = arith.mulf %89, %93 : vector<136x32xf32>
    %95 = vector.extract_strided_slice %76 {offsets = [0, 0], sizes = [1, 32], strides = [1, 1]} : vector<2x32xf32> to vector<1x32xf32>
    %96 = vector.broadcast %95 : vector<1x32xf32> to vector<136x32xf32>
    %97 = arith.mulf %94, %96 : vector<136x32xf32>
    %98 = vector.extract_strided_slice %76 {offsets = [1, 0], sizes = [1, 32], strides = [1, 1]} : vector<2x32xf32> to vector<1x32xf32>
    %99 = vector.broadcast %98 : vector<1x32xf32> to vector<136x32xf32>
    %100 = arith.addf %97, %99 : vector<136x32xf32>
    %c0_50 = arith.constant 0 : index
    %c0_51 = arith.constant 0 : index
    %101 = vector.load %arg4[%c0_50, %c0_51] : memref<136x136xf32, #tpu.memory_space<vmem>>, vector<136x136xf32>
    %c0_i32 = arith.constant 0 : i32
    %c2_i32 = arith.constant 2 : i32
    %102 = arith.addi %c0_i32, %c2_i32 : i32
    %c1_i32 = arith.constant 1 : i32
    %103 = scf.for %arg19 = %c0_i32 to %102 step %c1_i32 iter_args(%arg20 = %100) -> (vector<136x32xf32>)  : i32 {
      %131 = arith.index_cast %arg19 : i32 to index
      %c0_62 = arith.constant 0 : index
      %c0_63 = arith.constant 0 : index
      %132 = vector.load %arg7[%131, %c0_62, %c0_63] : memref<2x2x32xf32, #tpu.memory_space<vmem>>, vector<1x2x32xf32>
      %133 = vector.shape_cast %132 : vector<1x2x32xf32> to vector<2x32xf32>
      %cst_64 = arith.constant dense<0.000000e+00> : vector<136xf32>
      %134 = vector.multi_reduction <add>, %arg20, %cst_64 [1] : vector<136x32xf32> to vector<136xf32>
      %135 = vector.shape_cast %134 : vector<136xf32> to vector<136x1xf32>
      %cst_65 = arith.constant 3.200000e+01 : f32
      %136 = vector.broadcast %cst_65 : f32 to vector<136x1xf32>
      %137 = arith.divf %135, %136 : vector<136x1xf32>
      %138 = vector.broadcast %137 : vector<136x1xf32> to vector<136x32xf32>
      %139 = arith.subf %arg20, %138 : vector<136x32xf32>
      %140 = arith.mulf %139, %139 : vector<136x32xf32>
      %cst_66 = arith.constant dense<0.000000e+00> : vector<136xf32>
      %141 = vector.multi_reduction <add>, %140, %cst_66 [1] : vector<136x32xf32> to vector<136xf32>
      %142 = vector.shape_cast %141 : vector<136xf32> to vector<136x1xf32>
      %cst_67 = arith.constant 3.200000e+01 : f32
      %143 = vector.broadcast %cst_67 : f32 to vector<136x1xf32>
      %144 = arith.divf %142, %143 : vector<136x1xf32>
      %145 = vector.broadcast %137 : vector<136x1xf32> to vector<136x32xf32>
      %146 = arith.subf %arg20, %145 : vector<136x32xf32>
      %cst_68 = arith.constant 9.99999974E-6 : f32
      %147 = vector.broadcast %cst_68 : f32 to vector<136x1xf32>
      %148 = arith.addf %144, %147 : vector<136x1xf32>
      %149 = math.rsqrt %148 : vector<136x1xf32>
      %150 = vector.broadcast %149 : vector<136x1xf32> to vector<136x32xf32>
      %151 = arith.mulf %146, %150 : vector<136x32xf32>
      %152 = vector.extract_strided_slice %133 {offsets = [0, 0], sizes = [1, 32], strides = [1, 1]} : vector<2x32xf32> to vector<1x32xf32>
      %153 = vector.broadcast %152 : vector<1x32xf32> to vector<136x32xf32>
      %154 = arith.mulf %151, %153 : vector<136x32xf32>
      %155 = vector.extract_strided_slice %133 {offsets = [1, 0], sizes = [1, 32], strides = [1, 1]} : vector<2x32xf32> to vector<1x32xf32>
      %156 = vector.broadcast %155 : vector<1x32xf32> to vector<136x32xf32>
      %157 = arith.addf %154, %156 : vector<136x32xf32>
      %158 = arith.index_cast %arg19 : i32 to index
      %c0_69 = arith.constant 0 : index
      %c0_70 = arith.constant 0 : index
      %159 = vector.load %arg9[%158, %c0_69, %c0_70] : memref<2x32x96xf32, #tpu.memory_space<vmem>>, vector<1x32x96xf32>
      %160 = vector.shape_cast %159 : vector<1x32x96xf32> to vector<32x96xf32>
      %cst_71 = arith.constant dense<0.000000e+00> : vector<136x96xf32>
      %161 = tpu.matmul %157, %160, %cst_71 {dimension_numbers = #tpu.dot_dimension_numbers<[1], [0], [0], [1], [0, 0, 1, 1], [], []>} : vector<136x32xf32>, vector<32x96xf32>, vector<136x96xf32> -> vector<136x96xf32>
      %162 = arith.index_cast %arg19 : i32 to index
      %c0_72 = arith.constant 0 : index
      %c0_73 = arith.constant 0 : index
      %163 = vector.load %arg10[%162, %c0_72, %c0_73] : memref<2x1x96xf32, #tpu.memory_space<vmem>>, vector<1x1x96xf32>
      %164 = vector.shape_cast %163 : vector<1x1x96xf32> to vector<1x96xf32>
      %165 = vector.broadcast %164 : vector<1x96xf32> to vector<136x96xf32>
      %166 = arith.addf %161, %165 : vector<136x96xf32>
      %167 = arith.index_cast %arg19 : i32 to index
      %c0_74 = arith.constant 0 : index
      %c0_75 = arith.constant 0 : index
      %168 = vector.load %arg11[%167, %c0_74, %c0_75] : memref<2x32x32xf32, #tpu.memory_space<vmem>>, vector<1x32x32xf32>
      %169 = vector.shape_cast %168 : vector<1x32x32xf32> to vector<32x32xf32>
      %170 = vector.extract_strided_slice %166 {offsets = [0, 0], sizes = [136, 8], strides = [1, 1]} : vector<136x96xf32> to vector<136x8xf32>
      %171 = vector.extract_strided_slice %166 {offsets = [0, 32], sizes = [136, 8], strides = [1, 1]} : vector<136x96xf32> to vector<136x8xf32>
      %172 = vector.extract_strided_slice %166 {offsets = [0, 64], sizes = [136, 8], strides = [1, 1]} : vector<136x96xf32> to vector<136x8xf32>
      %cst_76 = arith.constant dense<0.000000e+00> : vector<136x136xf32>
      %173 = tpu.matmul %170, %171, %cst_76 {dimension_numbers = #tpu.dot_dimension_numbers<[1], [1], [0], [0], [0, 0, 1, 0], [], []>} : vector<136x8xf32>, vector<136x8xf32>, vector<136x136xf32> -> vector<136x136xf32>
      %174 = arith.addf %173, %101 : vector<136x136xf32>
      %cst_77 = arith.constant dense<0xFF800000> : vector<136xf32>
      %175 = vector.multi_reduction <maximumf>, %174, %cst_77 [1] : vector<136x136xf32> to vector<136xf32>
      %176 = vector.shape_cast %175 : vector<136xf32> to vector<136x1xf32>
      %177 = vector.broadcast %176 : vector<136x1xf32> to vector<136x136xf32>
      %178 = arith.subf %174, %177 : vector<136x136xf32>
      %179 = math.exp %178 : vector<136x136xf32>
      %cst_78 = arith.constant dense<0.000000e+00> : vector<136xf32>
      %180 = vector.multi_reduction <add>, %179, %cst_78 [1] : vector<136x136xf32> to vector<136xf32>
      %181 = vector.shape_cast %180 : vector<136xf32> to vector<136x1xf32>
      %182 = tpu.reciprocal %181 {approx = true} : vector<136x1xf32> -> vector<136x1xf32>
      %183 = vector.broadcast %182 : vector<136x1xf32> to vector<136x136xf32>
      %184 = arith.mulf %179, %183 : vector<136x136xf32>
      %cst_79 = arith.constant dense<0.000000e+00> : vector<136x8xf32>
      %185 = tpu.matmul %184, %172, %cst_79 {dimension_numbers = #tpu.dot_dimension_numbers<[1], [0], [0], [1], [0, 0, 1, 1], [], []>} : vector<136x136xf32>, vector<136x8xf32>, vector<136x8xf32> -> vector<136x8xf32>
      %186 = vector.extract_strided_slice %169 {offsets = [0, 0], sizes = [8, 32], strides = [1, 1]} : vector<32x32xf32> to vector<8x32xf32>
      %cst_80 = arith.constant dense<0.000000e+00> : vector<136x32xf32>
      %187 = tpu.matmul %185, %186, %cst_80 {dimension_numbers = #tpu.dot_dimension_numbers<[1], [0], [0], [1], [0, 0, 1, 1], [], []>} : vector<136x8xf32>, vector<8x32xf32>, vector<136x32xf32> -> vector<136x32xf32>
      %188 = vector.extract_strided_slice %166 {offsets = [0, 8], sizes = [136, 8], strides = [1, 1]} : vector<136x96xf32> to vector<136x8xf32>
      %189 = vector.extract_strided_slice %166 {offsets = [0, 40], sizes = [136, 8], strides = [1, 1]} : vector<136x96xf32> to vector<136x8xf32>
      %190 = vector.extract_strided_slice %166 {offsets = [0, 72], sizes = [136, 8], strides = [1, 1]} : vector<136x96xf32> to vector<136x8xf32>
      %cst_81 = arith.constant dense<0.000000e+00> : vector<136x136xf32>
      %191 = tpu.matmul %188, %189, %cst_81 {dimension_numbers = #tpu.dot_dimension_numbers<[1], [1], [0], [0], [0, 0, 1, 0], [], []>} : vector<136x8xf32>, vector<136x8xf32>, vector<136x136xf32> -> vector<136x136xf32>
      %192 = arith.addf %191, %101 : vector<136x136xf32>
      %cst_82 = arith.constant dense<0xFF800000> : vector<136xf32>
      %193 = vector.multi_reduction <maximumf>, %192, %cst_82 [1] : vector<136x136xf32> to vector<136xf32>
      %194 = vector.shape_cast %193 : vector<136xf32> to vector<136x1xf32>
      %195 = vector.broadcast %194 : vector<136x1xf32> to vector<136x136xf32>
      %196 = arith.subf %192, %195 : vector<136x136xf32>
      %197 = math.exp %196 : vector<136x136xf32>
      %cst_83 = arith.constant dense<0.000000e+00> : vector<136xf32>
      %198 = vector.multi_reduction <add>, %197, %cst_83 [1] : vector<136x136xf32> to vector<136xf32>
      %199 = vector.shape_cast %198 : vector<136xf32> to vector<136x1xf32>
      %200 = tpu.reciprocal %199 {approx = true} : vector<136x1xf32> -> vector<136x1xf32>
      %201 = vector.broadcast %200 : vector<136x1xf32> to vector<136x136xf32>
      %202 = arith.mulf %197, %201 : vector<136x136xf32>
      %cst_84 = arith.constant dense<0.000000e+00> : vector<136x8xf32>
      %203 = tpu.matmul %202, %190, %cst_84 {dimension_numbers = #tpu.dot_dimension_numbers<[1], [0], [0], [1], [0, 0, 1, 1], [], []>} : vector<136x136xf32>, vector<136x8xf32>, vector<136x8xf32> -> vector<136x8xf32>
      %204 = vector.extract_strided_slice %169 {offsets = [8, 0], sizes = [8, 32], strides = [1, 1]} : vector<32x32xf32> to vector<8x32xf32>
      %cst_85 = arith.constant dense<0.000000e+00> : vector<136x32xf32>
      %205 = tpu.matmul %203, %204, %cst_85 {dimension_numbers = #tpu.dot_dimension_numbers<[1], [0], [0], [1], [0, 0, 1, 1], [], []>} : vector<136x8xf32>, vector<8x32xf32>, vector<136x32xf32> -> vector<136x32xf32>
      %206 = arith.addf %187, %205 : vector<136x32xf32>
      %207 = vector.extract_strided_slice %166 {offsets = [0, 16], sizes = [136, 8], strides = [1, 1]} : vector<136x96xf32> to vector<136x8xf32>
      %208 = vector.extract_strided_slice %166 {offsets = [0, 48], sizes = [136, 8], strides = [1, 1]} : vector<136x96xf32> to vector<136x8xf32>
      %209 = vector.extract_strided_slice %166 {offsets = [0, 80], sizes = [136, 8], strides = [1, 1]} : vector<136x96xf32> to vector<136x8xf32>
      %cst_86 = arith.constant dense<0.000000e+00> : vector<136x136xf32>
      %210 = tpu.matmul %207, %208, %cst_86 {dimension_numbers = #tpu.dot_dimension_numbers<[1], [1], [0], [0], [0, 0, 1, 0], [], []>} : vector<136x8xf32>, vector<136x8xf32>, vector<136x136xf32> -> vector<136x136xf32>
      %211 = arith.addf %210, %101 : vector<136x136xf32>
      %cst_87 = arith.constant dense<0xFF800000> : vector<136xf32>
      %212 = vector.multi_reduction <maximumf>, %211, %cst_87 [1] : vector<136x136xf32> to vector<136xf32>
      %213 = vector.shape_cast %212 : vector<136xf32> to vector<136x1xf32>
      %214 = vector.broadcast %213 : vector<136x1xf32> to vector<136x136xf32>
      %215 = arith.subf %211, %214 : vector<136x136xf32>
      %216 = math.exp %215 : vector<136x136xf32>
      %cst_88 = arith.constant dense<0.000000e+00> : vector<136xf32>
      %217 = vector.multi_reduction <add>, %216, %cst_88 [1] : vector<136x136xf32> to vector<136xf32>
      %218 = vector.shape_cast %217 : vector<136xf32> to vector<136x1xf32>
      %219 = tpu.reciprocal %218 {approx = true} : vector<136x1xf32> -> vector<136x1xf32>
      %220 = vector.broadcast %219 : vector<136x1xf32> to vector<136x136xf32>
      %221 = arith.mulf %216, %220 : vector<136x136xf32>
      %cst_89 = arith.constant dense<0.000000e+00> : vector<136x8xf32>
      %222 = tpu.matmul %221, %209, %cst_89 {dimension_numbers = #tpu.dot_dimension_numbers<[1], [0], [0], [1], [0, 0, 1, 1], [], []>} : vector<136x136xf32>, vector<136x8xf32>, vector<136x8xf32> -> vector<136x8xf32>
      %223 = vector.extract_strided_slice %169 {offsets = [16, 0], sizes = [8, 32], strides = [1, 1]} : vector<32x32xf32> to vector<8x32xf32>
      %cst_90 = arith.constant dense<0.000000e+00> : vector<136x32xf32>
      %224 = tpu.matmul %222, %223, %cst_90 {dimension_numbers = #tpu.dot_dimension_numbers<[1], [0], [0], [1], [0, 0, 1, 1], [], []>} : vector<136x8xf32>, vector<8x32xf32>, vector<136x32xf32> -> vector<136x32xf32>
      %225 = arith.addf %206, %224 : vector<136x32xf32>
      %226 = vector.extract_strided_slice %166 {offsets = [0, 24], sizes = [136, 8], strides = [1, 1]} : vector<136x96xf32> to vector<136x8xf32>
      %227 = vector.extract_strided_slice %166 {offsets = [0, 56], sizes = [136, 8], strides = [1, 1]} : vector<136x96xf32> to vector<136x8xf32>
      %228 = vector.extract_strided_slice %166 {offsets = [0, 88], sizes = [136, 8], strides = [1, 1]} : vector<136x96xf32> to vector<136x8xf32>
      %cst_91 = arith.constant dense<0.000000e+00> : vector<136x136xf32>
      %229 = tpu.matmul %226, %227, %cst_91 {dimension_numbers = #tpu.dot_dimension_numbers<[1], [1], [0], [0], [0, 0, 1, 0], [], []>} : vector<136x8xf32>, vector<136x8xf32>, vector<136x136xf32> -> vector<136x136xf32>
      %230 = arith.addf %229, %101 : vector<136x136xf32>
      %cst_92 = arith.constant dense<0xFF800000> : vector<136xf32>
      %231 = vector.multi_reduction <maximumf>, %230, %cst_92 [1] : vector<136x136xf32> to vector<136xf32>
      %232 = vector.shape_cast %231 : vector<136xf32> to vector<136x1xf32>
      %233 = vector.broadcast %232 : vector<136x1xf32> to vector<136x136xf32>
      %234 = arith.subf %230, %233 : vector<136x136xf32>
      %235 = math.exp %234 : vector<136x136xf32>
      %cst_93 = arith.constant dense<0.000000e+00> : vector<136xf32>
      %236 = vector.multi_reduction <add>, %235, %cst_93 [1] : vector<136x136xf32> to vector<136xf32>
      %237 = vector.shape_cast %236 : vector<136xf32> to vector<136x1xf32>
      %238 = tpu.reciprocal %237 {approx = true} : vector<136x1xf32> -> vector<136x1xf32>
      %239 = vector.broadcast %238 : vector<136x1xf32> to vector<136x136xf32>
      %240 = arith.mulf %235, %239 : vector<136x136xf32>
      %cst_94 = arith.constant dense<0.000000e+00> : vector<136x8xf32>
      %241 = tpu.matmul %240, %228, %cst_94 {dimension_numbers = #tpu.dot_dimension_numbers<[1], [0], [0], [1], [0, 0, 1, 1], [], []>} : vector<136x136xf32>, vector<136x8xf32>, vector<136x8xf32> -> vector<136x8xf32>
      %242 = vector.extract_strided_slice %169 {offsets = [24, 0], sizes = [8, 32], strides = [1, 1]} : vector<32x32xf32> to vector<8x32xf32>
      %cst_95 = arith.constant dense<0.000000e+00> : vector<136x32xf32>
      %243 = tpu.matmul %241, %242, %cst_95 {dimension_numbers = #tpu.dot_dimension_numbers<[1], [0], [0], [1], [0, 0, 1, 1], [], []>} : vector<136x8xf32>, vector<8x32xf32>, vector<136x32xf32> -> vector<136x32xf32>
      %244 = arith.addf %225, %243 : vector<136x32xf32>
      %245 = arith.addf %arg20, %244 : vector<136x32xf32>
      %246 = arith.index_cast %arg19 : i32 to index
      %c0_96 = arith.constant 0 : index
      %c0_97 = arith.constant 0 : index
      %247 = vector.load %arg12[%246, %c0_96, %c0_97] : memref<2x1x32xf32, #tpu.memory_space<vmem>>, vector<1x1x32xf32>
      %248 = vector.shape_cast %247 : vector<1x1x32xf32> to vector<1x32xf32>
      %249 = vector.broadcast %248 : vector<1x32xf32> to vector<136x32xf32>
      %250 = arith.addf %245, %249 : vector<136x32xf32>
      %251 = arith.index_cast %arg19 : i32 to index
      %c0_98 = arith.constant 0 : index
      %c0_99 = arith.constant 0 : index
      %252 = vector.load %arg8[%251, %c0_98, %c0_99] : memref<2x2x32xf32, #tpu.memory_space<vmem>>, vector<1x2x32xf32>
      %253 = vector.shape_cast %252 : vector<1x2x32xf32> to vector<2x32xf32>
      %cst_100 = arith.constant dense<0.000000e+00> : vector<136xf32>
      %254 = vector.multi_reduction <add>, %250, %cst_100 [1] : vector<136x32xf32> to vector<136xf32>
      %255 = vector.shape_cast %254 : vector<136xf32> to vector<136x1xf32>
      %cst_101 = arith.constant 3.200000e+01 : f32
      %256 = vector.broadcast %cst_101 : f32 to vector<136x1xf32>
      %257 = arith.divf %255, %256 : vector<136x1xf32>
      %258 = vector.broadcast %257 : vector<136x1xf32> to vector<136x32xf32>
      %259 = arith.subf %250, %258 : vector<136x32xf32>
      %260 = arith.mulf %259, %259 : vector<136x32xf32>
      %cst_102 = arith.constant dense<0.000000e+00> : vector<136xf32>
      %261 = vector.multi_reduction <add>, %260, %cst_102 [1] : vector<136x32xf32> to vector<136xf32>
      %262 = vector.shape_cast %261 : vector<136xf32> to vector<136x1xf32>
      %cst_103 = arith.constant 3.200000e+01 : f32
      %263 = vector.broadcast %cst_103 : f32 to vector<136x1xf32>
      %264 = arith.divf %262, %263 : vector<136x1xf32>
      %265 = vector.broadcast %257 : vector<136x1xf32> to vector<136x32xf32>
      %266 = arith.subf %250, %265 : vector<136x32xf32>
      %cst_104 = arith.constant 9.99999974E-6 : f32
      %267 = vector.broadcast %cst_104 : f32 to vector<136x1xf32>
      %268 = arith.addf %264, %267 : vector<136x1xf32>
      %269 = math.rsqrt %268 : vector<136x1xf32>
      %270 = vector.broadcast %269 : vector<136x1xf32> to vector<136x32xf32>
      %271 = arith.mulf %266, %270 : vector<136x32xf32>
      %272 = vector.extract_strided_slice %253 {offsets = [0, 0], sizes = [1, 32], strides = [1, 1]} : vector<2x32xf32> to vector<1x32xf32>
      %273 = vector.broadcast %272 : vector<1x32xf32> to vector<136x32xf32>
      %274 = arith.mulf %271, %273 : vector<136x32xf32>
      %275 = vector.extract_strided_slice %253 {offsets = [1, 0], sizes = [1, 32], strides = [1, 1]} : vector<2x32xf32> to vector<1x32xf32>
      %276 = vector.broadcast %275 : vector<1x32xf32> to vector<136x32xf32>
      %277 = arith.addf %274, %276 : vector<136x32xf32>
      %278 = arith.index_cast %arg19 : i32 to index
      %c0_105 = arith.constant 0 : index
      %c0_106 = arith.constant 0 : index
      %279 = vector.load %arg13[%278, %c0_105, %c0_106] : memref<2x32x64xf32, #tpu.memory_space<vmem>>, vector<1x32x64xf32>
      %280 = vector.shape_cast %279 : vector<1x32x64xf32> to vector<32x64xf32>
      %cst_107 = arith.constant dense<0.000000e+00> : vector<136x64xf32>
      %281 = tpu.matmul %277, %280, %cst_107 {dimension_numbers = #tpu.dot_dimension_numbers<[1], [0], [0], [1], [0, 0, 1, 1], [], []>} : vector<136x32xf32>, vector<32x64xf32>, vector<136x64xf32> -> vector<136x64xf32>
      %282 = arith.index_cast %arg19 : i32 to index
      %c0_108 = arith.constant 0 : index
      %c0_109 = arith.constant 0 : index
      %283 = vector.load %arg14[%282, %c0_108, %c0_109] : memref<2x1x64xf32, #tpu.memory_space<vmem>>, vector<1x1x64xf32>
      %284 = vector.shape_cast %283 : vector<1x1x64xf32> to vector<1x64xf32>
      %285 = vector.broadcast %284 : vector<1x64xf32> to vector<136x64xf32>
      %286 = arith.addf %281, %285 : vector<136x64xf32>
      %cst_110 = arith.constant 1.702000e+00 : f32
      %287 = vector.broadcast %cst_110 : f32 to vector<136x64xf32>
      %288 = arith.mulf %287, %286 : vector<136x64xf32>
      %289 = arith.negf %288 : vector<136x64xf32>
      %290 = math.exp %289 : vector<136x64xf32>
      %cst_111 = arith.constant 1.000000e+00 : f32
      %291 = vector.broadcast %cst_111 : f32 to vector<136x64xf32>
      %292 = arith.addf %291, %290 : vector<136x64xf32>
      %293 = arith.divf %291, %292 : vector<136x64xf32>
      %294 = arith.mulf %286, %293 : vector<136x64xf32>
      %295 = arith.index_cast %arg19 : i32 to index
      %c0_112 = arith.constant 0 : index
      %c0_113 = arith.constant 0 : index
      %296 = vector.load %arg15[%295, %c0_112, %c0_113] : memref<2x64x32xf32, #tpu.memory_space<vmem>>, vector<1x64x32xf32>
      %297 = vector.shape_cast %296 : vector<1x64x32xf32> to vector<64x32xf32>
      %cst_114 = arith.constant dense<0.000000e+00> : vector<136x32xf32>
      %298 = tpu.matmul %294, %297, %cst_114 {dimension_numbers = #tpu.dot_dimension_numbers<[1], [0], [0], [1], [0, 0, 1, 1], [], []>} : vector<136x64xf32>, vector<64x32xf32>, vector<136x32xf32> -> vector<136x32xf32>
      %299 = arith.addf %250, %298 : vector<136x32xf32>
      %300 = arith.index_cast %arg19 : i32 to index
      %c0_115 = arith.constant 0 : index
      %c0_116 = arith.constant 0 : index
      %301 = vector.load %arg16[%300, %c0_115, %c0_116] : memref<2x1x32xf32, #tpu.memory_space<vmem>>, vector<1x1x32xf32>
      %302 = vector.shape_cast %301 : vector<1x1x32xf32> to vector<1x32xf32>
      %303 = vector.broadcast %302 : vector<1x32xf32> to vector<136x32xf32>
      %304 = arith.addf %299, %303 : vector<136x32xf32>
      scf.yield %304 : vector<136x32xf32>
    }
    %c2_i32_52 = arith.constant 2 : i32
    %104 = vector.extract_strided_slice %103 {offsets = [0, 0], sizes = [8, 32], strides = [1, 1]} : vector<136x32xf32> to vector<8x32xf32>
    %c0_53 = arith.constant 0 : index
    %c0_54 = arith.constant 0 : index
    %105 = vector.load %arg6[%c0_53, %c0_54] : memref<2x32xf32, #tpu.memory_space<vmem>>, vector<2x32xf32>
    %cst_55 = arith.constant dense<0.000000e+00> : vector<8xf32>
    %106 = vector.multi_reduction <add>, %104, %cst_55 [1] : vector<8x32xf32> to vector<8xf32>
    %107 = vector.shape_cast %106 : vector<8xf32> to vector<8x1xf32>
    %cst_56 = arith.constant 3.200000e+01 : f32
    %108 = vector.broadcast %cst_56 : f32 to vector<8x1xf32>
    %109 = arith.divf %107, %108 : vector<8x1xf32>
    %110 = vector.broadcast %109 : vector<8x1xf32> to vector<8x32xf32>
    %111 = arith.subf %104, %110 : vector<8x32xf32>
    %112 = arith.mulf %111, %111 : vector<8x32xf32>
    %cst_57 = arith.constant dense<0.000000e+00> : vector<8xf32>
    %113 = vector.multi_reduction <add>, %112, %cst_57 [1] : vector<8x32xf32> to vector<8xf32>
    %114 = vector.shape_cast %113 : vector<8xf32> to vector<8x1xf32>
    %cst_58 = arith.constant 3.200000e+01 : f32
    %115 = vector.broadcast %cst_58 : f32 to vector<8x1xf32>
    %116 = arith.divf %114, %115 : vector<8x1xf32>
    %117 = vector.broadcast %109 : vector<8x1xf32> to vector<8x32xf32>
    %118 = arith.subf %104, %117 : vector<8x32xf32>
    %cst_59 = arith.constant 9.99999974E-6 : f32
    %119 = vector.broadcast %cst_59 : f32 to vector<8x1xf32>
    %120 = arith.addf %116, %119 : vector<8x1xf32>
    %121 = math.rsqrt %120 : vector<8x1xf32>
    %122 = vector.broadcast %121 : vector<8x1xf32> to vector<8x32xf32>
    %123 = arith.mulf %118, %122 : vector<8x32xf32>
    %124 = vector.extract_strided_slice %105 {offsets = [0, 0], sizes = [1, 32], strides = [1, 1]} : vector<2x32xf32> to vector<1x32xf32>
    %125 = vector.broadcast %124 : vector<1x32xf32> to vector<8x32xf32>
    %126 = arith.mulf %123, %125 : vector<8x32xf32>
    %127 = vector.extract_strided_slice %105 {offsets = [1, 0], sizes = [1, 32], strides = [1, 1]} : vector<2x32xf32> to vector<1x32xf32>
    %128 = vector.broadcast %127 : vector<1x32xf32> to vector<8x32xf32>
    %129 = arith.addf %126, %128 : vector<8x32xf32>
    %c0_60 = arith.constant 0 : index
    %c0_61 = arith.constant 0 : index
    %130 = vector.load %arg17[%c0_60, %c0_61] : memref<8x32xf32, #tpu.memory_space<vmem>>, vector<8x32xf32>
    tpu.vector_store %arg17[%c0_60, %c0_61], %129 {strides = array<i32>} : memref<8x32xf32, #tpu.memory_space<vmem>>, vector<8x32xf32>,
    return
  }
  func.func @transform_0(%arg0: i32) -> (i32, i32) {
    %c0_i32 = arith.constant 0 : i32
    %c0_i32_0 = arith.constant 0 : i32
    return %arg0, %c0_i32 : i32, i32
  }
  func.func @transform_1(%arg0: i32) -> (i32, i32) {
    %c0_i32 = arith.constant 0 : i32
    %c0_i32_0 = arith.constant 0 : i32
    %c0_i32_1 = arith.constant 0 : i32
    return %c0_i32, %c0_i32_0 : i32, i32
  }
  func.func @transform_2(%arg0: i32) -> (i32, i32) {
    %c0_i32 = arith.constant 0 : i32
    %c0_i32_0 = arith.constant 0 : i32
    %c0_i32_1 = arith.constant 0 : i32
    return %c0_i32, %c0_i32_0 : i32, i32
  }
  func.func @transform_3(%arg0: i32) -> (i32, i32) {
    %c0_i32 = arith.constant 0 : i32
    %c0_i32_0 = arith.constant 0 : i32
    %c0_i32_1 = arith.constant 0 : i32
    return %c0_i32, %c0_i32_0 : i32, i32
  }
  func.func @transform_4(%arg0: i32) -> (i32, i32) {
    %c0_i32 = arith.constant 0 : i32
    %c0_i32_0 = arith.constant 0 : i32
    %c0_i32_1 = arith.constant 0 : i32
    return %c0_i32, %c0_i32_0 : i32, i32
  }
  func.func @transform_5(%arg0: i32) -> (i32, i32) {
    %c0_i32 = arith.constant 0 : i32
    %c0_i32_0 = arith.constant 0 : i32
    %c0_i32_1 = arith.constant 0 : i32
    return %c0_i32, %c0_i32_0 : i32, i32
  }
  func.func @transform_6(%arg0: i32) -> (i32, i32, i32) {
    %c0_i32 = arith.constant 0 : i32
    %c0_i32_0 = arith.constant 0 : i32
    %c0_i32_1 = arith.constant 0 : i32
    %c0_i32_2 = arith.constant 0 : i32
    return %c0_i32, %c0_i32_0, %c0_i32_1 : i32, i32, i32
  }
  func.func @transform_7(%arg0: i32) -> (i32, i32, i32) {
    %c0_i32 = arith.constant 0 : i32
    %c0_i32_0 = arith.constant 0 : i32
    %c0_i32_1 = arith.constant 0 : i32
    %c0_i32_2 = arith.constant 0 : i32
    return %c0_i32, %c0_i32_0, %c0_i32_1 : i32, i32, i32
  }
  func.func @transform_8(%arg0: i32) -> (i32, i32, i32) {
    %c0_i32 = arith.constant 0 : i32
    %c0_i32_0 = arith.constant 0 : i32
    %c0_i32_1 = arith.constant 0 : i32
    %c0_i32_2 = arith.constant 0 : i32
    return %c0_i32, %c0_i32_0, %c0_i32_1 : i32, i32, i32
  }
  func.func @transform_9(%arg0: i32) -> (i32, i32, i32) {
    %c0_i32 = arith.constant 0 : i32
    %c0_i32_0 = arith.constant 0 : i32
    %c0_i32_1 = arith.constant 0 : i32
    %c0_i32_2 = arith.constant 0 : i32
    return %c0_i32, %c0_i32_0, %c0_i32_1 : i32, i32, i32
  }
  func.func @transform_10(%arg0: i32) -> (i32, i32, i32) {
    %c0_i32 = arith.constant 0 : i32
    %c0_i32_0 = arith.constant 0 : i32
    %c0_i32_1 = arith.constant 0 : i32
    %c0_i32_2 = arith.constant 0 : i32
    return %c0_i32, %c0_i32_0, %c0_i32_1 : i32, i32, i32
  }
  func.func @transform_11(%arg0: i32) -> (i32, i32, i32) {
    %c0_i32 = arith.constant 0 : i32
    %c0_i32_0 = arith.constant 0 : i32
    %c0_i32_1 = arith.constant 0 : i32
    %c0_i32_2 = arith.constant 0 : i32
    return %c0_i32, %c0_i32_0, %c0_i32_1 : i32, i32, i32
  }
  func.func @transform_12(%arg0: i32) -> (i32, i32, i32) {
    %c0_i32 = arith.constant 0 : i32
    %c0_i32_0 = arith.constant 0 : i32
    %c0_i32_1 = arith.constant 0 : i32
    %c0_i32_2 = arith.constant 0 : i32
    return %c0_i32, %c0_i32_0, %c0_i32_1 : i32, i32, i32
  }
  func.func @transform_13(%arg0: i32) -> (i32, i32, i32) {
    %c0_i32 = arith.constant 0 : i32
    %c0_i32_0 = arith.constant 0 : i32
    %c0_i32_1 = arith.constant 0 : i32
    %c0_i32_2 = arith.constant 0 : i32
    return %c0_i32, %c0_i32_0, %c0_i32_1 : i32, i32, i32
  }
  func.func @transform_14(%arg0: i32) -> (i32, i32, i32) {
    %c0_i32 = arith.constant 0 : i32
    %c0_i32_0 = arith.constant 0 : i32
    %c0_i32_1 = arith.constant 0 : i32
    %c0_i32_2 = arith.constant 0 : i32
    return %c0_i32, %c0_i32_0, %c0_i32_1 : i32, i32, i32
  }
  func.func @transform_15(%arg0: i32) -> (i32, i32, i32) {
    %c0_i32 = arith.constant 0 : i32
    %c0_i32_0 = arith.constant 0 : i32
    %c0_i32_1 = arith.constant 0 : i32
    %c0_i32_2 = arith.constant 0 : i32
    return %c0_i32, %c0_i32_0, %c0_i32_1 : i32, i32, i32
  }
  func.func @transform_16(%arg0: i32) -> (i32, i32) {
    %c0_i32 = arith.constant 0 : i32
    %c0_i32_0 = arith.constant 0 : i32
    return %arg0, %c0_i32 : i32, i32
  }
}

</mosaic_0001>

<llo_original>
// kernel: frozen_image_to_clip_embedder.1
$region0: #{frozen_image_to_clip_embedder.1}
  #allocation0 [shape = 'u32[]', space=smem, size = 0x4, offset = 0x4, fixed_abs, tag = 'smem constant byte address 0x4 - core index']
  #allocation1 [shape = 'u32[144,128]{1,0:T(1,128)}', space=vmem, size = 0x12000, scoped, tag = 'internal scratch']
  #allocation2 [shape = 'f32[17,8,32]{2,1,0:T(8,128)}', space=vmem, size = 0x11000, scoped, tag = 'scratch operand']
  %s0 = inlined_call_operand.vmem [shape: f32[16,768], index: 0, kind: input, shape index: {}]
  %s1 = inlined_call_operand.vmem [shape: f32[768,544], index: 1, kind: input, shape index: {}]
  %s2 = inlined_call_operand.vmem [shape: f32[1,544], index: 2, kind: input, shape index: {}]
  %s3 = inlined_call_operand.vmem [shape: f32[136,136], index: 3, kind: input, shape index: {}]
  %s4 = inlined_call_operand.vmem [shape: f32[2,32], index: 4, kind: input, shape index: {}]
  %s5 = inlined_call_operand.vmem [shape: f32[2,32], index: 5, kind: input, shape index: {}]
  %s6 = inlined_call_operand.vmem [shape: f32[2,2,32], index: 6, kind: input, shape index: {}]
  %s7 = inlined_call_operand.vmem [shape: f32[2,2,32], index: 7, kind: input, shape index: {}]
  %s8 = inlined_call_operand.vmem [shape: f32[2,32,96], index: 8, kind: input, shape index: {}]
  %s9 = inlined_call_operand.vmem [shape: f32[2,1,96], index: 9, kind: input, shape index: {}]
  %s10 = inlined_call_operand.vmem [shape: f32[2,32,32], index: 10, kind: input, shape index: {}]
  %s11 = inlined_call_operand.vmem [shape: f32[2,1,32], index: 11, kind: input, shape index: {}]
  %s12 = inlined_call_operand.vmem [shape: f32[2,32,64], index: 12, kind: input, shape index: {}]
  %s13 = inlined_call_operand.vmem [shape: f32[2,1,64], index: 13, kind: input, shape index: {}]
  %s14 = inlined_call_operand.vmem [shape: f32[2,64,32], index: 14, kind: input, shape index: {}]
  %s15 = inlined_call_operand.vmem [shape: f32[2,1,32], index: 15, kind: input, shape index: {}]
  %s16 = inlined_call_operand.hbm [shape: f32[16,32], index: 16, kind: output, shape index: {}]
  %s17 = sld [smem:[#allocation0]]
  $region104: #{frozen_image_to_clip_embedder.1} parent=0
    _
  %s19 = ssub.s32 1, %s17
  %s20 = scalar_select 0, %s19, %s17
  $region1: #{frozen_image_to_clip_embedder.1} parent=0
    #allocation3 [shape = 'u8[8192]{0}', space=vmem, size = 0x2000, scoped, tag = 'output window, operand 0']
    #allocation4 [shape = 's32[2]{0}', space=sflag, size = 0x8, scoped, tag = 'scoped memory for frozen_image_to_clip_embedder.1']
    %21 = vsyncpa [#allocation4], 0
    %s22 = scalar_lea.sflag [#allocation4], 1
    %23 = vsyncpa %s22, 0
    loop: start=0, step=1, limit=4
    $region2: #{frozen_image_to_clip_embedder.1} parent=1 // loop_pre_header
      _
    $region3: #{frozen_image_to_clip_embedder.1} parent=1 // loop_header
      %s25 = sphi 0, %s29
      %p26 = scmp.ge.s32.totalorder %s25, 4
      %s35 = sphi 0, %s37
      %s38 = sphi 0, %s35
      %s39 = sphi 0, %s38
      %s55 = sphi 0, %s39
      %s59 = sphi 0, %s59
      %s61 = sphi 0, %s59
      %s62 = sphi 0, %s61
      %s76 = sphi 0, %s62
      %s80 = sphi 0, %s80
      %s82 = sphi 0, %s80
      %s83 = sphi 0, %s82
      %s97 = sphi 0, %s83
      %s101 = sphi 0, %s101
      %s103 = sphi 0, %s101
      %s104 = sphi 0, %s103
      %s118 = sphi 0, %s104
      %s122 = sphi 0, %s122
      %s124 = sphi 0, %s122
      %s125 = sphi 0, %s124
      %s139 = sphi 0, %s125
      %s143 = sphi 0, %s143
      %s145 = sphi 0, %s143
      %s146 = sphi 0, %s145
      %s160 = sphi 0, %s146
      %s164 = sphi 0, %s164
      %s166 = sphi 0, %s164
      %s167 = sphi 0, %s166
      %s181 = sphi 0, %s167
      %s185 = sphi 0, %s185
      %s187 = sphi 0, %s185
      %s188 = sphi 0, %s187
      %s202 = sphi 0, %s188
      %s206 = sphi 0, %s206
      %s208 = sphi 0, %s206
      %s209 = sphi 0, %s208
      %s223 = sphi 0, %s209
      %s227 = sphi 0, %s227
      %s229 = sphi 0, %s227
      %s230 = sphi 0, %s229
      %s244 = sphi 0, %s230
      %s248 = sphi 0, %s248
      %s250 = sphi 0, %s248
      %s251 = sphi 0, %s250
      %s265 = sphi 0, %s251
      %s269 = sphi 0, %s269
      %s271 = sphi 0, %s269
      %s272 = sphi 0, %s271
      %s286 = sphi 0, %s272
      %s290 = sphi 0, %s290
      %s292 = sphi 0, %s290
      %s293 = sphi 0, %s292
      %s307 = sphi 0, %s293
      %s311 = sphi 0, %s311
      %s313 = sphi 0, %s311
      %s314 = sphi 0, %s313
      %s328 = sphi 0, %s314
      %s332 = sphi 0, %s332
      %s334 = sphi 0, %s332
      %s335 = sphi 0, %s334
      %s349 = sphi 0, %s335
      %s353 = sphi 0, %s353
      %s355 = sphi 0, %s353
      %s356 = sphi 0, %s355
      %s370 = sphi 0, %s356
      %s376 = sphi 0, %s378
      %s379 = sphi 0, %s376
      %s380 = sphi 0, %s379
      %s396 = sphi 0, %s380
    $region4: #{frozen_image_to_clip_embedder.1} parent=1 // loop_header_branch
      %28 = sbr.rel (%p26) target = $region8
    $region5: #{frozen_image_to_clip_embedder.1} parent=1 // loop_body
      %s30 = ssub.s32 %s25, 1
      %s31 = ssub.s32 %s25, 2
      %s32 = sadd.s32 %s25, 1
      %s33 = ssub.s32 %s25, %s32
      %p34 = scmp.eq.s32.totalorder %s33, 0
      %s36 = sadd.s32 %s35, 1
      %s37 = scalar_select %p34, %s35, %s36
      %p40 = pneg %p34
      %p41 = scmp.eq.s32.totalorder %s25, 1
      %p42 = por %p40, %p41
      %p43 = scmp.ne.s32.totalorder %s35, %s38
      %p44 = scmp.eq.s32.totalorder %s25, 0
      %p45 = por %p43, %p44
      %p46 = scmp.ne.s32.totalorder %s35, %s38
      %p47 = scmp.eq.s32.totalorder %s30, 1
      %p48 = por %p46, %p47
      %p49 = scmp.ne.s32.totalorder %s38, %s39
      %p50 = scmp.eq.s32.totalorder %s30, 0
      %p51 = por %p49, %p50
      %p52 = scmp.ne.s32.totalorder %s38, %s39
      %p53 = scmp.eq.s32.totalorder %s31, 1
      %p54 = por %p52, %p53
      %p56 = scmp.ne.s32.totalorder %s39, %s55
      %p57 = scmp.eq.s32.totalorder %s31, 0
      %p58 = por %p56, %p57
      %s60 = sadd.s32 %s59, 1
      %p63 = scmp.eq.s32.totalorder %s25, 1
      %p64 = scmp.ne.s32.totalorder %s59, %s61
      %p65 = scmp.eq.s32.totalorder %s25, 0
      %p66 = por %p64, %p65
      %p67 = scmp.ne.s32.totalorder %s59, %s61
      %p68 = scmp.eq.s32.totalorder %s30, 1
      %p69 = por %p67, %p68
      %p70 = scmp.ne.s32.totalorder %s61, %s62
      %p71 = scmp.eq.s32.totalorder %s30, 0
      %p72 = por %p70, %p71
      %p73 = scmp.ne.s32.totalorder %s61, %s62
      %p74 = scmp.eq.s32.totalorder %s31, 1
      %p75 = por %p73, %p74
      %p77 = scmp.ne.s32.totalorder %s62, %s76
      %p78 = scmp.eq.s32.totalorder %s31, 0
      %p79 = por %p77, %p78
      %s81 = sadd.s32 %s80, 1
      %p84 = scmp.eq.s32.totalorder %s25, 1
      %p85 = scmp.ne.s32.totalorder %s80, %s82
      %p86 = scmp.eq.s32.totalorder %s25, 0
      %p87 = por %p85, %p86
      %p88 = scmp.ne.s32.totalorder %s80, %s82
      %p89 = scmp.eq.s32.totalorder %s30, 1
      %p90 = por %p88, %p89
      %p91 = scmp.ne.s32.totalorder %s82, %s83
      %p92 = scmp.eq.s32.totalorder %s30, 0
      %p93 = por %p91, %p92
      %p94 = scmp.ne.s32.totalorder %s82, %s83
      %p95 = scmp.eq.s32.totalorder %s31, 1
      %p96 = por %p94, %p95
      %p98 = scmp.ne.s32.totalorder %s83, %s97
      %p99 = scmp.eq.s32.totalorder %s31, 0
      %p100 = por %p98, %p99
      %s102 = sadd.s32 %s101, 1
      %p105 = scmp.eq.s32.totalorder %s25, 1
      %p106 = scmp.ne.s32.totalorder %s101, %s103
      %p107 = scmp.eq.s32.totalorder %s25, 0
      %p108 = por %p106, %p107
      %p109 = scmp.ne.s32.totalorder %s101, %s103
      %p110 = scmp.eq.s32.totalorder %s30, 1
      %p111 = por %p109, %p110
      %p112 = scmp.ne.s32.totalorder %s103, %s104
      %p113 = scmp.eq.s32.totalorder %s30, 0
      %p114 = por %p112, %p113
      %p115 = scmp.ne.s32.totalorder %s103, %s104
      %p116 = scmp.eq.s32.totalorder %s31, 1
      %p117 = por %p115, %p116
      %p119 = scmp.ne.s32.totalorder %s104, %s118
      %p120 = scmp.eq.s32.totalorder %s31, 0
      %p121 = por %p119, %p120
      %s123 = sadd.s32 %s122, 1
      %p126 = scmp.eq.s32.totalorder %s25, 1
      %p127 = scmp.ne.s32.totalorder %s122, %s124
      %p128 = scmp.eq.s32.totalorder %s25, 0
      %p129 = por %p127, %p128
      %p130 = scmp.ne.s32.totalorder %s122, %s124
      %p131 = scmp.eq.s32.totalorder %s30, 1
      %p132 = por %p130, %p131
      %p133 = scmp.ne.s32.totalorder %s124, %s125
      %p134 = scmp.eq.s32.totalorder %s30, 0
      %p135 = por %p133, %p134
      %p136 = scmp.ne.s32.totalorder %s124, %s125
      %p137 = scmp.eq.s32.totalorder %s31, 1
      %p138 = por %p136, %p137
      %p140 = scmp.ne.s32.totalorder %s125, %s139
      %p141 = scmp.eq.s32.totalorder %s31, 0
      %p142 = por %p140, %p141
      %s144 = sadd.s32 %s143, 1
      %p147 = scmp.eq.s32.totalorder %s25, 1
      %p148 = scmp.ne.s32.totalorder %s143, %s145
      %p149 = scmp.eq.s32.totalorder %s25, 0
      %p150 = por %p148, %p149
      %p151 = scmp.ne.s32.totalorder %s143, %s145
      %p152 = scmp.eq.s32.totalorder %s30, 1
      %p153 = por %p151, %p152
      %p154 = scmp.ne.s32.totalorder %s145, %s146
      %p155 = scmp.eq.s32.totalorder %s30, 0
      %p156 = por %p154, %p155
      %p157 = scmp.ne.s32.totalorder %s145, %s146
      %p158 = scmp.eq.s32.totalorder %s31, 1
      %p159 = por %p157, %p158
      %p161 = scmp.ne.s32.totalorder %s146, %s160
      %p162 = scmp.eq.s32.totalorder %s31, 0
      %p163 = por %p161, %p162
      %s165 = sadd.s32 %s164, 1
      %p168 = scmp.eq.s32.totalorder %s25, 1
      %p169 = scmp.ne.s32.totalorder %s164, %s166
      %p170 = scmp.eq.s32.totalorder %s25, 0
      %p171 = por %p169, %p170
      %p172 = scmp.ne.s32.totalorder %s164, %s166
      %p173 = scmp.eq.s32.totalorder %s30, 1
      %p174 = por %p172, %p173
      %p175 = scmp.ne.s32.totalorder %s166, %s167
      %p176 = scmp.eq.s32.totalorder %s30, 0
      %p177 = por %p175, %p176
      %p178 = scmp.ne.s32.totalorder %s166, %s167
      %p179 = scmp.eq.s32.totalorder %s31, 1
      %p180 = por %p178, %p179
      %p182 = scmp.ne.s32.totalorder %s167, %s181
      %p183 = scmp.eq.s32.totalorder %s31, 0
      %p184 = por %p182, %p183
      %s186 = sadd.s32 %s185, 1
      %p189 = scmp.eq.s32.totalorder %s25, 1
      %p190 = scmp.ne.s32.totalorder %s185, %s187
      %p191 = scmp.eq.s32.totalorder %s25, 0
      %p192 = por %p190, %p191
      %p193 = scmp.ne.s32.totalorder %s185, %s187
      %p194 = scmp.eq.s32.totalorder %s30, 1
      %p195 = por %p193, %p194
      %p196 = scmp.ne.s32.totalorder %s187, %s188
      %p197 = scmp.eq.s32.totalorder %s30, 0
      %p198 = por %p196, %p197
      %p199 = scmp.ne.s32.totalorder %s187, %s188
      %p200 = scmp.eq.s32.totalorder %s31, 1
      %p201 = por %p199, %p200
      %p203 = scmp.ne.s32.totalorder %s188, %s202
      %p204 = scmp.eq.s32.totalorder %s31, 0
      %p205 = por %p203, %p204
      %s207 = sadd.s32 %s206, 1
      %p210 = scmp.eq.s32.totalorder %s25, 1
      %p211 = scmp.ne.s32.totalorder %s206, %s208
      %p212 = scmp.eq.s32.totalorder %s25, 0
      %p213 = por %p211, %p212
      %p214 = scmp.ne.s32.totalorder %s206, %s208
      %p215 = scmp.eq.s32.totalorder %s30, 1
      %p216 = por %p214, %p215
      %p217 = scmp.ne.s32.totalorder %s208, %s209
      %p218 = scmp.eq.s32.totalorder %s30, 0
      %p219 = por %p217, %p218
      %p220 = scmp.ne.s32.totalorder %s208, %s209
      %p221 = scmp.eq.s32.totalorder %s31, 1
      %p222 = por %p220, %p221
      %p224 = scmp.ne.s32.totalorder %s209, %s223
      %p225 = scmp.eq.s32.totalorder %s31, 0
      %p226 = por %p224, %p225
      %s228 = sadd.s32 %s227, 1
      %p231 = scmp.eq.s32.totalorder %s25, 1
      %p232 = scmp.ne.s32.totalorder %s227, %s229
      %p233 = scmp.eq.s32.totalorder %s25, 0
      %p234 = por %p232, %p233
      %p235 = scmp.ne.s32.totalorder %s227, %s229
      %p236 = scmp.eq.s32.totalorder %s30, 1
      %p237 = por %p235, %p236
      %p238 = scmp.ne.s32.totalorder %s229, %s230
      %p239 = scmp.eq.s32.totalorder %s30, 0
      %p240 = por %p238, %p239
      %p241 = scmp.ne.s32.totalorder %s229, %s230
      %p242 = scmp.eq.s32.totalorder %s31, 1
      %p243 = por %p241, %p242
      %p245 = scmp.ne.s32.totalorder %s230, %s244
      %p246 = scmp.eq.s32.totalorder %s31, 0
      %p247 = por %p245, %p246
      %s249 = sadd.s32 %s248, 1
      %p252 = scmp.eq.s32.totalorder %s25, 1
      %p253 = scmp.ne.s32.totalorder %s248, %s250
      %p254 = scmp.eq.s32.totalorder %s25, 0
      %p255 = por %p253, %p254
      %p256 = scmp.ne.s32.totalorder %s248, %s250
      %p257 = scmp.eq.s32.totalorder %s30, 1
      %p258 = por %p256, %p257
      %p259 = scmp.ne.s32.totalorder %s250, %s251
      %p260 = scmp.eq.s32.totalorder %s30, 0
      %p261 = por %p259, %p260
      %p262 = scmp.ne.s32.totalorder %s250, %s251
      %p263 = scmp.eq.s32.totalorder %s31, 1
      %p264 = por %p262, %p263
      %p266 = scmp.ne.s32.totalorder %s251, %s265
      %p267 = scmp.eq.s32.totalorder %s31, 0
      %p268 = por %p266, %p267
      %s270 = sadd.s32 %s269, 1
      %p273 = scmp.eq.s32.totalorder %s25, 1
      %p274 = scmp.ne.s32.totalorder %s269, %s271
      %p275 = scmp.eq.s32.totalorder %s25, 0
      %p276 = por %p274, %p275
      %p277 = scmp.ne.s32.totalorder %s269, %s271
      %p278 = scmp.eq.s32.totalorder %s30, 1
      %p279 = por %p277, %p278
      %p280 = scmp.ne.s32.totalorder %s271, %s272
      %p281 = scmp.eq.s32.totalorder %s30, 0
      %p282 = por %p280, %p281
      %p283 = scmp.ne.s32.totalorder %s271, %s272
      %p284 = scmp.eq.s32.totalorder %s31, 1
      %p285 = por %p283, %p284
      %p287 = scmp.ne.s32.totalorder %s272, %s286
      %p288 = scmp.eq.s32.totalorder %s31, 0
      %p289 = por %p287, %p288
      %s291 = sadd.s32 %s290, 1
      %p294 = scmp.eq.s32.totalorder %s25, 1
      %p295 = scmp.ne.s32.totalorder %s290, %s292
      %p296 = scmp.eq.s32.totalorder %s25, 0
      %p297 = por %p295, %p296
      %p298 = scmp.ne.s32.totalorder %s290, %s292
      %p299 = scmp.eq.s32.totalorder %s30, 1
      %p300 = por %p298, %p299
      %p301 = scmp.ne.s32.totalorder %s292, %s293
      %p302 = scmp.eq.s32.totalorder %s30, 0
      %p303 = por %p301, %p302
      %p304 = scmp.ne.s32.totalorder %s292, %s293
      %p305 = scmp.eq.s32.totalorder %s31, 1
      %p306 = por %p304, %p305
      %p308 = scmp.ne.s32.totalorder %s293, %s307
      %p309 = scmp.eq.s32.totalorder %s31, 0
      %p310 = por %p308, %p309
      %s312 = sadd.s32 %s311, 1
      %p315 = scmp.eq.s32.totalorder %s25, 1
      %p316 = scmp.ne.s32.totalorder %s311, %s313
      %p317 = scmp.eq.s32.totalorder %s25, 0
      %p318 = por %p316, %p317
      %p319 = scmp.ne.s32.totalorder %s311, %s313
      %p320 = scmp.eq.s32.totalorder %s30, 1
      %p321 = por %p319, %p320
      %p322 = scmp.ne.s32.totalorder %s313, %s314
      %p323 = scmp.eq.s32.totalorder %s30, 0
      %p324 = por %p322, %p323
      %p325 = scmp.ne.s32.totalorder %s313, %s314
      %p326 = scmp.eq.s32.totalorder %s31, 1
      %p327 = por %p325, %p326
      %p329 = scmp.ne.s32.totalorder %s314, %s328
      %p330 = scmp.eq.s32.totalorder %s31, 0
      %p331 = por %p329, %p330
      %s333 = sadd.s32 %s332, 1
      %p336 = scmp.eq.s32.totalorder %s25, 1
      %p337 = scmp.ne.s32.totalorder %s332, %s334
      %p338 = scmp.eq.s32.totalorder %s25, 0
      %p339 = por %p337, %p338
      %p340 = scmp.ne.s32.totalorder %s332, %s334
      %p341 = scmp.eq.s32.totalorder %s30, 1
      %p342 = por %p340, %p341
      %p343 = scmp.ne.s32.totalorder %s334, %s335
      %p344 = scmp.eq.s32.totalorder %s30, 0
      %p345 = por %p343, %p344
      %p346 = scmp.ne.s32.totalorder %s334, %s335
      %p347 = scmp.eq.s32.totalorder %s31, 1
      %p348 = por %p346, %p347
      %p350 = scmp.ne.s32.totalorder %s335, %s349
      %p351 = scmp.eq.s32.totalorder %s31, 0
      %p352 = por %p350, %p351
      %s354 = sadd.s32 %s353, 1
      %p357 = scmp.eq.s32.totalorder %s25, 1
      %p358 = scmp.ne.s32.totalorder %s353, %s355
      %p359 = scmp.eq.s32.totalorder %s25, 0
      %p360 = por %p358, %p359
      %p361 = scmp.ne.s32.totalorder %s353, %s355
      %p362 = scmp.eq.s32.totalorder %s30, 1
      %p363 = por %p361, %p362
      %p364 = scmp.ne.s32.totalorder %s355, %s356
      %p365 = scmp.eq.s32.totalorder %s30, 0
      %p366 = por %p364, %p365
      %p367 = scmp.ne.s32.totalorder %s355, %s356
      %p368 = scmp.eq.s32.totalorder %s31, 1
      %p369 = por %p367, %p368
      %p371 = scmp.ne.s32.totalorder %s356, %s370
      %p372 = scmp.eq.s32.totalorder %s31, 0
      %p373 = por %p371, %p372
      %s374 = ssub.s32 %s25, %s32
      %p375 = scmp.eq.s32.totalorder %s374, 0
      %s377 = sadd.s32 %s376, 1
      %s378 = scalar_select %p375, %s376, %s377
      %p381 = pneg %p375
      %p382 = scmp.eq.s32.totalorder %s25, 1
      %p383 = por %p381, %p382
      %p384 = scmp.ne.s32.totalorder %s376, %s379
      %p385 = scmp.eq.s32.totalorder %s25, 0
      %p386 = por %p384, %p385
      %p387 = scmp.ne.s32.totalorder %s376, %s379
      %p388 = scmp.eq.s32.totalorder %s30, 1
      %p389 = por %p387, %p388
      %p390 = scmp.ne.s32.totalorder %s379, %s380
      %p391 = scmp.eq.s32.totalorder %s30, 0
      %p392 = por %p390, %p391
      %p393 = scmp.ne.s32.totalorder %s379, %s380
      %p394 = scmp.eq.s32.totalorder %s31, 1
      %p395 = por %p393, %p394
      %p397 = scmp.ne.s32.totalorder %s380, %s396
      %p398 = scmp.eq.s32.totalorder %s31, 0
      %p399 = por %p397, %p398
      %p400 = scmp.le.s32.totalorder 1, %s25
      %p401 = scmp.lt.s32.totalorder %s25, 3
      %p402 = pnand %p400, %p401
      %p403 = pneg %p402
      // Predicated region
      $region9: #{frozen_image_to_clip_embedder.1} parent=5 // pred_check
        _
      $region10: #{frozen_image_to_clip_embedder.1} parent=5 // pred_check_branch
        %405 = sbr.rel (%p402) target = $region12
      $region11: #{frozen_image_to_clip_embedder.1} parent=5 // pred_region
        %s406 = ssub.s32 %s25, 1
        // Predicated region
        $region13: #{frozen_image_to_clip_embedder.1} parent=11 // pred_check
          %p407 = pneg %p72
        $region14: #{frozen_image_to_clip_embedder.1} parent=11 // pred_check_branch
          %409 = sbr.rel (%p407) target = $region16
        $region15: #{frozen_image_to_clip_embedder.1} parent=11 // pred_region
          _
        $region16: #{frozen_image_to_clip_embedder.1} parent=11 // pred_fallthru
          _
        // Predicated region
        $region17: #{frozen_image_to_clip_embedder.1} parent=11 // pred_check
          %p410 = pneg %p93
        $region18: #{frozen_image_to_clip_embedder.1} parent=11 // pred_check_branch
          %412 = sbr.rel (%p410) target = $region20
        $region19: #{frozen_image_to_clip_embedder.1} parent=11 // pred_region
          _
        $region20: #{frozen_image_to_clip_embedder.1} parent=11 // pred_fallthru
          _
        // Predicated region
        $region21: #{frozen_image_to_clip_embedder.1} parent=11 // pred_check
          %p413 = pneg %p114
        $region22: #{frozen_image_to_clip_embedder.1} parent=11 // pred_check_branch
          %415 = sbr.rel (%p413) target = $region24
        $region23: #{frozen_image_to_clip_embedder.1} parent=11 // pred_region
          _
        $region24: #{frozen_image_to_clip_embedder.1} parent=11 // pred_fallthru
          _
        // Predicated region
        $region25: #{frozen_image_to_clip_embedder.1} parent=11 // pred_check
          %p416 = pneg %p135
        $region26: #{frozen_image_to_clip_embedder.1} parent=11 // pred_check_branch
          %418 = sbr.rel (%p416) target = $region28
        $region27: #{frozen_image_to_clip_embedder.1} parent=11 // pred_region
          _
        $region28: #{frozen_image_to_clip_embedder.1} parent=11 // pred_fallthru
          _
        // Predicated region
        $region29: #{frozen_image_to_clip_embedder.1} parent=11 // pred_check
          %p419 = pneg %p156
        $region30: #{frozen_image_to_clip_embedder.1} parent=11 // pred_check_branch
          %421 = sbr.rel (%p419) target = $region32
        $region31: #{frozen_image_to_clip_embedder.1} parent=11 // pred_region
          _
        $region32: #{frozen_image_to_clip_embedder.1} parent=11 // pred_fallthru
          _
        // Predicated region
        $region33: #{frozen_image_to_clip_embedder.1} parent=11 // pred_check
          %p422 = pneg %p177
        $region34: #{frozen_image_to_clip_embedder.1} parent=11 // pred_check_branch
          %424 = sbr.rel (%p422) target = $region36
        $region35: #{frozen_image_to_clip_embedder.1} parent=11 // pred_region
          _
        $region36: #{frozen_image_to_clip_embedder.1} parent=11 // pred_fallthru
          _
        // Predicated region
        $region37: #{frozen_image_to_clip_embedder.1} parent=11 // pred_check
          %p425 = pneg %p198
        $region38: #{frozen_image_to_clip_embedder.1} parent=11 // pred_check_branch
          %427 = sbr.rel (%p425) target = $region40
        $region39: #{frozen_image_to_clip_embedder.1} parent=11 // pred_region
          _
        $region40: #{frozen_image_to_clip_embedder.1} parent=11 // pred_fallthru
          _
        // Predicated region
        $region41: #{frozen_image_to_clip_embedder.1} parent=11 // pred_check
          %p428 = pneg %p219
        $region42: #{frozen_image_to_clip_embedder.1} parent=11 // pred_check_branch
          %430 = sbr.rel (%p428) target = $region44
        $region43: #{frozen_image_to_clip_embedder.1} parent=11 // pred_region
          _
        $region44: #{frozen_image_to_clip_embedder.1} parent=11 // pred_fallthru
          _
        // Predicated region
        $region45: #{frozen_image_to_clip_embedder.1} parent=11 // pred_check
          %p431 = pneg %p240
        $region46: #{frozen_image_to_clip_embedder.1} parent=11 // pred_check_branch
          %433 = sbr.rel (%p431) target = $region48
        $region47: #{frozen_image_to_clip_embedder.1} parent=11 // pred_region
          _
        $region48: #{frozen_image_to_clip_embedder.1} parent=11 // pred_fallthru
          _
        // Predicated region
        $region49: #{frozen_image_to_clip_embedder.1} parent=11 // pred_check
          %p434 = pneg %p261
        $region50: #{frozen_image_to_clip_embedder.1} parent=11 // pred_check_branch
          %436 = sbr.rel (%p434) target = $region52
        $region51: #{frozen_image_to_clip_embedder.1} parent=11 // pred_region
          _
        $region52: #{frozen_image_to_clip_embedder.1} parent=11 // pred_fallthru
          _
        // Predicated region
        $region53: #{frozen_image_to_clip_embedder.1} parent=11 // pred_check
          %p437 = pneg %p282
        $region54: #{frozen_image_to_clip_embedder.1} parent=11 // pred_check_branch
          %439 = sbr.rel (%p437) target = $region56
        $region55: #{frozen_image_to_clip_embedder.1} parent=11 // pred_region
          _
        $region56: #{frozen_image_to_clip_embedder.1} parent=11 // pred_fallthru
          _
        // Predicated region
        $region57: #{frozen_image_to_clip_embedder.1} parent=11 // pred_check
          %p440 = pneg %p303
        $region58: #{frozen_image_to_clip_embedder.1} parent=11 // pred_check_branch
          %442 = sbr.rel (%p440) target = $region60
        $region59: #{frozen_image_to_clip_embedder.1} parent=11 // pred_region
          _
        $region60: #{frozen_image_to_clip_embedder.1} parent=11 // pred_fallthru
          _
        // Predicated region
        $region61: #{frozen_image_to_clip_embedder.1} parent=11 // pred_check
          %p443 = pneg %p324
        $region62: #{frozen_image_to_clip_embedder.1} parent=11 // pred_check_branch
          %445 = sbr.rel (%p443) target = $region64
        $region63: #{frozen_image_to_clip_embedder.1} parent=11 // pred_region
          _
        $region64: #{frozen_image_to_clip_embedder.1} parent=11 // pred_fallthru
          _
        // Predicated region
        $region65: #{frozen_image_to_clip_embedder.1} parent=11 // pred_check
          %p446 = pneg %p345
        $region66: #{frozen_image_to_clip_embedder.1} parent=11 // pred_check_branch
          %448 = sbr.rel (%p446) target = $region68
        $region67: #{frozen_image_to_clip_embedder.1} parent=11 // pred_region
          _
        $region68: #{frozen_image_to_clip_embedder.1} parent=11 // pred_fallthru
          _
        // Predicated region
        $region69: #{frozen_image_to_clip_embedder.1} parent=11 // pred_check
          %p449 = pneg %p366
        $region70: #{frozen_image_to_clip_embedder.1} parent=11 // pred_check_branch
          %451 = sbr.rel (%p449) target = $region72
        $region71: #{frozen_image_to_clip_embedder.1} parent=11 // pred_region
          _
        $region72: #{frozen_image_to_clip_embedder.1} parent=11 // pred_fallthru
          _
      $region12: #{frozen_image_to_clip_embedder.1} parent=5 // pred_fallthru
        _
      %p452 = scmp.lt.s32.totalorder %s25, 2
      // Predicated region
      $region73: #{frozen_image_to_clip_embedder.1} parent=5 // pred_check
        %p453 = pneg %p452
      $region74: #{frozen_image_to_clip_embedder.1} parent=5 // pred_check_branch
        %455 = sbr.rel (%p453) target = $region76
      $region75: #{frozen_image_to_clip_embedder.1} parent=5 // pred_region
        // Predicated region
        $region77: #{frozen_image_to_clip_embedder.1} parent=75 // pred_check
          %p456 = pneg %p45
        $region78: #{frozen_image_to_clip_embedder.1} parent=75 // pred_check_branch
          %458 = sbr.rel (%p456) target = $region80
        $region79: #{frozen_image_to_clip_embedder.1} parent=75 // pred_region
          %p459 = scmp.lt.s32.totalorder %s25, 1
          %s460 = scalar_select %p459, %s25, 1
          %s461 = smul.addr %s460, 6
          %s462 = smul.addr %s461, 8
          %s463 = scalar_lea.vmem %s0, %s462
        $region80: #{frozen_image_to_clip_embedder.1} parent=75 // pred_fallthru
          _
      $region76: #{frozen_image_to_clip_embedder.1} parent=5 // pred_fallthru
        _
      %p464 = scmp.le.s32.totalorder 1, %s25
      %p465 = scmp.lt.s32.totalorder %s25, 3
      %p466 = pnand %p464, %p465
      %p467 = pneg %p466
      // Predicated region
      $region81: #{frozen_image_to_clip_embedder.1} parent=5 // pred_check
        _
      $region82: #{frozen_image_to_clip_embedder.1} parent=5 // pred_check_branch
        %469 = sbr.rel (%p466) target = $region84
      $region83: #{frozen_image_to_clip_embedder.1} parent=5 // pred_region
        %s470 = ssub.s32 %s25, 1
        %p471 = scmp.lt.s32.totalorder %s30, 1
        %s472 = scalar_select %p471, %s30, 1
        %s473 = smul.addr %s472, 6
        %s474 = smul.addr %s473, 8
        %s475 = scalar_lea.vmem %s0, %s474
        %p476 = pneg %p51
        %p477 = pneg %p48
        %p478 = pneg %p72
        %p479 = pneg %p69
        %p480 = pneg %p93
        %p481 = pneg %p90
        %p482 = pneg %p114
        %p483 = pneg %p111
        %p484 = pneg %p135
        %p485 = pneg %p132
        %p486 = pneg %p156
        %p487 = pneg %p153
        %p488 = pneg %p177
        %p489 = pneg %p174
        %p490 = pneg %p198
        %p491 = pneg %p195
        %p492 = pneg %p219
        %p493 = pneg %p216
        %p494 = pneg %p240
        %p495 = pneg %p237
        %p496 = pneg %p261
        %p497 = pneg %p258
        %p498 = pneg %p282
        %p499 = pneg %p279
        %p500 = pneg %p303
        %p501 = pneg %p300
        %p502 = pneg %p324
        %p503 = pneg %p321
        %p504 = pneg %p345
        %p505 = pneg %p342
        %p506 = pneg %p366
        %p507 = pneg %p363
        %p508 = pneg %p392
        %p509 = pneg %p389
        %s510 = sand.u32 %s379, 1
        %s511 = scalar_lea.sflag [#allocation4], %s510
        %s512 = sand.u32 %s379, 1
        %s513 = smul.addr %s512, 8
        %s514 = scalar_lea.vmem [#allocation3], %s513
        %p515 = scmp.lt.s32.totalorder %s30, 1
        %s516 = scalar_select %p515, %s30, 1
        %s517 = smul.addr %s516, 6
        %s518 = smul.addr %s517, 8
        %s519 = scalar_lea.vmem %s0, %s518
        %v520 = vld [vmem:[%s519] sm:$0xff]
        %v521 = vld [vmem:[%s519 + $0x8] sm:$0xff]
        %v522 = vld [vmem:[%s519 + $0x10] sm:$0xff]
        %v523 = vld [vmem:[%s519 + $0x18] sm:$0xff]
        %v524 = vld [vmem:[%s519 + $0x20] sm:$0xff]
        %v525 = vld [vmem:[%s519 + $0x28] sm:$0xff]
        %v526 = vld [vmem:[%s1] sm:$0xff]
        %v527 = vld [vmem:[%s1 + $0x8] sm:$0xff]
        %v528 = vld [vmem:[%s1 + $0x10] sm:$0xff]
        %v529 = vld [vmem:[%s1 + $0x18] sm:$0xff]
        %v530 = vld [vmem:[%s1 + $0x20] sm:$0xff]
        %v531 = vld [vmem:[%s1 + $0x28] sm:$0xff]
        %v532 = vld [vmem:[%s1 + $0x30] sm:$0xff]
        %v533 = vld [vmem:[%s1 + $0x38] sm:$0xff]
        %v534 = vld [vmem:[%s1 + $0x40] sm:$0xff]
        %v535 = vld [vmem:[%s1 + $0x48] sm:$0xff]
        %v536 = vld [vmem:[%s1 + $0x50] sm:$0xff]
        %v537 = vld [vmem:[%s1 + $0x58] sm:$0xff]
        %v538 = vld [vmem:[%s1 + $0x60] sm:$0xff]
        %v539 = vld [vmem:[%s1 + $0x68] sm:$0xff]
        %v540 = vld [vmem:[%s1 + $0x70] sm:$0xff]
        %v541 = vld [vmem:[%s1 + $0x78] sm:$0xff]
        %v542 = vld [vmem:[%s1 + $0x80] sm:$0xff]
        %v543 = vld [vmem:[%s1 + $0x88] sm:$0xff]
        %v544 = vld [vmem:[%s1 + $0x90] sm:$0xff]
        %v545 = vld [vmem:[%s1 + $0x98] sm:$0xff]
        %v546 = vld [vmem:[%s1 + $0xa0] sm:$0xff]
        %v547 = vld [vmem:[%s1 + $0xa8] sm:$0xff]
        %v548 = vld [vmem:[%s1 + $0xb0] sm:$0xff]
        %v549 = vld [vmem:[%s1 + $0xb8] sm:$0xff]
        %v550 = vld [vmem:[%s1 + $0xc0] sm:$0xff]
        %v551 = vld [vmem:[%s1 + $0xc8] sm:$0xff]
        %v552 = vld [vmem:[%s1 + $0xd0] sm:$0xff]
        %v553 = vld [vmem:[%s1 + $0xd8] sm:$0xff]
        %v554 = vld [vmem:[%s1 + $0xe0] sm:$0xff]
        %v555 = vld [vmem:[%s1 + $0xe8] sm:$0xff]
        %v556 = vld [vmem:[%s1 + $0xf0] sm:$0xff]
        %v557 = vld [vmem:[%s1 + $0xf8] sm:$0xff]
        %v558 = vld [vmem:[%s1 + $0x100] sm:$0xff]
        %v559 = vld [vmem:[%s1 + $0x108] sm:$0xff]
        %v560 = vld [vmem:[%s1 + $0x110] sm:$0xff]
        %v561 = vld [vmem:[%s1 + $0x118] sm:$0xff]
        %v562 = vld [vmem:[%s1 + $0x120] sm:$0xff]
        %v563 = vld [vmem:[%s1 + $0x128] sm:$0xff]
        %v564 = vld [vmem:[%s1 + $0x130] sm:$0xff]
        %v565 = vld [vmem:[%s1 + $0x138] sm:$0xff]
        %v566 = vld [vmem:[%s1 + $0x140] sm:$0xff]
        %v567 = vld [vmem:[%s1 + $0x148] sm:$0xff]
        %v568 = vld [vmem:[%s1 + $0x150] sm:$0xff]
        %v569 = vld [vmem:[%s1 + $0x158] sm:$0xff]
        %v570 = vld [vmem:[%s1 + $0x160] sm:$0xff]
        %v571 = vld [vmem:[%s1 + $0x168] sm:$0xff]
        %v572 = vld [vmem:[%s1 + $0x170] sm:$0xff]
        %v573 = vld [vmem:[%s1 + $0x178] sm:$0xff]
        %v574 = vld [vmem:[%s1 + $0x180] sm:$0xff]
        %v575 = vld [vmem:[%s1 + $0x188] sm:$0xff]
        %v576 = vld [vmem:[%s1 + $0x190] sm:$0xff]
        %v577 = vld [vmem:[%s1 + $0x198] sm:$0xff]
        %v578 = vld [vmem:[%s1 + $0x1a0] sm:$0xff]
        %v579 = vld [vmem:[%s1 + $0x1a8] sm:$0xff]
        %v580 = vld [vmem:[%s1 + $0x1b0] sm:$0xff]
        %v581 = vld [vmem:[%s1 + $0x1b8] sm:$0xff]
        %v582 = vld [vmem:[%s1 + $0x1c0] sm:$0xff]
        %v583 = vld [vmem:[%s1 + $0x1c8] sm:$0xff]
        %v584 = vld [vmem:[%s1 + $0x1d0] sm:$0xff]
        %v585 = vld [vmem:[%s1 + $0x1d8] sm:$0xff]
        %v586 = vld [vmem:[%s1 + $0x1e0] sm:$0xff]
        %v587 = vld [vmem:[%s1 + $0x1e8] sm:$0xff]
        %v588 = vld [vmem:[%s1 + $0x1f0] sm:$0xff]
        %v589 = vld [vmem:[%s1 + $0x1f8] sm:$0xff]
        %v590 = vld [vmem:[%s1 + $0x200] sm:$0xff]
        %v591 = vld [vmem:[%s1 + $0x208] sm:$0xff]
        %v592 = vld [vmem:[%s1 + $0x210] sm:$0xff]
        %v593 = vld [vmem:[%s1 + $0x218] sm:$0xff]
        %v594 = vld [vmem:[%s1 + $0x220] sm:$0xff]
        %v595 = vld [vmem:[%s1 + $0x228] sm:$0xff]
        %v596 = vld [vmem:[%s1 + $0x230] sm:$0xff]
        %v597 = vld [vmem:[%s1 + $0x238] sm:$0xff]
        %v598 = vld [vmem:[%s1 + $0x240] sm:$0xff]
        %v599 = vld [vmem:[%s1 + $0x248] sm:$0xff]
        %v600 = vld [vmem:[%s1 + $0x250] sm:$0xff]
        %v601 = vld [vmem:[%s1 + $0x258] sm:$0xff]
        %v602 = vld [vmem:[%s1 + $0x260] sm:$0xff]
        %v603 = vld [vmem:[%s1 + $0x268] sm:$0xff]
        %v604 = vld [vmem:[%s1 + $0x270] sm:$0xff]
        %v605 = vld [vmem:[%s1 + $0x278] sm:$0xff]
        %v606 = vld [vmem:[%s1 + $0x280] sm:$0xff]
        %v607 = vld [vmem:[%s1 + $0x288] sm:$0xff]
        %v608 = vld [vmem:[%s1 + $0x290] sm:$0xff]
        %v609 = vld [vmem:[%s1 + $0x298] sm:$0xff]
        %v610 = vld [vmem:[%s1 + $0x2a0] sm:$0xff]
        %v611 = vld [vmem:[%s1 + $0x2a8] sm:$0xff]
        %v612 = vld [vmem:[%s1 + $0x2b0] sm:$0xff]
        %v613 = vld [vmem:[%s1 + $0x2b8] sm:$0xff]
        %v614 = vld [vmem:[%s1 + $0x2c0] sm:$0xff]
        %v615 = vld [vmem:[%s1 + $0x2c8] sm:$0xff]
        %v616 = vld [vmem:[%s1 + $0x2d0] sm:$0xff]
        %v617 = vld [vmem:[%s1 + $0x2d8] sm:$0xff]
        %v618 = vld [vmem:[%s1 + $0x2e0] sm:$0xff]
        %v619 = vld [vmem:[%s1 + $0x2e8] sm:$0xff]
        %v620 = vld [vmem:[%s1 + $0x2f0] sm:$0xff]
        %v621 = vld [vmem:[%s1 + $0x2f8] sm:$0xff]
        %v622 = vld [vmem:[%s1 + $0x300] sm:$0xff]
        %v623 = vld [vmem:[%s1 + $0x308] sm:$0xff]
        %v624 = vld [vmem:[%s1 + $0x310] sm:$0xff]
        %v625 = vld [vmem:[%s1 + $0x318] sm:$0xff]
        %v626 = vld [vmem:[%s1 + $0x320] sm:$0xff]
        %v627 = vld [vmem:[%s1 + $0x328] sm:$0xff]
        %v628 = vld [vmem:[%s1 + $0x330] sm:$0xff]
        %v629 = vld [vmem:[%s1 + $0x338] sm:$0xff]
        %v630 = vld [vmem:[%s1 + $0x340] sm:$0xff]
        %v631 = vld [vmem:[%s1 + $0x348] sm:$0xff]
        %v632 = vld [vmem:[%s1 + $0x350] sm:$0xff]
        %v633 = vld [vmem:[%s1 + $0x358] sm:$0xff]
        %v634 = vld [vmem:[%s1 + $0x360] sm:$0xff]
        %v635 = vld [vmem:[%s1 + $0x368] sm:$0xff]
        %v636 = vld [vmem:[%s1 + $0x370] sm:$0xff]
        %v637 = vld [vmem:[%s1 + $0x378] sm:$0xff]
        %v638 = vld [vmem:[%s1 + $0x380] sm:$0xff]
        %v639 = vld [vmem:[%s1 + $0x388] sm:$0xff]
        %v640 = vld [vmem:[%s1 + $0x390] sm:$0xff]
        %v641 = vld [vmem:[%s1 + $0x398] sm:$0xff]
        %v642 = vld [vmem:[%s1 + $0x3a0] sm:$0xff]
        %v643 = vld [vmem:[%s1 + $0x3a8] sm:$0xff]
        %v644 = vld [vmem:[%s1 + $0x3b0] sm:$0xff]
        %v645 = vld [vmem:[%s1 + $0x3b8] sm:$0xff]
        %v646 = vld [vmem:[%s1 + $0x3c0] sm:$0xff]
        %v647 = vld [vmem:[%s1 + $0x3c8] sm:$0xff]
        %v648 = vld [vmem:[%s1 + $0x3d0] sm:$0xff]
        %v649 = vld [vmem:[%s1 + $0x3d8] sm:$0xff]
        %v650 = vld [vmem:[%s1 + $0x3e0] sm:$0xff]
        %v651 = vld [vmem:[%s1 + $0x3e8] sm:$0xff]
        %v652 = vld [vmem:[%s1 + $0x3f0] sm:$0xff]
        %v653 = vld [vmem:[%s1 + $0x3f8] sm:$0xff]
        %v654 = vld [vmem:[%s1 + $0x400] sm:$0xff]
        %v655 = vld [vmem:[%s1 + $0x408] sm:$0xff]
        %v656 = vld [vmem:[%s1 + $0x410] sm:$0xff]
        %v657 = vld [vmem:[%s1 + $0x418] sm:$0xff]
        %v658 = vld [vmem:[%s1 + $0x420] sm:$0xff]
        %v659 = vld [vmem:[%s1 + $0x428] sm:$0xff]
        %v660 = vld [vmem:[%s1 + $0x430] sm:$0xff]
        %v661 = vld [vmem:[%s1 + $0x438] sm:$0xff]
        %v662 = vld [vmem:[%s1 + $0x440] sm:$0xff]
        %v663 = vld [vmem:[%s1 + $0x448] sm:$0xff]
        %v664 = vld [vmem:[%s1 + $0x450] sm:$0xff]
        %v665 = vld [vmem:[%s1 + $0x458] sm:$0xff]
        %v666 = vld [vmem:[%s1 + $0x460] sm:$0xff]
        %v667 = vld [vmem:[%s1 + $0x468] sm:$0xff]
        %v668 = vld [vmem:[%s1 + $0x470] sm:$0xff]
        %v669 = vld [vmem:[%s1 + $0x478] sm:$0xff]
        %v670 = vld [vmem:[%s1 + $0x480] sm:$0xff]
        %v671 = vld [vmem:[%s1 + $0x488] sm:$0xff]
        %v672 = vld [vmem:[%s1 + $0x490] sm:$0xff]
        %v673 = vld [vmem:[%s1 + $0x498] sm:$0xff]
        %v674 = vld [vmem:[%s1 + $0x4a0] sm:$0xff]
        %v675 = vld [vmem:[%s1 + $0x4a8] sm:$0xff]
        %v676 = vld [vmem:[%s1 + $0x4b0] sm:$0xff]
        %v677 = vld [vmem:[%s1 + $0x4b8] sm:$0xff]
        %v678 = vld [vmem:[%s1 + $0x4c0] sm:$0xff]
        %v679 = vld [vmem:[%s1 + $0x4c8] sm:$0xff]
        %v680 = vld [vmem:[%s1 + $0x4d0] sm:$0xff]
        %v681 = vld [vmem:[%s1 + $0x4d8] sm:$0xff]
        %v682 = vld [vmem:[%s1 + $0x4e0] sm:$0xff]
        %v683 = vld [vmem:[%s1 + $0x4e8] sm:$0xff]
        %v684 = vld [vmem:[%s1 + $0x4f0] sm:$0xff]
        %v685 = vld [vmem:[%s1 + $0x4f8] sm:$0xff]
        %v686 = vld [vmem:[%s1 + $0x500] sm:$0xff]
        %v687 = vld [vmem:[%s1 + $0x508] sm:$0xff]
        %v688 = vld [vmem:[%s1 + $0x510] sm:$0xff]
        %v689 = vld [vmem:[%s1 + $0x518] sm:$0xff]
        %v690 = vld [vmem:[%s1 + $0x520] sm:$0xff]
        %v691 = vld [vmem:[%s1 + $0x528] sm:$0xff]
        %v692 = vld [vmem:[%s1 + $0x530] sm:$0xff]
        %v693 = vld [vmem:[%s1 + $0x538] sm:$0xff]
        %v694 = vld [vmem:[%s1 + $0x540] sm:$0xff]
        %v695 = vld [vmem:[%s1 + $0x548] sm:$0xff]
        %v696 = vld [vmem:[%s1 + $0x550] sm:$0xff]
        %v697 = vld [vmem:[%s1 + $0x558] sm:$0xff]
        %v698 = vld [vmem:[%s1 + $0x560] sm:$0xff]
        %v699 = vld [vmem:[%s1 + $0x568] sm:$0xff]
        %v700 = vld [vmem:[%s1 + $0x570] sm:$0xff]
        %v701 = vld [vmem:[%s1 + $0x578] sm:$0xff]
        %v702 = vld [vmem:[%s1 + $0x580] sm:$0xff]
        %v703 = vld [vmem:[%s1 + $0x588] sm:$0xff]
        %v704 = vld [vmem:[%s1 + $0x590] sm:$0xff]
        %v705 = vld [vmem:[%s1 + $0x598] sm:$0xff]
        %v706 = vld [vmem:[%s1 + $0x5a0] sm:$0xff]
        %v707 = vld [vmem:[%s1 + $0x5a8] sm:$0xff]
        %v708 = vld [vmem:[%s1 + $0x5b0] sm:$0xff]
        %v709 = vld [vmem:[%s1 + $0x5b8] sm:$0xff]
        %v710 = vld [vmem:[%s1 + $0x5c0] sm:$0xff]
        %v711 = vld [vmem:[%s1 + $0x5c8] sm:$0xff]
        %v712 = vld [vmem:[%s1 + $0x5d0] sm:$0xff]
        %v713 = vld [vmem:[%s1 + $0x5d8] sm:$0xff]
        %v714 = vld [vmem:[%s1 + $0x5e0] sm:$0xff]
        %v715 = vld [vmem:[%s1 + $0x5e8] sm:$0xff]
        %v716 = vld [vmem:[%s1 + $0x5f0] sm:$0xff]
        %v717 = vld [vmem:[%s1 + $0x5f8] sm:$0xff]
        %v718 = vld [vmem:[%s1 + $0x600] sm:$0xff]
        %v719 = vld [vmem:[%s1 + $0x608] sm:$0xff]
        %v720 = vld [vmem:[%s1 + $0x610] sm:$0xff]
        %v721 = vld [vmem:[%s1 + $0x618] sm:$0xff]
        %v722 = vld [vmem:[%s1 + $0x620] sm:$0xff]
        %v723 = vld [vmem:[%s1 + $0x628] sm:$0xff]
        %v724 = vld [vmem:[%s1 + $0x630] sm:$0xff]
        %v725 = vld [vmem:[%s1 + $0x638] sm:$0xff]
        %v726 = vld [vmem:[%s1 + $0x640] sm:$0xff]
        %v727 = vld [vmem:[%s1 + $0x648] sm:$0xff]
        %v728 = vld [vmem:[%s1 + $0x650] sm:$0xff]
        %v729 = vld [vmem:[%s1 + $0x658] sm:$0xff]
        %v730 = vld [vmem:[%s1 + $0x660] sm:$0xff]
        %v731 = vld [vmem:[%s1 + $0x668] sm:$0xff]
        %v732 = vld [vmem:[%s1 + $0x670] sm:$0xff]
        %v733 = vld [vmem:[%s1 + $0x678] sm:$0xff]
        %v734 = vld [vmem:[%s1 + $0x680] sm:$0xff]
        %v735 = vld [vmem:[%s1 + $0x688] sm:$0xff]
        %v736 = vld [vmem:[%s1 + $0x690] sm:$0xff]
        %v737 = vld [vmem:[%s1 + $0x698] sm:$0xff]
        %v738 = vld [vmem:[%s1 + $0x6a0] sm:$0xff]
        %v739 = vld [vmem:[%s1 + $0x6a8] sm:$0xff]
        %v740 = vld [vmem:[%s1 + $0x6b0] sm:$0xff]
        %v741 = vld [vmem:[%s1 + $0x6b8] sm:$0xff]
        %v742 = vld [vmem:[%s1 + $0x6c0] sm:$0xff]
        %v743 = vld [vmem:[%s1 + $0x6c8] sm:$0xff]
        %v744 = vld [vmem:[%s1 + $0x6d0] sm:$0xff]
        %v745 = vld [vmem:[%s1 + $0x6d8] sm:$0xff]
        %v746 = vld [vmem:[%s1 + $0x6e0] sm:$0xff]
        %v747 = vld [vmem:[%s1 + $0x6e8] sm:$0xff]
        %v748 = vld [vmem:[%s1 + $0x6f0] sm:$0xff]
        %v749 = vld [vmem:[%s1 + $0x6f8] sm:$0xff]
        %v750 = vld [vmem:[%s1 + $0x700] sm:$0xff]
        %v751 = vld [vmem:[%s1 + $0x708] sm:$0xff]
        %v752 = vld [vmem:[%s1 + $0x710] sm:$0xff]
        %v753 = vld [vmem:[%s1 + $0x718] sm:$0xff]
        %v754 = vld [vmem:[%s1 + $0x720] sm:$0xff]
        %v755 = vld [vmem:[%s1 + $0x728] sm:$0xff]
        %v756 = vld [vmem:[%s1 + $0x730] sm:$0xff]
        %v757 = vld [vmem:[%s1 + $0x738] sm:$0xff]
        %v758 = vld [vmem:[%s1 + $0x740] sm:$0xff]
        %v759 = vld [vmem:[%s1 + $0x748] sm:$0xff]
        %v760 = vld [vmem:[%s1 + $0x750] sm:$0xff]
        %v761 = vld [vmem:[%s1 + $0x758] sm:$0xff]
        %v762 = vld [vmem:[%s1 + $0x760] sm:$0xff]
        %v763 = vld [vmem:[%s1 + $0x768] sm:$0xff]
        %v764 = vld [vmem:[%s1 + $0x770] sm:$0xff]
        %v765 = vld [vmem:[%s1 + $0x778] sm:$0xff]
        %v766 = vld [vmem:[%s1 + $0x780] sm:$0xff]
        %v767 = vld [vmem:[%s1 + $0x788] sm:$0xff]
        %v768 = vld [vmem:[%s1 + $0x790] sm:$0xff]
        %v769 = vld [vmem:[%s1 + $0x798] sm:$0xff]
        %v770 = vld [vmem:[%s1 + $0x7a0] sm:$0xff]
        %v771 = vld [vmem:[%s1 + $0x7a8] sm:$0xff]
        %v772 = vld [vmem:[%s1 + $0x7b0] sm:$0xff]
        %v773 = vld [vmem:[%s1 + $0x7b8] sm:$0xff]
        %v774 = vld [vmem:[%s1 + $0x7c0] sm:$0xff]
        %v775 = vld [vmem:[%s1 + $0x7c8] sm:$0xff]
        %v776 = vld [vmem:[%s1 + $0x7d0] sm:$0xff]
        %v777 = vld [vmem:[%s1 + $0x7d8] sm:$0xff]
        %v778 = vld [vmem:[%s1 + $0x7e0] sm:$0xff]
        %v779 = vld [vmem:[%s1 + $0x7e8] sm:$0xff]
        %v780 = vld [vmem:[%s1 + $0x7f0] sm:$0xff]
        %v781 = vld [vmem:[%s1 + $0x7f8] sm:$0xff]
        %v782 = vld [vmem:[%s1 + $0x800] sm:$0xff]
        %v783 = vld [vmem:[%s1 + $0x808] sm:$0xff]
        %v784 = vld [vmem:[%s1 + $0x810] sm:$0xff]
        %v785 = vld [vmem:[%s1 + $0x818] sm:$0xff]
        %v786 = vld [vmem:[%s1 + $0x820] sm:$0xff]
        %v787 = vld [vmem:[%s1 + $0x828] sm:$0xff]
        %v788 = vld [vmem:[%s1 + $0x830] sm:$0xff]
        %v789 = vld [vmem:[%s1 + $0x838] sm:$0xff]
        %v790 = vld [vmem:[%s1 + $0x840] sm:$0xff]
        %v791 = vld [vmem:[%s1 + $0x848] sm:$0xff]
        %v792 = vld [vmem:[%s1 + $0x850] sm:$0xff]
        %v793 = vld [vmem:[%s1 + $0x858] sm:$0xff]
        %v794 = vld [vmem:[%s1 + $0x860] sm:$0xff]
        %v795 = vld [vmem:[%s1 + $0x868] sm:$0xff]
        %v796 = vld [vmem:[%s1 + $0x870] sm:$0xff]
        %v797 = vld [vmem:[%s1 + $0x878] sm:$0xff]
        %v798 = vld [vmem:[%s1 + $0x880] sm:$0xff]
        %v799 = vld [vmem:[%s1 + $0x888] sm:$0xff]
        %v800 = vld [vmem:[%s1 + $0x890] sm:$0xff]
        %v801 = vld [vmem:[%s1 + $0x898] sm:$0xff]
        %v802 = vld [vmem:[%s1 + $0x8a0] sm:$0xff]
        %v803 = vld [vmem:[%s1 + $0x8a8] sm:$0xff]
        %v804 = vld [vmem:[%s1 + $0x8b0] sm:$0xff]
        %v805 = vld [vmem:[%s1 + $0x8b8] sm:$0xff]
        %v806 = vld [vmem:[%s1 + $0x8c0] sm:$0xff]
        %v807 = vld [vmem:[%s1 + $0x8c8] sm:$0xff]
        %v808 = vld [vmem:[%s1 + $0x8d0] sm:$0xff]
        %v809 = vld [vmem:[%s1 + $0x8d8] sm:$0xff]
        %v810 = vld [vmem:[%s1 + $0x8e0] sm:$0xff]
        %v811 = vld [vmem:[%s1 + $0x8e8] sm:$0xff]
        %v812 = vld [vmem:[%s1 + $0x8f0] sm:$0xff]
        %v813 = vld [vmem:[%s1 + $0x8f8] sm:$0xff]
        %v814 = vld [vmem:[%s1 + $0x900] sm:$0xff]
        %v815 = vld [vmem:[%s1 + $0x908] sm:$0xff]
        %v816 = vld [vmem:[%s1 + $0x910] sm:$0xff]
        %v817 = vld [vmem:[%s1 + $0x918] sm:$0xff]
        %v818 = vld [vmem:[%s1 + $0x920] sm:$0xff]
        %v819 = vld [vmem:[%s1 + $0x928] sm:$0xff]
        %v820 = vld [vmem:[%s1 + $0x930] sm:$0xff]
        %v821 = vld [vmem:[%s1 + $0x938] sm:$0xff]
        %v822 = vld [vmem:[%s1 + $0x940] sm:$0xff]
        %v823 = vld [vmem:[%s1 + $0x948] sm:$0xff]
        %v824 = vld [vmem:[%s1 + $0x950] sm:$0xff]
        %v825 = vld [vmem:[%s1 + $0x958] sm:$0xff]
        %v826 = vld [vmem:[%s1 + $0x960] sm:$0xff]
        %v827 = vld [vmem:[%s1 + $0x968] sm:$0xff]
        %v828 = vld [vmem:[%s1 + $0x970] sm:$0xff]
        %v829 = vld [vmem:[%s1 + $0x978] sm:$0xff]
        %v830 = vld [vmem:[%s1 + $0x980] sm:$0xff]
        %v831 = vld [vmem:[%s1 + $0x988] sm:$0xff]
        %v832 = vld [vmem:[%s1 + $0x990] sm:$0xff]
        %v833 = vld [vmem:[%s1 + $0x998] sm:$0xff]
        %v834 = vld [vmem:[%s1 + $0x9a0] sm:$0xff]
        %v835 = vld [vmem:[%s1 + $0x9a8] sm:$0xff]
        %v836 = vld [vmem:[%s1 + $0x9b0] sm:$0xff]
        %v837 = vld [vmem:[%s1 + $0x9b8] sm:$0xff]
        %v838 = vld [vmem:[%s1 + $0x9c0] sm:$0xff]
        %v839 = vld [vmem:[%s1 + $0x9c8] sm:$0xff]
        %v840 = vld [vmem:[%s1 + $0x9d0] sm:$0xff]
        %v841 = vld [vmem:[%s1 + $0x9d8] sm:$0xff]
        %v842 = vld [vmem:[%s1 + $0x9e0] sm:$0xff]
        %v843 = vld [vmem:[%s1 + $0x9e8] sm:$0xff]
        %v844 = vld [vmem:[%s1 + $0x9f0] sm:$0xff]
        %v845 = vld [vmem:[%s1 + $0x9f8] sm:$0xff]
        %v846 = vld [vmem:[%s1 + $0xa00] sm:$0xff]
        %v847 = vld [vmem:[%s1 + $0xa08] sm:$0xff]
        %v848 = vld [vmem:[%s1 + $0xa10] sm:$0xff]
        %v849 = vld [vmem:[%s1 + $0xa18] sm:$0xff]
        %v850 = vld [vmem:[%s1 + $0xa20] sm:$0xff]
        %v851 = vld [vmem:[%s1 + $0xa28] sm:$0xff]
        %v852 = vld [vmem:[%s1 + $0xa30] sm:$0xff]
        %v853 = vld [vmem:[%s1 + $0xa38] sm:$0xff]
        %v854 = vld [vmem:[%s1 + $0xa40] sm:$0xff]
        %v855 = vld [vmem:[%s1 + $0xa48] sm:$0xff]
        %v856 = vld [vmem:[%s1 + $0xa50] sm:$0xff]
        %v857 = vld [vmem:[%s1 + $0xa58] sm:$0xff]
        %v858 = vld [vmem:[%s1 + $0xa60] sm:$0xff]
        %v859 = vld [vmem:[%s1 + $0xa68] sm:$0xff]
        %v860 = vld [vmem:[%s1 + $0xa70] sm:$0xff]
        %v861 = vld [vmem:[%s1 + $0xa78] sm:$0xff]
        %v862 = vld [vmem:[%s1 + $0xa80] sm:$0xff]
        %v863 = vld [vmem:[%s1 + $0xa88] sm:$0xff]
        %v864 = vld [vmem:[%s1 + $0xa90] sm:$0xff]
        %v865 = vld [vmem:[%s1 + $0xa98] sm:$0xff]
        %v866 = vld [vmem:[%s1 + $0xaa0] sm:$0xff]
        %v867 = vld [vmem:[%s1 + $0xaa8] sm:$0xff]
        %v868 = vld [vmem:[%s1 + $0xab0] sm:$0xff]
        %v869 = vld [vmem:[%s1 + $0xab8] sm:$0xff]
        %v870 = vld [vmem:[%s1 + $0xac0] sm:$0xff]
        %v871 = vld [vmem:[%s1 + $0xac8] sm:$0xff]
        %v872 = vld [vmem:[%s1 + $0xad0] sm:$0xff]
        %v873 = vld [vmem:[%s1 + $0xad8] sm:$0xff]
        %v874 = vld [vmem:[%s1 + $0xae0] sm:$0xff]
        %v875 = vld [vmem:[%s1 + $0xae8] sm:$0xff]
        %v876 = vld [vmem:[%s1 + $0xaf0] sm:$0xff]
        %v877 = vld [vmem:[%s1 + $0xaf8] sm:$0xff]
        %v878 = vld [vmem:[%s1 + $0xb00] sm:$0xff]
        %v879 = vld [vmem:[%s1 + $0xb08] sm:$0xff]
        %v880 = vld [vmem:[%s1 + $0xb10] sm:$0xff]
        %v881 = vld [vmem:[%s1 + $0xb18] sm:$0xff]
        %v882 = vld [vmem:[%s1 + $0xb20] sm:$0xff]
        %v883 = vld [vmem:[%s1 + $0xb28] sm:$0xff]
        %v884 = vld [vmem:[%s1 + $0xb30] sm:$0xff]
        %v885 = vld [vmem:[%s1 + $0xb38] sm:$0xff]
        %v886 = vld [vmem:[%s1 + $0xb40] sm:$0xff]
        %v887 = vld [vmem:[%s1 + $0xb48] sm:$0xff]
        %v888 = vld [vmem:[%s1 + $0xb50] sm:$0xff]
        %v889 = vld [vmem:[%s1 + $0xb58] sm:$0xff]
        %v890 = vld [vmem:[%s1 + $0xb60] sm:$0xff]
        %v891 = vld [vmem:[%s1 + $0xb68] sm:$0xff]
        %v892 = vld [vmem:[%s1 + $0xb70] sm:$0xff]
        %v893 = vld [vmem:[%s1 + $0xb78] sm:$0xff]
        %v894 = vld [vmem:[%s1 + $0xb80] sm:$0xff]
        %v895 = vld [vmem:[%s1 + $0xb88] sm:$0xff]
        %v896 = vld [vmem:[%s1 + $0xb90] sm:$0xff]
        %v897 = vld [vmem:[%s1 + $0xb98] sm:$0xff]
        %v898 = vld [vmem:[%s1 + $0xba0] sm:$0xff]
        %v899 = vld [vmem:[%s1 + $0xba8] sm:$0xff]
        %v900 = vld [vmem:[%s1 + $0xbb0] sm:$0xff]
        %v901 = vld [vmem:[%s1 + $0xbb8] sm:$0xff]
        %v902 = vld [vmem:[%s1 + $0xbc0] sm:$0xff]
        %v903 = vld [vmem:[%s1 + $0xbc8] sm:$0xff]
        %v904 = vld [vmem:[%s1 + $0xbd0] sm:$0xff]
        %v905 = vld [vmem:[%s1 + $0xbd8] sm:$0xff]
        %v906 = vld [vmem:[%s1 + $0xbe0] sm:$0xff]
        %v907 = vld [vmem:[%s1 + $0xbe8] sm:$0xff]
        %v908 = vld [vmem:[%s1 + $0xbf0] sm:$0xff]
        %v909 = vld [vmem:[%s1 + $0xbf8] sm:$0xff]
        %v910 = vld [vmem:[%s1 + $0xc00] sm:$0xff]
        %v911 = vld [vmem:[%s1 + $0xc08] sm:$0xff]
        %v912 = vld [vmem:[%s1 + $0xc10] sm:$0xff]
        %v913 = vld [vmem:[%s1 + $0xc18] sm:$0xff]
        %v914 = vld [vmem:[%s1 + $0xc20] sm:$0xff]
        %v915 = vld [vmem:[%s1 + $0xc28] sm:$0xff]
        %v916 = vld [vmem:[%s1 + $0xc30] sm:$0xff]
        %v917 = vld [vmem:[%s1 + $0xc38] sm:$0xff]
        %v918 = vld [vmem:[%s1 + $0xc40] sm:$0xff]
        %v919 = vld [vmem:[%s1 + $0xc48] sm:$0xff]
        %v920 = vld [vmem:[%s1 + $0xc50] sm:$0xff]
        %v921 = vld [vmem:[%s1 + $0xc58] sm:$0xff]
        %v922 = vld [vmem:[%s1 + $0xc60] sm:$0xff]
        %v923 = vld [vmem:[%s1 + $0xc68] sm:$0xff]
        %v924 = vld [vmem:[%s1 + $0xc70] sm:$0xff]
        %v925 = vld [vmem:[%s1 + $0xc78] sm:$0xff]
        %v926 = vld [vmem:[%s1 + $0xc80] sm:$0xff]
        %v927 = vld [vmem:[%s1 + $0xc88] sm:$0xff]
        %v928 = vld [vmem:[%s1 + $0xc90] sm:$0xff]
        %v929 = vld [vmem:[%s1 + $0xc98] sm:$0xff]
        %v930 = vld [vmem:[%s1 + $0xca0] sm:$0xff]
        %v931 = vld [vmem:[%s1 + $0xca8] sm:$0xff]
        %v932 = vld [vmem:[%s1 + $0xcb0] sm:$0xff]
        %v933 = vld [vmem:[%s1 + $0xcb8] sm:$0xff]
        %v934 = vld [vmem:[%s1 + $0xcc0] sm:$0xff]
        %v935 = vld [vmem:[%s1 + $0xcc8] sm:$0xff]
        %v936 = vld [vmem:[%s1 + $0xcd0] sm:$0xff]
        %v937 = vld [vmem:[%s1 + $0xcd8] sm:$0xff]
        %v938 = vld [vmem:[%s1 + $0xce0] sm:$0xff]
        %v939 = vld [vmem:[%s1 + $0xce8] sm:$0xff]
        %v940 = vld [vmem:[%s1 + $0xcf0] sm:$0xff]
        %v941 = vld [vmem:[%s1 + $0xcf8] sm:$0xff]
        %v942 = vld [vmem:[%s1 + $0xd00] sm:$0xff]
        %v943 = vld [vmem:[%s1 + $0xd08] sm:$0xff]
        %v944 = vld [vmem:[%s1 + $0xd10] sm:$0xff]
        %v945 = vld [vmem:[%s1 + $0xd18] sm:$0xff]
        %v946 = vld [vmem:[%s1 + $0xd20] sm:$0xff]
        %v947 = vld [vmem:[%s1 + $0xd28] sm:$0xff]
        %v948 = vld [vmem:[%s1 + $0xd30] sm:$0xff]
        %v949 = vld [vmem:[%s1 + $0xd38] sm:$0xff]
        %v950 = vld [vmem:[%s1 + $0xd40] sm:$0xff]
        %v951 = vld [vmem:[%s1 + $0xd48] sm:$0xff]
        %v952 = vld [vmem:[%s1 + $0xd50] sm:$0xff]
        %v953 = vld [vmem:[%s1 + $0xd58] sm:$0xff]
        %v954 = vld [vmem:[%s1 + $0xd60] sm:$0xff]
        %v955 = vld [vmem:[%s1 + $0xd68] sm:$0xff]
        %v956 = vld [vmem:[%s1 + $0xd70] sm:$0xff]
        %v957 = vld [vmem:[%s1 + $0xd78] sm:$0xff]
        %v958 = vld [vmem:[%s1 + $0xd80] sm:$0xff]
        %v959 = vld [vmem:[%s1 + $0xd88] sm:$0xff]
        %v960 = vld [vmem:[%s1 + $0xd90] sm:$0xff]
        %v961 = vld [vmem:[%s1 + $0xd98] sm:$0xff]
        %v962 = vld [vmem:[%s1 + $0xda0] sm:$0xff]
        %v963 = vld [vmem:[%s1 + $0xda8] sm:$0xff]
        %v964 = vld [vmem:[%s1 + $0xdb0] sm:$0xff]
        %v965 = vld [vmem:[%s1 + $0xdb8] sm:$0xff]
        %v966 = vld [vmem:[%s1 + $0xdc0] sm:$0xff]
        %v967 = vld [vmem:[%s1 + $0xdc8] sm:$0xff]
        %v968 = vld [vmem:[%s1 + $0xdd0] sm:$0xff]
        %v969 = vld [vmem:[%s1 + $0xdd8] sm:$0xff]
        %v970 = vld [vmem:[%s1 + $0xde0] sm:$0xff]
        %v971 = vld [vmem:[%s1 + $0xde8] sm:$0xff]
        %v972 = vld [vmem:[%s1 + $0xdf0] sm:$0xff]
        %v973 = vld [vmem:[%s1 + $0xdf8] sm:$0xff]
        %v974 = vld [vmem:[%s1 + $0xe00] sm:$0xff]
        %v975 = vld [vmem:[%s1 + $0xe08] sm:$0xff]
        %v976 = vld [vmem:[%s1 + $0xe10] sm:$0xff]
        %v977 = vld [vmem:[%s1 + $0xe18] sm:$0xff]
        %v978 = vld [vmem:[%s1 + $0xe20] sm:$0xff]
        %v979 = vld [vmem:[%s1 + $0xe28] sm:$0xff]
        %v980 = vld [vmem:[%s1 + $0xe30] sm:$0xff]
        %v981 = vld [vmem:[%s1 + $0xe38] sm:$0xff]
        %v982 = vld [vmem:[%s1 + $0xe40] sm:$0xff]
        %v983 = vld [vmem:[%s1 + $0xe48] sm:$0xff]
        %v984 = vld [vmem:[%s1 + $0xe50] sm:$0xff]
        %v985 = vld [vmem:[%s1 + $0xe58] sm:$0xff]
        %v986 = vld [vmem:[%s1 + $0xe60] sm:$0xff]
        %v987 = vld [vmem:[%s1 + $0xe68] sm:$0xff]
        %v988 = vld [vmem:[%s1 + $0xe70] sm:$0xff]
        %v989 = vld [vmem:[%s1 + $0xe78] sm:$0xff]
        %v990 = vld [vmem:[%s1 + $0xe80] sm:$0xff]
        %v991 = vld [vmem:[%s1 + $0xe88] sm:$0xff]
        %v992 = vld [vmem:[%s1 + $0xe90] sm:$0xff]
        %v993 = vld [vmem:[%s1 + $0xe98] sm:$0xff]
        %v994 = vld [vmem:[%s1 + $0xea0] sm:$0xff]
        %v995 = vld [vmem:[%s1 + $0xea8] sm:$0xff]
        %v996 = vld [vmem:[%s1 + $0xeb0] sm:$0xff]
        %v997 = vld [vmem:[%s1 + $0xeb8] sm:$0xff]
        %v998 = vld [vmem:[%s1 + $0xec0] sm:$0xff]
        %v999 = vld [vmem:[%s1 + $0xec8] sm:$0xff]
        %v1000 = vld [vmem:[%s1 + $0xed0] sm:$0xff]
        %v1001 = vld [vmem:[%s1 + $0xed8] sm:$0xff]
        %v1002 = vld [vmem:[%s1 + $0xee0] sm:$0xff]
        %v1003 = vld [vmem:[%s1 + $0xee8] sm:$0xff]
        %v1004 = vld [vmem:[%s1 + $0xef0] sm:$0xff]
        %v1005 = vld [vmem:[%s1 + $0xef8] sm:$0xff]
        %v1006 = vld [vmem:[%s2] sm:$0x1f]
        %v1008 = vlaneseq
        %v1009 = vshrl.u32 %v1008, 7
        %v1010 = vsub.s32 0, %v1009
        %v1011 = vrot.slane %v1006, %v1010
        %v1012 = vlaneseq
        %v1013 = vshrl.u32 %v1012, 7
        %v1014 = vsub.s32 1, %v1013
        %v1015 = vrot.slane %v1006, %v1014
        %v1016 = vlaneseq
        %v1017 = vshrl.u32 %v1016, 7
        %v1018 = vsub.s32 2, %v1017
        %v1019 = vrot.slane %v1006, %v1018
        %v1020 = vlaneseq
        %v1021 = vshrl.u32 %v1020, 7
        %v1022 = vsub.s32 3, %v1021
        %v1023 = vrot.slane %v1006, %v1022
        %v1024 = vlaneseq
        %v1025 = vshrl.u32 %v1024, 7
        %v1026 = vsub.s32 4, %v1025
        %v1027 = vrot.slane %v1006, %v1026
        %1033 = vmatprep.subr.mxu0 %v602
        %1034 = vmatpush1.msra.mxu0 %v601
        %1035 = vmatprep.subr.mxu0 %v597
        %1036 = vmatpush1.msra.mxu0 %v596
        %1037 = vmatprep.subr.mxu0 %v592
        %1038 = vmatpush1.msra.mxu0 %v591
        %1039 = vmatprep.subr.mxu0 %v587
        %1040 = vmatpush1.msra.mxu0 %v586
        %1041 = vmatprep.subr.mxu0 %v582
        %1042 = vmatpush1.msra.mxu0 %v581
        %1043 = vmatprep.subr.mxu0 %v577
        %1044 = vmatpush1.msra.mxu0 %v576
        %1045 = vmatprep.subr.mxu0 %v572
        %1046 = vmatpush1.msra.mxu0 %v571
        %1047 = vmatprep.subr.mxu0 %v567
        %1048 = vmatpush1.msra.mxu0 %v566
        %1049 = vmatprep.subr.mxu0 %v562
        %1050 = vmatpush1.msra.mxu0 %v561
        %1051 = vmatprep.subr.mxu0 %v557
        %1052 = vmatpush1.msra.mxu0 %v556
        %1053 = vmatprep.subr.mxu0 %v552
        %1054 = vmatpush1.msra.mxu0 %v551
        %1055 = vmatprep.subr.mxu0 %v547
        %1056 = vmatpush1.msra.mxu0 %v546
        %1057 = vmatprep.subr.mxu0 %v542
        %1058 = vmatpush1.msra.mxu0 %v541
        %1059 = vmatprep.subr.mxu0 %v537
        %1060 = vmatpush1.msra.mxu0 %v536
        %1061 = vmatprep.subr.mxu0 %v532
        %1062 = vmatpush1.msra.mxu0 %v531
        %1063 = vmatprep.subr.mxu0 %v527
        %1064 = vmatpush1.msra.mxu0 %v526
        %1065 = vmatprep.subr.mxu0 %v682
        %1066 = vmatpush2.msra.mxu0 %v681
        %1067 = vmatprep.subr.mxu0 %v677
        %1068 = vmatpush2.msra.mxu0 %v676
        %1069 = vmatprep.subr.mxu0 %v672
        %1070 = vmatpush2.msra.mxu0 %v671
        %1071 = vmatprep.subr.mxu0 %v667
        %1072 = vmatpush2.msra.mxu0 %v666
        %1073 = vmatprep.subr.mxu0 %v662
        %1074 = vmatpush2.msra.mxu0 %v661
        %1075 = vmatprep.subr.mxu0 %v657
        %1076 = vmatpush2.msra.mxu0 %v656
        %1077 = vmatprep.subr.mxu0 %v652
        %1078 = vmatpush2.msra.mxu0 %v651
        %1079 = vmatprep.subr.mxu0 %v647
        %1080 = vmatpush2.msra.mxu0 %v646
        %1081 = vmatprep.subr.mxu0 %v642
        %1082 = vmatpush2.msra.mxu0 %v641
        %1083 = vmatprep.subr.mxu0 %v637
        %1084 = vmatpush2.msra.mxu0 %v636
        %1085 = vmatprep.subr.mxu0 %v632
        %1086 = vmatpush2.msra.mxu0 %v631
        %1087 = vmatprep.subr.mxu0 %v627
        %1088 = vmatpush2.msra.mxu0 %v626
        %1089 = vmatprep.subr.mxu0 %v622
        %1090 = vmatpush2.msra.mxu0 %v621
        %1091 = vmatprep.subr.mxu0 %v617
        %1092 = vmatpush2.msra.mxu0 %v616
        %1093 = vmatprep.subr.mxu0 %v612
        %1094 = vmatpush2.msra.mxu0 %v611
        %1095 = vmatprep.subr.mxu0 %v607
        %1096 = vmatpush2.msra.mxu0 %v606
        %1097 = vmatprep.mubr.f32.mxu0 %v521
        %1098 = vmatmul.mubr.f32.gmra.mxu0 %v520
        %v1099 = vpop.f32.mrf.mxu0
        %v1100 = vadd.f32 %v1011, %v1099
        %v1101 = vpop.f32.mrf.mxu0
        %v1102 = vadd.f32 %v1015, %v1101
        %1103 = vdwg.mxu0
        %1104 = vmatprep.subr.mxu0 %v762
        %1105 = vmatpush1.msra.mxu0 %v761
        %1106 = vmatprep.subr.mxu0 %v757
        %1107 = vmatpush1.msra.mxu0 %v756
        %1108 = vmatprep.subr.mxu0 %v752
        %1109 = vmatpush1.msra.mxu0 %v751
        %1110 = vmatprep.subr.mxu0 %v747
        %1111 = vmatpush1.msra.mxu0 %v746
        %1112 = vmatprep.subr.mxu0 %v742
        %1113 = vmatpush1.msra.mxu0 %v741
        %1114 = vmatprep.subr.mxu0 %v737
        %1115 = vmatpush1.msra.mxu0 %v736
        %1116 = vmatprep.subr.mxu0 %v732
        %1117 = vmatpush1.msra.mxu0 %v731
        %1118 = vmatprep.subr.mxu0 %v727
        %1119 = vmatpush1.msra.mxu0 %v726
        %1120 = vmatprep.subr.mxu0 %v722
        %1121 = vmatpush1.msra.mxu0 %v721
        %1122 = vmatprep.subr.mxu0 %v717
        %1123 = vmatpush1.msra.mxu0 %v716
        %1124 = vmatprep.subr.mxu0 %v712
        %1125 = vmatpush1.msra.mxu0 %v711
        %1126 = vmatprep.subr.mxu0 %v707
        %1127 = vmatpush1.msra.mxu0 %v706
        %1128 = vmatprep.subr.mxu0 %v702
        %1129 = vmatpush1.msra.mxu0 %v701
        %1130 = vmatprep.subr.mxu0 %v697
        %1131 = vmatpush1.msra.mxu0 %v696
        %1132 = vmatprep.subr.mxu0 %v692
        %1133 = vmatpush1.msra.mxu0 %v691
        %1134 = vmatprep.subr.mxu0 %v687
        %1135 = vmatpush1.msra.mxu0 %v686
        %1136 = vmatprep.subr.mxu0 %v842
        %1137 = vmatpush2.msra.mxu0 %v841
        %1138 = vmatprep.subr.mxu0 %v837
        %1139 = vmatpush2.msra.mxu0 %v836
        %1140 = vmatprep.subr.mxu0 %v832
        %1141 = vmatpush2.msra.mxu0 %v831
        %1142 = vmatprep.subr.mxu0 %v827
        %1143 = vmatpush2.msra.mxu0 %v826
        %1144 = vmatprep.subr.mxu0 %v822
        %1145 = vmatpush2.msra.mxu0 %v821
        %1146 = vmatprep.subr.mxu0 %v817
        %1147 = vmatpush2.msra.mxu0 %v816
        %1148 = vmatprep.subr.mxu0 %v812
        %1149 = vmatpush2.msra.mxu0 %v811
        %1150 = vmatprep.subr.mxu0 %v807
        %1151 = vmatpush2.msra.mxu0 %v806
        %1152 = vmatprep.subr.mxu0 %v802
        %1153 = vmatpush2.msra.mxu0 %v801
        %1154 = vmatprep.subr.mxu0 %v797
        %1155 = vmatpush2.msra.mxu0 %v796
        %1156 = vmatprep.subr.mxu0 %v792
        %1157 = vmatpush2.msra.mxu0 %v791
        %1158 = vmatprep.subr.mxu0 %v787
        %1159 = vmatpush2.msra.mxu0 %v786
        %1160 = vmatprep.subr.mxu0 %v782
        %1161 = vmatpush2.msra.mxu0 %v781
        %1162 = vmatprep.subr.mxu0 %v777
        %1163 = vmatpush2.msra.mxu0 %v776
        %1164 = vmatprep.subr.mxu0 %v772
        %1165 = vmatpush2.msra.mxu0 %v771
        %1166 = vmatprep.subr.mxu0 %v767
        %1167 = vmatpush2.msra.mxu0 %v766
        %1168 = vmatprep.mubr.f32.mxu0 %v523
        %1169 = vmatmul.mubr.f32.gmra.mxu0 %v522
        %v1170 = vpop.f32.mrf.mxu0
        %v1171 = vadd.f32 %v1100, %v1170
        %v1172 = vpop.f32.mrf.mxu0
        %v1173 = vadd.f32 %v1102, %v1172
        %1174 = vdwg.mxu0
        %1175 = vmatprep.subr.mxu0 %v922
        %1176 = vmatpush1.msra.mxu0 %v921
        %1177 = vmatprep.subr.mxu0 %v917
        %1178 = vmatpush1.msra.mxu0 %v916
        %1179 = vmatprep.subr.mxu0 %v912
        %1180 = vmatpush1.msra.mxu0 %v911
        %1181 = vmatprep.subr.mxu0 %v907
        %1182 = vmatpush1.msra.mxu0 %v906
        %1183 = vmatprep.subr.mxu0 %v902
        %1184 = vmatpush1.msra.mxu0 %v901
        %1185 = vmatprep.subr.mxu0 %v897
        %1186 = vmatpush1.msra.mxu0 %v896
        %1187 = vmatprep.subr.mxu0 %v892
        %1188 = vmatpush1.msra.mxu0 %v891
        %1189 = vmatprep.subr.mxu0 %v887
        %1190 = vmatpush1.msra.mxu0 %v886
        %1191 = vmatprep.subr.mxu0 %v882
        %1192 = vmatpush1.msra.mxu0 %v881
        %1193 = vmatprep.subr.mxu0 %v877
        %1194 = vmatpush1.msra.mxu0 %v876
        %1195 = vmatprep.subr.mxu0 %v872
        %1196 = vmatpush1.msra.mxu0 %v871
        %1197 = vmatprep.subr.mxu0 %v867
        %1198 = vmatpush1.msra.mxu0 %v866
        %1199 = vmatprep.subr.mxu0 %v862
        %1200 = vmatpush1.msra.mxu0 %v861
        %1201 = vmatprep.subr.mxu0 %v857
        %1202 = vmatpush1.msra.mxu0 %v856
        %1203 = vmatprep.subr.mxu0 %v852
        %1204 = vmatpush1.msra.mxu0 %v851
        %1205 = vmatprep.subr.mxu0 %v847
        %1206 = vmatpush1.msra.mxu0 %v846
        %1207 = vmatprep.subr.mxu0 %v1002
        %1208 = vmatpush2.msra.mxu0 %v1001
        %1209 = vmatprep.subr.mxu0 %v997
        %1210 = vmatpush2.msra.mxu0 %v996
        %1211 = vmatprep.subr.mxu0 %v992
        %1212 = vmatpush2.msra.mxu0 %v991
        %1213 = vmatprep.subr.mxu0 %v987
        %1214 = vmatpush2.msra.mxu0 %v986
        %1215 = vmatprep.subr.mxu0 %v982
        %1216 = vmatpush2.msra.mxu0 %v981
        %1217 = vmatprep.subr.mxu0 %v977
        %1218 = vmatpush2.msra.mxu0 %v976
        %1219 = vmatprep.subr.mxu0 %v972
        %1220 = vmatpush2.msra.mxu0 %v971
        %1221 = vmatprep.subr.mxu0 %v967
        %1222 = vmatpush2.msra.mxu0 %v966
        %1223 = vmatprep.subr.mxu0 %v962
        %1224 = vmatpush2.msra.mxu0 %v961
        %1225 = vmatprep.subr.mxu0 %v957
        %1226 = vmatpush2.msra.mxu0 %v956
        %1227 = vmatprep.subr.mxu0 %v952
        %1228 = vmatpush2.msra.mxu0 %v951
        %1229 = vmatprep.subr.mxu0 %v947
        %1230 = vmatpush2.msra.mxu0 %v946
        %1231 = vmatprep.subr.mxu0 %v942
        %1232 = vmatpush2.msra.mxu0 %v941
        %1233 = vmatprep.subr.mxu0 %v937
        %1234 = vmatpush2.msra.mxu0 %v936
        %1235 = vmatprep.subr.mxu0 %v932
        %1236 = vmatpush2.msra.mxu0 %v931
        %1237 = vmatprep.subr.mxu0 %v927
        %1238 = vmatpush2.msra.mxu0 %v926
        %1239 = vmatprep.mubr.f32.mxu0 %v525
        %1240 = vmatmul.mubr.f32.gmra.mxu0 %v524
        %v1241 = vpop.f32.mrf.mxu0
        %v1242 = vadd.f32 %v1171, %v1241
        %v1243 = vpop.f32.mrf.mxu0
        %v1244 = vadd.f32 %v1173, %v1243
        %1245 = vdwg.mxu0
        %1246 = vmatprep.subr.mxu0 %v604
        %1247 = vmatpush1.msra.mxu0 %v603
        %1248 = vmatprep.subr.mxu0 %v599
        %1249 = vmatpush1.msra.mxu0 %v598
        %1250 = vmatprep.subr.mxu0 %v594
        %1251 = vmatpush1.msra.mxu0 %v593
        %1252 = vmatprep.subr.mxu0 %v589
        %1253 = vmatpush1.msra.mxu0 %v588
        %1254 = vmatprep.subr.mxu0 %v584
        %1255 = vmatpush1.msra.mxu0 %v583
        %1256 = vmatprep.subr.mxu0 %v579
        %1257 = vmatpush1.msra.mxu0 %v578
        %1258 = vmatprep.subr.mxu0 %v574
        %1259 = vmatpush1.msra.mxu0 %v573
        %1260 = vmatprep.subr.mxu0 %v569
        %1261 = vmatpush1.msra.mxu0 %v568
        %1262 = vmatprep.subr.mxu0 %v564
        %1263 = vmatpush1.msra.mxu0 %v563
        %1264 = vmatprep.subr.mxu0 %v559
        %1265 = vmatpush1.msra.mxu0 %v558
        %1266 = vmatprep.subr.mxu0 %v554
        %1267 = vmatpush1.msra.mxu0 %v553
        %1268 = vmatprep.subr.mxu0 %v549
        %1269 = vmatpush1.msra.mxu0 %v548
        %1270 = vmatprep.subr.mxu0 %v544
        %1271 = vmatpush1.msra.mxu0 %v543
        %1272 = vmatprep.subr.mxu0 %v539
        %1273 = vmatpush1.msra.mxu0 %v538
        %1274 = vmatprep.subr.mxu0 %v534
        %1275 = vmatpush1.msra.mxu0 %v533
        %1276 = vmatprep.subr.mxu0 %v529
        %1277 = vmatpush1.msra.mxu0 %v528
        %1278 = vmatprep.subr.mxu0 %v684
        %1279 = vmatpush2.msra.mxu0 %v683
        %1280 = vmatprep.subr.mxu0 %v679
        %1281 = vmatpush2.msra.mxu0 %v678
        %1282 = vmatprep.subr.mxu0 %v674
        %1283 = vmatpush2.msra.mxu0 %v673
        %1284 = vmatprep.subr.mxu0 %v669
        %1285 = vmatpush2.msra.mxu0 %v668
        %1286 = vmatprep.subr.mxu0 %v664
        %1287 = vmatpush2.msra.mxu0 %v663
        %1288 = vmatprep.subr.mxu0 %v659
        %1289 = vmatpush2.msra.mxu0 %v658
        %1290 = vmatprep.subr.mxu0 %v654
        %1291 = vmatpush2.msra.mxu0 %v653
        %1292 = vmatprep.subr.mxu0 %v649
        %1293 = vmatpush2.msra.mxu0 %v648
        %1294 = vmatprep.subr.mxu0 %v644
        %1295 = vmatpush2.msra.mxu0 %v643
        %1296 = vmatprep.subr.mxu0 %v639
        %1297 = vmatpush2.msra.mxu0 %v638
        %1298 = vmatprep.subr.mxu0 %v634
        %1299 = vmatpush2.msra.mxu0 %v633
        %1300 = vmatprep.subr.mxu0 %v629
        %1301 = vmatpush2.msra.mxu0 %v628
        %1302 = vmatprep.subr.mxu0 %v624
        %1303 = vmatpush2.msra.mxu0 %v623
        %1304 = vmatprep.subr.mxu0 %v619
        %1305 = vmatpush2.msra.mxu0 %v618
        %1306 = vmatprep.subr.mxu0 %v614
        %1307 = vmatpush2.msra.mxu0 %v613
        %1308 = vmatprep.subr.mxu0 %v609
        %1309 = vmatpush2.msra.mxu0 %v608
        %1310 = vmatprep.mubr.f32.mxu0 %v521
        %1311 = vmatmul.mubr.f32.gmra.mxu0 %v520
        %v1312 = vpop.f32.mrf.mxu0
        %v1313 = vadd.f32 %v1019, %v1312
        %v1314 = vpop.f32.mrf.mxu0
        %v1315 = vadd.f32 %v1023, %v1314
        %1316 = vdwg.mxu0
        %1317 = vmatprep.subr.mxu0 %v764
        %1318 = vmatpush1.msra.mxu0 %v763
        %1319 = vmatprep.subr.mxu0 %v759
        %1320 = vmatpush1.msra.mxu0 %v758
        %1321 = vmatprep.subr.mxu0 %v754
        %1322 = vmatpush1.msra.mxu0 %v753
        %1323 = vmatprep.subr.mxu0 %v749
        %1324 = vmatpush1.msra.mxu0 %v748
        %1325 = vmatprep.subr.mxu0 %v744
        %1326 = vmatpush1.msra.mxu0 %v743
        %1327 = vmatprep.subr.mxu0 %v739
        %1328 = vmatpush1.msra.mxu0 %v738
        %1329 = vmatprep.subr.mxu0 %v734
        %1330 = vmatpush1.msra.mxu0 %v733
        %1331 = vmatprep.subr.mxu0 %v729
        %1332 = vmatpush1.msra.mxu0 %v728
        %1333 = vmatprep.subr.mxu0 %v724
        %1334 = vmatpush1.msra.mxu0 %v723
        %1335 = vmatprep.subr.mxu0 %v719
        %1336 = vmatpush1.msra.mxu0 %v718
        %1337 = vmatprep.subr.mxu0 %v714
        %1338 = vmatpush1.msra.mxu0 %v713
        %1339 = vmatprep.subr.mxu0 %v709
        %1340 = vmatpush1.msra.mxu0 %v708
        %1341 = vmatprep.subr.mxu0 %v704
        %1342 = vmatpush1.msra.mxu0 %v703
        %1343 = vmatprep.subr.mxu0 %v699
        %1344 = vmatpush1.msra.mxu0 %v698
        %1345 = vmatprep.subr.mxu0 %v694
        %1346 = vmatpush1.msra.mxu0 %v693
        %1347 = vmatprep.subr.mxu0 %v689
        %1348 = vmatpush1.msra.mxu0 %v688
        %1349 = vmatprep.subr.mxu0 %v844
        %1350 = vmatpush2.msra.mxu0 %v843
        %1351 = vmatprep.subr.mxu0 %v839
        %1352 = vmatpush2.msra.mxu0 %v838
        %1353 = vmatprep.subr.mxu0 %v834
        %1354 = vmatpush2.msra.mxu0 %v833
        %1355 = vmatprep.subr.mxu0 %v829
        %1356 = vmatpush2.msra.mxu0 %v828
        %1357 = vmatprep.subr.mxu0 %v824
        %1358 = vmatpush2.msra.mxu0 %v823
        %1359 = vmatprep.subr.mxu0 %v819
        %1360 = vmatpush2.msra.mxu0 %v818
        %1361 = vmatprep.subr.mxu0 %v814
        %1362 = vmatpush2.msra.mxu0 %v813
        %1363 = vmatprep.subr.mxu0 %v809
        %1364 = vmatpush2.msra.mxu0 %v808
        %1365 = vmatprep.subr.mxu0 %v804
        %1366 = vmatpush2.msra.mxu0 %v803
        %1367 = vmatprep.subr.mxu0 %v799
        %1368 = vmatpush2.msra.mxu0 %v798
        %1369 = vmatprep.subr.mxu0 %v794
        %1370 = vmatpush2.msra.mxu0 %v793
        %1371 = vmatprep.subr.mxu0 %v789
        %1372 = vmatpush2.msra.mxu0 %v788
        %1373 = vmatprep.subr.mxu0 %v784
        %1374 = vmatpush2.msra.mxu0 %v783
        %1375 = vmatprep.subr.mxu0 %v779
        %1376 = vmatpush2.msra.mxu0 %v778
        %1377 = vmatprep.subr.mxu0 %v774
        %1378 = vmatpush2.msra.mxu0 %v773
        %1379 = vmatprep.subr.mxu0 %v769
        %1380 = vmatpush2.msra.mxu0 %v768
        %1381 = vmatprep.mubr.f32.mxu0 %v523
        %1382 = vmatmul.mubr.f32.gmra.mxu0 %v522
        %v1383 = vpop.f32.mrf.mxu0
        %v1384 = vadd.f32 %v1313, %v1383
        %v1385 = vpop.f32.mrf.mxu0
        %v1386 = vadd.f32 %v1315, %v1385
        %1387 = vdwg.mxu0
        %1388 = vmatprep.subr.mxu0 %v924
        %1389 = vmatpush1.msra.mxu0 %v923
        %1390 = vmatprep.subr.mxu0 %v919
        %1391 = vmatpush1.msra.mxu0 %v918
        %1392 = vmatprep.subr.mxu0 %v914
        %1393 = vmatpush1.msra.mxu0 %v913
        %1394 = vmatprep.subr.mxu0 %v909
        %1395 = vmatpush1.msra.mxu0 %v908
        %1396 = vmatprep.subr.mxu0 %v904
        %1397 = vmatpush1.msra.mxu0 %v903
        %1398 = vmatprep.subr.mxu0 %v899
        %1399 = vmatpush1.msra.mxu0 %v898
        %1400 = vmatprep.subr.mxu0 %v894
        %1401 = vmatpush1.msra.mxu0 %v893
        %1402 = vmatprep.subr.mxu0 %v889
        %1403 = vmatpush1.msra.mxu0 %v888
        %1404 = vmatprep.subr.mxu0 %v884
        %1405 = vmatpush1.msra.mxu0 %v883
        %1406 = vmatprep.subr.mxu0 %v879
        %1407 = vmatpush1.msra.mxu0 %v878
        %1408 = vmatprep.subr.mxu0 %v874
        %1409 = vmatpush1.msra.mxu0 %v873
        %1410 = vmatprep.subr.mxu0 %v869
        %1411 = vmatpush1.msra.mxu0 %v868
        %1412 = vmatprep.subr.mxu0 %v864
        %1413 = vmatpush1.msra.mxu0 %v863
        %1414 = vmatprep.subr.mxu0 %v859
        %1415 = vmatpush1.msra.mxu0 %v858
        %1416 = vmatprep.subr.mxu0 %v854
        %1417 = vmatpush1.msra.mxu0 %v853
        %1418 = vmatprep.subr.mxu0 %v849
        %1419 = vmatpush1.msra.mxu0 %v848
        %1420 = vmatprep.subr.mxu0 %v1004
        %1421 = vmatpush2.msra.mxu0 %v1003
        %1422 = vmatprep.subr.mxu0 %v999
        %1423 = vmatpush2.msra.mxu0 %v998
        %1424 = vmatprep.subr.mxu0 %v994
        %1425 = vmatpush2.msra.mxu0 %v993
        %1426 = vmatprep.subr.mxu0 %v989
        %1427 = vmatpush2.msra.mxu0 %v988
        %1428 = vmatprep.subr.mxu0 %v984
        %1429 = vmatpush2.msra.mxu0 %v983
        %1430 = vmatprep.subr.mxu0 %v979
        %1431 = vmatpush2.msra.mxu0 %v978
        %1432 = vmatprep.subr.mxu0 %v974
        %1433 = vmatpush2.msra.mxu0 %v973
        %1434 = vmatprep.subr.mxu0 %v969
        %1435 = vmatpush2.msra.mxu0 %v968
        %1436 = vmatprep.subr.mxu0 %v964
        %1437 = vmatpush2.msra.mxu0 %v963
        %1438 = vmatprep.subr.mxu0 %v959
        %1439 = vmatpush2.msra.mxu0 %v958
        %1440 = vmatprep.subr.mxu0 %v954
        %1441 = vmatpush2.msra.mxu0 %v953
        %1442 = vmatprep.subr.mxu0 %v949
        %1443 = vmatpush2.msra.mxu0 %v948
        %1444 = vmatprep.subr.mxu0 %v944
        %1445 = vmatpush2.msra.mxu0 %v943
        %1446 = vmatprep.subr.mxu0 %v939
        %1447 = vmatpush2.msra.mxu0 %v938
        %1448 = vmatprep.subr.mxu0 %v934
        %1449 = vmatpush2.msra.mxu0 %v933
        %1450 = vmatprep.subr.mxu0 %v929
        %1451 = vmatpush2.msra.mxu0 %v928
        %1452 = vmatprep.mubr.f32.mxu0 %v525
        %1453 = vmatmul.mubr.f32.gmra.mxu0 %v524
        %v1454 = vpop.f32.mrf.mxu0
        %v1455 = vadd.f32 %v1384, %v1454
        %v1456 = vpop.f32.mrf.mxu0
        %v1457 = vadd.f32 %v1386, %v1456
        %1458 = vdwg.mxu0
        %1459 = vmatprep.subr.mxu0 0.0
        %1460 = vmatpush1.msra.mxu0 %v605
        %1461 = vmatprep.subr.mxu0 0.0
        %1462 = vmatpush1.msra.mxu0 %v600
        %1463 = vmatprep.subr.mxu0 0.0
        %1464 = vmatpush1.msra.mxu0 %v595
        %1465 = vmatprep.subr.mxu0 0.0
        %1466 = vmatpush1.msra.mxu0 %v590
        %1467 = vmatprep.subr.mxu0 0.0
        %1468 = vmatpush1.msra.mxu0 %v585
        %1469 = vmatprep.subr.mxu0 0.0
        %1470 = vmatpush1.msra.mxu0 %v580
        %1471 = vmatprep.subr.mxu0 0.0
        %1472 = vmatpush1.msra.mxu0 %v575
        %1473 = vmatprep.subr.mxu0 0.0
        %1474 = vmatpush1.msra.mxu0 %v570
        %1475 = vmatprep.subr.mxu0 0.0
        %1476 = vmatpush1.msra.mxu0 %v565
        %1477 = vmatprep.subr.mxu0 0.0
        %1478 = vmatpush1.msra.mxu0 %v560
        %1479 = vmatprep.subr.mxu0 0.0
        %1480 = vmatpush1.msra.mxu0 %v555
        %1481 = vmatprep.subr.mxu0 0.0
        %1482 = vmatpush1.msra.mxu0 %v550
        %1483 = vmatprep.subr.mxu0 0.0
        %1484 = vmatpush1.msra.mxu0 %v545
        %1485 = vmatprep.subr.mxu0 0.0
        %1486 = vmatpush1.msra.mxu0 %v540
        %1487 = vmatprep.subr.mxu0 0.0
        %1488 = vmatpush1.msra.mxu0 %v535
        %1489 = vmatprep.subr.mxu0 0.0
        %1490 = vmatpush1.msra.mxu0 %v530
        %1491 = vmatprep.subr.mxu0 0.0
        %1492 = vmatpush2.msra.mxu0 %v685
        %1493 = vmatprep.subr.mxu0 0.0
        %1494 = vmatpush2.msra.mxu0 %v680
        %1495 = vmatprep.subr.mxu0 0.0
        %1496 = vmatpush2.msra.mxu0 %v675
        %1497 = vmatprep.subr.mxu0 0.0
        %1498 = vmatpush2.msra.mxu0 %v670
        %1499 = vmatprep.subr.mxu0 0.0
        %1500 = vmatpush2.msra.mxu0 %v665
        %1501 = vmatprep.subr.mxu0 0.0
        %1502 = vmatpush2.msra.mxu0 %v660
        %1503 = vmatprep.subr.mxu0 0.0
        %1504 = vmatpush2.msra.mxu0 %v655
        %1505 = vmatprep.subr.mxu0 0.0
        %1506 = vmatpush2.msra.mxu0 %v650
        %1507 = vmatprep.subr.mxu0 0.0
        %1508 = vmatpush2.msra.mxu0 %v645
        %1509 = vmatprep.subr.mxu0 0.0
        %1510 = vmatpush2.msra.mxu0 %v640
        %1511 = vmatprep.subr.mxu0 0.0
        %1512 = vmatpush2.msra.mxu0 %v635
        %1513 = vmatprep.subr.mxu0 0.0
        %1514 = vmatpush2.msra.mxu0 %v630
        %1515 = vmatprep.subr.mxu0 0.0
        %1516 = vmatpush2.msra.mxu0 %v625
        %1517 = vmatprep.subr.mxu0 0.0
        %1518 = vmatpush2.msra.mxu0 %v620
        %1519 = vmatprep.subr.mxu0 0.0
        %1520 = vmatpush2.msra.mxu0 %v615
        %1521 = vmatprep.subr.mxu0 0.0
        %1522 = vmatpush2.msra.mxu0 %v610
        %1523 = vmatprep.mubr.f32.mxu0 %v521
        %1524 = vmatmul.mubr.f32.gmra.mxu0 %v520
        %v1525 = vpop.f32.mrf.mxu0
        %v1526 = vadd.f32 %v1027, %v1525
        %v1527 = vpop.f32.mrf.mxu0
        %1528 = vdwg.mxu0
        %1529 = vmatprep.subr.mxu0 0.0
        %1530 = vmatpush1.msra.mxu0 %v765
        %1531 = vmatprep.subr.mxu0 0.0
        %1532 = vmatpush1.msra.mxu0 %v760
        %1533 = vmatprep.subr.mxu0 0.0
        %1534 = vmatpush1.msra.mxu0 %v755
        %1535 = vmatprep.subr.mxu0 0.0
        %1536 = vmatpush1.msra.mxu0 %v750
        %1537 = vmatprep.subr.mxu0 0.0
        %1538 = vmatpush1.msra.mxu0 %v745
        %1539 = vmatprep.subr.mxu0 0.0
        %1540 = vmatpush1.msra.mxu0 %v740
        %1541 = vmatprep.subr.mxu0 0.0
        %1542 = vmatpush1.msra.mxu0 %v735
        %1543 = vmatprep.subr.mxu0 0.0
        %1544 = vmatpush1.msra.mxu0 %v730
        %1545 = vmatprep.subr.mxu0 0.0
        %1546 = vmatpush1.msra.mxu0 %v725
        %1547 = vmatprep.subr.mxu0 0.0
        %1548 = vmatpush1.msra.mxu0 %v720
        %1549 = vmatprep.subr.mxu0 0.0
        %1550 = vmatpush1.msra.mxu0 %v715
        %1551 = vmatprep.subr.mxu0 0.0
        %1552 = vmatpush1.msra.mxu0 %v710
        %1553 = vmatprep.subr.mxu0 0.0
        %1554 = vmatpush1.msra.mxu0 %v705
        %1555 = vmatprep.subr.mxu0 0.0
        %1556 = vmatpush1.msra.mxu0 %v700
        %1557 = vmatprep.subr.mxu0 0.0
        %1558 = vmatpush1.msra.mxu0 %v695
        %1559 = vmatprep.subr.mxu0 0.0
        %1560 = vmatpush1.msra.mxu0 %v690
        %1561 = vmatprep.subr.mxu0 0.0
        %1562 = vmatpush2.msra.mxu0 %v845
        %1563 = vmatprep.subr.mxu0 0.0
        %1564 = vmatpush2.msra.mxu0 %v840
        %1565 = vmatprep.subr.mxu0 0.0
        %1566 = vmatpush2.msra.mxu0 %v835
        %1567 = vmatprep.subr.mxu0 0.0
        %1568 = vmatpush2.msra.mxu0 %v830
        %1569 = vmatprep.subr.mxu0 0.0
        %1570 = vmatpush2.msra.mxu0 %v825
        %1571 = vmatprep.subr.mxu0 0.0
        %1572 = vmatpush2.msra.mxu0 %v820
        %1573 = vmatprep.subr.mxu0 0.0
        %1574 = vmatpush2.msra.mxu0 %v815
        %1575 = vmatprep.subr.mxu0 0.0
        %1576 = vmatpush2.msra.mxu0 %v810
        %1577 = vmatprep.subr.mxu0 0.0
        %1578 = vmatpush2.msra.mxu0 %v805
        %1579 = vmatprep.subr.mxu0 0.0
        %1580 = vmatpush2.msra.mxu0 %v800
        %1581 = vmatprep.subr.mxu0 0.0
        %1582 = vmatpush2.msra.mxu0 %v795
        %1583 = vmatprep.subr.mxu0 0.0
        %1584 = vmatpush2.msra.mxu0 %v790
        %1585 = vmatprep.subr.mxu0 0.0
        %1586 = vmatpush2.msra.mxu0 %v785
        %1587 = vmatprep.subr.mxu0 0.0
        %1588 = vmatpush2.msra.mxu0 %v780
        %1589 = vmatprep.subr.mxu0 0.0
        %1590 = vmatpush2.msra.mxu0 %v775
        %1591 = vmatprep.subr.mxu0 0.0
        %1592 = vmatpush2.msra.mxu0 %v770
        %1593 = vmatprep.mubr.f32.mxu0 %v523
        %1594 = vmatmul.mubr.f32.gmra.mxu0 %v522
        %v1595 = vpop.f32.mrf.mxu0
        %v1596 = vadd.f32 %v1526, %v1595
        %v1597 = vpop.f32.mrf.mxu0
        %1598 = vdwg.mxu0
        %1599 = vmatprep.subr.mxu0 0.0
        %1600 = vmatpush1.msra.mxu0 %v925
        %1601 = vmatprep.subr.mxu0 0.0
        %1602 = vmatpush1.msra.mxu0 %v920
        %1603 = vmatprep.subr.mxu0 0.0
        %1604 = vmatpush1.msra.mxu0 %v915
        %1605 = vmatprep.subr.mxu0 0.0
        %1606 = vmatpush1.msra.mxu0 %v910
        %1607 = vmatprep.subr.mxu0 0.0
        %1608 = vmatpush1.msra.mxu0 %v905
        %1609 = vmatprep.subr.mxu0 0.0
        %1610 = vmatpush1.msra.mxu0 %v900
        %1611 = vmatprep.subr.mxu0 0.0
        %1612 = vmatpush1.msra.mxu0 %v895
        %1613 = vmatprep.subr.mxu0 0.0
        %1614 = vmatpush1.msra.mxu0 %v890
        %1615 = vmatprep.subr.mxu0 0.0
        %1616 = vmatpush1.msra.mxu0 %v885
        %1617 = vmatprep.subr.mxu0 0.0
        %1618 = vmatpush1.msra.mxu0 %v880
        %1619 = vmatprep.subr.mxu0 0.0
        %1620 = vmatpush1.msra.mxu0 %v875
        %1621 = vmatprep.subr.mxu0 0.0
        %1622 = vmatpush1.msra.mxu0 %v870
        %1623 = vmatprep.subr.mxu0 0.0
        %1624 = vmatpush1.msra.mxu0 %v865
        %1625 = vmatprep.subr.mxu0 0.0
        %1626 = vmatpush1.msra.mxu0 %v860
        %1627 = vmatprep.subr.mxu0 0.0
        %1628 = vmatpush1.msra.mxu0 %v855
        %1629 = vmatprep.subr.mxu0 0.0
        %1630 = vmatpush1.msra.mxu0 %v850
        %1631 = vmatprep.subr.mxu0 0.0
        %1632 = vmatpush2.msra.mxu0 %v1005
        %1633 = vmatprep.subr.mxu0 0.0
        %1634 = vmatpush2.msra.mxu0 %v1000
        %1635 = vmatprep.subr.mxu0 0.0
        %1636 = vmatpush2.msra.mxu0 %v995
        %1637 = vmatprep.subr.mxu0 0.0
        %1638 = vmatpush2.msra.mxu0 %v990
        %1639 = vmatprep.subr.mxu0 0.0
        %1640 = vmatpush2.msra.mxu0 %v985
        %1641 = vmatprep.subr.mxu0 0.0
        %1642 = vmatpush2.msra.mxu0 %v980
        %1643 = vmatprep.subr.mxu0 0.0
        %1644 = vmatpush2.msra.mxu0 %v975
        %1645 = vmatprep.subr.mxu0 0.0
        %1646 = vmatpush2.msra.mxu0 %v970
        %1647 = vmatprep.subr.mxu0 0.0
        %1648 = vmatpush2.msra.mxu0 %v965
        %1649 = vmatprep.subr.mxu0 0.0
        %1650 = vmatpush2.msra.mxu0 %v960
        %1651 = vmatprep.subr.mxu0 0.0
        %1652 = vmatpush2.msra.mxu0 %v955
        %1653 = vmatprep.subr.mxu0 0.0
        %1654 = vmatpush2.msra.mxu0 %v950
        %1655 = vmatprep.subr.mxu0 0.0
        %1656 = vmatpush2.msra.mxu0 %v945
        %1657 = vmatprep.subr.mxu0 0.0
        %1658 = vmatpush2.msra.mxu0 %v940
        %1659 = vmatprep.subr.mxu0 0.0
        %1660 = vmatpush2.msra.mxu0 %v935
        %1661 = vmatprep.subr.mxu0 0.0
        %1662 = vmatpush2.msra.mxu0 %v930
        %1663 = vmatprep.mubr.f32.mxu0 %v525
        %1664 = vmatmul.mubr.f32.gmra.mxu0 %v524
        %v1665 = vpop.f32.mrf.mxu0
        %v1666 = vadd.f32 %v1596, %v1665
        %v1667 = vpop.f32.mrf.mxu0
        %1668 = vdwg.mxu0
        %vm1669 = vcmask 261120
        %1670 = vst.msk [vmem:[#allocation2] sm:$0xff] %vm1669, %v1242
        %1672 = vrot.lane.b32.xlu0 %v1242, 96
        %v1673 = vpop.permute.xlu0 %1672
        %s1675 = scalar_lea.vmem [#allocation2], 8
        %1676 = vst.msk [vmem:[%s1675] sm:$0xff] %vm1669, %v1673
        %1677 = vrot.lane.b32.xlu0 %v1242, 64
        %v1678 = vpop.permute.xlu0 %1677
        %s1680 = scalar_lea.vmem [#allocation2], 16
        %1681 = vst.msk [vmem:[%s1680] sm:$0xff] %vm1669, %v1678
        %1682 = vrot.lane.b32.xlu0 %v1242, 32
        %v1683 = vpop.permute.xlu0 %1682
        %s1685 = scalar_lea.vmem [#allocation2], 24
        %1686 = vst.msk [vmem:[%s1685] sm:$0xff] %vm1669, %v1683
        %s1687 = scalar_lea.vmem [#allocation2], 32
        %1688 = vst.msk [vmem:[%s1687] sm:$0xff] %vm1669, %v1244
        %1690 = vrot.lane.b32.xlu0 %v1244, 96
        %v1691 = vpop.permute.xlu0 %1690
        %s1693 = scalar_lea.vmem [#allocation2], 40
        %1694 = vst.msk [vmem:[%s1693] sm:$0xff] %vm1669, %v1691
        %1695 = vrot.lane.b32.xlu0 %v1244, 64
        %v1696 = vpop.permute.xlu0 %1695
        %s1698 = scalar_lea.vmem [#allocation2], 48
        %1699 = vst.msk [vmem:[%s1698] sm:$0xff] %vm1669, %v1696
        %1700 = vrot.lane.b32.xlu0 %v1244, 32
        %v1701 = vpop.permute.xlu0 %1700
        %s1703 = scalar_lea.vmem [#allocation2], 56
        %1704 = vst.msk [vmem:[%s1703] sm:$0xff] %vm1669, %v1701
        %s1705 = scalar_lea.vmem [#allocation2], 64
        %1706 = vst.msk [vmem:[%s1705] sm:$0xff] %vm1669, %v1455
        %1708 = vrot.lane.b32.xlu0 %v1455, 96
        %v1709 = vpop.permute.xlu0 %1708
        %s1711 = scalar_lea.vmem [#allocation2], 72
        %1712 = vst.msk [vmem:[%s1711] sm:$0xff] %vm1669, %v1709
        %1713 = vrot.lane.b32.xlu0 %v1455, 64
        %v1714 = vpop.permute.xlu0 %1713
        %s1716 = scalar_lea.vmem [#allocation2], 80
        %1717 = vst.msk [vmem:[%s1716] sm:$0xff] %vm1669, %v1714
        %1718 = vrot.lane.b32.xlu0 %v1455, 32
        %v1719 = vpop.permute.xlu0 %1718
        %s1721 = scalar_lea.vmem [#allocation2], 88
        %1722 = vst.msk [vmem:[%s1721] sm:$0xff] %vm1669, %v1719
        %s1723 = scalar_lea.vmem [#allocation2], 96
        %1724 = vst.msk [vmem:[%s1723] sm:$0xff] %vm1669, %v1457
        %1726 = vrot.lane.b32.xlu0 %v1457, 96
        %v1727 = vpop.permute.xlu0 %1726
        %s1729 = scalar_lea.vmem [#allocation2], 104
        %1730 = vst.msk [vmem:[%s1729] sm:$0xff] %vm1669, %v1727
        %1731 = vrot.lane.b32.xlu0 %v1457, 64
        %v1732 = vpop.permute.xlu0 %1731
        %s1734 = scalar_lea.vmem [#allocation2], 112
        %1735 = vst.msk [vmem:[%s1734] sm:$0xff] %vm1669, %v1732
        %1736 = vrot.lane.b32.xlu0 %v1457, 32
        %v1737 = vpop.permute.xlu0 %1736
        %s1739 = scalar_lea.vmem [#allocation2], 120
        %1740 = vst.msk [vmem:[%s1739] sm:$0xff] %vm1669, %v1737
        %s1741 = scalar_lea.vmem [#allocation2], 128
        %1742 = vst.msk [vmem:[%s1741] sm:$0xff] %vm1669, %v1666
        %v1743 = vld [vmem:[#allocation2] sm:$0xff]
        %v1744 = vld [vmem:[#allocation2 + $0x8] sm:$0xff]
        %v1745 = vld [vmem:[#allocation2 + $0x10] sm:$0xff]
        %v1746 = vld [vmem:[#allocation2 + $0x18] sm:$0xff]
        %v1747 = vld [vmem:[#allocation2 + $0x20] sm:$0xff]
        %v1748 = vld [vmem:[#allocation2 + $0x28] sm:$0xff]
        %v1749 = vld [vmem:[#allocation2 + $0x30] sm:$0xff]
        %v1750 = vld [vmem:[#allocation2 + $0x38] sm:$0xff]
        %v1751 = vld [vmem:[#allocation2 + $0x40] sm:$0xff]
        %v1752 = vld [vmem:[#allocation2 + $0x48] sm:$0xff]
        %v1753 = vld [vmem:[#allocation2 + $0x50] sm:$0xff]
        %v1754 = vld [vmem:[#allocation2 + $0x58] sm:$0xff]
        %v1755 = vld [vmem:[#allocation2 + $0x60] sm:$0xff]
        %v1756 = vld [vmem:[#allocation2 + $0x68] sm:$0xff]
        %v1757 = vld [vmem:[#allocation2 + $0x70] sm:$0xff]
        %v1758 = vld [vmem:[#allocation2 + $0x78] sm:$0xff]
        %v1759 = vld [vmem:[#allocation2 + $0x80] sm:$0xff]
        %v1760 = vld [vmem:[%s4] sm:$0x3]
        %v1761 = vsel %vm1669, %v1743, 0.0
        %1762 = vadd.xlane.f32.xlu0 %v1761
        %v1763 = vpop.xlane.xlu0 %1762
        %v1764 = vsel %vm1669, %v1744, 0.0
        %1765 = vadd.xlane.f32.xlu0 %v1764
        %v1766 = vpop.xlane.xlu0 %1765
        %v1767 = vsel %vm1669, %v1745, 0.0
        %1768 = vadd.xlane.f32.xlu0 %v1767
        %v1769 = vpop.xlane.xlu0 %1768
        %v1770 = vsel %vm1669, %v1746, 0.0
        %1771 = vadd.xlane.f32.xlu0 %v1770
        %v1772 = vpop.xlane.xlu0 %1771
        %v1773 = vsel %vm1669, %v1747, 0.0
        %1774 = vadd.xlane.f32.xlu0 %v1773
        %v1775 = vpop.xlane.xlu0 %1774
        %v1776 = vsel %vm1669, %v1748, 0.0
        %1777 = vadd.xlane.f32.xlu0 %v1776
        %v1778 = vpop.xlane.xlu0 %1777
        %v1779 = vsel %vm1669, %v1749, 0.0
        %1780 = vadd.xlane.f32.xlu0 %v1779
        %v1781 = vpop.xlane.xlu0 %1780
        %v1782 = vsel %vm1669, %v1750, 0.0
        %1783 = vadd.xlane.f32.xlu0 %v1782
        %v1784 = vpop.xlane.xlu0 %1783
        %v1785 = vsel %vm1669, %v1751, 0.0
        %1786 = vadd.xlane.f32.xlu0 %v1785
        %v1787 = vpop.xlane.xlu0 %1786
        %v1788 = vsel %vm1669, %v1752, 0.0
        %1789 = vadd.xlane.f32.xlu0 %v1788
        %v1790 = vpop.xlane.xlu0 %1789
        %v1791 = vsel %vm1669, %v1753, 0.0
        %1792 = vadd.xlane.f32.xlu0 %v1791
        %v1793 = vpop.xlane.xlu0 %1792
        %v1794 = vsel %vm1669, %v1754, 0.0
        %1795 = vadd.xlane.f32.xlu0 %v1794
        %v1796 = vpop.xlane.xlu0 %1795
        %v1797 = vsel %vm1669, %v1755, 0.0
        %1798 = vadd.xlane.f32.xlu0 %v1797
        %v1799 = vpop.xlane.xlu0 %1798
        %v1800 = vsel %vm1669, %v1756, 0.0
        %1801 = vadd.xlane.f32.xlu0 %v1800
        %v1802 = vpop.xlane.xlu0 %1801
        %v1803 = vsel %vm1669, %v1757, 0.0
        %1804 = vadd.xlane.f32.xlu0 %v1803
        %v1805 = vpop.xlane.xlu0 %1804
        %v1806 = vsel %vm1669, %v1758, 0.0
        %1807 = vadd.xlane.f32.xlu0 %v1806
        %v1808 = vpop.xlane.xlu0 %1807
        %v1809 = vsel %vm1669, %v1759, 0.0
        %1810 = vadd.xlane.f32.xlu0 %v1809
        %v1811 = vpop.xlane.xlu0 %1810
        %v1812 = vrcp.pop 32.0
        %v1813 = vmul.f32 %v1763, %v1812
        %v1814 = vmul.f32 %v1766, %v1812
        %v1815 = vmul.f32 %v1769, %v1812
        %v1816 = vmul.f32 %v1772, %v1812
        %v1817 = vmul.f32 %v1775, %v1812
        %v1818 = vmul.f32 %v1778, %v1812
        %v1819 = vmul.f32 %v1781, %v1812
        %v1820 = vmul.f32 %v1784, %v1812
        %v1821 = vmul.f32 %v1787, %v1812
        %v1822 = vmul.f32 %v1790, %v1812
        %v1823 = vmul.f32 %v1793, %v1812
        %v1824 = vmul.f32 %v1796, %v1812
        %v1825 = vmul.f32 %v1799, %v1812
        %v1826 = vmul.f32 %v1802, %v1812
        %v1827 = vmul.f32 %v1805, %v1812
        %v1828 = vmul.f32 %v1808, %v1812
        %v1829 = vmul.f32 %v1811, %v1812
        %v1830 = vsub.f32 %v1743, %v1813
        %v1831 = vsub.f32 %v1744, %v1814
        %v1832 = vsub.f32 %v1745, %v1815
        %v1833 = vsub.f32 %v1746, %v1816
        %v1834 = vsub.f32 %v1747, %v1817
        %v1835 = vsub.f32 %v1748, %v1818
        %v1836 = vsub.f32 %v1749, %v1819
        %v1837 = vsub.f32 %v1750, %v1820
        %v1838 = vsub.f32 %v1751, %v1821
        %v1839 = vsub.f32 %v1752, %v1822
        %v1840 = vsub.f32 %v1753, %v1823
        %v1841 = vsub.f32 %v1754, %v1824
        %v1842 = vsub.f32 %v1755, %v1825
        %v1843 = vsub.f32 %v1756, %v1826
        %v1844 = vsub.f32 %v1757, %v1827
        %v1845 = vsub.f32 %v1758, %v1828
        %v1846 = vsub.f32 %v1759, %v1829
        %v1847 = vmul.f32 %v1830, %v1830
        %v1848 = vmul.f32 %v1831, %v1831
        %v1849 = vmul.f32 %v1832, %v1832
        %v1850 = vmul.f32 %v1833, %v1833
        %v1851 = vmul.f32 %v1834, %v1834
        %v1852 = vmul.f32 %v1835, %v1835
        %v1853 = vmul.f32 %v1836, %v1836
        %v1854 = vmul.f32 %v1837, %v1837
        %v1855 = vmul.f32 %v1838, %v1838
        %v1856 = vmul.f32 %v1839, %v1839
        %v1857 = vmul.f32 %v1840, %v1840
        %v1858 = vmul.f32 %v1841, %v1841
        %v1859 = vmul.f32 %v1842, %v1842
        %v1860 = vmul.f32 %v1843, %v1843
        %v1861 = vmul.f32 %v1844, %v1844
        %v1862 = vmul.f32 %v1845, %v1845
        %v1863 = vmul.f32 %v1846, %v1846
        %v1864 = vsel %vm1669, %v1847, 0.0
        %1865 = vadd.xlane.f32.xlu0 %v1864
        %v1866 = vpop.xlane.xlu0 %1865
        %v1867 = vsel %vm1669, %v1848, 0.0
        %1868 = vadd.xlane.f32.xlu0 %v1867
        %v1869 = vpop.xlane.xlu0 %1868
        %v1870 = vsel %vm1669, %v1849, 0.0
        %1871 = vadd.xlane.f32.xlu0 %v1870
        %v1872 = vpop.xlane.xlu0 %1871
        %v1873 = vsel %vm1669, %v1850, 0.0
        %1874 = vadd.xlane.f32.xlu0 %v1873
        %v1875 = vpop.xlane.xlu0 %1874
        %v1876 = vsel %vm1669, %v1851, 0.0
        %1877 = vadd.xlane.f32.xlu0 %v1876
        %v1878 = vpop.xlane.xlu0 %1877
        %v1879 = vsel %vm1669, %v1852, 0.0
        %1880 = vadd.xlane.f32.xlu0 %v1879
        %v1881 = vpop.xlane.xlu0 %1880
        %v1882 = vsel %vm1669, %v1853, 0.0
        %1883 = vadd.xlane.f32.xlu0 %v1882
        %v1884 = vpop.xlane.xlu0 %1883
        %v1885 = vsel %vm1669, %v1854, 0.0
        %1886 = vadd.xlane.f32.xlu0 %v1885
        %v1887 = vpop.xlane.xlu0 %1886
        %v1888 = vsel %vm1669, %v1855, 0.0
        %1889 = vadd.xlane.f32.xlu0 %v1888
        %v1890 = vpop.xlane.xlu0 %1889
        %v1891 = vsel %vm1669, %v1856, 0.0
        %1892 = vadd.xlane.f32.xlu0 %v1891
        %v1893 = vpop.xlane.xlu0 %1892
        %v1894 = vsel %vm1669, %v1857, 0.0
        %1895 = vadd.xlane.f32.xlu0 %v1894
        %v1896 = vpop.xlane.xlu0 %1895
        %v1897 = vsel %vm1669, %v1858, 0.0
        %1898 = vadd.xlane.f32.xlu0 %v1897
        %v1899 = vpop.xlane.xlu0 %1898
        %v1900 = vsel %vm1669, %v1859, 0.0
        %1901 = vadd.xlane.f32.xlu0 %v1900
        %v1902 = vpop.xlane.xlu0 %1901
        %v1903 = vsel %vm1669, %v1860, 0.0
        %1904 = vadd.xlane.f32.xlu0 %v1903
        %v1905 = vpop.xlane.xlu0 %1904
        %v1906 = vsel %vm1669, %v1861, 0.0
        %1907 = vadd.xlane.f32.xlu0 %v1906
        %v1908 = vpop.xlane.xlu0 %1907
        %v1909 = vsel %vm1669, %v1862, 0.0
        %1910 = vadd.xlane.f32.xlu0 %v1909
        %v1911 = vpop.xlane.xlu0 %1910
        %v1912 = vsel %vm1669, %v1863, 0.0
        %1913 = vadd.xlane.f32.xlu0 %v1912
        %v1914 = vpop.xlane.xlu0 %1913
        %v1915 = vmul.f32 %v1866, %v1812
        %v1916 = vmul.f32 %v1869, %v1812
        %v1917 = vmul.f32 %v1872, %v1812
        %v1918 = vmul.f32 %v1875, %v1812
        %v1919 = vmul.f32 %v1878, %v1812
        %v1920 = vmul.f32 %v1881, %v1812
        %v1921 = vmul.f32 %v1884, %v1812
        %v1922 = vmul.f32 %v1887, %v1812
        %v1923 = vmul.f32 %v1890, %v1812
        %v1924 = vmul.f32 %v1893, %v1812
        %v1925 = vmul.f32 %v1896, %v1812
        %v1926 = vmul.f32 %v1899, %v1812
        %v1927 = vmul.f32 %v1902, %v1812
        %v1928 = vmul.f32 %v1905, %v1812
        %v1929 = vmul.f32 %v1908, %v1812
        %v1930 = vmul.f32 %v1911, %v1812
        %v1931 = vmul.f32 %v1914, %v1812
        %v1932 = vadd.f32 %v1915, 1e-05
        %v1933 = vadd.f32 %v1916, 1e-05
        %v1934 = vadd.f32 %v1917, 1e-05
        %v1935 = vadd.f32 %v1918, 1e-05
        %v1936 = vadd.f32 %v1919, 1e-05
        %v1937 = vadd.f32 %v1920, 1e-05
        %v1938 = vadd.f32 %v1921, 1e-05
        %v1939 = vadd.f32 %v1922, 1e-05
        %v1940 = vadd.f32 %v1923, 1e-05
        %v1941 = vadd.f32 %v1924, 1e-05
        %v1942 = vadd.f32 %v1925, 1e-05
        %v1943 = vadd.f32 %v1926, 1e-05
        %v1944 = vadd.f32 %v1927, 1e-05
        %v1945 = vadd.f32 %v1928, 1e-05
        %v1946 = vadd.f32 %v1929, 1e-05
        %v1947 = vadd.f32 %v1930, 1e-05
        %v1948 = vadd.f32 %v1931, 1e-05
        %v1949 = vrsqrt.pop %v1932
        %v1950 = vrsqrt.pop %v1933
        %v1951 = vrsqrt.pop %v1934
        %v1952 = vrsqrt.pop %v1935
        %v1953 = vrsqrt.pop %v1936
        %v1954 = vrsqrt.pop %v1937
        %v1955 = vrsqrt.pop %v1938
        %v1956 = vrsqrt.pop %v1939
        %v1957 = vrsqrt.pop %v1940
        %v1958 = vrsqrt.pop %v1941
        %v1959 = vrsqrt.pop %v1942
        %v1960 = vrsqrt.pop %v1943
        %v1961 = vrsqrt.pop %v1944
        %v1962 = vrsqrt.pop %v1945
        %v1963 = vrsqrt.pop %v1946
        %v1964 = vrsqrt.pop %v1947
        %v1965 = vrsqrt.pop %v1948
        %v1966 = vmul.f32 %v1830, %v1949
        %v1967 = vmul.f32 %v1831, %v1950
        %v1968 = vmul.f32 %v1832, %v1951
        %v1969 = vmul.f32 %v1833, %v1952
        %v1970 = vmul.f32 %v1834, %v1953
        %v1971 = vmul.f32 %v1835, %v1954
        %v1972 = vmul.f32 %v1836, %v1955
        %v1973 = vmul.f32 %v1837, %v1956
        %v1974 = vmul.f32 %v1838, %v1957
        %v1975 = vmul.f32 %v1839, %v1958
        %v1976 = vmul.f32 %v1840, %v1959
        %v1977 = vmul.f32 %v1841, %v1960
        %v1978 = vmul.f32 %v1842, %v1961
        %v1979 = vmul.f32 %v1843, %v1962
        %v1980 = vmul.f32 %v1844, %v1963
        %v1981 = vmul.f32 %v1845, %v1964
        %v1982 = vmul.f32 %v1846, %v1965
        %v1983 = vlaneseq
        %v1984 = vshrl.u32 %v1983, 7
        %v1985 = vsub.s32 0, %v1984
        %v1986 = vrot.slane %v1760, %v1985
        %v1987 = vmul.f32 %v1966, %v1986
        %v1988 = vmul.f32 %v1967, %v1986
        %v1989 = vmul.f32 %v1968, %v1986
        %v1990 = vmul.f32 %v1969, %v1986
        %v1991 = vmul.f32 %v1970, %v1986
        %v1992 = vmul.f32 %v1971, %v1986
        %v1993 = vmul.f32 %v1972, %v1986
        %v1994 = vmul.f32 %v1973, %v1986
        %v1995 = vmul.f32 %v1974, %v1986
        %v1996 = vmul.f32 %v1975, %v1986
        %v1997 = vmul.f32 %v1976, %v1986
        %v1998 = vmul.f32 %v1977, %v1986
        %v1999 = vmul.f32 %v1978, %v1986
        %v2000 = vmul.f32 %v1979, %v1986
        %v2001 = vmul.f32 %v1980, %v1986
        %v2002 = vmul.f32 %v1981, %v1986
        %v2003 = vmul.f32 %v1982, %v1986
        %v2004 = vlaneseq
        %v2005 = vshrl.u32 %v2004, 7
        %v2006 = vsub.s32 1, %v2005
        %v2007 = vrot.slane %v1760, %v2006
        %v2008 = vadd.f32 %v1987, %v2007
        %v2009 = vadd.f32 %v1988, %v2007
        %v2010 = vadd.f32 %v1989, %v2007
        %v2011 = vadd.f32 %v1990, %v2007
        %v2012 = vadd.f32 %v1991, %v2007
        %v2013 = vadd.f32 %v1992, %v2007
        %v2014 = vadd.f32 %v1993, %v2007
        %v2015 = vadd.f32 %v1994, %v2007
        %v2016 = vadd.f32 %v1995, %v2007
        %v2017 = vadd.f32 %v1996, %v2007
        %v2018 = vadd.f32 %v1997, %v2007
        %v2019 = vadd.f32 %v1998, %v2007
        %v2020 = vadd.f32 %v1999, %v2007
        %v2021 = vadd.f32 %v2000, %v2007
        %v2022 = vadd.f32 %v2001, %v2007
        %v2023 = vadd.f32 %v2002, %v2007
        %v2024 = vadd.f32 %v2003, %v2007
        %v2025 = vld [vmem:[%s3] sm:$0xff]
        %v2026 = vld [vmem:[%s3 + $0x8] sm:$0xff]
        %v2027 = vld [vmem:[%s3 + $0x10] sm:$0xff]
        %v2028 = vld [vmem:[%s3 + $0x18] sm:$0xff]
        %v2029 = vld [vmem:[%s3 + $0x20] sm:$0xff]
        %v2030 = vld [vmem:[%s3 + $0x28] sm:$0xff]
        %v2031 = vld [vmem:[%s3 + $0x30] sm:$0xff]
        %v2032 = vld [vmem:[%s3 + $0x38] sm:$0xff]
        %v2033 = vld [vmem:[%s3 + $0x40] sm:$0xff]
        %v2034 = vld [vmem:[%s3 + $0x48] sm:$0xff]
        %v2035 = vld [vmem:[%s3 + $0x50] sm:$0xff]
        %v2036 = vld [vmem:[%s3 + $0x58] sm:$0xff]
        %v2037 = vld [vmem:[%s3 + $0x60] sm:$0xff]
        %v2038 = vld [vmem:[%s3 + $0x68] sm:$0xff]
        %v2039 = vld [vmem:[%s3 + $0x70] sm:$0xff]
        %v2040 = vld [vmem:[%s3 + $0x78] sm:$0xff]
        %v2041 = vld [vmem:[%s3 + $0x80] sm:$0xff]
        %v2042 = vld [vmem:[%s3 + $0x88] sm:$0xff]
        %v2043 = vld [vmem:[%s3 + $0x90] sm:$0xff]
        %v2044 = vld [vmem:[%s3 + $0x98] sm:$0xff]
        %v2045 = vld [vmem:[%s3 + $0xa0] sm:$0xff]
        %v2046 = vld [vmem:[%s3 + $0xa8] sm:$0xff]
        %v2047 = vld [vmem:[%s3 + $0xb0] sm:$0xff]
        %v2048 = vld [vmem:[%s3 + $0xb8] sm:$0xff]
        %v2049 = vld [vmem:[%s3 + $0xc0] sm:$0xff]
        %v2050 = vld [vmem:[%s3 + $0xc8] sm:$0xff]
        %v2051 = vld [vmem:[%s3 + $0xd0] sm:$0xff]
        %v2052 = vld [vmem:[%s3 + $0xd8] sm:$0xff]
        %v2053 = vld [vmem:[%s3 + $0xe0] sm:$0xff]
        %v2054 = vld [vmem:[%s3 + $0xe8] sm:$0xff]
        %v2055 = vld [vmem:[%s3 + $0xf0] sm:$0xff]
        %v2056 = vld [vmem:[%s3 + $0xf8] sm:$0xff]
        %v2057 = vld [vmem:[%s3 + $0x100] sm:$0xff]
        %v2058 = vld [vmem:[%s3 + $0x108] sm:$0xff]
        loop: start=0, step=1, limit=2
        $region85: #{frozen_image_to_clip_embedder.1} parent=83 // loop_pre_header
          _
        $region86: #{frozen_image_to_clip_embedder.1} parent=83 // loop_header
          %s2060 = sphi 0, %s2064
          %p2061 = scmp.ge.s32.totalorder %s2060, 2
          %v2065 = vphi %v2008, %v7660
          %v2066 = vphi %v2009, %v7661
          %v2067 = vphi %v2010, %v7662
          %v2068 = vphi %v2011, %v7663
          %v2069 = vphi %v2012, %v7664
          %v2070 = vphi %v2013, %v7665
          %v2071 = vphi %v2014, %v7666
          %v2072 = vphi %v2015, %v7667
          %v2073 = vphi %v2016, %v7668
          %v2074 = vphi %v2017, %v7669
          %v2075 = vphi %v2018, %v7670
          %v2076 = vphi %v2019, %v7671
          %v2077 = vphi %v2020, %v7672
          %v2078 = vphi %v2021, %v7673
          %v2079 = vphi %v2022, %v7674
          %v2080 = vphi %v2023, %v7675
          %v2081 = vphi %v2024, %v7676
        $region87: #{frozen_image_to_clip_embedder.1} parent=83 // loop_header_branch
          %2063 = sbr.rel (%p2061) target = $region91
        $region88: #{frozen_image_to_clip_embedder.1} parent=83 // loop_body
          %s2082 = smul.u32 %s2060, 2
          %s2083 = scalar_lea.vmem %s6, %s2082
          %v2084 = vld [vmem:[%s2083] sm:$0x3]
          %v2085 = vsel %vm1669, %v2065, 0.0
          %2086 = vadd.xlane.f32.xlu0 %v2085
          %v2087 = vpop.xlane.xlu0 %2086
          %v2088 = vsel %vm1669, %v2066, 0.0
          %2089 = vadd.xlane.f32.xlu0 %v2088
          %v2090 = vpop.xlane.xlu0 %2089
          %v2091 = vsel %vm1669, %v2067, 0.0
          %2092 = vadd.xlane.f32.xlu0 %v2091
          %v2093 = vpop.xlane.xlu0 %2092
          %v2094 = vsel %vm1669, %v2068, 0.0
          %2095 = vadd.xlane.f32.xlu0 %v2094
          %v2096 = vpop.xlane.xlu0 %2095
          %v2097 = vsel %vm1669, %v2069, 0.0
          %2098 = vadd.xlane.f32.xlu0 %v2097
          %v2099 = vpop.xlane.xlu0 %2098
          %v2100 = vsel %vm1669, %v2070, 0.0
          %2101 = vadd.xlane.f32.xlu0 %v2100
          %v2102 = vpop.xlane.xlu0 %2101
          %v2103 = vsel %vm1669, %v2071, 0.0
          %2104 = vadd.xlane.f32.xlu0 %v2103
          %v2105 = vpop.xlane.xlu0 %2104
          %v2106 = vsel %vm1669, %v2072, 0.0
          %2107 = vadd.xlane.f32.xlu0 %v2106
          %v2108 = vpop.xlane.xlu0 %2107
          %v2109 = vsel %vm1669, %v2073, 0.0
          %2110 = vadd.xlane.f32.xlu0 %v2109
          %v2111 = vpop.xlane.xlu0 %2110
          %v2112 = vsel %vm1669, %v2074, 0.0
          %2113 = vadd.xlane.f32.xlu0 %v2112
          %v2114 = vpop.xlane.xlu0 %2113
          %v2115 = vsel %vm1669, %v2075, 0.0
          %2116 = vadd.xlane.f32.xlu0 %v2115
          %v2117 = vpop.xlane.xlu0 %2116
          %v2118 = vsel %vm1669, %v2076, 0.0
          %2119 = vadd.xlane.f32.xlu0 %v2118
          %v2120 = vpop.xlane.xlu0 %2119
          %v2121 = vsel %vm1669, %v2077, 0.0
          %2122 = vadd.xlane.f32.xlu0 %v2121
          %v2123 = vpop.xlane.xlu0 %2122
          %v2124 = vsel %vm1669, %v2078, 0.0
          %2125 = vadd.xlane.f32.xlu0 %v2124
          %v2126 = vpop.xlane.xlu0 %2125
          %v2127 = vsel %vm1669, %v2079, 0.0
          %2128 = vadd.xlane.f32.xlu0 %v2127
          %v2129 = vpop.xlane.xlu0 %2128
          %v2130 = vsel %vm1669, %v2080, 0.0
          %2131 = vadd.xlane.f32.xlu0 %v2130
          %v2132 = vpop.xlane.xlu0 %2131
          %v2133 = vsel %vm1669, %v2081, 0.0
          %2134 = vadd.xlane.f32.xlu0 %v2133
          %v2135 = vpop.xlane.xlu0 %2134
          %v2136 = vmul.f32 %v2087, %v1812
          %v2137 = vmul.f32 %v2090, %v1812
          %v2138 = vmul.f32 %v2093, %v1812
          %v2139 = vmul.f32 %v2096, %v1812
          %v2140 = vmul.f32 %v2099, %v1812
          %v2141 = vmul.f32 %v2102, %v1812
          %v2142 = vmul.f32 %v2105, %v1812
          %v2143 = vmul.f32 %v2108, %v1812
          %v2144 = vmul.f32 %v2111, %v1812
          %v2145 = vmul.f32 %v2114, %v1812
          %v2146 = vmul.f32 %v2117, %v1812
          %v2147 = vmul.f32 %v2120, %v1812
          %v2148 = vmul.f32 %v2123, %v1812
          %v2149 = vmul.f32 %v2126, %v1812
          %v2150 = vmul.f32 %v2129, %v1812
          %v2151 = vmul.f32 %v2132, %v1812
          %v2152 = vmul.f32 %v2135, %v1812
          %v2153 = vsub.f32 %v2065, %v2136
          %v2154 = vsub.f32 %v2066, %v2137
          %v2155 = vsub.f32 %v2067, %v2138
          %v2156 = vsub.f32 %v2068, %v2139
          %v2157 = vsub.f32 %v2069, %v2140
          %v2158 = vsub.f32 %v2070, %v2141
          %v2159 = vsub.f32 %v2071, %v2142
          %v2160 = vsub.f32 %v2072, %v2143
          %v2161 = vsub.f32 %v2073, %v2144
          %v2162 = vsub.f32 %v2074, %v2145
          %v2163 = vsub.f32 %v2075, %v2146
          %v2164 = vsub.f32 %v2076, %v2147
          %v2165 = vsub.f32 %v2077, %v2148
          %v2166 = vsub.f32 %v2078, %v2149
          %v2167 = vsub.f32 %v2079, %v2150
          %v2168 = vsub.f32 %v2080, %v2151
          %v2169 = vsub.f32 %v2081, %v2152
          %v2170 = vmul.f32 %v2153, %v2153
          %v2171 = vmul.f32 %v2154, %v2154
          %v2172 = vmul.f32 %v2155, %v2155
          %v2173 = vmul.f32 %v2156, %v2156
          %v2174 = vmul.f32 %v2157, %v2157
          %v2175 = vmul.f32 %v2158, %v2158
          %v2176 = vmul.f32 %v2159, %v2159
          %v2177 = vmul.f32 %v2160, %v2160
          %v2178 = vmul.f32 %v2161, %v2161
          %v2179 = vmul.f32 %v2162, %v2162
          %v2180 = vmul.f32 %v2163, %v2163
          %v2181 = vmul.f32 %v2164, %v2164
          %v2182 = vmul.f32 %v2165, %v2165
          %v2183 = vmul.f32 %v2166, %v2166
          %v2184 = vmul.f32 %v2167, %v2167
          %v2185 = vmul.f32 %v2168, %v2168
          %v2186 = vmul.f32 %v2169, %v2169
          %v2187 = vsel %vm1669, %v2170, 0.0
          %2188 = vadd.xlane.f32.xlu0 %v2187
          %v2189 = vpop.xlane.xlu0 %2188
          %v2190 = vsel %vm1669, %v2171, 0.0
          %2191 = vadd.xlane.f32.xlu0 %v2190
          %v2192 = vpop.xlane.xlu0 %2191
          %v2193 = vsel %vm1669, %v2172, 0.0
          %2194 = vadd.xlane.f32.xlu0 %v2193
          %v2195 = vpop.xlane.xlu0 %2194
          %v2196 = vsel %vm1669, %v2173, 0.0
          %2197 = vadd.xlane.f32.xlu0 %v2196
          %v2198 = vpop.xlane.xlu0 %2197
          %v2199 = vsel %vm1669, %v2174, 0.0
          %2200 = vadd.xlane.f32.xlu0 %v2199
          %v2201 = vpop.xlane.xlu0 %2200
          %v2202 = vsel %vm1669, %v2175, 0.0
          %2203 = vadd.xlane.f32.xlu0 %v2202
          %v2204 = vpop.xlane.xlu0 %2203
          %v2205 = vsel %vm1669, %v2176, 0.0
          %2206 = vadd.xlane.f32.xlu0 %v2205
          %v2207 = vpop.xlane.xlu0 %2206
          %v2208 = vsel %vm1669, %v2177, 0.0
          %2209 = vadd.xlane.f32.xlu0 %v2208
          %v2210 = vpop.xlane.xlu0 %2209
          %v2211 = vsel %vm1669, %v2178, 0.0
          %2212 = vadd.xlane.f32.xlu0 %v2211
          %v2213 = vpop.xlane.xlu0 %2212
          %v2214 = vsel %vm1669, %v2179, 0.0
          %2215 = vadd.xlane.f32.xlu0 %v2214
          %v2216 = vpop.xlane.xlu0 %2215
          %v2217 = vsel %vm1669, %v2180, 0.0
          %2218 = vadd.xlane.f32.xlu0 %v2217
          %v2219 = vpop.xlane.xlu0 %2218
          %v2220 = vsel %vm1669, %v2181, 0.0
          %2221 = vadd.xlane.f32.xlu0 %v2220
          %v2222 = vpop.xlane.xlu0 %2221
          %v2223 = vsel %vm1669, %v2182, 0.0
          %2224 = vadd.xlane.f32.xlu0 %v2223
          %v2225 = vpop.xlane.xlu0 %2224
          %v2226 = vsel %vm1669, %v2183, 0.0
          %2227 = vadd.xlane.f32.xlu0 %v2226
          %v2228 = vpop.xlane.xlu0 %2227
          %v2229 = vsel %vm1669, %v2184, 0.0
          %2230 = vadd.xlane.f32.xlu0 %v2229
          %v2231 = vpop.xlane.xlu0 %2230
          %v2232 = vsel %vm1669, %v2185, 0.0
          %2233 = vadd.xlane.f32.xlu0 %v2232
          %v2234 = vpop.xlane.xlu0 %2233
          %v2235 = vsel %vm1669, %v2186, 0.0
          %2236 = vadd.xlane.f32.xlu0 %v2235
          %v2237 = vpop.xlane.xlu0 %2236
          %v2238 = vmul.f32 %v2189, %v1812
          %v2239 = vmul.f32 %v2192, %v1812
          %v2240 = vmul.f32 %v2195, %v1812
          %v2241 = vmul.f32 %v2198, %v1812
          %v2242 = vmul.f32 %v2201, %v1812
          %v2243 = vmul.f32 %v2204, %v1812
          %v2244 = vmul.f32 %v2207, %v1812
          %v2245 = vmul.f32 %v2210, %v1812
          %v2246 = vmul.f32 %v2213, %v1812
          %v2247 = vmul.f32 %v2216, %v1812
          %v2248 = vmul.f32 %v2219, %v1812
          %v2249 = vmul.f32 %v2222, %v1812
          %v2250 = vmul.f32 %v2225, %v1812
          %v2251 = vmul.f32 %v2228, %v1812
          %v2252 = vmul.f32 %v2231, %v1812
          %v2253 = vmul.f32 %v2234, %v1812
          %v2254 = vmul.f32 %v2237, %v1812
          %v2255 = vadd.f32 %v2238, 1e-05
          %v2256 = vadd.f32 %v2239, 1e-05
          %v2257 = vadd.f32 %v2240, 1e-05
          %v2258 = vadd.f32 %v2241, 1e-05
          %v2259 = vadd.f32 %v2242, 1e-05
          %v2260 = vadd.f32 %v2243, 1e-05
          %v2261 = vadd.f32 %v2244, 1e-05
          %v2262 = vadd.f32 %v2245, 1e-05
          %v2263 = vadd.f32 %v2246, 1e-05
          %v2264 = vadd.f32 %v2247, 1e-05
          %v2265 = vadd.f32 %v2248, 1e-05
          %v2266 = vadd.f32 %v2249, 1e-05
          %v2267 = vadd.f32 %v2250, 1e-05
          %v2268 = vadd.f32 %v2251, 1e-05
          %v2269 = vadd.f32 %v2252, 1e-05
          %v2270 = vadd.f32 %v2253, 1e-05
          %v2271 = vadd.f32 %v2254, 1e-05
          %v2272 = vrsqrt.pop %v2255
          %v2273 = vrsqrt.pop %v2256
          %v2274 = vrsqrt.pop %v2257
          %v2275 = vrsqrt.pop %v2258
          %v2276 = vrsqrt.pop %v2259
          %v2277 = vrsqrt.pop %v2260
          %v2278 = vrsqrt.pop %v2261
          %v2279 = vrsqrt.pop %v2262
          %v2280 = vrsqrt.pop %v2263
          %v2281 = vrsqrt.pop %v2264
          %v2282 = vrsqrt.pop %v2265
          %v2283 = vrsqrt.pop %v2266
          %v2284 = vrsqrt.pop %v2267
          %v2285 = vrsqrt.pop %v2268
          %v2286 = vrsqrt.pop %v2269
          %v2287 = vrsqrt.pop %v2270
          %v2288 = vrsqrt.pop %v2271
          %v2289 = vmul.f32 %v2153, %v2272
          %v2290 = vmul.f32 %v2154, %v2273
          %v2291 = vmul.f32 %v2155, %v2274
          %v2292 = vmul.f32 %v2156, %v2275
          %v2293 = vmul.f32 %v2157, %v2276
          %v2294 = vmul.f32 %v2158, %v2277
          %v2295 = vmul.f32 %v2159, %v2278
          %v2296 = vmul.f32 %v2160, %v2279
          %v2297 = vmul.f32 %v2161, %v2280
          %v2298 = vmul.f32 %v2162, %v2281
          %v2299 = vmul.f32 %v2163, %v2282
          %v2300 = vmul.f32 %v2164, %v2283
          %v2301 = vmul.f32 %v2165, %v2284
          %v2302 = vmul.f32 %v2166, %v2285
          %v2303 = vmul.f32 %v2167, %v2286
          %v2304 = vmul.f32 %v2168, %v2287
          %v2305 = vmul.f32 %v2169, %v2288
          %v2306 = vlaneseq
          %v2307 = vshrl.u32 %v2306, 7
          %v2308 = vsub.s32 0, %v2307
          %v2309 = vrot.slane %v2084, %v2308
          %v2310 = vmul.f32 %v2289, %v2309
          %v2311 = vmul.f32 %v2290, %v2309
          %v2312 = vmul.f32 %v2291, %v2309
          %v2313 = vmul.f32 %v2292, %v2309
          %v2314 = vmul.f32 %v2293, %v2309
          %v2315 = vmul.f32 %v2294, %v2309
          %v2316 = vmul.f32 %v2295, %v2309
          %v2317 = vmul.f32 %v2296, %v2309
          %v2318 = vmul.f32 %v2297, %v2309
          %v2319 = vmul.f32 %v2298, %v2309
          %v2320 = vmul.f32 %v2299, %v2309
          %v2321 = vmul.f32 %v2300, %v2309
          %v2322 = vmul.f32 %v2301, %v2309
          %v2323 = vmul.f32 %v2302, %v2309
          %v2324 = vmul.f32 %v2303, %v2309
          %v2325 = vmul.f32 %v2304, %v2309
          %v2326 = vmul.f32 %v2305, %v2309
          %v2327 = vlaneseq
          %v2328 = vshrl.u32 %v2327, 7
          %v2329 = vsub.s32 1, %v2328
          %v2330 = vrot.slane %v2084, %v2329
          %v2331 = vadd.f32 %v2310, %v2330
          %v2332 = vadd.f32 %v2311, %v2330
          %v2333 = vadd.f32 %v2312, %v2330
          %v2334 = vadd.f32 %v2313, %v2330
          %v2335 = vadd.f32 %v2314, %v2330
          %v2336 = vadd.f32 %v2315, %v2330
          %v2337 = vadd.f32 %v2316, %v2330
          %v2338 = vadd.f32 %v2317, %v2330
          %v2339 = vadd.f32 %v2318, %v2330
          %v2340 = vadd.f32 %v2319, %v2330
          %v2341 = vadd.f32 %v2320, %v2330
          %v2342 = vadd.f32 %v2321, %v2330
          %v2343 = vadd.f32 %v2322, %v2330
          %v2344 = vadd.f32 %v2323, %v2330
          %v2345 = vadd.f32 %v2324, %v2330
          %v2346 = vadd.f32 %v2325, %v2330
          %v2347 = vadd.f32 %v2326, %v2330
          %s2348 = smul.u32 %s2060, 32
          %s2349 = scalar_lea.vmem %s8, %s2348
          %v2350 = vld [vmem:[%s2349] sm:$0xff]
          %v2351 = vld [vmem:[%s2349 + $0x8] sm:$0xff]
          %v2352 = vld [vmem:[%s2349 + $0x10] sm:$0xff]
          %v2353 = vld [vmem:[%s2349 + $0x18] sm:$0xff]
          %s2354 = scalar_lea.vmem %s9, %s2060
          %v2355 = vld [vmem:[%s2354] sm:$0x1]
          %v2357 = vlaneseq
          %v2358 = vshrl.u32 %v2357, 7
          %v2359 = vsub.s32 0, %v2358
          %v2360 = vrot.slane %v2355, %v2359
          %v2363 = vsel %vm1669, %v2331, 0
          %v2366 = vsel %vm1669, %v2332, 0
          %v2369 = vsel %vm1669, %v2333, 0
          %v2372 = vsel %vm1669, %v2334, 0
          %v2375 = vsel %vm1669, %v2335, 0
          %v2378 = vsel %vm1669, %v2336, 0
          %v2381 = vsel %vm1669, %v2337, 0
          %v2384 = vsel %vm1669, %v2338, 0
          %v2387 = vsel %vm1669, %v2339, 0
          %v2390 = vsel %vm1669, %v2340, 0
          %v2393 = vsel %vm1669, %v2341, 0
          %v2396 = vsel %vm1669, %v2342, 0
          %v2399 = vsel %vm1669, %v2343, 0
          %v2402 = vsel %vm1669, %v2344, 0
          %v2405 = vsel %vm1669, %v2345, 0
          %v2408 = vsel %vm1669, %v2346, 0
          %v2411 = vsel %vm1669, %v2347, 0
          %2413 = vmatprep.subr.mxu0 0.0
          %2414 = vmatpush1.msra.mxu0 0.0
          %2415 = vmatprep.subr.mxu0 0.0
          %2416 = vmatpush1.msra.mxu0 0.0
          %2417 = vmatprep.subr.mxu0 0.0
          %2418 = vmatpush1.msra.mxu0 0.0
          %2419 = vmatprep.subr.mxu0 0.0
          %2420 = vmatpush1.msra.mxu0 0.0
          %2421 = vmatprep.subr.mxu0 0.0
          %2422 = vmatpush1.msra.mxu0 0.0
          %2423 = vmatprep.subr.mxu0 0.0
          %2424 = vmatpush1.msra.mxu0 0.0
          %2425 = vmatprep.subr.mxu0 0.0
          %2426 = vmatpush1.msra.mxu0 0.0
          %2427 = vmatprep.subr.mxu0 0.0
          %2428 = vmatpush1.msra.mxu0 0.0
          %2429 = vmatprep.subr.mxu0 0.0
          %2430 = vmatpush1.msra.mxu0 0.0
          %2431 = vmatprep.subr.mxu0 0.0
          %2432 = vmatpush1.msra.mxu0 0.0
          %2433 = vmatprep.subr.mxu0 0.0
          %2434 = vmatpush1.msra.mxu0 0.0
          %2435 = vmatprep.subr.mxu0 0.0
          %2436 = vmatpush1.msra.mxu0 0.0
          %2437 = vmatprep.subr.mxu0 0.0
          %2438 = vmatpush1.msra.mxu0 %v2353
          %2439 = vmatprep.subr.mxu0 0.0
          %2440 = vmatpush1.msra.mxu0 %v2352
          %2441 = vmatprep.subr.mxu0 0.0
          %2442 = vmatpush1.msra.mxu0 %v2351
          %2443 = vmatprep.subr.mxu0 0.0
          %2444 = vmatpush1.msra.mxu0 %v2350
          %2445 = vmatprep.subr.mxu0 0.0
          %2446 = vmatpush2.msra.mxu0 0.0
          %2447 = vmatprep.subr.mxu0 0.0
          %2448 = vmatpush2.msra.mxu0 0.0
          %2449 = vmatprep.subr.mxu0 0.0
          %2450 = vmatpush2.msra.mxu0 0.0
          %2451 = vmatprep.subr.mxu0 0.0
          %2452 = vmatpush2.msra.mxu0 0.0
          %2453 = vmatprep.subr.mxu0 0.0
          %2454 = vmatpush2.msra.mxu0 0.0
          %2455 = vmatprep.subr.mxu0 0.0
          %2456 = vmatpush2.msra.mxu0 0.0
          %2457 = vmatprep.subr.mxu0 0.0
          %2458 = vmatpush2.msra.mxu0 0.0
          %2459 = vmatprep.subr.mxu0 0.0
          %2460 = vmatpush2.msra.mxu0 0.0
          %2461 = vmatprep.subr.mxu0 0.0
          %2462 = vmatpush2.msra.mxu0 0.0
          %2463 = vmatprep.subr.mxu0 0.0
          %2464 = vmatpush2.msra.mxu0 0.0
          %2465 = vmatprep.subr.mxu0 0.0
          %2466 = vmatpush2.msra.mxu0 0.0
          %2467 = vmatprep.subr.mxu0 0.0
          %2468 = vmatpush2.msra.mxu0 0.0
          %2469 = vmatprep.subr.mxu0 0.0
          %2470 = vmatpush2.msra.mxu0 0.0
          %2471 = vmatprep.subr.mxu0 0.0
          %2472 = vmatpush2.msra.mxu0 0.0
          %2473 = vmatprep.subr.mxu0 0.0
          %2474 = vmatpush2.msra.mxu0 0.0
          %2475 = vmatprep.subr.mxu0 0.0
          %2476 = vmatpush2.msra.mxu0 0.0
          %2477 = vmatprep.mubr.f32.mxu0 0.0
          %2478 = vmatmul.mubr.f32.gmra.mxu0 %v2363
          %v2479 = vpop.f32.mrf.mxu0
          %v2480 = vadd.f32 %v2360, %v2479
          %v2481 = vpop.f32.mrf.mxu0
          %2482 = vmatprep.mubr.f32.mxu0 0.0
          %2483 = vmatmul.mubr.f32.gmra.mxu0 %v2366
          %v2484 = vpop.f32.mrf.mxu0
          %v2485 = vadd.f32 %v2360, %v2484
          %v2486 = vpop.f32.mrf.mxu0
          %2487 = vmatprep.mubr.f32.mxu0 0.0
          %2488 = vmatmul.mubr.f32.gmra.mxu0 %v2369
          %v2489 = vpop.f32.mrf.mxu0
          %v2490 = vadd.f32 %v2360, %v2489
          %v2491 = vpop.f32.mrf.mxu0
          %2492 = vmatprep.mubr.f32.mxu0 0.0
          %2493 = vmatmul.mubr.f32.gmra.mxu0 %v2372
          %v2494 = vpop.f32.mrf.mxu0
          %v2495 = vadd.f32 %v2360, %v2494
          %v2496 = vpop.f32.mrf.mxu0
          %2497 = vmatprep.mubr.f32.mxu0 0.0
          %2498 = vmatmul.mubr.f32.gmra.mxu0 %v2375
          %v2499 = vpop.f32.mrf.mxu0
          %v2500 = vadd.f32 %v2360, %v2499
          %v2501 = vpop.f32.mrf.mxu0
          %2502 = vmatprep.mubr.f32.mxu0 0.0
          %2503 = vmatmul.mubr.f32.gmra.mxu0 %v2378
          %v2504 = vpop.f32.mrf.mxu0
          %v2505 = vadd.f32 %v2360, %v2504
          %v2506 = vpop.f32.mrf.mxu0
          %2507 = vmatprep.mubr.f32.mxu0 0.0
          %2508 = vmatmul.mubr.f32.gmra.mxu0 %v2381
          %v2509 = vpop.f32.mrf.mxu0
          %v2510 = vadd.f32 %v2360, %v2509
          %v2511 = vpop.f32.mrf.mxu0
          %2512 = vmatprep.mubr.f32.mxu0 0.0
          %2513 = vmatmul.mubr.f32.gmra.mxu0 %v2384
          %v2514 = vpop.f32.mrf.mxu0
          %v2515 = vadd.f32 %v2360, %v2514
          %v2516 = vpop.f32.mrf.mxu0
          %2517 = vmatprep.mubr.f32.mxu0 0.0
          %2518 = vmatmul.mubr.f32.gmra.mxu0 %v2387
          %v2519 = vpop.f32.mrf.mxu0
          %v2520 = vadd.f32 %v2360, %v2519
          %v2521 = vpop.f32.mrf.mxu0
          %2522 = vmatprep.mubr.f32.mxu0 0.0
          %2523 = vmatmul.mubr.f32.gmra.mxu0 %v2390
          %v2524 = vpop.f32.mrf.mxu0
          %v2525 = vadd.f32 %v2360, %v2524
          %v2526 = vpop.f32.mrf.mxu0
          %2527 = vmatprep.mubr.f32.mxu0 0.0
          %2528 = vmatmul.mubr.f32.gmra.mxu0 %v2393
          %v2529 = vpop.f32.mrf.mxu0
          %v2530 = vadd.f32 %v2360, %v2529
          %v2531 = vpop.f32.mrf.mxu0
          %2532 = vmatprep.mubr.f32.mxu0 0.0
          %2533 = vmatmul.mubr.f32.gmra.mxu0 %v2396
          %v2534 = vpop.f32.mrf.mxu0
          %v2535 = vadd.f32 %v2360, %v2534
          %v2536 = vpop.f32.mrf.mxu0
          %2537 = vmatprep.mubr.f32.mxu0 0.0
          %2538 = vmatmul.mubr.f32.gmra.mxu0 %v2399
          %v2539 = vpop.f32.mrf.mxu0
          %v2540 = vadd.f32 %v2360, %v2539
          %v2541 = vpop.f32.mrf.mxu0
          %2542 = vmatprep.mubr.f32.mxu0 0.0
          %2543 = vmatmul.mubr.f32.gmra.mxu0 %v2402
          %v2544 = vpop.f32.mrf.mxu0
          %v2545 = vadd.f32 %v2360, %v2544
          %v2546 = vpop.f32.mrf.mxu0
          %2547 = vmatprep.mubr.f32.mxu0 0.0
          %2548 = vmatmul.mubr.f32.gmra.mxu0 %v2405
          %v2549 = vpop.f32.mrf.mxu0
          %v2550 = vadd.f32 %v2360, %v2549
          %v2551 = vpop.f32.mrf.mxu0
          %2552 = vmatprep.mubr.f32.mxu0 0.0
          %2553 = vmatmul.mubr.f32.gmra.mxu0 %v2408
          %v2554 = vpop.f32.mrf.mxu0
          %v2555 = vadd.f32 %v2360, %v2554
          %v2556 = vpop.f32.mrf.mxu0
          %2557 = vmatprep.mubr.f32.mxu0 0.0
          %2558 = vmatmul.mubr.f32.gmra.mxu0 %v2411
          %v2559 = vpop.f32.mrf.mxu0
          %v2560 = vadd.f32 %v2360, %v2559
          %v2561 = vpop.f32.mrf.mxu0
          %2562 = vdwg.mxu0
          %s2563 = scalar_lea.vmem %s10, %s2348
          %v2564 = vld [vmem:[%s2563] sm:$0xff]
          %v2565 = vld [vmem:[%s2563 + $0x8] sm:$0xff]
          %v2566 = vld [vmem:[%s2563 + $0x10] sm:$0xff]
          %v2567 = vld [vmem:[%s2563 + $0x18] sm:$0xff]
          %2585 = vrot.lane.b32.xlu0 %v2480, 96
          %v2586 = vpop.permute.xlu0 %2585
          %2587 = vrot.lane.b32.xlu0 %v2485, 96
          %v2588 = vpop.permute.xlu0 %2587
          %2589 = vrot.lane.b32.xlu0 %v2490, 96
          %v2590 = vpop.permute.xlu0 %2589
          %2591 = vrot.lane.b32.xlu0 %v2495, 96
          %v2592 = vpop.permute.xlu0 %2591
          %2593 = vrot.lane.b32.xlu0 %v2500, 96
          %v2594 = vpop.permute.xlu0 %2593
          %2595 = vrot.lane.b32.xlu0 %v2505, 96
          %v2596 = vpop.permute.xlu0 %2595
          %2597 = vrot.lane.b32.xlu0 %v2510, 96
          %v2598 = vpop.permute.xlu0 %2597
          %2599 = vrot.lane.b32.xlu0 %v2515, 96
          %v2600 = vpop.permute.xlu0 %2599
          %2601 = vrot.lane.b32.xlu0 %v2520, 96
          %v2602 = vpop.permute.xlu0 %2601
          %2603 = vrot.lane.b32.xlu0 %v2525, 96
          %v2604 = vpop.permute.xlu0 %2603
          %2605 = vrot.lane.b32.xlu0 %v2530, 96
          %v2606 = vpop.permute.xlu0 %2605
          %2607 = vrot.lane.b32.xlu0 %v2535, 96
          %v2608 = vpop.permute.xlu0 %2607
          %2609 = vrot.lane.b32.xlu0 %v2540, 96
          %v2610 = vpop.permute.xlu0 %2609
          %2611 = vrot.lane.b32.xlu0 %v2545, 96
          %v2612 = vpop.permute.xlu0 %2611
          %2613 = vrot.lane.b32.xlu0 %v2550, 96
          %v2614 = vpop.permute.xlu0 %2613
          %2615 = vrot.lane.b32.xlu0 %v2555, 96
          %v2616 = vpop.permute.xlu0 %2615
          %2617 = vrot.lane.b32.xlu0 %v2560, 96
          %v2618 = vpop.permute.xlu0 %2617
          %vm2619 = vcmask 64512
          %v2620 = vsel %vm2619, %v2480, 0
          %v2622 = vsel %vm2619, %v2485, 0
          %v2624 = vsel %vm2619, %v2490, 0
          %v2626 = vsel %vm2619, %v2495, 0
          %v2628 = vsel %vm2619, %v2500, 0
          %v2630 = vsel %vm2619, %v2505, 0
          %v2632 = vsel %vm2619, %v2510, 0
          %v2634 = vsel %vm2619, %v2515, 0
          %v2636 = vsel %vm2619, %v2520, 0
          %v2638 = vsel %vm2619, %v2525, 0
          %v2640 = vsel %vm2619, %v2530, 0
          %v2642 = vsel %vm2619, %v2535, 0
          %v2644 = vsel %vm2619, %v2540, 0
          %v2646 = vsel %vm2619, %v2545, 0
          %v2648 = vsel %vm2619, %v2550, 0
          %v2650 = vsel %vm2619, %v2555, 0
          %v2652 = vsel %vm2619, %v2560, 0
          %v2654 = vsel %vm2619, %v2586, 0
          %v2656 = vsel %vm2619, %v2588, 0
          %v2658 = vsel %vm2619, %v2590, 0
          %v2660 = vsel %vm2619, %v2592, 0
          %v2662 = vsel %vm2619, %v2594, 0
          %v2664 = vsel %vm2619, %v2596, 0
          %v2666 = vsel %vm2619, %v2598, 0
          %v2668 = vsel %vm2619, %v2600, 0
          %v2670 = vsel %vm2619, %v2602, 0
          %v2672 = vsel %vm2619, %v2604, 0
          %v2674 = vsel %vm2619, %v2606, 0
          %v2676 = vsel %vm2619, %v2608, 0
          %v2678 = vsel %vm2619, %v2610, 0
          %v2680 = vsel %vm2619, %v2612, 0
          %v2682 = vsel %vm2619, %v2614, 0
          %v2684 = vsel %vm2619, %v2616, 0
          %v2686 = vsel %vm2619, %v2618, 0
          %2688 = vmatprep.subr.mxu0 0.0
          %2689 = vmatpush1.xpose.msra.mxu0 %v2684
          %2690 = vmatprep.subr.mxu0 0.0
          %2691 = vmatpush1.xpose.msra.mxu0 %v2682
          %2692 = vmatprep.subr.mxu0 0.0
          %2693 = vmatpush1.xpose.msra.mxu0 %v2680
          %2694 = vmatprep.subr.mxu0 0.0
          %2695 = vmatpush1.xpose.msra.mxu0 %v2678
          %2696 = vmatprep.subr.mxu0 0.0
          %2697 = vmatpush1.xpose.msra.mxu0 %v2676
          %2698 = vmatprep.subr.mxu0 0.0
          %2699 = vmatpush1.xpose.msra.mxu0 %v2674
          %2700 = vmatprep.subr.mxu0 0.0
          %2701 = vmatpush1.xpose.msra.mxu0 %v2672
          %2702 = vmatprep.subr.mxu0 0.0
          %2703 = vmatpush1.xpose.msra.mxu0 %v2670
          %2704 = vmatprep.subr.mxu0 0.0
          %2705 = vmatpush1.xpose.msra.mxu0 %v2668
          %2706 = vmatprep.subr.mxu0 0.0
          %2707 = vmatpush1.xpose.msra.mxu0 %v2666
          %2708 = vmatprep.subr.mxu0 0.0
          %2709 = vmatpush1.xpose.msra.mxu0 %v2664
          %2710 = vmatprep.subr.mxu0 0.0
          %2711 = vmatpush1.xpose.msra.mxu0 %v2662
          %2712 = vmatprep.subr.mxu0 0.0
          %2713 = vmatpush1.xpose.msra.mxu0 %v2660
          %2714 = vmatprep.subr.mxu0 0.0
          %2715 = vmatpush1.xpose.msra.mxu0 %v2658
          %2716 = vmatprep.subr.mxu0 0.0
          %2717 = vmatpush1.xpose.msra.mxu0 %v2656
          %2718 = vmatprep.subr.mxu0 0.0
          %2719 = vmatpush1.xpose.msra.mxu0 %v2654
          %2720 = vmatprep.subr.mxu0 0.0
          %2721 = vmatpush2.xpose.msra.mxu0 0.0
          %2722 = vmatprep.subr.mxu0 0.0
          %2723 = vmatpush2.xpose.msra.mxu0 0.0
          %2724 = vmatprep.subr.mxu0 0.0
          %2725 = vmatpush2.xpose.msra.mxu0 0.0
          %2726 = vmatprep.subr.mxu0 0.0
          %2727 = vmatpush2.xpose.msra.mxu0 0.0
          %2728 = vmatprep.subr.mxu0 0.0
          %2729 = vmatpush2.xpose.msra.mxu0 0.0
          %2730 = vmatprep.subr.mxu0 0.0
          %2731 = vmatpush2.xpose.msra.mxu0 0.0
          %2732 = vmatprep.subr.mxu0 0.0
          %2733 = vmatpush2.xpose.msra.mxu0 0.0
          %2734 = vmatprep.subr.mxu0 0.0
          %2735 = vmatpush2.xpose.msra.mxu0 0.0
          %2736 = vmatprep.subr.mxu0 0.0
          %2737 = vmatpush2.xpose.msra.mxu0 0.0
          %2738 = vmatprep.subr.mxu0 0.0
          %2739 = vmatpush2.xpose.msra.mxu0 0.0
          %2740 = vmatprep.subr.mxu0 0.0
          %2741 = vmatpush2.xpose.msra.mxu0 0.0
          %2742 = vmatprep.subr.mxu0 0.0
          %2743 = vmatpush2.xpose.msra.mxu0 0.0
          %2744 = vmatprep.subr.mxu0 0.0
          %2745 = vmatpush2.xpose.msra.mxu0 0.0
          %2746 = vmatprep.subr.mxu0 0.0
          %2747 = vmatpush2.xpose.msra.mxu0 0.0
          %2748 = vmatprep.subr.mxu0 0.0
          %2749 = vmatpush2.xpose.msra.mxu0 0.0
          %2750 = vmatprep.subr.mxu0 0.0
          %2751 = vmatpush2.xpose.msra.mxu0 %v2686
          %2752 = vmatprep.mubr.f32.mxu0 0.0
          %2753 = vmatmul.mubr.f32.gmra.mxu0 %v2620
          %v2754 = vpop.f32.mrf.mxu0
          %v2755 = vadd.f32 %v2025, %v2754
          %v2756 = vpop.f32.mrf.mxu0
          %v2757 = vadd.f32 %v2026, %v2756
          %2758 = vmatprep.mubr.f32.mxu0 0.0
          %2759 = vmatmul.mubr.f32.gmra.mxu0 %v2622
          %v2760 = vpop.f32.mrf.mxu0
          %v2761 = vadd.f32 %v2027, %v2760
          %v2762 = vpop.f32.mrf.mxu0
          %v2763 = vadd.f32 %v2028, %v2762
          %2764 = vmatprep.mubr.f32.mxu0 0.0
          %2765 = vmatmul.mubr.f32.gmra.mxu0 %v2624
          %v2766 = vpop.f32.mrf.mxu0
          %v2767 = vadd.f32 %v2029, %v2766
          %v2768 = vpop.f32.mrf.mxu0
          %v2769 = vadd.f32 %v2030, %v2768
          %2770 = vmatprep.mubr.f32.mxu0 0.0
          %2771 = vmatmul.mubr.f32.gmra.mxu0 %v2626
          %v2772 = vpop.f32.mrf.mxu0
          %v2773 = vadd.f32 %v2031, %v2772
          %v2774 = vpop.f32.mrf.mxu0
          %v2775 = vadd.f32 %v2032, %v2774
          %2776 = vmatprep.mubr.f32.mxu0 0.0
          %2777 = vmatmul.mubr.f32.gmra.mxu0 %v2628
          %v2778 = vpop.f32.mrf.mxu0
          %v2779 = vadd.f32 %v2033, %v2778
          %v2780 = vpop.f32.mrf.mxu0
          %v2781 = vadd.f32 %v2034, %v2780
          %2782 = vmatprep.mubr.f32.mxu0 0.0
          %2783 = vmatmul.mubr.f32.gmra.mxu0 %v2630
          %v2784 = vpop.f32.mrf.mxu0
          %v2785 = vadd.f32 %v2035, %v2784
          %v2786 = vpop.f32.mrf.mxu0
          %v2787 = vadd.f32 %v2036, %v2786
          %2788 = vmatprep.mubr.f32.mxu0 0.0
          %2789 = vmatmul.mubr.f32.gmra.mxu0 %v2632
          %v2790 = vpop.f32.mrf.mxu0
          %v2791 = vadd.f32 %v2037, %v2790
          %v2792 = vpop.f32.mrf.mxu0
          %v2793 = vadd.f32 %v2038, %v2792
          %2794 = vmatprep.mubr.f32.mxu0 0.0
          %2795 = vmatmul.mubr.f32.gmra.mxu0 %v2634
          %v2796 = vpop.f32.mrf.mxu0
          %v2797 = vadd.f32 %v2039, %v2796
          %v2798 = vpop.f32.mrf.mxu0
          %v2799 = vadd.f32 %v2040, %v2798
          %2800 = vmatprep.mubr.f32.mxu0 0.0
          %2801 = vmatmul.mubr.f32.gmra.mxu0 %v2636
          %v2802 = vpop.f32.mrf.mxu0
          %v2803 = vadd.f32 %v2041, %v2802
          %v2804 = vpop.f32.mrf.mxu0
          %v2805 = vadd.f32 %v2042, %v2804
          %2806 = vmatprep.mubr.f32.mxu0 0.0
          %2807 = vmatmul.mubr.f32.gmra.mxu0 %v2638
          %v2808 = vpop.f32.mrf.mxu0
          %v2809 = vadd.f32 %v2043, %v2808
          %v2810 = vpop.f32.mrf.mxu0
          %v2811 = vadd.f32 %v2044, %v2810
          %2812 = vmatprep.mubr.f32.mxu0 0.0
          %2813 = vmatmul.mubr.f32.gmra.mxu0 %v2640
          %v2814 = vpop.f32.mrf.mxu0
          %v2815 = vadd.f32 %v2045, %v2814
          %v2816 = vpop.f32.mrf.mxu0
          %v2817 = vadd.f32 %v2046, %v2816
          %2818 = vmatprep.mubr.f32.mxu0 0.0
          %2819 = vmatmul.mubr.f32.gmra.mxu0 %v2642
          %v2820 = vpop.f32.mrf.mxu0
          %v2821 = vadd.f32 %v2047, %v2820
          %v2822 = vpop.f32.mrf.mxu0
          %v2823 = vadd.f32 %v2048, %v2822
          %2824 = vmatprep.mubr.f32.mxu0 0.0
          %2825 = vmatmul.mubr.f32.gmra.mxu0 %v2644
          %v2826 = vpop.f32.mrf.mxu0
          %v2827 = vadd.f32 %v2049, %v2826
          %v2828 = vpop.f32.mrf.mxu0
          %v2829 = vadd.f32 %v2050, %v2828
          %2830 = vmatprep.mubr.f32.mxu0 0.0
          %2831 = vmatmul.mubr.f32.gmra.mxu0 %v2646
          %v2832 = vpop.f32.mrf.mxu0
          %v2833 = vadd.f32 %v2051, %v2832
          %v2834 = vpop.f32.mrf.mxu0
          %v2835 = vadd.f32 %v2052, %v2834
          %2836 = vmatprep.mubr.f32.mxu0 0.0
          %2837 = vmatmul.mubr.f32.gmra.mxu0 %v2648
          %v2838 = vpop.f32.mrf.mxu0
          %v2839 = vadd.f32 %v2053, %v2838
          %v2840 = vpop.f32.mrf.mxu0
          %v2841 = vadd.f32 %v2054, %v2840
          %2842 = vmatprep.mubr.f32.mxu0 0.0
          %2843 = vmatmul.mubr.f32.gmra.mxu0 %v2650
          %v2844 = vpop.f32.mrf.mxu0
          %v2845 = vadd.f32 %v2055, %v2844
          %v2846 = vpop.f32.mrf.mxu0
          %v2847 = vadd.f32 %v2056, %v2846
          %2848 = vmatprep.mubr.f32.mxu0 0.0
          %2849 = vmatmul.mubr.f32.gmra.mxu0 %v2652
          %v2850 = vpop.f32.mrf.mxu0
          %v2851 = vadd.f32 %v2057, %v2850
          %v2852 = vpop.f32.mrf.mxu0
          %v2853 = vadd.f32 %v2058, %v2852
          %2854 = vdwg.mxu0
          %v2855 = vsel %vm2619, %v2757, -inf
          %v2856 = vmax.f32 %v2755, %v2855
          %2857 = vmax.xlane.f32.xlu0 %v2856
          %v2858 = vpop.xlane.xlu0 %2857
          %v2859 = vsel %vm2619, %v2763, -inf
          %v2860 = vmax.f32 %v2761, %v2859
          %2861 = vmax.xlane.f32.xlu0 %v2860
          %v2862 = vpop.xlane.xlu0 %2861
          %v2863 = vsel %vm2619, %v2769, -inf
          %v2864 = vmax.f32 %v2767, %v2863
          %2865 = vmax.xlane.f32.xlu0 %v2864
          %v2866 = vpop.xlane.xlu0 %2865
          %v2867 = vsel %vm2619, %v2775, -inf
          %v2868 = vmax.f32 %v2773, %v2867
          %2869 = vmax.xlane.f32.xlu0 %v2868
          %v2870 = vpop.xlane.xlu0 %2869
          %v2871 = vsel %vm2619, %v2781, -inf
          %v2872 = vmax.f32 %v2779, %v2871
          %2873 = vmax.xlane.f32.xlu0 %v2872
          %v2874 = vpop.xlane.xlu0 %2873
          %v2875 = vsel %vm2619, %v2787, -inf
          %v2876 = vmax.f32 %v2785, %v2875
          %2877 = vmax.xlane.f32.xlu0 %v2876
          %v2878 = vpop.xlane.xlu0 %2877
          %v2879 = vsel %vm2619, %v2793, -inf
          %v2880 = vmax.f32 %v2791, %v2879
          %2881 = vmax.xlane.f32.xlu0 %v2880
          %v2882 = vpop.xlane.xlu0 %2881
          %v2883 = vsel %vm2619, %v2799, -inf
          %v2884 = vmax.f32 %v2797, %v2883
          %2885 = vmax.xlane.f32.xlu0 %v2884
          %v2886 = vpop.xlane.xlu0 %2885
          %v2887 = vsel %vm2619, %v2805, -inf
          %v2888 = vmax.f32 %v2803, %v2887
          %2889 = vmax.xlane.f32.xlu0 %v2888
          %v2890 = vpop.xlane.xlu0 %2889
          %v2891 = vsel %vm2619, %v2811, -inf
          %v2892 = vmax.f32 %v2809, %v2891
          %2893 = vmax.xlane.f32.xlu0 %v2892
          %v2894 = vpop.xlane.xlu0 %2893
          %v2895 = vsel %vm2619, %v2817, -inf
          %v2896 = vmax.f32 %v2815, %v2895
          %2897 = vmax.xlane.f32.xlu0 %v2896
          %v2898 = vpop.xlane.xlu0 %2897
          %v2899 = vsel %vm2619, %v2823, -inf
          %v2900 = vmax.f32 %v2821, %v2899
          %2901 = vmax.xlane.f32.xlu0 %v2900
          %v2902 = vpop.xlane.xlu0 %2901
          %v2903 = vsel %vm2619, %v2829, -inf
          %v2904 = vmax.f32 %v2827, %v2903
          %2905 = vmax.xlane.f32.xlu0 %v2904
          %v2906 = vpop.xlane.xlu0 %2905
          %v2907 = vsel %vm2619, %v2835, -inf
          %v2908 = vmax.f32 %v2833, %v2907
          %2909 = vmax.xlane.f32.xlu0 %v2908
          %v2910 = vpop.xlane.xlu0 %2909
          %v2911 = vsel %vm2619, %v2841, -inf
          %v2912 = vmax.f32 %v2839, %v2911
          %2913 = vmax.xlane.f32.xlu0 %v2912
          %v2914 = vpop.xlane.xlu0 %2913
          %v2915 = vsel %vm2619, %v2847, -inf
          %v2916 = vmax.f32 %v2845, %v2915
          %2917 = vmax.xlane.f32.xlu0 %v2916
          %v2918 = vpop.xlane.xlu0 %2917
          %v2919 = vsel %vm2619, %v2853, -inf
          %v2920 = vmax.f32 %v2851, %v2919
          %2921 = vmax.xlane.f32.xlu0 %v2920
          %v2922 = vpop.xlane.xlu0 %2921
          %v2923 = vsub.f32 %v2755, %v2858
          %v2924 = vsub.f32 %v2757, %v2858
          %v2925 = vsub.f32 %v2761, %v2862
          %v2926 = vsub.f32 %v2763, %v2862
          %v2927 = vsub.f32 %v2767, %v2866
          %v2928 = vsub.f32 %v2769, %v2866
          %v2929 = vsub.f32 %v2773, %v2870
          %v2930 = vsub.f32 %v2775, %v2870
          %v2931 = vsub.f32 %v2779, %v2874
          %v2932 = vsub.f32 %v2781, %v2874
          %v2933 = vsub.f32 %v2785, %v2878
          %v2934 = vsub.f32 %v2787, %v2878
          %v2935 = vsub.f32 %v2791, %v2882
          %v2936 = vsub.f32 %v2793, %v2882
          %v2937 = vsub.f32 %v2797, %v2886
          %v2938 = vsub.f32 %v2799, %v2886
          %v2939 = vsub.f32 %v2803, %v2890
          %v2940 = vsub.f32 %v2805, %v2890
          %v2941 = vsub.f32 %v2809, %v2894
          %v2942 = vsub.f32 %v2811, %v2894
          %v2943 = vsub.f32 %v2815, %v2898
          %v2944 = vsub.f32 %v2817, %v2898
          %v2945 = vsub.f32 %v2821, %v2902
          %v2946 = vsub.f32 %v2823, %v2902
          %v2947 = vsub.f32 %v2827, %v2906
          %v2948 = vsub.f32 %v2829, %v2906
          %v2949 = vsub.f32 %v2833, %v2910
          %v2950 = vsub.f32 %v2835, %v2910
          %v2951 = vsub.f32 %v2839, %v2914
          %v2952 = vsub.f32 %v2841, %v2914
          %v2953 = vsub.f32 %v2845, %v2918
          %v2954 = vsub.f32 %v2847, %v2918
          %v2955 = vsub.f32 %v2851, %v2922
          %v2956 = vsub.f32 %v2853, %v2922
          %v2957 = vmul.f32 %v2923, 1.442695
          %v2958 = vpow.pop %v2957
          %v2959 = vmul.f32 %v2924, 1.442695
          %v2960 = vpow.pop %v2959
          %v2961 = vmul.f32 %v2925, 1.442695
          %v2962 = vpow.pop %v2961
          %v2963 = vmul.f32 %v2926, 1.442695
          %v2964 = vpow.pop %v2963
          %v2965 = vmul.f32 %v2927, 1.442695
          %v2966 = vpow.pop %v2965
          %v2967 = vmul.f32 %v2928, 1.442695
          %v2968 = vpow.pop %v2967
          %v2969 = vmul.f32 %v2929, 1.442695
          %v2970 = vpow.pop %v2969
          %v2971 = vmul.f32 %v2930, 1.442695
          %v2972 = vpow.pop %v2971
          %v2973 = vmul.f32 %v2931, 1.442695
          %v2974 = vpow.pop %v2973
          %v2975 = vmul.f32 %v2932, 1.442695
          %v2976 = vpow.pop %v2975
          %v2977 = vmul.f32 %v2933, 1.442695
          %v2978 = vpow.pop %v2977
          %v2979 = vmul.f32 %v2934, 1.442695
          %v2980 = vpow.pop %v2979
          %v2981 = vmul.f32 %v2935, 1.442695
          %v2982 = vpow.pop %v2981
          %v2983 = vmul.f32 %v2936, 1.442695
          %v2984 = vpow.pop %v2983
          %v2985 = vmul.f32 %v2937, 1.442695
          %v2986 = vpow.pop %v2985
          %v2987 = vmul.f32 %v2938, 1.442695
          %v2988 = vpow.pop %v2987
          %v2989 = vmul.f32 %v2939, 1.442695
          %v2990 = vpow.pop %v2989
          %v2991 = vmul.f32 %v2940, 1.442695
          %v2992 = vpow.pop %v2991
          %v2993 = vmul.f32 %v2941, 1.442695
          %v2994 = vpow.pop %v2993
          %v2995 = vmul.f32 %v2942, 1.442695
          %v2996 = vpow.pop %v2995
          %v2997 = vmul.f32 %v2943, 1.442695
          %v2998 = vpow.pop %v2997
          %v2999 = vmul.f32 %v2944, 1.442695
          %v3000 = vpow.pop %v2999
          %v3001 = vmul.f32 %v2945, 1.442695
          %v3002 = vpow.pop %v3001
          %v3003 = vmul.f32 %v2946, 1.442695
          %v3004 = vpow.pop %v3003
          %v3005 = vmul.f32 %v2947, 1.442695
          %v3006 = vpow.pop %v3005
          %v3007 = vmul.f32 %v2948, 1.442695
          %v3008 = vpow.pop %v3007
          %v3009 = vmul.f32 %v2949, 1.442695
          %v3010 = vpow.pop %v3009
          %v3011 = vmul.f32 %v2950, 1.442695
          %v3012 = vpow.pop %v3011
          %v3013 = vmul.f32 %v2951, 1.442695
          %v3014 = vpow.pop %v3013
          %v3015 = vmul.f32 %v2952, 1.442695
          %v3016 = vpow.pop %v3015
          %v3017 = vmul.f32 %v2953, 1.442695
          %v3018 = vpow.pop %v3017
          %v3019 = vmul.f32 %v2954, 1.442695
          %v3020 = vpow.pop %v3019
          %v3021 = vmul.f32 %v2955, 1.442695
          %v3022 = vpow.pop %v3021
          %v3023 = vmul.f32 %v2956, 1.442695
          %v3024 = vpow.pop %v3023
          %v3025 = vsel %vm2619, %v2960, 0.0
          %v3026 = vadd.f32 %v2958, %v3025
          %3027 = vadd.xlane.f32.xlu0 %v3026
          %v3028 = vpop.xlane.xlu0 %3027
          %v3029 = vsel %vm2619, %v2964, 0.0
          %v3030 = vadd.f32 %v2962, %v3029
          %3031 = vadd.xlane.f32.xlu0 %v3030
          %v3032 = vpop.xlane.xlu0 %3031
          %v3033 = vsel %vm2619, %v2968, 0.0
          %v3034 = vadd.f32 %v2966, %v3033
          %3035 = vadd.xlane.f32.xlu0 %v3034
          %v3036 = vpop.xlane.xlu0 %3035
          %v3037 = vsel %vm2619, %v2972, 0.0
          %v3038 = vadd.f32 %v2970, %v3037
          %3039 = vadd.xlane.f32.xlu0 %v3038
          %v3040 = vpop.xlane.xlu0 %3039
          %v3041 = vsel %vm2619, %v2976, 0.0
          %v3042 = vadd.f32 %v2974, %v3041
          %3043 = vadd.xlane.f32.xlu0 %v3042
          %v3044 = vpop.xlane.xlu0 %3043
          %v3045 = vsel %vm2619, %v2980, 0.0
          %v3046 = vadd.f32 %v2978, %v3045
          %3047 = vadd.xlane.f32.xlu0 %v3046
          %v3048 = vpop.xlane.xlu0 %3047
          %v3049 = vsel %vm2619, %v2984, 0.0
          %v3050 = vadd.f32 %v2982, %v3049
          %3051 = vadd.xlane.f32.xlu0 %v3050
          %v3052 = vpop.xlane.xlu0 %3051
          %v3053 = vsel %vm2619, %v2988, 0.0
          %v3054 = vadd.f32 %v2986, %v3053
          %3055 = vadd.xlane.f32.xlu0 %v3054
          %v3056 = vpop.xlane.xlu0 %3055
          %v3057 = vsel %vm2619, %v2992, 0.0
          %v3058 = vadd.f32 %v2990, %v3057
          %3059 = vadd.xlane.f32.xlu0 %v3058
          %v3060 = vpop.xlane.xlu0 %3059
          %v3061 = vsel %vm2619, %v2996, 0.0
          %v3062 = vadd.f32 %v2994, %v3061
          %3063 = vadd.xlane.f32.xlu0 %v3062
          %v3064 = vpop.xlane.xlu0 %3063
          %v3065 = vsel %vm2619, %v3000, 0.0
          %v3066 = vadd.f32 %v2998, %v3065
          %3067 = vadd.xlane.f32.xlu0 %v3066
          %v3068 = vpop.xlane.xlu0 %3067
          %v3069 = vsel %vm2619, %v3004, 0.0
          %v3070 = vadd.f32 %v3002, %v3069
          %3071 = vadd.xlane.f32.xlu0 %v3070
          %v3072 = vpop.xlane.xlu0 %3071
          %v3073 = vsel %vm2619, %v3008, 0.0
          %v3074 = vadd.f32 %v3006, %v3073
          %3075 = vadd.xlane.f32.xlu0 %v3074
          %v3076 = vpop.xlane.xlu0 %3075
          %v3077 = vsel %vm2619, %v3012, 0.0
          %v3078 = vadd.f32 %v3010, %v3077
          %3079 = vadd.xlane.f32.xlu0 %v3078
          %v3080 = vpop.xlane.xlu0 %3079
          %v3081 = vsel %vm2619, %v3016, 0.0
          %v3082 = vadd.f32 %v3014, %v3081
          %3083 = vadd.xlane.f32.xlu0 %v3082
          %v3084 = vpop.xlane.xlu0 %3083
          %v3085 = vsel %vm2619, %v3020, 0.0
          %v3086 = vadd.f32 %v3018, %v3085
          %3087 = vadd.xlane.f32.xlu0 %v3086
          %v3088 = vpop.xlane.xlu0 %3087
          %v3089 = vsel %vm2619, %v3024, 0.0
          %v3090 = vadd.f32 %v3022, %v3089
          %3091 = vadd.xlane.f32.xlu0 %v3090
          %v3092 = vpop.xlane.xlu0 %3091
          %v3093 = vrcp.pop %v3028
          %v3094 = vrcp.pop %v3032
          %v3095 = vrcp.pop %v3036
          %v3096 = vrcp.pop %v3040
          %v3097 = vrcp.pop %v3044
          %v3098 = vrcp.pop %v3048
          %v3099 = vrcp.pop %v3052
          %v3100 = vrcp.pop %v3056
          %v3101 = vrcp.pop %v3060
          %v3102 = vrcp.pop %v3064
          %v3103 = vrcp.pop %v3068
          %v3104 = vrcp.pop %v3072
          %v3105 = vrcp.pop %v3076
          %v3106 = vrcp.pop %v3080
          %v3107 = vrcp.pop %v3084
          %v3108 = vrcp.pop %v3088
          %v3109 = vrcp.pop %v3092
          %v3110 = vmul.f32 %v2958, %v3093
          %v3111 = vmul.f32 %v2960, %v3093
          %v3112 = vmul.f32 %v2962, %v3094
          %v3113 = vmul.f32 %v2964, %v3094
          %v3114 = vmul.f32 %v2966, %v3095
          %v3115 = vmul.f32 %v2968, %v3095
          %v3116 = vmul.f32 %v2970, %v3096
          %v3117 = vmul.f32 %v2972, %v3096
          %v3118 = vmul.f32 %v2974, %v3097
          %v3119 = vmul.f32 %v2976, %v3097
          %v3120 = vmul.f32 %v2978, %v3098
          %v3121 = vmul.f32 %v2980, %v3098
          %v3122 = vmul.f32 %v2982, %v3099
          %v3123 = vmul.f32 %v2984, %v3099
          %v3124 = vmul.f32 %v2986, %v3100
          %v3125 = vmul.f32 %v2988, %v3100
          %v3126 = vmul.f32 %v2990, %v3101
          %v3127 = vmul.f32 %v2992, %v3101
          %v3128 = vmul.f32 %v2994, %v3102
          %v3129 = vmul.f32 %v2996, %v3102
          %v3130 = vmul.f32 %v2998, %v3103
          %v3131 = vmul.f32 %v3000, %v3103
          %v3132 = vmul.f32 %v3002, %v3104
          %v3133 = vmul.f32 %v3004, %v3104
          %v3134 = vmul.f32 %v3006, %v3105
          %v3135 = vmul.f32 %v3008, %v3105
          %v3136 = vmul.f32 %v3010, %v3106
          %v3137 = vmul.f32 %v3012, %v3106
          %v3138 = vmul.f32 %v3014, %v3107
          %v3139 = vmul.f32 %v3016, %v3107
          %v3140 = vmul.f32 %v3018, %v3108
          %v3141 = vmul.f32 %v3020, %v3108
          %v3142 = vmul.f32 %v3022, %v3109
          %v3143 = vmul.f32 %v3024, %v3109
          %3144 = vrot.lane.b32.xlu0 %v2480, 64
          %v3145 = vpop.permute.xlu0 %3144
          %3146 = vrot.lane.b32.xlu0 %v2485, 64
          %v3147 = vpop.permute.xlu0 %3146
          %3148 = vrot.lane.b32.xlu0 %v2490, 64
          %v3149 = vpop.permute.xlu0 %3148
          %3150 = vrot.lane.b32.xlu0 %v2495, 64
          %v3151 = vpop.permute.xlu0 %3150
          %3152 = vrot.lane.b32.xlu0 %v2500, 64
          %v3153 = vpop.permute.xlu0 %3152
          %3154 = vrot.lane.b32.xlu0 %v2505, 64
          %v3155 = vpop.permute.xlu0 %3154
          %3156 = vrot.lane.b32.xlu0 %v2510, 64
          %v3157 = vpop.permute.xlu0 %3156
          %3158 = vrot.lane.b32.xlu0 %v2515, 64
          %v3159 = vpop.permute.xlu0 %3158
          %3160 = vrot.lane.b32.xlu0 %v2520, 64
          %v3161 = vpop.permute.xlu0 %3160
          %3162 = vrot.lane.b32.xlu0 %v2525, 64
          %v3163 = vpop.permute.xlu0 %3162
          %3164 = vrot.lane.b32.xlu0 %v2530, 64
          %v3165 = vpop.permute.xlu0 %3164
          %3166 = vrot.lane.b32.xlu0 %v2535, 64
          %v3167 = vpop.permute.xlu0 %3166
          %3168 = vrot.lane.b32.xlu0 %v2540, 64
          %v3169 = vpop.permute.xlu0 %3168
          %3170 = vrot.lane.b32.xlu0 %v2545, 64
          %v3171 = vpop.permute.xlu0 %3170
          %3172 = vrot.lane.b32.xlu0 %v2550, 64
          %v3173 = vpop.permute.xlu0 %3172
          %3174 = vrot.lane.b32.xlu0 %v2555, 64
          %v3175 = vpop.permute.xlu0 %3174
          %3176 = vrot.lane.b32.xlu0 %v2560, 64
          %v3177 = vpop.permute.xlu0 %3176
          %v3196 = vsel %vm2619, %v3111, 0
          %v3199 = vsel %vm2619, %v3113, 0
          %v3202 = vsel %vm2619, %v3115, 0
          %v3205 = vsel %vm2619, %v3117, 0
          %v3208 = vsel %vm2619, %v3119, 0
          %v3211 = vsel %vm2619, %v3121, 0
          %v3214 = vsel %vm2619, %v3123, 0
          %v3217 = vsel %vm2619, %v3125, 0
          %v3220 = vsel %vm2619, %v3127, 0
          %v3223 = vsel %vm2619, %v3129, 0
          %v3226 = vsel %vm2619, %v3131, 0
          %v3229 = vsel %vm2619, %v3133, 0
          %v3232 = vsel %vm2619, %v3135, 0
          %v3235 = vsel %vm2619, %v3137, 0
          %v3238 = vsel %vm2619, %v3139, 0
          %v3241 = vsel %vm2619, %v3141, 0
          %v3244 = vsel %vm2619, %v3143, 0
          %3246 = vmatprep.subr.mxu0 0.0
          %3247 = vmatpush1.msra.mxu0 %v3175
          %3248 = vmatprep.subr.mxu0 0.0
          %3249 = vmatpush1.msra.mxu0 %v3173
          %3250 = vmatprep.subr.mxu0 0.0
          %3251 = vmatpush1.msra.mxu0 %v3171
          %3252 = vmatprep.subr.mxu0 0.0
          %3253 = vmatpush1.msra.mxu0 %v3169
          %3254 = vmatprep.subr.mxu0 0.0
          %3255 = vmatpush1.msra.mxu0 %v3167
          %3256 = vmatprep.subr.mxu0 0.0
          %3257 = vmatpush1.msra.mxu0 %v3165
          %3258 = vmatprep.subr.mxu0 0.0
          %3259 = vmatpush1.msra.mxu0 %v3163
          %3260 = vmatprep.subr.mxu0 0.0
          %3261 = vmatpush1.msra.mxu0 %v3161
          %3262 = vmatprep.subr.mxu0 0.0
          %3263 = vmatpush1.msra.mxu0 %v3159
          %3264 = vmatprep.subr.mxu0 0.0
          %3265 = vmatpush1.msra.mxu0 %v3157
          %3266 = vmatprep.subr.mxu0 0.0
          %3267 = vmatpush1.msra.mxu0 %v3155
          %3268 = vmatprep.subr.mxu0 0.0
          %3269 = vmatpush1.msra.mxu0 %v3153
          %3270 = vmatprep.subr.mxu0 0.0
          %3271 = vmatpush1.msra.mxu0 %v3151
          %3272 = vmatprep.subr.mxu0 0.0
          %3273 = vmatpush1.msra.mxu0 %v3149
          %3274 = vmatprep.subr.mxu0 0.0
          %3275 = vmatpush1.msra.mxu0 %v3147
          %3276 = vmatprep.subr.mxu0 0.0
          %3277 = vmatpush1.msra.mxu0 %v3145
          %3278 = vmatprep.subr.mxu0 0.0
          %3279 = vmatpush2.msra.mxu0 0.0
          %3280 = vmatprep.subr.mxu0 0.0
          %3281 = vmatpush2.msra.mxu0 0.0
          %3282 = vmatprep.subr.mxu0 0.0
          %3283 = vmatpush2.msra.mxu0 0.0
          %3284 = vmatprep.subr.mxu0 0.0
          %3285 = vmatpush2.msra.mxu0 0.0
          %3286 = vmatprep.subr.mxu0 0.0
          %3287 = vmatpush2.msra.mxu0 0.0
          %3288 = vmatprep.subr.mxu0 0.0
          %3289 = vmatpush2.msra.mxu0 0.0
          %3290 = vmatprep.subr.mxu0 0.0
          %3291 = vmatpush2.msra.mxu0 0.0
          %3292 = vmatprep.subr.mxu0 0.0
          %3293 = vmatpush2.msra.mxu0 0.0
          %3294 = vmatprep.subr.mxu0 0.0
          %3295 = vmatpush2.msra.mxu0 0.0
          %3296 = vmatprep.subr.mxu0 0.0
          %3297 = vmatpush2.msra.mxu0 0.0
          %3298 = vmatprep.subr.mxu0 0.0
          %3299 = vmatpush2.msra.mxu0 0.0
          %3300 = vmatprep.subr.mxu0 0.0
          %3301 = vmatpush2.msra.mxu0 0.0
          %3302 = vmatprep.subr.mxu0 0.0
          %3303 = vmatpush2.msra.mxu0 0.0
          %3304 = vmatprep.subr.mxu0 0.0
          %3305 = vmatpush2.msra.mxu0 0.0
          %3306 = vmatprep.subr.mxu0 0.0
          %3307 = vmatpush2.msra.mxu0 0.0
          %3308 = vmatprep.subr.mxu0 0.0
          %3309 = vmatpush2.msra.mxu0 %v3177
          %3310 = vmatprep.mubr.f32.mxu0 %v3196
          %3311 = vmatmul.mubr.f32.gmra.mxu0 %v3110
          %v3312 = vpop.f32.mrf.mxu0
          %v3313 = vadd.f32 0.0, %v3312
          %v3314 = vpop.f32.mrf.mxu0
          %3315 = vmatprep.mubr.f32.mxu0 %v3199
          %3316 = vmatmul.mubr.f32.gmra.mxu0 %v3112
          %v3317 = vpop.f32.mrf.mxu0
          %v3318 = vadd.f32 0.0, %v3317
          %v3319 = vpop.f32.mrf.mxu0
          %3320 = vmatprep.mubr.f32.mxu0 %v3202
          %3321 = vmatmul.mubr.f32.gmra.mxu0 %v3114
          %v3322 = vpop.f32.mrf.mxu0
          %v3323 = vadd.f32 0.0, %v3322
          %v3324 = vpop.f32.mrf.mxu0
          %3325 = vmatprep.mubr.f32.mxu0 %v3205
          %3326 = vmatmul.mubr.f32.gmra.mxu0 %v3116
          %v3327 = vpop.f32.mrf.mxu0
          %v3328 = vadd.f32 0.0, %v3327
          %v3329 = vpop.f32.mrf.mxu0
          %3330 = vmatprep.mubr.f32.mxu0 %v3208
          %3331 = vmatmul.mubr.f32.gmra.mxu0 %v3118
          %v3332 = vpop.f32.mrf.mxu0
          %v3333 = vadd.f32 0.0, %v3332
          %v3334 = vpop.f32.mrf.mxu0
          %3335 = vmatprep.mubr.f32.mxu0 %v3211
          %3336 = vmatmul.mubr.f32.gmra.mxu0 %v3120
          %v3337 = vpop.f32.mrf.mxu0
          %v3338 = vadd.f32 0.0, %v3337
          %v3339 = vpop.f32.mrf.mxu0
          %3340 = vmatprep.mubr.f32.mxu0 %v3214
          %3341 = vmatmul.mubr.f32.gmra.mxu0 %v3122
          %v3342 = vpop.f32.mrf.mxu0
          %v3343 = vadd.f32 0.0, %v3342
          %v3344 = vpop.f32.mrf.mxu0
          %3345 = vmatprep.mubr.f32.mxu0 %v3217
          %3346 = vmatmul.mubr.f32.gmra.mxu0 %v3124
          %v3347 = vpop.f32.mrf.mxu0
          %v3348 = vadd.f32 0.0, %v3347
          %v3349 = vpop.f32.mrf.mxu0
          %3350 = vmatprep.mubr.f32.mxu0 %v3220
          %3351 = vmatmul.mubr.f32.gmra.mxu0 %v3126
          %v3352 = vpop.f32.mrf.mxu0
          %v3353 = vadd.f32 0.0, %v3352
          %v3354 = vpop.f32.mrf.mxu0
          %3355 = vmatprep.mubr.f32.mxu0 %v3223
          %3356 = vmatmul.mubr.f32.gmra.mxu0 %v3128
          %v3357 = vpop.f32.mrf.mxu0
          %v3358 = vadd.f32 0.0, %v3357
          %v3359 = vpop.f32.mrf.mxu0
          %3360 = vmatprep.mubr.f32.mxu0 %v3226
          %3361 = vmatmul.mubr.f32.gmra.mxu0 %v3130
          %v3362 = vpop.f32.mrf.mxu0
          %v3363 = vadd.f32 0.0, %v3362
          %v3364 = vpop.f32.mrf.mxu0
          %3365 = vmatprep.mubr.f32.mxu0 %v3229
          %3366 = vmatmul.mubr.f32.gmra.mxu0 %v3132
          %v3367 = vpop.f32.mrf.mxu0
          %v3368 = vadd.f32 0.0, %v3367
          %v3369 = vpop.f32.mrf.mxu0
          %3370 = vmatprep.mubr.f32.mxu0 %v3232
          %3371 = vmatmul.mubr.f32.gmra.mxu0 %v3134
          %v3372 = vpop.f32.mrf.mxu0
          %v3373 = vadd.f32 0.0, %v3372
          %v3374 = vpop.f32.mrf.mxu0
          %3375 = vmatprep.mubr.f32.mxu0 %v3235
          %3376 = vmatmul.mubr.f32.gmra.mxu0 %v3136
          %v3377 = vpop.f32.mrf.mxu0
          %v3378 = vadd.f32 0.0, %v3377
          %v3379 = vpop.f32.mrf.mxu0
          %3380 = vmatprep.mubr.f32.mxu0 %v3238
          %3381 = vmatmul.mubr.f32.gmra.mxu0 %v3138
          %v3382 = vpop.f32.mrf.mxu0
          %v3383 = vadd.f32 0.0, %v3382
          %v3384 = vpop.f32.mrf.mxu0
          %3385 = vmatprep.mubr.f32.mxu0 %v3241
          %3386 = vmatmul.mubr.f32.gmra.mxu0 %v3140
          %v3387 = vpop.f32.mrf.mxu0
          %v3388 = vadd.f32 0.0, %v3387
          %v3389 = vpop.f32.mrf.mxu0
          %3390 = vmatprep.mubr.f32.mxu0 %v3244
          %3391 = vmatmul.mubr.f32.gmra.mxu0 %v3142
          %v3392 = vpop.f32.mrf.mxu0
          %v3393 = vadd.f32 0.0, %v3392
          %v3394 = vpop.f32.mrf.mxu0
          %3395 = vdwg.mxu0
          %3396 = vrot.lane.b32.xlu0 %v2480, 120
          %v3397 = vpop.permute.xlu0 %3396
          %3398 = vrot.lane.b32.xlu0 %v2485, 120
          %v3399 = vpop.permute.xlu0 %3398
          %3400 = vrot.lane.b32.xlu0 %v2490, 120
          %v3401 = vpop.permute.xlu0 %3400
          %3402 = vrot.lane.b32.xlu0 %v2495, 120
          %v3403 = vpop.permute.xlu0 %3402
          %3404 = vrot.lane.b32.xlu0 %v2500, 120
          %v3405 = vpop.permute.xlu0 %3404
          %3406 = vrot.lane.b32.xlu0 %v2505, 120
          %v3407 = vpop.permute.xlu0 %3406
          %3408 = vrot.lane.b32.xlu0 %v2510, 120
          %v3409 = vpop.permute.xlu0 %3408
          %3410 = vrot.lane.b32.xlu0 %v2515, 120
          %v3411 = vpop.permute.xlu0 %3410
          %3412 = vrot.lane.b32.xlu0 %v2520, 120
          %v3413 = vpop.permute.xlu0 %3412
          %3414 = vrot.lane.b32.xlu0 %v2525, 120
          %v3415 = vpop.permute.xlu0 %3414
          %3416 = vrot.lane.b32.xlu0 %v2530, 120
          %v3417 = vpop.permute.xlu0 %3416
          %3418 = vrot.lane.b32.xlu0 %v2535, 120
          %v3419 = vpop.permute.xlu0 %3418
          %3420 = vrot.lane.b32.xlu0 %v2540, 120
          %v3421 = vpop.permute.xlu0 %3420
          %3422 = vrot.lane.b32.xlu0 %v2545, 120
          %v3423 = vpop.permute.xlu0 %3422
          %3424 = vrot.lane.b32.xlu0 %v2550, 120
          %v3425 = vpop.permute.xlu0 %3424
          %3426 = vrot.lane.b32.xlu0 %v2555, 120
          %v3427 = vpop.permute.xlu0 %3426
          %3428 = vrot.lane.b32.xlu0 %v2560, 120
          %v3429 = vpop.permute.xlu0 %3428
          %3430 = vrot.lane.b32.xlu0 %v2480, 88
          %v3431 = vpop.permute.xlu0 %3430
          %3432 = vrot.lane.b32.xlu0 %v2485, 88
          %v3433 = vpop.permute.xlu0 %3432
          %3434 = vrot.lane.b32.xlu0 %v2490, 88
          %v3435 = vpop.permute.xlu0 %3434
          %3436 = vrot.lane.b32.xlu0 %v2495, 88
          %v3437 = vpop.permute.xlu0 %3436
          %3438 = vrot.lane.b32.xlu0 %v2500, 88
          %v3439 = vpop.permute.xlu0 %3438
          %3440 = vrot.lane.b32.xlu0 %v2505, 88
          %v3441 = vpop.permute.xlu0 %3440
          %3442 = vrot.lane.b32.xlu0 %v2510, 88
          %v3443 = vpop.permute.xlu0 %3442
          %3444 = vrot.lane.b32.xlu0 %v2515, 88
          %v3445 = vpop.permute.xlu0 %3444
          %3446 = vrot.lane.b32.xlu0 %v2520, 88
          %v3447 = vpop.permute.xlu0 %3446
          %3448 = vrot.lane.b32.xlu0 %v2525, 88
          %v3449 = vpop.permute.xlu0 %3448
          %3450 = vrot.lane.b32.xlu0 %v2530, 88
          %v3451 = vpop.permute.xlu0 %3450
          %3452 = vrot.lane.b32.xlu0 %v2535, 88
          %v3453 = vpop.permute.xlu0 %3452
          %3454 = vrot.lane.b32.xlu0 %v2540, 88
          %v3455 = vpop.permute.xlu0 %3454
          %3456 = vrot.lane.b32.xlu0 %v2545, 88
          %v3457 = vpop.permute.xlu0 %3456
          %3458 = vrot.lane.b32.xlu0 %v2550, 88
          %v3459 = vpop.permute.xlu0 %3458
          %3460 = vrot.lane.b32.xlu0 %v2555, 88
          %v3461 = vpop.permute.xlu0 %3460
          %3462 = vrot.lane.b32.xlu0 %v2560, 88
          %v3463 = vpop.permute.xlu0 %3462
          %v3464 = vsel %vm2619, %v3397, 0
          %v3466 = vsel %vm2619, %v3399, 0
          %v3468 = vsel %vm2619, %v3401, 0
          %v3470 = vsel %vm2619, %v3403, 0
          %v3472 = vsel %vm2619, %v3405, 0
          %v3474 = vsel %vm2619, %v3407, 0
          %v3476 = vsel %vm2619, %v3409, 0
          %v3478 = vsel %vm2619, %v3411, 0
          %v3480 = vsel %vm2619, %v3413, 0
          %v3482 = vsel %vm2619, %v3415, 0
          %v3484 = vsel %vm2619, %v3417, 0
          %v3486 = vsel %vm2619, %v3419, 0
          %v3488 = vsel %vm2619, %v3421, 0
          %v3490 = vsel %vm2619, %v3423, 0
          %v3492 = vsel %vm2619, %v3425, 0
          %v3494 = vsel %vm2619, %v3427, 0
          %v3496 = vsel %vm2619, %v3429, 0
          %v3498 = vsel %vm2619, %v3431, 0
          %v3500 = vsel %vm2619, %v3433, 0
          %v3502 = vsel %vm2619, %v3435, 0
          %v3504 = vsel %vm2619, %v3437, 0
          %v3506 = vsel %vm2619, %v3439, 0
          %v3508 = vsel %vm2619, %v3441, 0
          %v3510 = vsel %vm2619, %v3443, 0
          %v3512 = vsel %vm2619, %v3445, 0
          %v3514 = vsel %vm2619, %v3447, 0
          %v3516 = vsel %vm2619, %v3449, 0
          %v3518 = vsel %vm2619, %v3451, 0
          %v3520 = vsel %vm2619, %v3453, 0
          %v3522 = vsel %vm2619, %v3455, 0
          %v3524 = vsel %vm2619, %v3457, 0
          %v3526 = vsel %vm2619, %v3459, 0
          %v3528 = vsel %vm2619, %v3461, 0
          %v3530 = vsel %vm2619, %v3463, 0
          %3532 = vmatprep.subr.mxu0 0.0
          %3533 = vmatpush1.xpose.msra.mxu0 %v3528
          %3534 = vmatprep.subr.mxu0 0.0
          %3535 = vmatpush1.xpose.msra.mxu0 %v3526
          %3536 = vmatprep.subr.mxu0 0.0
          %3537 = vmatpush1.xpose.msra.mxu0 %v3524
          %3538 = vmatprep.subr.mxu0 0.0
          %3539 = vmatpush1.xpose.msra.mxu0 %v3522
          %3540 = vmatprep.subr.mxu0 0.0
          %3541 = vmatpush1.xpose.msra.mxu0 %v3520
          %3542 = vmatprep.subr.mxu0 0.0
          %3543 = vmatpush1.xpose.msra.mxu0 %v3518
          %3544 = vmatprep.subr.mxu0 0.0
          %3545 = vmatpush1.xpose.msra.mxu0 %v3516
          %3546 = vmatprep.subr.mxu0 0.0
          %3547 = vmatpush1.xpose.msra.mxu0 %v3514
          %3548 = vmatprep.subr.mxu0 0.0
          %3549 = vmatpush1.xpose.msra.mxu0 %v3512
          %3550 = vmatprep.subr.mxu0 0.0
          %3551 = vmatpush1.xpose.msra.mxu0 %v3510
          %3552 = vmatprep.subr.mxu0 0.0
          %3553 = vmatpush1.xpose.msra.mxu0 %v3508
          %3554 = vmatprep.subr.mxu0 0.0
          %3555 = vmatpush1.xpose.msra.mxu0 %v3506
          %3556 = vmatprep.subr.mxu0 0.0
          %3557 = vmatpush1.xpose.msra.mxu0 %v3504
          %3558 = vmatprep.subr.mxu0 0.0
          %3559 = vmatpush1.xpose.msra.mxu0 %v3502
          %3560 = vmatprep.subr.mxu0 0.0
          %3561 = vmatpush1.xpose.msra.mxu0 %v3500
          %3562 = vmatprep.subr.mxu0 0.0
          %3563 = vmatpush1.xpose.msra.mxu0 %v3498
          %3564 = vmatprep.subr.mxu0 0.0
          %3565 = vmatpush2.xpose.msra.mxu0 0.0
          %3566 = vmatprep.subr.mxu0 0.0
          %3567 = vmatpush2.xpose.msra.mxu0 0.0
          %3568 = vmatprep.subr.mxu0 0.0
          %3569 = vmatpush2.xpose.msra.mxu0 0.0
          %3570 = vmatprep.subr.mxu0 0.0
          %3571 = vmatpush2.xpose.msra.mxu0 0.0
          %3572 = vmatprep.subr.mxu0 0.0
          %3573 = vmatpush2.xpose.msra.mxu0 0.0
          %3574 = vmatprep.subr.mxu0 0.0
          %3575 = vmatpush2.xpose.msra.mxu0 0.0
          %3576 = vmatprep.subr.mxu0 0.0
          %3577 = vmatpush2.xpose.msra.mxu0 0.0
          %3578 = vmatprep.subr.mxu0 0.0
          %3579 = vmatpush2.xpose.msra.mxu0 0.0
          %3580 = vmatprep.subr.mxu0 0.0
          %3581 = vmatpush2.xpose.msra.mxu0 0.0
          %3582 = vmatprep.subr.mxu0 0.0
          %3583 = vmatpush2.xpose.msra.mxu0 0.0
          %3584 = vmatprep.subr.mxu0 0.0
          %3585 = vmatpush2.xpose.msra.mxu0 0.0
          %3586 = vmatprep.subr.mxu0 0.0
          %3587 = vmatpush2.xpose.msra.mxu0 0.0
          %3588 = vmatprep.subr.mxu0 0.0
          %3589 = vmatpush2.xpose.msra.mxu0 0.0
          %3590 = vmatprep.subr.mxu0 0.0
          %3591 = vmatpush2.xpose.msra.mxu0 0.0
          %3592 = vmatprep.subr.mxu0 0.0
          %3593 = vmatpush2.xpose.msra.mxu0 0.0
          %3594 = vmatprep.subr.mxu0 0.0
          %3595 = vmatpush2.xpose.msra.mxu0 %v3530
          %3596 = vmatprep.mubr.f32.mxu0 0.0
          %3597 = vmatmul.mubr.f32.gmra.mxu0 %v3464
          %v3598 = vpop.f32.mrf.mxu0
          %v3599 = vadd.f32 %v2025, %v3598
          %v3600 = vpop.f32.mrf.mxu0
          %v3601 = vadd.f32 %v2026, %v3600
          %3602 = vmatprep.mubr.f32.mxu0 0.0
          %3603 = vmatmul.mubr.f32.gmra.mxu0 %v3466
          %v3604 = vpop.f32.mrf.mxu0
          %v3605 = vadd.f32 %v2027, %v3604
          %v3606 = vpop.f32.mrf.mxu0
          %v3607 = vadd.f32 %v2028, %v3606
          %3608 = vmatprep.mubr.f32.mxu0 0.0
          %3609 = vmatmul.mubr.f32.gmra.mxu0 %v3468
          %v3610 = vpop.f32.mrf.mxu0
          %v3611 = vadd.f32 %v2029, %v3610
          %v3612 = vpop.f32.mrf.mxu0
          %v3613 = vadd.f32 %v2030, %v3612
          %3614 = vmatprep.mubr.f32.mxu0 0.0
          %3615 = vmatmul.mubr.f32.gmra.mxu0 %v3470
          %v3616 = vpop.f32.mrf.mxu0
          %v3617 = vadd.f32 %v2031, %v3616
          %v3618 = vpop.f32.mrf.mxu0
          %v3619 = vadd.f32 %v2032, %v3618
          %3620 = vmatprep.mubr.f32.mxu0 0.0
          %3621 = vmatmul.mubr.f32.gmra.mxu0 %v3472
          %v3622 = vpop.f32.mrf.mxu0
          %v3623 = vadd.f32 %v2033, %v3622
          %v3624 = vpop.f32.mrf.mxu0
          %v3625 = vadd.f32 %v2034, %v3624
          %3626 = vmatprep.mubr.f32.mxu0 0.0
          %3627 = vmatmul.mubr.f32.gmra.mxu0 %v3474
          %v3628 = vpop.f32.mrf.mxu0
          %v3629 = vadd.f32 %v2035, %v3628
          %v3630 = vpop.f32.mrf.mxu0
          %v3631 = vadd.f32 %v2036, %v3630
          %3632 = vmatprep.mubr.f32.mxu0 0.0
          %3633 = vmatmul.mubr.f32.gmra.mxu0 %v3476
          %v3634 = vpop.f32.mrf.mxu0
          %v3635 = vadd.f32 %v2037, %v3634
          %v3636 = vpop.f32.mrf.mxu0
          %v3637 = vadd.f32 %v2038, %v3636
          %3638 = vmatprep.mubr.f32.mxu0 0.0
          %3639 = vmatmul.mubr.f32.gmra.mxu0 %v3478
          %v3640 = vpop.f32.mrf.mxu0
          %v3641 = vadd.f32 %v2039, %v3640
          %v3642 = vpop.f32.mrf.mxu0
          %v3643 = vadd.f32 %v2040, %v3642
          %3644 = vmatprep.mubr.f32.mxu0 0.0
          %3645 = vmatmul.mubr.f32.gmra.mxu0 %v3480
          %v3646 = vpop.f32.mrf.mxu0
          %v3647 = vadd.f32 %v2041, %v3646
          %v3648 = vpop.f32.mrf.mxu0
          %v3649 = vadd.f32 %v2042, %v3648
          %3650 = vmatprep.mubr.f32.mxu0 0.0
          %3651 = vmatmul.mubr.f32.gmra.mxu0 %v3482
          %v3652 = vpop.f32.mrf.mxu0
          %v3653 = vadd.f32 %v2043, %v3652
          %v3654 = vpop.f32.mrf.mxu0
          %v3655 = vadd.f32 %v2044, %v3654
          %3656 = vmatprep.mubr.f32.mxu0 0.0
          %3657 = vmatmul.mubr.f32.gmra.mxu0 %v3484
          %v3658 = vpop.f32.mrf.mxu0
          %v3659 = vadd.f32 %v2045, %v3658
          %v3660 = vpop.f32.mrf.mxu0
          %v3661 = vadd.f32 %v2046, %v3660
          %3662 = vmatprep.mubr.f32.mxu0 0.0
          %3663 = vmatmul.mubr.f32.gmra.mxu0 %v3486
          %v3664 = vpop.f32.mrf.mxu0
          %v3665 = vadd.f32 %v2047, %v3664
          %v3666 = vpop.f32.mrf.mxu0
          %v3667 = vadd.f32 %v2048, %v3666
          %3668 = vmatprep.mubr.f32.mxu0 0.0
          %3669 = vmatmul.mubr.f32.gmra.mxu0 %v3488
          %v3670 = vpop.f32.mrf.mxu0
          %v3671 = vadd.f32 %v2049, %v3670
          %v3672 = vpop.f32.mrf.mxu0
          %v3673 = vadd.f32 %v2050, %v3672
          %3674 = vmatprep.mubr.f32.mxu0 0.0
          %3675 = vmatmul.mubr.f32.gmra.mxu0 %v3490
          %v3676 = vpop.f32.mrf.mxu0
          %v3677 = vadd.f32 %v2051, %v3676
          %v3678 = vpop.f32.mrf.mxu0
          %v3679 = vadd.f32 %v2052, %v3678
          %3680 = vmatprep.mubr.f32.mxu0 0.0
          %3681 = vmatmul.mubr.f32.gmra.mxu0 %v3492
          %v3682 = vpop.f32.mrf.mxu0
          %v3683 = vadd.f32 %v2053, %v3682
          %v3684 = vpop.f32.mrf.mxu0
          %v3685 = vadd.f32 %v2054, %v3684
          %3686 = vmatprep.mubr.f32.mxu0 0.0
          %3687 = vmatmul.mubr.f32.gmra.mxu0 %v3494
          %v3688 = vpop.f32.mrf.mxu0
          %v3689 = vadd.f32 %v2055, %v3688
          %v3690 = vpop.f32.mrf.mxu0
          %v3691 = vadd.f32 %v2056, %v3690
          %3692 = vmatprep.mubr.f32.mxu0 0.0
          %3693 = vmatmul.mubr.f32.gmra.mxu0 %v3496
          %v3694 = vpop.f32.mrf.mxu0
          %v3695 = vadd.f32 %v2057, %v3694
          %v3696 = vpop.f32.mrf.mxu0
          %v3697 = vadd.f32 %v2058, %v3696
          %3698 = vdwg.mxu0
          %v3699 = vsel %vm2619, %v3601, -inf
          %v3700 = vmax.f32 %v3599, %v3699
          %3701 = vmax.xlane.f32.xlu0 %v3700
          %v3702 = vpop.xlane.xlu0 %3701
          %v3703 = vsel %vm2619, %v3607, -inf
          %v3704 = vmax.f32 %v3605, %v3703
          %3705 = vmax.xlane.f32.xlu0 %v3704
          %v3706 = vpop.xlane.xlu0 %3705
          %v3707 = vsel %vm2619, %v3613, -inf
          %v3708 = vmax.f32 %v3611, %v3707
          %3709 = vmax.xlane.f32.xlu0 %v3708
          %v3710 = vpop.xlane.xlu0 %3709
          %v3711 = vsel %vm2619, %v3619, -inf
          %v3712 = vmax.f32 %v3617, %v3711
          %3713 = vmax.xlane.f32.xlu0 %v3712
          %v3714 = vpop.xlane.xlu0 %3713
          %v3715 = vsel %vm2619, %v3625, -inf
          %v3716 = vmax.f32 %v3623, %v3715
          %3717 = vmax.xlane.f32.xlu0 %v3716
          %v3718 = vpop.xlane.xlu0 %3717
          %v3719 = vsel %vm2619, %v3631, -inf
          %v3720 = vmax.f32 %v3629, %v3719
          %3721 = vmax.xlane.f32.xlu0 %v3720
          %v3722 = vpop.xlane.xlu0 %3721
          %v3723 = vsel %vm2619, %v3637, -inf
          %v3724 = vmax.f32 %v3635, %v3723
          %3725 = vmax.xlane.f32.xlu0 %v3724
          %v3726 = vpop.xlane.xlu0 %3725
          %v3727 = vsel %vm2619, %v3643, -inf
          %v3728 = vmax.f32 %v3641, %v3727
          %3729 = vmax.xlane.f32.xlu0 %v3728
          %v3730 = vpop.xlane.xlu0 %3729
          %v3731 = vsel %vm2619, %v3649, -inf
          %v3732 = vmax.f32 %v3647, %v3731
          %3733 = vmax.xlane.f32.xlu0 %v3732
          %v3734 = vpop.xlane.xlu0 %3733
          %v3735 = vsel %vm2619, %v3655, -inf
          %v3736 = vmax.f32 %v3653, %v3735
          %3737 = vmax.xlane.f32.xlu0 %v3736
          %v3738 = vpop.xlane.xlu0 %3737
          %v3739 = vsel %vm2619, %v3661, -inf
          %v3740 = vmax.f32 %v3659, %v3739
          %3741 = vmax.xlane.f32.xlu0 %v3740
          %v3742 = vpop.xlane.xlu0 %3741
          %v3743 = vsel %vm2619, %v3667, -inf
          %v3744 = vmax.f32 %v3665, %v3743
          %3745 = vmax.xlane.f32.xlu0 %v3744
          %v3746 = vpop.xlane.xlu0 %3745
          %v3747 = vsel %vm2619, %v3673, -inf
          %v3748 = vmax.f32 %v3671, %v3747
          %3749 = vmax.xlane.f32.xlu0 %v3748
          %v3750 = vpop.xlane.xlu0 %3749
          %v3751 = vsel %vm2619, %v3679, -inf
          %v3752 = vmax.f32 %v3677, %v3751
          %3753 = vmax.xlane.f32.xlu0 %v3752
          %v3754 = vpop.xlane.xlu0 %3753
          %v3755 = vsel %vm2619, %v3685, -inf
          %v3756 = vmax.f32 %v3683, %v3755
          %3757 = vmax.xlane.f32.xlu0 %v3756
          %v3758 = vpop.xlane.xlu0 %3757
          %v3759 = vsel %vm2619, %v3691, -inf
          %v3760 = vmax.f32 %v3689, %v3759
          %3761 = vmax.xlane.f32.xlu0 %v3760
          %v3762 = vpop.xlane.xlu0 %3761
          %v3763 = vsel %vm2619, %v3697, -inf
          %v3764 = vmax.f32 %v3695, %v3763
          %3765 = vmax.xlane.f32.xlu0 %v3764
          %v3766 = vpop.xlane.xlu0 %3765
          %v3767 = vsub.f32 %v3599, %v3702
          %v3768 = vsub.f32 %v3601, %v3702
          %v3769 = vsub.f32 %v3605, %v3706
          %v3770 = vsub.f32 %v3607, %v3706
          %v3771 = vsub.f32 %v3611, %v3710
          %v3772 = vsub.f32 %v3613, %v3710
          %v3773 = vsub.f32 %v3617, %v3714
          %v3774 = vsub.f32 %v3619, %v3714
          %v3775 = vsub.f32 %v3623, %v3718
          %v3776 = vsub.f32 %v3625, %v3718
          %v3777 = vsub.f32 %v3629, %v3722
          %v3778 = vsub.f32 %v3631, %v3722
          %v3779 = vsub.f32 %v3635, %v3726
          %v3780 = vsub.f32 %v3637, %v3726
          %v3781 = vsub.f32 %v3641, %v3730
          %v3782 = vsub.f32 %v3643, %v3730
          %v3783 = vsub.f32 %v3647, %v3734
          %v3784 = vsub.f32 %v3649, %v3734
          %v3785 = vsub.f32 %v3653, %v3738
          %v3786 = vsub.f32 %v3655, %v3738
          %v3787 = vsub.f32 %v3659, %v3742
          %v3788 = vsub.f32 %v3661, %v3742
          %v3789 = vsub.f32 %v3665, %v3746
          %v3790 = vsub.f32 %v3667, %v3746
          %v3791 = vsub.f32 %v3671, %v3750
          %v3792 = vsub.f32 %v3673, %v3750
          %v3793 = vsub.f32 %v3677, %v3754
          %v3794 = vsub.f32 %v3679, %v3754
          %v3795 = vsub.f32 %v3683, %v3758
          %v3796 = vsub.f32 %v3685, %v3758
          %v3797 = vsub.f32 %v3689, %v3762
          %v3798 = vsub.f32 %v3691, %v3762
          %v3799 = vsub.f32 %v3695, %v3766
          %v3800 = vsub.f32 %v3697, %v3766
          %v3801 = vmul.f32 %v3767, 1.442695
          %v3802 = vpow.pop %v3801
          %v3803 = vmul.f32 %v3768, 1.442695
          %v3804 = vpow.pop %v3803
          %v3805 = vmul.f32 %v3769, 1.442695
          %v3806 = vpow.pop %v3805
          %v3807 = vmul.f32 %v3770, 1.442695
          %v3808 = vpow.pop %v3807
          %v3809 = vmul.f32 %v3771, 1.442695
          %v3810 = vpow.pop %v3809
          %v3811 = vmul.f32 %v3772, 1.442695
          %v3812 = vpow.pop %v3811
          %v3813 = vmul.f32 %v3773, 1.442695
          %v3814 = vpow.pop %v3813
          %v3815 = vmul.f32 %v3774, 1.442695
          %v3816 = vpow.pop %v3815
          %v3817 = vmul.f32 %v3775, 1.442695
          %v3818 = vpow.pop %v3817
          %v3819 = vmul.f32 %v3776, 1.442695
          %v3820 = vpow.pop %v3819
          %v3821 = vmul.f32 %v3777, 1.442695
          %v3822 = vpow.pop %v3821
          %v3823 = vmul.f32 %v3778, 1.442695
          %v3824 = vpow.pop %v3823
          %v3825 = vmul.f32 %v3779, 1.442695
          %v3826 = vpow.pop %v3825
          %v3827 = vmul.f32 %v3780, 1.442695
          %v3828 = vpow.pop %v3827
          %v3829 = vmul.f32 %v3781, 1.442695
          %v3830 = vpow.pop %v3829
          %v3831 = vmul.f32 %v3782, 1.442695
          %v3832 = vpow.pop %v3831
          %v3833 = vmul.f32 %v3783, 1.442695
          %v3834 = vpow.pop %v3833
          %v3835 = vmul.f32 %v3784, 1.442695
          %v3836 = vpow.pop %v3835
          %v3837 = vmul.f32 %v3785, 1.442695
          %v3838 = vpow.pop %v3837
          %v3839 = vmul.f32 %v3786, 1.442695
          %v3840 = vpow.pop %v3839
          %v3841 = vmul.f32 %v3787, 1.442695
          %v3842 = vpow.pop %v3841
          %v3843 = vmul.f32 %v3788, 1.442695
          %v3844 = vpow.pop %v3843
          %v3845 = vmul.f32 %v3789, 1.442695
          %v3846 = vpow.pop %v3845
          %v3847 = vmul.f32 %v3790, 1.442695
          %v3848 = vpow.pop %v3847
          %v3849 = vmul.f32 %v3791, 1.442695
          %v3850 = vpow.pop %v3849
          %v3851 = vmul.f32 %v3792, 1.442695
          %v3852 = vpow.pop %v3851
          %v3853 = vmul.f32 %v3793, 1.442695
          %v3854 = vpow.pop %v3853
          %v3855 = vmul.f32 %v3794, 1.442695
          %v3856 = vpow.pop %v3855
          %v3857 = vmul.f32 %v3795, 1.442695
          %v3858 = vpow.pop %v3857
          %v3859 = vmul.f32 %v3796, 1.442695
          %v3860 = vpow.pop %v3859
          %v3861 = vmul.f32 %v3797, 1.442695
          %v3862 = vpow.pop %v3861
          %v3863 = vmul.f32 %v3798, 1.442695
          %v3864 = vpow.pop %v3863
          %v3865 = vmul.f32 %v3799, 1.442695
          %v3866 = vpow.pop %v3865
          %v3867 = vmul.f32 %v3800, 1.442695
          %v3868 = vpow.pop %v3867
          %v3869 = vsel %vm2619, %v3804, 0.0
          %v3870 = vadd.f32 %v3802, %v3869
          %3871 = vadd.xlane.f32.xlu0 %v3870
          %v3872 = vpop.xlane.xlu0 %3871
          %v3873 = vsel %vm2619, %v3808, 0.0
          %v3874 = vadd.f32 %v3806, %v3873
          %3875 = vadd.xlane.f32.xlu0 %v3874
          %v3876 = vpop.xlane.xlu0 %3875
          %v3877 = vsel %vm2619, %v3812, 0.0
          %v3878 = vadd.f32 %v3810, %v3877
          %3879 = vadd.xlane.f32.xlu0 %v3878
          %v3880 = vpop.xlane.xlu0 %3879
          %v3881 = vsel %vm2619, %v3816, 0.0
          %v3882 = vadd.f32 %v3814, %v3881
          %3883 = vadd.xlane.f32.xlu0 %v3882
          %v3884 = vpop.xlane.xlu0 %3883
          %v3885 = vsel %vm2619, %v3820, 0.0
          %v3886 = vadd.f32 %v3818, %v3885
          %3887 = vadd.xlane.f32.xlu0 %v3886
          %v3888 = vpop.xlane.xlu0 %3887
          %v3889 = vsel %vm2619, %v3824, 0.0
          %v3890 = vadd.f32 %v3822, %v3889
          %3891 = vadd.xlane.f32.xlu0 %v3890
          %v3892 = vpop.xlane.xlu0 %3891
          %v3893 = vsel %vm2619, %v3828, 0.0
          %v3894 = vadd.f32 %v3826, %v3893
          %3895 = vadd.xlane.f32.xlu0 %v3894
          %v3896 = vpop.xlane.xlu0 %3895
          %v3897 = vsel %vm2619, %v3832, 0.0
          %v3898 = vadd.f32 %v3830, %v3897
          %3899 = vadd.xlane.f32.xlu0 %v3898
          %v3900 = vpop.xlane.xlu0 %3899
          %v3901 = vsel %vm2619, %v3836, 0.0
          %v3902 = vadd.f32 %v3834, %v3901
          %3903 = vadd.xlane.f32.xlu0 %v3902
          %v3904 = vpop.xlane.xlu0 %3903
          %v3905 = vsel %vm2619, %v3840, 0.0
          %v3906 = vadd.f32 %v3838, %v3905
          %3907 = vadd.xlane.f32.xlu0 %v3906
          %v3908 = vpop.xlane.xlu0 %3907
          %v3909 = vsel %vm2619, %v3844, 0.0
          %v3910 = vadd.f32 %v3842, %v3909
          %3911 = vadd.xlane.f32.xlu0 %v3910
          %v3912 = vpop.xlane.xlu0 %3911
          %v3913 = vsel %vm2619, %v3848, 0.0
          %v3914 = vadd.f32 %v3846, %v3913
          %3915 = vadd.xlane.f32.xlu0 %v3914
          %v3916 = vpop.xlane.xlu0 %3915
          %v3917 = vsel %vm2619, %v3852, 0.0
          %v3918 = vadd.f32 %v3850, %v3917
          %3919 = vadd.xlane.f32.xlu0 %v3918
          %v3920 = vpop.xlane.xlu0 %3919
          %v3921 = vsel %vm2619, %v3856, 0.0
          %v3922 = vadd.f32 %v3854, %v3921
          %3923 = vadd.xlane.f32.xlu0 %v3922
          %v3924 = vpop.xlane.xlu0 %3923
          %v3925 = vsel %vm2619, %v3860, 0.0
          %v3926 = vadd.f32 %v3858, %v3925
          %3927 = vadd.xlane.f32.xlu0 %v3926
          %v3928 = vpop.xlane.xlu0 %3927
          %v3929 = vsel %vm2619, %v3864, 0.0
          %v3930 = vadd.f32 %v3862, %v3929
          %3931 = vadd.xlane.f32.xlu0 %v3930
          %v3932 = vpop.xlane.xlu0 %3931
          %v3933 = vsel %vm2619, %v3868, 0.0
          %v3934 = vadd.f32 %v3866, %v3933
          %3935 = vadd.xlane.f32.xlu0 %v3934
          %v3936 = vpop.xlane.xlu0 %3935
          %v3937 = vrcp.pop %v3872
          %v3938 = vrcp.pop %v3876
          %v3939 = vrcp.pop %v3880
          %v3940 = vrcp.pop %v3884
          %v3941 = vrcp.pop %v3888
          %v3942 = vrcp.pop %v3892
          %v3943 = vrcp.pop %v3896
          %v3944 = vrcp.pop %v3900
          %v3945 = vrcp.pop %v3904
          %v3946 = vrcp.pop %v3908
          %v3947 = vrcp.pop %v3912
          %v3948 = vrcp.pop %v3916
          %v3949 = vrcp.pop %v3920
          %v3950 = vrcp.pop %v3924
          %v3951 = vrcp.pop %v3928
          %v3952 = vrcp.pop %v3932
          %v3953 = vrcp.pop %v3936
          %v3954 = vmul.f32 %v3802, %v3937
          %v3955 = vmul.f32 %v3804, %v3937
          %v3956 = vmul.f32 %v3806, %v3938
          %v3957 = vmul.f32 %v3808, %v3938
          %v3958 = vmul.f32 %v3810, %v3939
          %v3959 = vmul.f32 %v3812, %v3939
          %v3960 = vmul.f32 %v3814, %v3940
          %v3961 = vmul.f32 %v3816, %v3940
          %v3962 = vmul.f32 %v3818, %v3941
          %v3963 = vmul.f32 %v3820, %v3941
          %v3964 = vmul.f32 %v3822, %v3942
          %v3965 = vmul.f32 %v3824, %v3942
          %v3966 = vmul.f32 %v3826, %v3943
          %v3967 = vmul.f32 %v3828, %v3943
          %v3968 = vmul.f32 %v3830, %v3944
          %v3969 = vmul.f32 %v3832, %v3944
          %v3970 = vmul.f32 %v3834, %v3945
          %v3971 = vmul.f32 %v3836, %v3945
          %v3972 = vmul.f32 %v3838, %v3946
          %v3973 = vmul.f32 %v3840, %v3946
          %v3974 = vmul.f32 %v3842, %v3947
          %v3975 = vmul.f32 %v3844, %v3947
          %v3976 = vmul.f32 %v3846, %v3948
          %v3977 = vmul.f32 %v3848, %v3948
          %v3978 = vmul.f32 %v3850, %v3949
          %v3979 = vmul.f32 %v3852, %v3949
          %v3980 = vmul.f32 %v3854, %v3950
          %v3981 = vmul.f32 %v3856, %v3950
          %v3982 = vmul.f32 %v3858, %v3951
          %v3983 = vmul.f32 %v3860, %v3951
          %v3984 = vmul.f32 %v3862, %v3952
          %v3985 = vmul.f32 %v3864, %v3952
          %v3986 = vmul.f32 %v3866, %v3953
          %v3987 = vmul.f32 %v3868, %v3953
          %3988 = vrot.lane.b32.xlu0 %v2480, 56
          %v3989 = vpop.permute.xlu0 %3988
          %3990 = vrot.lane.b32.xlu0 %v2485, 56
          %v3991 = vpop.permute.xlu0 %3990
          %3992 = vrot.lane.b32.xlu0 %v2490, 56
          %v3993 = vpop.permute.xlu0 %3992
          %3994 = vrot.lane.b32.xlu0 %v2495, 56
          %v3995 = vpop.permute.xlu0 %3994
          %3996 = vrot.lane.b32.xlu0 %v2500, 56
          %v3997 = vpop.permute.xlu0 %3996
          %3998 = vrot.lane.b32.xlu0 %v2505, 56
          %v3999 = vpop.permute.xlu0 %3998
          %4000 = vrot.lane.b32.xlu0 %v2510, 56
          %v4001 = vpop.permute.xlu0 %4000
          %4002 = vrot.lane.b32.xlu0 %v2515, 56
          %v4003 = vpop.permute.xlu0 %4002
          %4004 = vrot.lane.b32.xlu0 %v2520, 56
          %v4005 = vpop.permute.xlu0 %4004
          %4006 = vrot.lane.b32.xlu0 %v2525, 56
          %v4007 = vpop.permute.xlu0 %4006
          %4008 = vrot.lane.b32.xlu0 %v2530, 56
          %v4009 = vpop.permute.xlu0 %4008
          %4010 = vrot.lane.b32.xlu0 %v2535, 56
          %v4011 = vpop.permute.xlu0 %4010
          %4012 = vrot.lane.b32.xlu0 %v2540, 56
          %v4013 = vpop.permute.xlu0 %4012
          %4014 = vrot.lane.b32.xlu0 %v2545, 56
          %v4015 = vpop.permute.xlu0 %4014
          %4016 = vrot.lane.b32.xlu0 %v2550, 56
          %v4017 = vpop.permute.xlu0 %4016
          %4018 = vrot.lane.b32.xlu0 %v2555, 56
          %v4019 = vpop.permute.xlu0 %4018
          %4020 = vrot.lane.b32.xlu0 %v2560, 56
          %v4021 = vpop.permute.xlu0 %4020
          %v4040 = vsel %vm2619, %v3955, 0
          %v4043 = vsel %vm2619, %v3957, 0
          %v4046 = vsel %vm2619, %v3959, 0
          %v4049 = vsel %vm2619, %v3961, 0
          %v4052 = vsel %vm2619, %v3963, 0
          %v4055 = vsel %vm2619, %v3965, 0
          %v4058 = vsel %vm2619, %v3967, 0
          %v4061 = vsel %vm2619, %v3969, 0
          %v4064 = vsel %vm2619, %v3971, 0
          %v4067 = vsel %vm2619, %v3973, 0
          %v4070 = vsel %vm2619, %v3975, 0
          %v4073 = vsel %vm2619, %v3977, 0
          %v4076 = vsel %vm2619, %v3979, 0
          %v4079 = vsel %vm2619, %v3981, 0
          %v4082 = vsel %vm2619, %v3983, 0
          %v4085 = vsel %vm2619, %v3985, 0
          %v4088 = vsel %vm2619, %v3987, 0
          %4090 = vmatprep.subr.mxu0 0.0
          %4091 = vmatpush1.msra.mxu0 %v4019
          %4092 = vmatprep.subr.mxu0 0.0
          %4093 = vmatpush1.msra.mxu0 %v4017
          %4094 = vmatprep.subr.mxu0 0.0
          %4095 = vmatpush1.msra.mxu0 %v4015
          %4096 = vmatprep.subr.mxu0 0.0
          %4097 = vmatpush1.msra.mxu0 %v4013
          %4098 = vmatprep.subr.mxu0 0.0
          %4099 = vmatpush1.msra.mxu0 %v4011
          %4100 = vmatprep.subr.mxu0 0.0
          %4101 = vmatpush1.msra.mxu0 %v4009
          %4102 = vmatprep.subr.mxu0 0.0
          %4103 = vmatpush1.msra.mxu0 %v4007
          %4104 = vmatprep.subr.mxu0 0.0
          %4105 = vmatpush1.msra.mxu0 %v4005
          %4106 = vmatprep.subr.mxu0 0.0
          %4107 = vmatpush1.msra.mxu0 %v4003
          %4108 = vmatprep.subr.mxu0 0.0
          %4109 = vmatpush1.msra.mxu0 %v4001
          %4110 = vmatprep.subr.mxu0 0.0
          %4111 = vmatpush1.msra.mxu0 %v3999
          %4112 = vmatprep.subr.mxu0 0.0
          %4113 = vmatpush1.msra.mxu0 %v3997
          %4114 = vmatprep.subr.mxu0 0.0
          %4115 = vmatpush1.msra.mxu0 %v3995
          %4116 = vmatprep.subr.mxu0 0.0
          %4117 = vmatpush1.msra.mxu0 %v3993
          %4118 = vmatprep.subr.mxu0 0.0
          %4119 = vmatpush1.msra.mxu0 %v3991
          %4120 = vmatprep.subr.mxu0 0.0
          %4121 = vmatpush1.msra.mxu0 %v3989
          %4122 = vmatprep.subr.mxu0 0.0
          %4123 = vmatpush2.msra.mxu0 0.0
          %4124 = vmatprep.subr.mxu0 0.0
          %4125 = vmatpush2.msra.mxu0 0.0
          %4126 = vmatprep.subr.mxu0 0.0
          %4127 = vmatpush2.msra.mxu0 0.0
          %4128 = vmatprep.subr.mxu0 0.0
          %4129 = vmatpush2.msra.mxu0 0.0
          %4130 = vmatprep.subr.mxu0 0.0
          %4131 = vmatpush2.msra.mxu0 0.0
          %4132 = vmatprep.subr.mxu0 0.0
          %4133 = vmatpush2.msra.mxu0 0.0
          %4134 = vmatprep.subr.mxu0 0.0
          %4135 = vmatpush2.msra.mxu0 0.0
          %4136 = vmatprep.subr.mxu0 0.0
          %4137 = vmatpush2.msra.mxu0 0.0
          %4138 = vmatprep.subr.mxu0 0.0
          %4139 = vmatpush2.msra.mxu0 0.0
          %4140 = vmatprep.subr.mxu0 0.0
          %4141 = vmatpush2.msra.mxu0 0.0
          %4142 = vmatprep.subr.mxu0 0.0
          %4143 = vmatpush2.msra.mxu0 0.0
          %4144 = vmatprep.subr.mxu0 0.0
          %4145 = vmatpush2.msra.mxu0 0.0
          %4146 = vmatprep.subr.mxu0 0.0
          %4147 = vmatpush2.msra.mxu0 0.0
          %4148 = vmatprep.subr.mxu0 0.0
          %4149 = vmatpush2.msra.mxu0 0.0
          %4150 = vmatprep.subr.mxu0 0.0
          %4151 = vmatpush2.msra.mxu0 0.0
          %4152 = vmatprep.subr.mxu0 0.0
          %4153 = vmatpush2.msra.mxu0 %v4021
          %4154 = vmatprep.mubr.f32.mxu0 %v4040
          %4155 = vmatmul.mubr.f32.gmra.mxu0 %v3954
          %v4156 = vpop.f32.mrf.mxu0
          %v4157 = vadd.f32 0.0, %v4156
          %v4158 = vpop.f32.mrf.mxu0
          %4159 = vmatprep.mubr.f32.mxu0 %v4043
          %4160 = vmatmul.mubr.f32.gmra.mxu0 %v3956
          %v4161 = vpop.f32.mrf.mxu0
          %v4162 = vadd.f32 0.0, %v4161
          %v4163 = vpop.f32.mrf.mxu0
          %4164 = vmatprep.mubr.f32.mxu0 %v4046
          %4165 = vmatmul.mubr.f32.gmra.mxu0 %v3958
          %v4166 = vpop.f32.mrf.mxu0
          %v4167 = vadd.f32 0.0, %v4166
          %v4168 = vpop.f32.mrf.mxu0
          %4169 = vmatprep.mubr.f32.mxu0 %v4049
          %4170 = vmatmul.mubr.f32.gmra.mxu0 %v3960
          %v4171 = vpop.f32.mrf.mxu0
          %v4172 = vadd.f32 0.0, %v4171
          %v4173 = vpop.f32.mrf.mxu0
          %4174 = vmatprep.mubr.f32.mxu0 %v4052
          %4175 = vmatmul.mubr.f32.gmra.mxu0 %v3962
          %v4176 = vpop.f32.mrf.mxu0
          %v4177 = vadd.f32 0.0, %v4176
          %v4178 = vpop.f32.mrf.mxu0
          %4179 = vmatprep.mubr.f32.mxu0 %v4055
          %4180 = vmatmul.mubr.f32.gmra.mxu0 %v3964
          %v4181 = vpop.f32.mrf.mxu0
          %v4182 = vadd.f32 0.0, %v4181
          %v4183 = vpop.f32.mrf.mxu0
          %4184 = vmatprep.mubr.f32.mxu0 %v4058
          %4185 = vmatmul.mubr.f32.gmra.mxu0 %v3966
          %v4186 = vpop.f32.mrf.mxu0
          %v4187 = vadd.f32 0.0, %v4186
          %v4188 = vpop.f32.mrf.mxu0
          %4189 = vmatprep.mubr.f32.mxu0 %v4061
          %4190 = vmatmul.mubr.f32.gmra.mxu0 %v3968
          %v4191 = vpop.f32.mrf.mxu0
          %v4192 = vadd.f32 0.0, %v4191
          %v4193 = vpop.f32.mrf.mxu0
          %4194 = vmatprep.mubr.f32.mxu0 %v4064
          %4195 = vmatmul.mubr.f32.gmra.mxu0 %v3970
          %v4196 = vpop.f32.mrf.mxu0
          %v4197 = vadd.f32 0.0, %v4196
          %v4198 = vpop.f32.mrf.mxu0
          %4199 = vmatprep.mubr.f32.mxu0 %v4067
          %4200 = vmatmul.mubr.f32.gmra.mxu0 %v3972
          %v4201 = vpop.f32.mrf.mxu0
          %v4202 = vadd.f32 0.0, %v4201
          %v4203 = vpop.f32.mrf.mxu0
          %4204 = vmatprep.mubr.f32.mxu0 %v4070
          %4205 = vmatmul.mubr.f32.gmra.mxu0 %v3974
          %v4206 = vpop.f32.mrf.mxu0
          %v4207 = vadd.f32 0.0, %v4206
          %v4208 = vpop.f32.mrf.mxu0
          %4209 = vmatprep.mubr.f32.mxu0 %v4073
          %4210 = vmatmul.mubr.f32.gmra.mxu0 %v3976
          %v4211 = vpop.f32.mrf.mxu0
          %v4212 = vadd.f32 0.0, %v4211
          %v4213 = vpop.f32.mrf.mxu0
          %4214 = vmatprep.mubr.f32.mxu0 %v4076
          %4215 = vmatmul.mubr.f32.gmra.mxu0 %v3978
          %v4216 = vpop.f32.mrf.mxu0
          %v4217 = vadd.f32 0.0, %v4216
          %v4218 = vpop.f32.mrf.mxu0
          %4219 = vmatprep.mubr.f32.mxu0 %v4079
          %4220 = vmatmul.mubr.f32.gmra.mxu0 %v3980
          %v4221 = vpop.f32.mrf.mxu0
          %v4222 = vadd.f32 0.0, %v4221
          %v4223 = vpop.f32.mrf.mxu0
          %4224 = vmatprep.mubr.f32.mxu0 %v4082
          %4225 = vmatmul.mubr.f32.gmra.mxu0 %v3982
          %v4226 = vpop.f32.mrf.mxu0
          %v4227 = vadd.f32 0.0, %v4226
          %v4228 = vpop.f32.mrf.mxu0
          %4229 = vmatprep.mubr.f32.mxu0 %v4085
          %4230 = vmatmul.mubr.f32.gmra.mxu0 %v3984
          %v4231 = vpop.f32.mrf.mxu0
          %v4232 = vadd.f32 0.0, %v4231
          %v4233 = vpop.f32.mrf.mxu0
          %4234 = vmatprep.mubr.f32.mxu0 %v4088
          %4235 = vmatmul.mubr.f32.gmra.mxu0 %v3986
          %v4236 = vpop.f32.mrf.mxu0
          %v4237 = vadd.f32 0.0, %v4236
          %v4238 = vpop.f32.mrf.mxu0
          %4239 = vdwg.mxu0
          %v4241 = vsel %vm2619, %v4157, 0
          %v4244 = vsel %vm2619, %v4162, 0
          %v4247 = vsel %vm2619, %v4167, 0
          %v4250 = vsel %vm2619, %v4172, 0
          %v4253 = vsel %vm2619, %v4177, 0
          %v4256 = vsel %vm2619, %v4182, 0
          %v4259 = vsel %vm2619, %v4187, 0
          %v4262 = vsel %vm2619, %v4192, 0
          %v4265 = vsel %vm2619, %v4197, 0
          %v4268 = vsel %vm2619, %v4202, 0
          %v4271 = vsel %vm2619, %v4207, 0
          %v4274 = vsel %vm2619, %v4212, 0
          %v4277 = vsel %vm2619, %v4217, 0
          %v4280 = vsel %vm2619, %v4222, 0
          %v4283 = vsel %vm2619, %v4227, 0
          %v4286 = vsel %vm2619, %v4232, 0
          %v4289 = vsel %vm2619, %v4237, 0
          %4291 = vmatprep.subr.mxu0 0.0
          %4292 = vmatpush1.msra.mxu0 0.0
          %4293 = vmatprep.subr.mxu0 0.0
          %4294 = vmatpush1.msra.mxu0 0.0
          %4295 = vmatprep.subr.mxu0 0.0
          %4296 = vmatpush1.msra.mxu0 0.0
          %4297 = vmatprep.subr.mxu0 0.0
          %4298 = vmatpush1.msra.mxu0 0.0
          %4299 = vmatprep.subr.mxu0 0.0
          %4300 = vmatpush1.msra.mxu0 0.0
          %4301 = vmatprep.subr.mxu0 0.0
          %4302 = vmatpush1.msra.mxu0 0.0
          %4303 = vmatprep.subr.mxu0 0.0
          %4304 = vmatpush1.msra.mxu0 0.0
          %4305 = vmatprep.subr.mxu0 0.0
          %4306 = vmatpush1.msra.mxu0 0.0
          %4307 = vmatprep.subr.mxu0 0.0
          %4308 = vmatpush1.msra.mxu0 0.0
          %4309 = vmatprep.subr.mxu0 0.0
          %4310 = vmatpush1.msra.mxu0 0.0
          %4311 = vmatprep.subr.mxu0 0.0
          %4312 = vmatpush1.msra.mxu0 0.0
          %4313 = vmatprep.subr.mxu0 0.0
          %4314 = vmatpush1.msra.mxu0 0.0
          %4315 = vmatprep.subr.mxu0 0.0
          %4316 = vmatpush1.msra.mxu0 0.0
          %4317 = vmatprep.subr.mxu0 0.0
          %4318 = vmatpush1.msra.mxu0 0.0
          %4319 = vmatprep.subr.mxu0 0.0
          %4320 = vmatpush1.msra.mxu0 0.0
          %4321 = vmatprep.subr.mxu0 0.0
          %4322 = vmatpush1.msra.mxu0 %v2565
          %4323 = vmatprep.subr.mxu0 0.0
          %4324 = vmatpush2.msra.mxu0 0.0
          %4325 = vmatprep.subr.mxu0 0.0
          %4326 = vmatpush2.msra.mxu0 0.0
          %4327 = vmatprep.subr.mxu0 0.0
          %4328 = vmatpush2.msra.mxu0 0.0
          %4329 = vmatprep.subr.mxu0 0.0
          %4330 = vmatpush2.msra.mxu0 0.0
          %4331 = vmatprep.subr.mxu0 0.0
          %4332 = vmatpush2.msra.mxu0 0.0
          %4333 = vmatprep.subr.mxu0 0.0
          %4334 = vmatpush2.msra.mxu0 0.0
          %4335 = vmatprep.subr.mxu0 0.0
          %4336 = vmatpush2.msra.mxu0 0.0
          %4337 = vmatprep.subr.mxu0 0.0
          %4338 = vmatpush2.msra.mxu0 0.0
          %4339 = vmatprep.subr.mxu0 0.0
          %4340 = vmatpush2.msra.mxu0 0.0
          %4341 = vmatprep.subr.mxu0 0.0
          %4342 = vmatpush2.msra.mxu0 0.0
          %4343 = vmatprep.subr.mxu0 0.0
          %4344 = vmatpush2.msra.mxu0 0.0
          %4345 = vmatprep.subr.mxu0 0.0
          %4346 = vmatpush2.msra.mxu0 0.0
          %4347 = vmatprep.subr.mxu0 0.0
          %4348 = vmatpush2.msra.mxu0 0.0
          %4349 = vmatprep.subr.mxu0 0.0
          %4350 = vmatpush2.msra.mxu0 0.0
          %4351 = vmatprep.subr.mxu0 0.0
          %4352 = vmatpush2.msra.mxu0 0.0
          %4353 = vmatprep.subr.mxu0 0.0
          %4354 = vmatpush2.msra.mxu0 0.0
          %4355 = vmatprep.mubr.f32.mxu0 0.0
          %4356 = vmatmul.mubr.f32.gmra.mxu0 %v4241
          %v4357 = vpop.f32.mrf.mxu0
          %v4358 = vadd.f32 0.0, %v4357
          %v4359 = vpop.f32.mrf.mxu0
          %4360 = vmatprep.mubr.f32.mxu0 0.0
          %4361 = vmatmul.mubr.f32.gmra.mxu0 %v4244
          %v4362 = vpop.f32.mrf.mxu0
          %v4363 = vadd.f32 0.0, %v4362
          %v4364 = vpop.f32.mrf.mxu0
          %4365 = vmatprep.mubr.f32.mxu0 0.0
          %4366 = vmatmul.mubr.f32.gmra.mxu0 %v4247
          %v4367 = vpop.f32.mrf.mxu0
          %v4368 = vadd.f32 0.0, %v4367
          %v4369 = vpop.f32.mrf.mxu0
          %4370 = vmatprep.mubr.f32.mxu0 0.0
          %4371 = vmatmul.mubr.f32.gmra.mxu0 %v4250
          %v4372 = vpop.f32.mrf.mxu0
          %v4373 = vadd.f32 0.0, %v4372
          %v4374 = vpop.f32.mrf.mxu0
          %4375 = vmatprep.mubr.f32.mxu0 0.0
          %4376 = vmatmul.mubr.f32.gmra.mxu0 %v4253
          %v4377 = vpop.f32.mrf.mxu0
          %v4378 = vadd.f32 0.0, %v4377
          %v4379 = vpop.f32.mrf.mxu0
          %4380 = vmatprep.mubr.f32.mxu0 0.0
          %4381 = vmatmul.mubr.f32.gmra.mxu0 %v4256
          %v4382 = vpop.f32.mrf.mxu0
          %v4383 = vadd.f32 0.0, %v4382
          %v4384 = vpop.f32.mrf.mxu0
          %4385 = vmatprep.mubr.f32.mxu0 0.0
          %4386 = vmatmul.mubr.f32.gmra.mxu0 %v4259
          %v4387 = vpop.f32.mrf.mxu0
          %v4388 = vadd.f32 0.0, %v4387
          %v4389 = vpop.f32.mrf.mxu0
          %4390 = vmatprep.mubr.f32.mxu0 0.0
          %4391 = vmatmul.mubr.f32.gmra.mxu0 %v4262
          %v4392 = vpop.f32.mrf.mxu0
          %v4393 = vadd.f32 0.0, %v4392
          %v4394 = vpop.f32.mrf.mxu0
          %4395 = vmatprep.mubr.f32.mxu0 0.0
          %4396 = vmatmul.mubr.f32.gmra.mxu0 %v4265
          %v4397 = vpop.f32.mrf.mxu0
          %v4398 = vadd.f32 0.0, %v4397
          %v4399 = vpop.f32.mrf.mxu0
          %4400 = vmatprep.mubr.f32.mxu0 0.0
          %4401 = vmatmul.mubr.f32.gmra.mxu0 %v4268
          %v4402 = vpop.f32.mrf.mxu0
          %v4403 = vadd.f32 0.0, %v4402
          %v4404 = vpop.f32.mrf.mxu0
          %4405 = vmatprep.mubr.f32.mxu0 0.0
          %4406 = vmatmul.mubr.f32.gmra.mxu0 %v4271
          %v4407 = vpop.f32.mrf.mxu0
          %v4408 = vadd.f32 0.0, %v4407
          %v4409 = vpop.f32.mrf.mxu0
          %4410 = vmatprep.mubr.f32.mxu0 0.0
          %4411 = vmatmul.mubr.f32.gmra.mxu0 %v4274
          %v4412 = vpop.f32.mrf.mxu0
          %v4413 = vadd.f32 0.0, %v4412
          %v4414 = vpop.f32.mrf.mxu0
          %4415 = vmatprep.mubr.f32.mxu0 0.0
          %4416 = vmatmul.mubr.f32.gmra.mxu0 %v4277
          %v4417 = vpop.f32.mrf.mxu0
          %v4418 = vadd.f32 0.0, %v4417
          %v4419 = vpop.f32.mrf.mxu0
          %4420 = vmatprep.mubr.f32.mxu0 0.0
          %4421 = vmatmul.mubr.f32.gmra.mxu0 %v4280
          %v4422 = vpop.f32.mrf.mxu0
          %v4423 = vadd.f32 0.0, %v4422
          %v4424 = vpop.f32.mrf.mxu0
          %4425 = vmatprep.mubr.f32.mxu0 0.0
          %4426 = vmatmul.mubr.f32.gmra.mxu0 %v4283
          %v4427 = vpop.f32.mrf.mxu0
          %v4428 = vadd.f32 0.0, %v4427
          %v4429 = vpop.f32.mrf.mxu0
          %4430 = vmatprep.mubr.f32.mxu0 0.0
          %4431 = vmatmul.mubr.f32.gmra.mxu0 %v4286
          %v4432 = vpop.f32.mrf.mxu0
          %v4433 = vadd.f32 0.0, %v4432
          %v4434 = vpop.f32.mrf.mxu0
          %4435 = vmatprep.mubr.f32.mxu0 0.0
          %4436 = vmatmul.mubr.f32.gmra.mxu0 %v4289
          %v4437 = vpop.f32.mrf.mxu0
          %v4438 = vadd.f32 0.0, %v4437
          %v4439 = vpop.f32.mrf.mxu0
          %4440 = vdwg.mxu0
          %v4442 = vsel %vm2619, %v3313, 0
          %v4445 = vsel %vm2619, %v3318, 0
          %v4448 = vsel %vm2619, %v3323, 0
          %v4451 = vsel %vm2619, %v3328, 0
          %v4454 = vsel %vm2619, %v3333, 0
          %v4457 = vsel %vm2619, %v3338, 0
          %v4460 = vsel %vm2619, %v3343, 0
          %v4463 = vsel %vm2619, %v3348, 0
          %v4466 = vsel %vm2619, %v3353, 0
          %v4469 = vsel %vm2619, %v3358, 0
          %v4472 = vsel %vm2619, %v3363, 0
          %v4475 = vsel %vm2619, %v3368, 0
          %v4478 = vsel %vm2619, %v3373, 0
          %v4481 = vsel %vm2619, %v3378, 0
          %v4484 = vsel %vm2619, %v3383, 0
          %v4487 = vsel %vm2619, %v3388, 0
          %v4490 = vsel %vm2619, %v3393, 0
          %4492 = vmatprep.subr.mxu0 0.0
          %4493 = vmatpush1.msra.mxu0 0.0
          %4494 = vmatprep.subr.mxu0 0.0
          %4495 = vmatpush1.msra.mxu0 0.0
          %4496 = vmatprep.subr.mxu0 0.0
          %4497 = vmatpush1.msra.mxu0 0.0
          %4498 = vmatprep.subr.mxu0 0.0
          %4499 = vmatpush1.msra.mxu0 0.0
          %4500 = vmatprep.subr.mxu0 0.0
          %4501 = vmatpush1.msra.mxu0 0.0
          %4502 = vmatprep.subr.mxu0 0.0
          %4503 = vmatpush1.msra.mxu0 0.0
          %4504 = vmatprep.subr.mxu0 0.0
          %4505 = vmatpush1.msra.mxu0 0.0
          %4506 = vmatprep.subr.mxu0 0.0
          %4507 = vmatpush1.msra.mxu0 0.0
          %4508 = vmatprep.subr.mxu0 0.0
          %4509 = vmatpush1.msra.mxu0 0.0
          %4510 = vmatprep.subr.mxu0 0.0
          %4511 = vmatpush1.msra.mxu0 0.0
          %4512 = vmatprep.subr.mxu0 0.0
          %4513 = vmatpush1.msra.mxu0 0.0
          %4514 = vmatprep.subr.mxu0 0.0
          %4515 = vmatpush1.msra.mxu0 0.0
          %4516 = vmatprep.subr.mxu0 0.0
          %4517 = vmatpush1.msra.mxu0 0.0
          %4518 = vmatprep.subr.mxu0 0.0
          %4519 = vmatpush1.msra.mxu0 0.0
          %4520 = vmatprep.subr.mxu0 0.0
          %4521 = vmatpush1.msra.mxu0 0.0
          %4522 = vmatprep.subr.mxu0 0.0
          %4523 = vmatpush1.msra.mxu0 %v2564
          %4524 = vmatprep.subr.mxu0 0.0
          %4525 = vmatpush2.msra.mxu0 0.0
          %4526 = vmatprep.subr.mxu0 0.0
          %4527 = vmatpush2.msra.mxu0 0.0
          %4528 = vmatprep.subr.mxu0 0.0
          %4529 = vmatpush2.msra.mxu0 0.0
          %4530 = vmatprep.subr.mxu0 0.0
          %4531 = vmatpush2.msra.mxu0 0.0
          %4532 = vmatprep.subr.mxu0 0.0
          %4533 = vmatpush2.msra.mxu0 0.0
          %4534 = vmatprep.subr.mxu0 0.0
          %4535 = vmatpush2.msra.mxu0 0.0
          %4536 = vmatprep.subr.mxu0 0.0
          %4537 = vmatpush2.msra.mxu0 0.0
          %4538 = vmatprep.subr.mxu0 0.0
          %4539 = vmatpush2.msra.mxu0 0.0
          %4540 = vmatprep.subr.mxu0 0.0
          %4541 = vmatpush2.msra.mxu0 0.0
          %4542 = vmatprep.subr.mxu0 0.0
          %4543 = vmatpush2.msra.mxu0 0.0
          %4544 = vmatprep.subr.mxu0 0.0
          %4545 = vmatpush2.msra.mxu0 0.0
          %4546 = vmatprep.subr.mxu0 0.0
          %4547 = vmatpush2.msra.mxu0 0.0
          %4548 = vmatprep.subr.mxu0 0.0
          %4549 = vmatpush2.msra.mxu0 0.0
          %4550 = vmatprep.subr.mxu0 0.0
          %4551 = vmatpush2.msra.mxu0 0.0
          %4552 = vmatprep.subr.mxu0 0.0
          %4553 = vmatpush2.msra.mxu0 0.0
          %4554 = vmatprep.subr.mxu0 0.0
          %4555 = vmatpush2.msra.mxu0 0.0
          %4556 = vmatprep.mubr.f32.mxu0 0.0
          %4557 = vmatmul.mubr.f32.gmra.mxu0 %v4442
          %v4558 = vpop.f32.mrf.mxu0
          %v4559 = vadd.f32 %v4358, %v4558
          %v4560 = vpop.f32.mrf.mxu0
          %4561 = vmatprep.mubr.f32.mxu0 0.0
          %4562 = vmatmul.mubr.f32.gmra.mxu0 %v4445
          %v4563 = vpop.f32.mrf.mxu0
          %v4564 = vadd.f32 %v4363, %v4563
          %v4565 = vpop.f32.mrf.mxu0
          %4566 = vmatprep.mubr.f32.mxu0 0.0
          %4567 = vmatmul.mubr.f32.gmra.mxu0 %v4448
          %v4568 = vpop.f32.mrf.mxu0
          %v4569 = vadd.f32 %v4368, %v4568
          %v4570 = vpop.f32.mrf.mxu0
          %4571 = vmatprep.mubr.f32.mxu0 0.0
          %4572 = vmatmul.mubr.f32.gmra.mxu0 %v4451
          %v4573 = vpop.f32.mrf.mxu0
          %v4574 = vadd.f32 %v4373, %v4573
          %v4575 = vpop.f32.mrf.mxu0
          %4576 = vmatprep.mubr.f32.mxu0 0.0
          %4577 = vmatmul.mubr.f32.gmra.mxu0 %v4454
          %v4578 = vpop.f32.mrf.mxu0
          %v4579 = vadd.f32 %v4378, %v4578
          %v4580 = vpop.f32.mrf.mxu0
          %4581 = vmatprep.mubr.f32.mxu0 0.0
          %4582 = vmatmul.mubr.f32.gmra.mxu0 %v4457
          %v4583 = vpop.f32.mrf.mxu0
          %v4584 = vadd.f32 %v4383, %v4583
          %v4585 = vpop.f32.mrf.mxu0
          %4586 = vmatprep.mubr.f32.mxu0 0.0
          %4587 = vmatmul.mubr.f32.gmra.mxu0 %v4460
          %v4588 = vpop.f32.mrf.mxu0
          %v4589 = vadd.f32 %v4388, %v4588
          %v4590 = vpop.f32.mrf.mxu0
          %4591 = vmatprep.mubr.f32.mxu0 0.0
          %4592 = vmatmul.mubr.f32.gmra.mxu0 %v4463
          %v4593 = vpop.f32.mrf.mxu0
          %v4594 = vadd.f32 %v4393, %v4593
          %v4595 = vpop.f32.mrf.mxu0
          %4596 = vmatprep.mubr.f32.mxu0 0.0
          %4597 = vmatmul.mubr.f32.gmra.mxu0 %v4466
          %v4598 = vpop.f32.mrf.mxu0
          %v4599 = vadd.f32 %v4398, %v4598
          %v4600 = vpop.f32.mrf.mxu0
          %4601 = vmatprep.mubr.f32.mxu0 0.0
          %4602 = vmatmul.mubr.f32.gmra.mxu0 %v4469
          %v4603 = vpop.f32.mrf.mxu0
          %v4604 = vadd.f32 %v4403, %v4603
          %v4605 = vpop.f32.mrf.mxu0
          %4606 = vmatprep.mubr.f32.mxu0 0.0
          %4607 = vmatmul.mubr.f32.gmra.mxu0 %v4472
          %v4608 = vpop.f32.mrf.mxu0
          %v4609 = vadd.f32 %v4408, %v4608
          %v4610 = vpop.f32.mrf.mxu0
          %4611 = vmatprep.mubr.f32.mxu0 0.0
          %4612 = vmatmul.mubr.f32.gmra.mxu0 %v4475
          %v4613 = vpop.f32.mrf.mxu0
          %v4614 = vadd.f32 %v4413, %v4613
          %v4615 = vpop.f32.mrf.mxu0
          %4616 = vmatprep.mubr.f32.mxu0 0.0
          %4617 = vmatmul.mubr.f32.gmra.mxu0 %v4478
          %v4618 = vpop.f32.mrf.mxu0
          %v4619 = vadd.f32 %v4418, %v4618
          %v4620 = vpop.f32.mrf.mxu0
          %4621 = vmatprep.mubr.f32.mxu0 0.0
          %4622 = vmatmul.mubr.f32.gmra.mxu0 %v4481
          %v4623 = vpop.f32.mrf.mxu0
          %v4624 = vadd.f32 %v4423, %v4623
          %v4625 = vpop.f32.mrf.mxu0
          %4626 = vmatprep.mubr.f32.mxu0 0.0
          %4627 = vmatmul.mubr.f32.gmra.mxu0 %v4484
          %v4628 = vpop.f32.mrf.mxu0
          %v4629 = vadd.f32 %v4428, %v4628
          %v4630 = vpop.f32.mrf.mxu0
          %4631 = vmatprep.mubr.f32.mxu0 0.0
          %4632 = vmatmul.mubr.f32.gmra.mxu0 %v4487
          %v4633 = vpop.f32.mrf.mxu0
          %v4634 = vadd.f32 %v4433, %v4633
          %v4635 = vpop.f32.mrf.mxu0
          %4636 = vmatprep.mubr.f32.mxu0 0.0
          %4637 = vmatmul.mubr.f32.gmra.mxu0 %v4490
          %v4638 = vpop.f32.mrf.mxu0
          %v4639 = vadd.f32 %v4438, %v4638
          %v4640 = vpop.f32.mrf.mxu0
          %4641 = vdwg.mxu0
          %4642 = vrot.lane.b32.xlu0 %v2480, 112
          %v4643 = vpop.permute.xlu0 %4642
          %4644 = vrot.lane.b32.xlu0 %v2485, 112
          %v4645 = vpop.permute.xlu0 %4644
          %4646 = vrot.lane.b32.xlu0 %v2490, 112
          %v4647 = vpop.permute.xlu0 %4646
          %4648 = vrot.lane.b32.xlu0 %v2495, 112
          %v4649 = vpop.permute.xlu0 %4648
          %4650 = vrot.lane.b32.xlu0 %v2500, 112
          %v4651 = vpop.permute.xlu0 %4650
          %4652 = vrot.lane.b32.xlu0 %v2505, 112
          %v4653 = vpop.permute.xlu0 %4652
          %4654 = vrot.lane.b32.xlu0 %v2510, 112
          %v4655 = vpop.permute.xlu0 %4654
          %4656 = vrot.lane.b32.xlu0 %v2515, 112
          %v4657 = vpop.permute.xlu0 %4656
          %4658 = vrot.lane.b32.xlu0 %v2520, 112
          %v4659 = vpop.permute.xlu0 %4658
          %4660 = vrot.lane.b32.xlu0 %v2525, 112
          %v4661 = vpop.permute.xlu0 %4660
          %4662 = vrot.lane.b32.xlu0 %v2530, 112
          %v4663 = vpop.permute.xlu0 %4662
          %4664 = vrot.lane.b32.xlu0 %v2535, 112
          %v4665 = vpop.permute.xlu0 %4664
          %4666 = vrot.lane.b32.xlu0 %v2540, 112
          %v4667 = vpop.permute.xlu0 %4666
          %4668 = vrot.lane.b32.xlu0 %v2545, 112
          %v4669 = vpop.permute.xlu0 %4668
          %4670 = vrot.lane.b32.xlu0 %v2550, 112
          %v4671 = vpop.permute.xlu0 %4670
          %4672 = vrot.lane.b32.xlu0 %v2555, 112
          %v4673 = vpop.permute.xlu0 %4672
          %4674 = vrot.lane.b32.xlu0 %v2560, 112
          %v4675 = vpop.permute.xlu0 %4674
          %4676 = vrot.lane.b32.xlu0 %v2480, 80
          %v4677 = vpop.permute.xlu0 %4676
          %4678 = vrot.lane.b32.xlu0 %v2485, 80
          %v4679 = vpop.permute.xlu0 %4678
          %4680 = vrot.lane.b32.xlu0 %v2490, 80
          %v4681 = vpop.permute.xlu0 %4680
          %4682 = vrot.lane.b32.xlu0 %v2495, 80
          %v4683 = vpop.permute.xlu0 %4682
          %4684 = vrot.lane.b32.xlu0 %v2500, 80
          %v4685 = vpop.permute.xlu0 %4684
          %4686 = vrot.lane.b32.xlu0 %v2505, 80
          %v4687 = vpop.permute.xlu0 %4686
          %4688 = vrot.lane.b32.xlu0 %v2510, 80
          %v4689 = vpop.permute.xlu0 %4688
          %4690 = vrot.lane.b32.xlu0 %v2515, 80
          %v4691 = vpop.permute.xlu0 %4690
          %4692 = vrot.lane.b32.xlu0 %v2520, 80
          %v4693 = vpop.permute.xlu0 %4692
          %4694 = vrot.lane.b32.xlu0 %v2525, 80
          %v4695 = vpop.permute.xlu0 %4694
          %4696 = vrot.lane.b32.xlu0 %v2530, 80
          %v4697 = vpop.permute.xlu0 %4696
          %4698 = vrot.lane.b32.xlu0 %v2535, 80
          %v4699 = vpop.permute.xlu0 %4698
          %4700 = vrot.lane.b32.xlu0 %v2540, 80
          %v4701 = vpop.permute.xlu0 %4700
          %4702 = vrot.lane.b32.xlu0 %v2545, 80
          %v4703 = vpop.permute.xlu0 %4702
          %4704 = vrot.lane.b32.xlu0 %v2550, 80
          %v4705 = vpop.permute.xlu0 %4704
          %4706 = vrot.lane.b32.xlu0 %v2555, 80
          %v4707 = vpop.permute.xlu0 %4706
          %4708 = vrot.lane.b32.xlu0 %v2560, 80
          %v4709 = vpop.permute.xlu0 %4708
          %v4710 = vsel %vm2619, %v4643, 0
          %v4712 = vsel %vm2619, %v4645, 0
          %v4714 = vsel %vm2619, %v4647, 0
          %v4716 = vsel %vm2619, %v4649, 0
          %v4718 = vsel %vm2619, %v4651, 0
          %v4720 = vsel %vm2619, %v4653, 0
          %v4722 = vsel %vm2619, %v4655, 0
          %v4724 = vsel %vm2619, %v4657, 0
          %v4726 = vsel %vm2619, %v4659, 0
          %v4728 = vsel %vm2619, %v4661, 0
          %v4730 = vsel %vm2619, %v4663, 0
          %v4732 = vsel %vm2619, %v4665, 0
          %v4734 = vsel %vm2619, %v4667, 0
          %v4736 = vsel %vm2619, %v4669, 0
          %v4738 = vsel %vm2619, %v4671, 0
          %v4740 = vsel %vm2619, %v4673, 0
          %v4742 = vsel %vm2619, %v4675, 0
          %v4744 = vsel %vm2619, %v4677, 0
          %v4746 = vsel %vm2619, %v4679, 0
          %v4748 = vsel %vm2619, %v4681, 0
          %v4750 = vsel %vm2619, %v4683, 0
          %v4752 = vsel %vm2619, %v4685, 0
          %v4754 = vsel %vm2619, %v4687, 0
          %v4756 = vsel %vm2619, %v4689, 0
          %v4758 = vsel %vm2619, %v4691, 0
          %v4760 = vsel %vm2619, %v4693, 0
          %v4762 = vsel %vm2619, %v4695, 0
          %v4764 = vsel %vm2619, %v4697, 0
          %v4766 = vsel %vm2619, %v4699, 0
          %v4768 = vsel %vm2619, %v4701, 0
          %v4770 = vsel %vm2619, %v4703, 0
          %v4772 = vsel %vm2619, %v4705, 0
          %v4774 = vsel %vm2619, %v4707, 0
          %v4776 = vsel %vm2619, %v4709, 0
          %4778 = vmatprep.subr.mxu0 0.0
          %4779 = vmatpush1.xpose.msra.mxu0 %v4774
          %4780 = vmatprep.subr.mxu0 0.0
          %4781 = vmatpush1.xpose.msra.mxu0 %v4772
          %4782 = vmatprep.subr.mxu0 0.0
          %4783 = vmatpush1.xpose.msra.mxu0 %v4770
          %4784 = vmatprep.subr.mxu0 0.0
          %4785 = vmatpush1.xpose.msra.mxu0 %v4768
          %4786 = vmatprep.subr.mxu0 0.0
          %4787 = vmatpush1.xpose.msra.mxu0 %v4766
          %4788 = vmatprep.subr.mxu0 0.0
          %4789 = vmatpush1.xpose.msra.mxu0 %v4764
          %4790 = vmatprep.subr.mxu0 0.0
          %4791 = vmatpush1.xpose.msra.mxu0 %v4762
          %4792 = vmatprep.subr.mxu0 0.0
          %4793 = vmatpush1.xpose.msra.mxu0 %v4760
          %4794 = vmatprep.subr.mxu0 0.0
          %4795 = vmatpush1.xpose.msra.mxu0 %v4758
          %4796 = vmatprep.subr.mxu0 0.0
          %4797 = vmatpush1.xpose.msra.mxu0 %v4756
          %4798 = vmatprep.subr.mxu0 0.0
          %4799 = vmatpush1.xpose.msra.mxu0 %v4754
          %4800 = vmatprep.subr.mxu0 0.0
          %4801 = vmatpush1.xpose.msra.mxu0 %v4752
          %4802 = vmatprep.subr.mxu0 0.0
          %4803 = vmatpush1.xpose.msra.mxu0 %v4750
          %4804 = vmatprep.subr.mxu0 0.0
          %4805 = vmatpush1.xpose.msra.mxu0 %v4748
          %4806 = vmatprep.subr.mxu0 0.0
          %4807 = vmatpush1.xpose.msra.mxu0 %v4746
          %4808 = vmatprep.subr.mxu0 0.0
          %4809 = vmatpush1.xpose.msra.mxu0 %v4744
          %4810 = vmatprep.subr.mxu0 0.0
          %4811 = vmatpush2.xpose.msra.mxu0 0.0
          %4812 = vmatprep.subr.mxu0 0.0
          %4813 = vmatpush2.xpose.msra.mxu0 0.0
          %4814 = vmatprep.subr.mxu0 0.0
          %4815 = vmatpush2.xpose.msra.mxu0 0.0
          %4816 = vmatprep.subr.mxu0 0.0
          %4817 = vmatpush2.xpose.msra.mxu0 0.0
          %4818 = vmatprep.subr.mxu0 0.0
          %4819 = vmatpush2.xpose.msra.mxu0 0.0
          %4820 = vmatprep.subr.mxu0 0.0
          %4821 = vmatpush2.xpose.msra.mxu0 0.0
          %4822 = vmatprep.subr.mxu0 0.0
          %4823 = vmatpush2.xpose.msra.mxu0 0.0
          %4824 = vmatprep.subr.mxu0 0.0
          %4825 = vmatpush2.xpose.msra.mxu0 0.0
          %4826 = vmatprep.subr.mxu0 0.0
          %4827 = vmatpush2.xpose.msra.mxu0 0.0
          %4828 = vmatprep.subr.mxu0 0.0
          %4829 = vmatpush2.xpose.msra.mxu0 0.0
          %4830 = vmatprep.subr.mxu0 0.0
          %4831 = vmatpush2.xpose.msra.mxu0 0.0
          %4832 = vmatprep.subr.mxu0 0.0
          %4833 = vmatpush2.xpose.msra.mxu0 0.0
          %4834 = vmatprep.subr.mxu0 0.0
          %4835 = vmatpush2.xpose.msra.mxu0 0.0
          %4836 = vmatprep.subr.mxu0 0.0
          %4837 = vmatpush2.xpose.msra.mxu0 0.0
          %4838 = vmatprep.subr.mxu0 0.0
          %4839 = vmatpush2.xpose.msra.mxu0 0.0
          %4840 = vmatprep.subr.mxu0 0.0
          %4841 = vmatpush2.xpose.msra.mxu0 %v4776
          %4842 = vmatprep.mubr.f32.mxu0 0.0
          %4843 = vmatmul.mubr.f32.gmra.mxu0 %v4710
          %v4844 = vpop.f32.mrf.mxu0
          %v4845 = vadd.f32 %v2025, %v4844
          %v4846 = vpop.f32.mrf.mxu0
          %v4847 = vadd.f32 %v2026, %v4846
          %4848 = vmatprep.mubr.f32.mxu0 0.0
          %4849 = vmatmul.mubr.f32.gmra.mxu0 %v4712
          %v4850 = vpop.f32.mrf.mxu0
          %v4851 = vadd.f32 %v2027, %v4850
          %v4852 = vpop.f32.mrf.mxu0
          %v4853 = vadd.f32 %v2028, %v4852
          %4854 = vmatprep.mubr.f32.mxu0 0.0
          %4855 = vmatmul.mubr.f32.gmra.mxu0 %v4714
          %v4856 = vpop.f32.mrf.mxu0
          %v4857 = vadd.f32 %v2029, %v4856
          %v4858 = vpop.f32.mrf.mxu0
          %v4859 = vadd.f32 %v2030, %v4858
          %4860 = vmatprep.mubr.f32.mxu0 0.0
          %4861 = vmatmul.mubr.f32.gmra.mxu0 %v4716
          %v4862 = vpop.f32.mrf.mxu0
          %v4863 = vadd.f32 %v2031, %v4862
          %v4864 = vpop.f32.mrf.mxu0
          %v4865 = vadd.f32 %v2032, %v4864
          %4866 = vmatprep.mubr.f32.mxu0 0.0
          %4867 = vmatmul.mubr.f32.gmra.mxu0 %v4718
          %v4868 = vpop.f32.mrf.mxu0
          %v4869 = vadd.f32 %v2033, %v4868
          %v4870 = vpop.f32.mrf.mxu0
          %v4871 = vadd.f32 %v2034, %v4870
          %4872 = vmatprep.mubr.f32.mxu0 0.0
          %4873 = vmatmul.mubr.f32.gmra.mxu0 %v4720
          %v4874 = vpop.f32.mrf.mxu0
          %v4875 = vadd.f32 %v2035, %v4874
          %v4876 = vpop.f32.mrf.mxu0
          %v4877 = vadd.f32 %v2036, %v4876
          %4878 = vmatprep.mubr.f32.mxu0 0.0
          %4879 = vmatmul.mubr.f32.gmra.mxu0 %v4722
          %v4880 = vpop.f32.mrf.mxu0
          %v4881 = vadd.f32 %v2037, %v4880
          %v4882 = vpop.f32.mrf.mxu0
          %v4883 = vadd.f32 %v2038, %v4882
          %4884 = vmatprep.mubr.f32.mxu0 0.0
          %4885 = vmatmul.mubr.f32.gmra.mxu0 %v4724
          %v4886 = vpop.f32.mrf.mxu0
          %v4887 = vadd.f32 %v2039, %v4886
          %v4888 = vpop.f32.mrf.mxu0
          %v4889 = vadd.f32 %v2040, %v4888
          %4890 = vmatprep.mubr.f32.mxu0 0.0
          %4891 = vmatmul.mubr.f32.gmra.mxu0 %v4726
          %v4892 = vpop.f32.mrf.mxu0
          %v4893 = vadd.f32 %v2041, %v4892
          %v4894 = vpop.f32.mrf.mxu0
          %v4895 = vadd.f32 %v2042, %v4894
          %4896 = vmatprep.mubr.f32.mxu0 0.0
          %4897 = vmatmul.mubr.f32.gmra.mxu0 %v4728
          %v4898 = vpop.f32.mrf.mxu0
          %v4899 = vadd.f32 %v2043, %v4898
          %v4900 = vpop.f32.mrf.mxu0
          %v4901 = vadd.f32 %v2044, %v4900
          %4902 = vmatprep.mubr.f32.mxu0 0.0
          %4903 = vmatmul.mubr.f32.gmra.mxu0 %v4730
          %v4904 = vpop.f32.mrf.mxu0
          %v4905 = vadd.f32 %v2045, %v4904
          %v4906 = vpop.f32.mrf.mxu0
          %v4907 = vadd.f32 %v2046, %v4906
          %4908 = vmatprep.mubr.f32.mxu0 0.0
          %4909 = vmatmul.mubr.f32.gmra.mxu0 %v4732
          %v4910 = vpop.f32.mrf.mxu0
          %v4911 = vadd.f32 %v2047, %v4910
          %v4912 = vpop.f32.mrf.mxu0
          %v4913 = vadd.f32 %v2048, %v4912
          %4914 = vmatprep.mubr.f32.mxu0 0.0
          %4915 = vmatmul.mubr.f32.gmra.mxu0 %v4734
          %v4916 = vpop.f32.mrf.mxu0
          %v4917 = vadd.f32 %v2049, %v4916
          %v4918 = vpop.f32.mrf.mxu0
          %v4919 = vadd.f32 %v2050, %v4918
          %4920 = vmatprep.mubr.f32.mxu0 0.0
          %4921 = vmatmul.mubr.f32.gmra.mxu0 %v4736
          %v4922 = vpop.f32.mrf.mxu0
          %v4923 = vadd.f32 %v2051, %v4922
          %v4924 = vpop.f32.mrf.mxu0
          %v4925 = vadd.f32 %v2052, %v4924
          %4926 = vmatprep.mubr.f32.mxu0 0.0
          %4927 = vmatmul.mubr.f32.gmra.mxu0 %v4738
          %v4928 = vpop.f32.mrf.mxu0
          %v4929 = vadd.f32 %v2053, %v4928
          %v4930 = vpop.f32.mrf.mxu0
          %v4931 = vadd.f32 %v2054, %v4930
          %4932 = vmatprep.mubr.f32.mxu0 0.0
          %4933 = vmatmul.mubr.f32.gmra.mxu0 %v4740
          %v4934 = vpop.f32.mrf.mxu0
          %v4935 = vadd.f32 %v2055, %v4934
          %v4936 = vpop.f32.mrf.mxu0
          %v4937 = vadd.f32 %v2056, %v4936
          %4938 = vmatprep.mubr.f32.mxu0 0.0
          %4939 = vmatmul.mubr.f32.gmra.mxu0 %v4742
          %v4940 = vpop.f32.mrf.mxu0
          %v4941 = vadd.f32 %v2057, %v4940
          %v4942 = vpop.f32.mrf.mxu0
          %v4943 = vadd.f32 %v2058, %v4942
          %4944 = vdwg.mxu0
          %v4945 = vsel %vm2619, %v4847, -inf
          %v4946 = vmax.f32 %v4845, %v4945
          %4947 = vmax.xlane.f32.xlu0 %v4946
          %v4948 = vpop.xlane.xlu0 %4947
          %v4949 = vsel %vm2619, %v4853, -inf
          %v4950 = vmax.f32 %v4851, %v4949
          %4951 = vmax.xlane.f32.xlu0 %v4950
          %v4952 = vpop.xlane.xlu0 %4951
          %v4953 = vsel %vm2619, %v4859, -inf
          %v4954 = vmax.f32 %v4857, %v4953
          %4955 = vmax.xlane.f32.xlu0 %v4954
          %v4956 = vpop.xlane.xlu0 %4955
          %v4957 = vsel %vm2619, %v4865, -inf
          %v4958 = vmax.f32 %v4863, %v4957
          %4959 = vmax.xlane.f32.xlu0 %v4958
          %v4960 = vpop.xlane.xlu0 %4959
          %v4961 = vsel %vm2619, %v4871, -inf
          %v4962 = vmax.f32 %v4869, %v4961
          %4963 = vmax.xlane.f32.xlu0 %v4962
          %v4964 = vpop.xlane.xlu0 %4963
          %v4965 = vsel %vm2619, %v4877, -inf
          %v4966 = vmax.f32 %v4875, %v4965
          %4967 = vmax.xlane.f32.xlu0 %v4966
          %v4968 = vpop.xlane.xlu0 %4967
          %v4969 = vsel %vm2619, %v4883, -inf
          %v4970 = vmax.f32 %v4881, %v4969
          %4971 = vmax.xlane.f32.xlu0 %v4970
          %v4972 = vpop.xlane.xlu0 %4971
          %v4973 = vsel %vm2619, %v4889, -inf
          %v4974 = vmax.f32 %v4887, %v4973
          %4975 = vmax.xlane.f32.xlu0 %v4974
          %v4976 = vpop.xlane.xlu0 %4975
          %v4977 = vsel %vm2619, %v4895, -inf
          %v4978 = vmax.f32 %v4893, %v4977
          %4979 = vmax.xlane.f32.xlu0 %v4978
          %v4980 = vpop.xlane.xlu0 %4979
          %v4981 = vsel %vm2619, %v4901, -inf
          %v4982 = vmax.f32 %v4899, %v4981
          %4983 = vmax.xlane.f32.xlu0 %v4982
          %v4984 = vpop.xlane.xlu0 %4983
          %v4985 = vsel %vm2619, %v4907, -inf
          %v4986 = vmax.f32 %v4905, %v4985
          %4987 = vmax.xlane.f32.xlu0 %v4986
          %v4988 = vpop.xlane.xlu0 %4987
          %v4989 = vsel %vm2619, %v4913, -inf
          %v4990 = vmax.f32 %v4911, %v4989
          %4991 = vmax.xlane.f32.xlu0 %v4990
          %v4992 = vpop.xlane.xlu0 %4991
          %v4993 = vsel %vm2619, %v4919, -inf
          %v4994 = vmax.f32 %v4917, %v4993
          %4995 = vmax.xlane.f32.xlu0 %v4994
          %v4996 = vpop.xlane.xlu0 %4995
          %v4997 = vsel %vm2619, %v4925, -inf
          %v4998 = vmax.f32 %v4923, %v4997
          %4999 = vmax.xlane.f32.xlu0 %v4998
          %v5000 = vpop.xlane.xlu0 %4999
          %v5001 = vsel %vm2619, %v4931, -inf
          %v5002 = vmax.f32 %v4929, %v5001
          %5003 = vmax.xlane.f32.xlu0 %v5002
          %v5004 = vpop.xlane.xlu0 %5003
          %v5005 = vsel %vm2619, %v4937, -inf
          %v5006 = vmax.f32 %v4935, %v5005
          %5007 = vmax.xlane.f32.xlu0 %v5006
          %v5008 = vpop.xlane.xlu0 %5007
          %v5009 = vsel %vm2619, %v4943, -inf
          %v5010 = vmax.f32 %v4941, %v5009
          %5011 = vmax.xlane.f32.xlu0 %v5010
          %v5012 = vpop.xlane.xlu0 %5011
          %v5013 = vsub.f32 %v4845, %v4948
          %v5014 = vsub.f32 %v4847, %v4948
          %v5015 = vsub.f32 %v4851, %v4952
          %v5016 = vsub.f32 %v4853, %v4952
          %v5017 = vsub.f32 %v4857, %v4956
          %v5018 = vsub.f32 %v4859, %v4956
          %v5019 = vsub.f32 %v4863, %v4960
          %v5020 = vsub.f32 %v4865, %v4960
          %v5021 = vsub.f32 %v4869, %v4964
          %v5022 = vsub.f32 %v4871, %v4964
          %v5023 = vsub.f32 %v4875, %v4968
          %v5024 = vsub.f32 %v4877, %v4968
          %v5025 = vsub.f32 %v4881, %v4972
          %v5026 = vsub.f32 %v4883, %v4972
          %v5027 = vsub.f32 %v4887, %v4976
          %v5028 = vsub.f32 %v4889, %v4976
          %v5029 = vsub.f32 %v4893, %v4980
          %v5030 = vsub.f32 %v4895, %v4980
          %v5031 = vsub.f32 %v4899, %v4984
          %v5032 = vsub.f32 %v4901, %v4984
          %v5033 = vsub.f32 %v4905, %v4988
          %v5034 = vsub.f32 %v4907, %v4988
          %v5035 = vsub.f32 %v4911, %v4992
          %v5036 = vsub.f32 %v4913, %v4992
          %v5037 = vsub.f32 %v4917, %v4996
          %v5038 = vsub.f32 %v4919, %v4996
          %v5039 = vsub.f32 %v4923, %v5000
          %v5040 = vsub.f32 %v4925, %v5000
          %v5041 = vsub.f32 %v4929, %v5004
          %v5042 = vsub.f32 %v4931, %v5004
          %v5043 = vsub.f32 %v4935, %v5008
          %v5044 = vsub.f32 %v4937, %v5008
          %v5045 = vsub.f32 %v4941, %v5012
          %v5046 = vsub.f32 %v4943, %v5012
          %v5047 = vmul.f32 %v5013, 1.442695
          %v5048 = vpow.pop %v5047
          %v5049 = vmul.f32 %v5014, 1.442695
          %v5050 = vpow.pop %v5049
          %v5051 = vmul.f32 %v5015, 1.442695
          %v5052 = vpow.pop %v5051
          %v5053 = vmul.f32 %v5016, 1.442695
          %v5054 = vpow.pop %v5053
          %v5055 = vmul.f32 %v5017, 1.442695
          %v5056 = vpow.pop %v5055
          %v5057 = vmul.f32 %v5018, 1.442695
          %v5058 = vpow.pop %v5057
          %v5059 = vmul.f32 %v5019, 1.442695
          %v5060 = vpow.pop %v5059
          %v5061 = vmul.f32 %v5020, 1.442695
          %v5062 = vpow.pop %v5061
          %v5063 = vmul.f32 %v5021, 1.442695
          %v5064 = vpow.pop %v5063
          %v5065 = vmul.f32 %v5022, 1.442695
          %v5066 = vpow.pop %v5065
          %v5067 = vmul.f32 %v5023, 1.442695
          %v5068 = vpow.pop %v5067
          %v5069 = vmul.f32 %v5024, 1.442695
          %v5070 = vpow.pop %v5069
          %v5071 = vmul.f32 %v5025, 1.442695
          %v5072 = vpow.pop %v5071
          %v5073 = vmul.f32 %v5026, 1.442695
          %v5074 = vpow.pop %v5073
          %v5075 = vmul.f32 %v5027, 1.442695
          %v5076 = vpow.pop %v5075
          %v5077 = vmul.f32 %v5028, 1.442695
          %v5078 = vpow.pop %v5077
          %v5079 = vmul.f32 %v5029, 1.442695
          %v5080 = vpow.pop %v5079
          %v5081 = vmul.f32 %v5030, 1.442695
          %v5082 = vpow.pop %v5081
          %v5083 = vmul.f32 %v5031, 1.442695
          %v5084 = vpow.pop %v5083
          %v5085 = vmul.f32 %v5032, 1.442695
          %v5086 = vpow.pop %v5085
          %v5087 = vmul.f32 %v5033, 1.442695
          %v5088 = vpow.pop %v5087
          %v5089 = vmul.f32 %v5034, 1.442695
          %v5090 = vpow.pop %v5089
          %v5091 = vmul.f32 %v5035, 1.442695
          %v5092 = vpow.pop %v5091
          %v5093 = vmul.f32 %v5036, 1.442695
          %v5094 = vpow.pop %v5093
          %v5095 = vmul.f32 %v5037, 1.442695
          %v5096 = vpow.pop %v5095
          %v5097 = vmul.f32 %v5038, 1.442695
          %v5098 = vpow.pop %v5097
          %v5099 = vmul.f32 %v5039, 1.442695
          %v5100 = vpow.pop %v5099
          %v5101 = vmul.f32 %v5040, 1.442695
          %v5102 = vpow.pop %v5101
          %v5103 = vmul.f32 %v5041, 1.442695
          %v5104 = vpow.pop %v5103
          %v5105 = vmul.f32 %v5042, 1.442695
          %v5106 = vpow.pop %v5105
          %v5107 = vmul.f32 %v5043, 1.442695
          %v5108 = vpow.pop %v5107
          %v5109 = vmul.f32 %v5044, 1.442695
          %v5110 = vpow.pop %v5109
          %v5111 = vmul.f32 %v5045, 1.442695
          %v5112 = vpow.pop %v5111
          %v5113 = vmul.f32 %v5046, 1.442695
          %v5114 = vpow.pop %v5113
          %v5115 = vsel %vm2619, %v5050, 0.0
          %v5116 = vadd.f32 %v5048, %v5115
          %5117 = vadd.xlane.f32.xlu0 %v5116
          %v5118 = vpop.xlane.xlu0 %5117
          %v5119 = vsel %vm2619, %v5054, 0.0
          %v5120 = vadd.f32 %v5052, %v5119
          %5121 = vadd.xlane.f32.xlu0 %v5120
          %v5122 = vpop.xlane.xlu0 %5121
          %v5123 = vsel %vm2619, %v5058, 0.0
          %v5124 = vadd.f32 %v5056, %v5123
          %5125 = vadd.xlane.f32.xlu0 %v5124
          %v5126 = vpop.xlane.xlu0 %5125
          %v5127 = vsel %vm2619, %v5062, 0.0
          %v5128 = vadd.f32 %v5060, %v5127
          %5129 = vadd.xlane.f32.xlu0 %v5128
          %v5130 = vpop.xlane.xlu0 %5129
          %v5131 = vsel %vm2619, %v5066, 0.0
          %v5132 = vadd.f32 %v5064, %v5131
          %5133 = vadd.xlane.f32.xlu0 %v5132
          %v5134 = vpop.xlane.xlu0 %5133
          %v5135 = vsel %vm2619, %v5070, 0.0
          %v5136 = vadd.f32 %v5068, %v5135
          %5137 = vadd.xlane.f32.xlu0 %v5136
          %v5138 = vpop.xlane.xlu0 %5137
          %v5139 = vsel %vm2619, %v5074, 0.0
          %v5140 = vadd.f32 %v5072, %v5139
          %5141 = vadd.xlane.f32.xlu0 %v5140
          %v5142 = vpop.xlane.xlu0 %5141
          %v5143 = vsel %vm2619, %v5078, 0.0
          %v5144 = vadd.f32 %v5076, %v5143
          %5145 = vadd.xlane.f32.xlu0 %v5144
          %v5146 = vpop.xlane.xlu0 %5145
          %v5147 = vsel %vm2619, %v5082, 0.0
          %v5148 = vadd.f32 %v5080, %v5147
          %5149 = vadd.xlane.f32.xlu0 %v5148
          %v5150 = vpop.xlane.xlu0 %5149
          %v5151 = vsel %vm2619, %v5086, 0.0
          %v5152 = vadd.f32 %v5084, %v5151
          %5153 = vadd.xlane.f32.xlu0 %v5152
          %v5154 = vpop.xlane.xlu0 %5153
          %v5155 = vsel %vm2619, %v5090, 0.0
          %v5156 = vadd.f32 %v5088, %v5155
          %5157 = vadd.xlane.f32.xlu0 %v5156
          %v5158 = vpop.xlane.xlu0 %5157
          %v5159 = vsel %vm2619, %v5094, 0.0
          %v5160 = vadd.f32 %v5092, %v5159
          %5161 = vadd.xlane.f32.xlu0 %v5160
          %v5162 = vpop.xlane.xlu0 %5161
          %v5163 = vsel %vm2619, %v5098, 0.0
          %v5164 = vadd.f32 %v5096, %v5163
          %5165 = vadd.xlane.f32.xlu0 %v5164
          %v5166 = vpop.xlane.xlu0 %5165
          %v5167 = vsel %vm2619, %v5102, 0.0
          %v5168 = vadd.f32 %v5100, %v5167
          %5169 = vadd.xlane.f32.xlu0 %v5168
          %v5170 = vpop.xlane.xlu0 %5169
          %v5171 = vsel %vm2619, %v5106, 0.0
          %v5172 = vadd.f32 %v5104, %v5171
          %5173 = vadd.xlane.f32.xlu0 %v5172
          %v5174 = vpop.xlane.xlu0 %5173
          %v5175 = vsel %vm2619, %v5110, 0.0
          %v5176 = vadd.f32 %v5108, %v5175
          %5177 = vadd.xlane.f32.xlu0 %v5176
          %v5178 = vpop.xlane.xlu0 %5177
          %v5179 = vsel %vm2619, %v5114, 0.0
          %v5180 = vadd.f32 %v5112, %v5179
          %5181 = vadd.xlane.f32.xlu0 %v5180
          %v5182 = vpop.xlane.xlu0 %5181
          %v5183 = vrcp.pop %v5118
          %v5184 = vrcp.pop %v5122
          %v5185 = vrcp.pop %v5126
          %v5186 = vrcp.pop %v5130
          %v5187 = vrcp.pop %v5134
          %v5188 = vrcp.pop %v5138
          %v5189 = vrcp.pop %v5142
          %v5190 = vrcp.pop %v5146
          %v5191 = vrcp.pop %v5150
          %v5192 = vrcp.pop %v5154
          %v5193 = vrcp.pop %v5158
          %v5194 = vrcp.pop %v5162
          %v5195 = vrcp.pop %v5166
          %v5196 = vrcp.pop %v5170
          %v5197 = vrcp.pop %v5174
          %v5198 = vrcp.pop %v5178
          %v5199 = vrcp.pop %v5182
          %v5200 = vmul.f32 %v5048, %v5183
          %v5201 = vmul.f32 %v5050, %v5183
          %v5202 = vmul.f32 %v5052, %v5184
          %v5203 = vmul.f32 %v5054, %v5184
          %v5204 = vmul.f32 %v5056, %v5185
          %v5205 = vmul.f32 %v5058, %v5185
          %v5206 = vmul.f32 %v5060, %v5186
          %v5207 = vmul.f32 %v5062, %v5186
          %v5208 = vmul.f32 %v5064, %v5187
          %v5209 = vmul.f32 %v5066, %v5187
          %v5210 = vmul.f32 %v5068, %v5188
          %v5211 = vmul.f32 %v5070, %v5188
          %v5212 = vmul.f32 %v5072, %v5189
          %v5213 = vmul.f32 %v5074, %v5189
          %v5214 = vmul.f32 %v5076, %v5190
          %v5215 = vmul.f32 %v5078, %v5190
          %v5216 = vmul.f32 %v5080, %v5191
          %v5217 = vmul.f32 %v5082, %v5191
          %v5218 = vmul.f32 %v5084, %v5192
          %v5219 = vmul.f32 %v5086, %v5192
          %v5220 = vmul.f32 %v5088, %v5193
          %v5221 = vmul.f32 %v5090, %v5193
          %v5222 = vmul.f32 %v5092, %v5194
          %v5223 = vmul.f32 %v5094, %v5194
          %v5224 = vmul.f32 %v5096, %v5195
          %v5225 = vmul.f32 %v5098, %v5195
          %v5226 = vmul.f32 %v5100, %v5196
          %v5227 = vmul.f32 %v5102, %v5196
          %v5228 = vmul.f32 %v5104, %v5197
          %v5229 = vmul.f32 %v5106, %v5197
          %v5230 = vmul.f32 %v5108, %v5198
          %v5231 = vmul.f32 %v5110, %v5198
          %v5232 = vmul.f32 %v5112, %v5199
          %v5233 = vmul.f32 %v5114, %v5199
          %5234 = vrot.lane.b32.xlu0 %v2480, 48
          %v5235 = vpop.permute.xlu0 %5234
          %5236 = vrot.lane.b32.xlu0 %v2485, 48
          %v5237 = vpop.permute.xlu0 %5236
          %5238 = vrot.lane.b32.xlu0 %v2490, 48
          %v5239 = vpop.permute.xlu0 %5238
          %5240 = vrot.lane.b32.xlu0 %v2495, 48
          %v5241 = vpop.permute.xlu0 %5240
          %5242 = vrot.lane.b32.xlu0 %v2500, 48
          %v5243 = vpop.permute.xlu0 %5242
          %5244 = vrot.lane.b32.xlu0 %v2505, 48
          %v5245 = vpop.permute.xlu0 %5244
          %5246 = vrot.lane.b32.xlu0 %v2510, 48
          %v5247 = vpop.permute.xlu0 %5246
          %5248 = vrot.lane.b32.xlu0 %v2515, 48
          %v5249 = vpop.permute.xlu0 %5248
          %5250 = vrot.lane.b32.xlu0 %v2520, 48
          %v5251 = vpop.permute.xlu0 %5250
          %5252 = vrot.lane.b32.xlu0 %v2525, 48
          %v5253 = vpop.permute.xlu0 %5252
          %5254 = vrot.lane.b32.xlu0 %v2530, 48
          %v5255 = vpop.permute.xlu0 %5254
          %5256 = vrot.lane.b32.xlu0 %v2535, 48
          %v5257 = vpop.permute.xlu0 %5256
          %5258 = vrot.lane.b32.xlu0 %v2540, 48
          %v5259 = vpop.permute.xlu0 %5258
          %5260 = vrot.lane.b32.xlu0 %v2545, 48
          %v5261 = vpop.permute.xlu0 %5260
          %5262 = vrot.lane.b32.xlu0 %v2550, 48
          %v5263 = vpop.permute.xlu0 %5262
          %5264 = vrot.lane.b32.xlu0 %v2555, 48
          %v5265 = vpop.permute.xlu0 %5264
          %5266 = vrot.lane.b32.xlu0 %v2560, 48
          %v5267 = vpop.permute.xlu0 %5266
          %v5286 = vsel %vm2619, %v5201, 0
          %v5289 = vsel %vm2619, %v5203, 0
          %v5292 = vsel %vm2619, %v5205, 0
          %v5295 = vsel %vm2619, %v5207, 0
          %v5298 = vsel %vm2619, %v5209, 0
          %v5301 = vsel %vm2619, %v5211, 0
          %v5304 = vsel %vm2619, %v5213, 0
          %v5307 = vsel %vm2619, %v5215, 0
          %v5310 = vsel %vm2619, %v5217, 0
          %v5313 = vsel %vm2619, %v5219, 0
          %v5316 = vsel %vm2619, %v5221, 0
          %v5319 = vsel %vm2619, %v5223, 0
          %v5322 = vsel %vm2619, %v5225, 0
          %v5325 = vsel %vm2619, %v5227, 0
          %v5328 = vsel %vm2619, %v5229, 0
          %v5331 = vsel %vm2619, %v5231, 0
          %v5334 = vsel %vm2619, %v5233, 0
          %5336 = vmatprep.subr.mxu0 0.0
          %5337 = vmatpush1.msra.mxu0 %v5265
          %5338 = vmatprep.subr.mxu0 0.0
          %5339 = vmatpush1.msra.mxu0 %v5263
          %5340 = vmatprep.subr.mxu0 0.0
          %5341 = vmatpush1.msra.mxu0 %v5261
          %5342 = vmatprep.subr.mxu0 0.0
          %5343 = vmatpush1.msra.mxu0 %v5259
          %5344 = vmatprep.subr.mxu0 0.0
          %5345 = vmatpush1.msra.mxu0 %v5257
          %5346 = vmatprep.subr.mxu0 0.0
          %5347 = vmatpush1.msra.mxu0 %v5255
          %5348 = vmatprep.subr.mxu0 0.0
          %5349 = vmatpush1.msra.mxu0 %v5253
          %5350 = vmatprep.subr.mxu0 0.0
          %5351 = vmatpush1.msra.mxu0 %v5251
          %5352 = vmatprep.subr.mxu0 0.0
          %5353 = vmatpush1.msra.mxu0 %v5249
          %5354 = vmatprep.subr.mxu0 0.0
          %5355 = vmatpush1.msra.mxu0 %v5247
          %5356 = vmatprep.subr.mxu0 0.0
          %5357 = vmatpush1.msra.mxu0 %v5245
          %5358 = vmatprep.subr.mxu0 0.0
          %5359 = vmatpush1.msra.mxu0 %v5243
          %5360 = vmatprep.subr.mxu0 0.0
          %5361 = vmatpush1.msra.mxu0 %v5241
          %5362 = vmatprep.subr.mxu0 0.0
          %5363 = vmatpush1.msra.mxu0 %v5239
          %5364 = vmatprep.subr.mxu0 0.0
          %5365 = vmatpush1.msra.mxu0 %v5237
          %5366 = vmatprep.subr.mxu0 0.0
          %5367 = vmatpush1.msra.mxu0 %v5235
          %5368 = vmatprep.subr.mxu0 0.0
          %5369 = vmatpush2.msra.mxu0 0.0
          %5370 = vmatprep.subr.mxu0 0.0
          %5371 = vmatpush2.msra.mxu0 0.0
          %5372 = vmatprep.subr.mxu0 0.0
          %5373 = vmatpush2.msra.mxu0 0.0
          %5374 = vmatprep.subr.mxu0 0.0
          %5375 = vmatpush2.msra.mxu0 0.0
          %5376 = vmatprep.subr.mxu0 0.0
          %5377 = vmatpush2.msra.mxu0 0.0
          %5378 = vmatprep.subr.mxu0 0.0
          %5379 = vmatpush2.msra.mxu0 0.0
          %5380 = vmatprep.subr.mxu0 0.0
          %5381 = vmatpush2.msra.mxu0 0.0
          %5382 = vmatprep.subr.mxu0 0.0
          %5383 = vmatpush2.msra.mxu0 0.0
          %5384 = vmatprep.subr.mxu0 0.0
          %5385 = vmatpush2.msra.mxu0 0.0
          %5386 = vmatprep.subr.mxu0 0.0
          %5387 = vmatpush2.msra.mxu0 0.0
          %5388 = vmatprep.subr.mxu0 0.0
          %5389 = vmatpush2.msra.mxu0 0.0
          %5390 = vmatprep.subr.mxu0 0.0
          %5391 = vmatpush2.msra.mxu0 0.0
          %5392 = vmatprep.subr.mxu0 0.0
          %5393 = vmatpush2.msra.mxu0 0.0
          %5394 = vmatprep.subr.mxu0 0.0
          %5395 = vmatpush2.msra.mxu0 0.0
          %5396 = vmatprep.subr.mxu0 0.0
          %5397 = vmatpush2.msra.mxu0 0.0
          %5398 = vmatprep.subr.mxu0 0.0
          %5399 = vmatpush2.msra.mxu0 %v5267
          %5400 = vmatprep.mubr.f32.mxu0 %v5286
          %5401 = vmatmul.mubr.f32.gmra.mxu0 %v5200
          %v5402 = vpop.f32.mrf.mxu0
          %v5403 = vadd.f32 0.0, %v5402
          %v5404 = vpop.f32.mrf.mxu0
          %5405 = vmatprep.mubr.f32.mxu0 %v5289
          %5406 = vmatmul.mubr.f32.gmra.mxu0 %v5202
          %v5407 = vpop.f32.mrf.mxu0
          %v5408 = vadd.f32 0.0, %v5407
          %v5409 = vpop.f32.mrf.mxu0
          %5410 = vmatprep.mubr.f32.mxu0 %v5292
          %5411 = vmatmul.mubr.f32.gmra.mxu0 %v5204
          %v5412 = vpop.f32.mrf.mxu0
          %v5413 = vadd.f32 0.0, %v5412
          %v5414 = vpop.f32.mrf.mxu0
          %5415 = vmatprep.mubr.f32.mxu0 %v5295
          %5416 = vmatmul.mubr.f32.gmra.mxu0 %v5206
          %v5417 = vpop.f32.mrf.mxu0
          %v5418 = vadd.f32 0.0, %v5417
          %v5419 = vpop.f32.mrf.mxu0
          %5420 = vmatprep.mubr.f32.mxu0 %v5298
          %5421 = vmatmul.mubr.f32.gmra.mxu0 %v5208
          %v5422 = vpop.f32.mrf.mxu0
          %v5423 = vadd.f32 0.0, %v5422
          %v5424 = vpop.f32.mrf.mxu0
          %5425 = vmatprep.mubr.f32.mxu0 %v5301
          %5426 = vmatmul.mubr.f32.gmra.mxu0 %v5210
          %v5427 = vpop.f32.mrf.mxu0
          %v5428 = vadd.f32 0.0, %v5427
          %v5429 = vpop.f32.mrf.mxu0
          %5430 = vmatprep.mubr.f32.mxu0 %v5304
          %5431 = vmatmul.mubr.f32.gmra.mxu0 %v5212
          %v5432 = vpop.f32.mrf.mxu0
          %v5433 = vadd.f32 0.0, %v5432
          %v5434 = vpop.f32.mrf.mxu0
          %5435 = vmatprep.mubr.f32.mxu0 %v5307
          %5436 = vmatmul.mubr.f32.gmra.mxu0 %v5214
          %v5437 = vpop.f32.mrf.mxu0
          %v5438 = vadd.f32 0.0, %v5437
          %v5439 = vpop.f32.mrf.mxu0
          %5440 = vmatprep.mubr.f32.mxu0 %v5310
          %5441 = vmatmul.mubr.f32.gmra.mxu0 %v5216
          %v5442 = vpop.f32.mrf.mxu0
          %v5443 = vadd.f32 0.0, %v5442
          %v5444 = vpop.f32.mrf.mxu0
          %5445 = vmatprep.mubr.f32.mxu0 %v5313
          %5446 = vmatmul.mubr.f32.gmra.mxu0 %v5218
          %v5447 = vpop.f32.mrf.mxu0
          %v5448 = vadd.f32 0.0, %v5447
          %v5449 = vpop.f32.mrf.mxu0
          %5450 = vmatprep.mubr.f32.mxu0 %v5316
          %5451 = vmatmul.mubr.f32.gmra.mxu0 %v5220
          %v5452 = vpop.f32.mrf.mxu0
          %v5453 = vadd.f32 0.0, %v5452
          %v5454 = vpop.f32.mrf.mxu0
          %5455 = vmatprep.mubr.f32.mxu0 %v5319
          %5456 = vmatmul.mubr.f32.gmra.mxu0 %v5222
          %v5457 = vpop.f32.mrf.mxu0
          %v5458 = vadd.f32 0.0, %v5457
          %v5459 = vpop.f32.mrf.mxu0
          %5460 = vmatprep.mubr.f32.mxu0 %v5322
          %5461 = vmatmul.mubr.f32.gmra.mxu0 %v5224
          %v5462 = vpop.f32.mrf.mxu0
          %v5463 = vadd.f32 0.0, %v5462
          %v5464 = vpop.f32.mrf.mxu0
          %5465 = vmatprep.mubr.f32.mxu0 %v5325
          %5466 = vmatmul.mubr.f32.gmra.mxu0 %v5226
          %v5467 = vpop.f32.mrf.mxu0
          %v5468 = vadd.f32 0.0, %v5467
          %v5469 = vpop.f32.mrf.mxu0
          %5470 = vmatprep.mubr.f32.mxu0 %v5328
          %5471 = vmatmul.mubr.f32.gmra.mxu0 %v5228
          %v5472 = vpop.f32.mrf.mxu0
          %v5473 = vadd.f32 0.0, %v5472
          %v5474 = vpop.f32.mrf.mxu0
          %5475 = vmatprep.mubr.f32.mxu0 %v5331
          %5476 = vmatmul.mubr.f32.gmra.mxu0 %v5230
          %v5477 = vpop.f32.mrf.mxu0
          %v5478 = vadd.f32 0.0, %v5477
          %v5479 = vpop.f32.mrf.mxu0
          %5480 = vmatprep.mubr.f32.mxu0 %v5334
          %5481 = vmatmul.mubr.f32.gmra.mxu0 %v5232
          %v5482 = vpop.f32.mrf.mxu0
          %v5483 = vadd.f32 0.0, %v5482
          %v5484 = vpop.f32.mrf.mxu0
          %5485 = vdwg.mxu0
          %v5487 = vsel %vm2619, %v5403, 0
          %v5490 = vsel %vm2619, %v5408, 0
          %v5493 = vsel %vm2619, %v5413, 0
          %v5496 = vsel %vm2619, %v5418, 0
          %v5499 = vsel %vm2619, %v5423, 0
          %v5502 = vsel %vm2619, %v5428, 0
          %v5505 = vsel %vm2619, %v5433, 0
          %v5508 = vsel %vm2619, %v5438, 0
          %v5511 = vsel %vm2619, %v5443, 0
          %v5514 = vsel %vm2619, %v5448, 0
          %v5517 = vsel %vm2619, %v5453, 0
          %v5520 = vsel %vm2619, %v5458, 0
          %v5523 = vsel %vm2619, %v5463, 0
          %v5526 = vsel %vm2619, %v5468, 0
          %v5529 = vsel %vm2619, %v5473, 0
          %v5532 = vsel %vm2619, %v5478, 0
          %v5535 = vsel %vm2619, %v5483, 0
          %5537 = vmatprep.subr.mxu0 0.0
          %5538 = vmatpush1.msra.mxu0 0.0
          %5539 = vmatprep.subr.mxu0 0.0
          %5540 = vmatpush1.msra.mxu0 0.0
          %5541 = vmatprep.subr.mxu0 0.0
          %5542 = vmatpush1.msra.mxu0 0.0
          %5543 = vmatprep.subr.mxu0 0.0
          %5544 = vmatpush1.msra.mxu0 0.0
          %5545 = vmatprep.subr.mxu0 0.0
          %5546 = vmatpush1.msra.mxu0 0.0
          %5547 = vmatprep.subr.mxu0 0.0
          %5548 = vmatpush1.msra.mxu0 0.0
          %5549 = vmatprep.subr.mxu0 0.0
          %5550 = vmatpush1.msra.mxu0 0.0
          %5551 = vmatprep.subr.mxu0 0.0
          %5552 = vmatpush1.msra.mxu0 0.0
          %5553 = vmatprep.subr.mxu0 0.0
          %5554 = vmatpush1.msra.mxu0 0.0
          %5555 = vmatprep.subr.mxu0 0.0
          %5556 = vmatpush1.msra.mxu0 0.0
          %5557 = vmatprep.subr.mxu0 0.0
          %5558 = vmatpush1.msra.mxu0 0.0
          %5559 = vmatprep.subr.mxu0 0.0
          %5560 = vmatpush1.msra.mxu0 0.0
          %5561 = vmatprep.subr.mxu0 0.0
          %5562 = vmatpush1.msra.mxu0 0.0
          %5563 = vmatprep.subr.mxu0 0.0
          %5564 = vmatpush1.msra.mxu0 0.0
          %5565 = vmatprep.subr.mxu0 0.0
          %5566 = vmatpush1.msra.mxu0 0.0
          %5567 = vmatprep.subr.mxu0 0.0
          %5568 = vmatpush1.msra.mxu0 %v2566
          %5569 = vmatprep.subr.mxu0 0.0
          %5570 = vmatpush2.msra.mxu0 0.0
          %5571 = vmatprep.subr.mxu0 0.0
          %5572 = vmatpush2.msra.mxu0 0.0
          %5573 = vmatprep.subr.mxu0 0.0
          %5574 = vmatpush2.msra.mxu0 0.0
          %5575 = vmatprep.subr.mxu0 0.0
          %5576 = vmatpush2.msra.mxu0 0.0
          %5577 = vmatprep.subr.mxu0 0.0
          %5578 = vmatpush2.msra.mxu0 0.0
          %5579 = vmatprep.subr.mxu0 0.0
          %5580 = vmatpush2.msra.mxu0 0.0
          %5581 = vmatprep.subr.mxu0 0.0
          %5582 = vmatpush2.msra.mxu0 0.0
          %5583 = vmatprep.subr.mxu0 0.0
          %5584 = vmatpush2.msra.mxu0 0.0
          %5585 = vmatprep.subr.mxu0 0.0
          %5586 = vmatpush2.msra.mxu0 0.0
          %5587 = vmatprep.subr.mxu0 0.0
          %5588 = vmatpush2.msra.mxu0 0.0
          %5589 = vmatprep.subr.mxu0 0.0
          %5590 = vmatpush2.msra.mxu0 0.0
          %5591 = vmatprep.subr.mxu0 0.0
          %5592 = vmatpush2.msra.mxu0 0.0
          %5593 = vmatprep.subr.mxu0 0.0
          %5594 = vmatpush2.msra.mxu0 0.0
          %5595 = vmatprep.subr.mxu0 0.0
          %5596 = vmatpush2.msra.mxu0 0.0
          %5597 = vmatprep.subr.mxu0 0.0
          %5598 = vmatpush2.msra.mxu0 0.0
          %5599 = vmatprep.subr.mxu0 0.0
          %5600 = vmatpush2.msra.mxu0 0.0
          %5601 = vmatprep.mubr.f32.mxu0 0.0
          %5602 = vmatmul.mubr.f32.gmra.mxu0 %v5487
          %v5603 = vpop.f32.mrf.mxu0
          %v5604 = vadd.f32 0.0, %v5603
          %v5605 = vpop.f32.mrf.mxu0
          %5606 = vmatprep.mubr.f32.mxu0 0.0
          %5607 = vmatmul.mubr.f32.gmra.mxu0 %v5490
          %v5608 = vpop.f32.mrf.mxu0
          %v5609 = vadd.f32 0.0, %v5608
          %v5610 = vpop.f32.mrf.mxu0
          %5611 = vmatprep.mubr.f32.mxu0 0.0
          %5612 = vmatmul.mubr.f32.gmra.mxu0 %v5493
          %v5613 = vpop.f32.mrf.mxu0
          %v5614 = vadd.f32 0.0, %v5613
          %v5615 = vpop.f32.mrf.mxu0
          %5616 = vmatprep.mubr.f32.mxu0 0.0
          %5617 = vmatmul.mubr.f32.gmra.mxu0 %v5496
          %v5618 = vpop.f32.mrf.mxu0
          %v5619 = vadd.f32 0.0, %v5618
          %v5620 = vpop.f32.mrf.mxu0
          %5621 = vmatprep.mubr.f32.mxu0 0.0
          %5622 = vmatmul.mubr.f32.gmra.mxu0 %v5499
          %v5623 = vpop.f32.mrf.mxu0
          %v5624 = vadd.f32 0.0, %v5623
          %v5625 = vpop.f32.mrf.mxu0
          %5626 = vmatprep.mubr.f32.mxu0 0.0
          %5627 = vmatmul.mubr.f32.gmra.mxu0 %v5502
          %v5628 = vpop.f32.mrf.mxu0
          %v5629 = vadd.f32 0.0, %v5628
          %v5630 = vpop.f32.mrf.mxu0
          %5631 = vmatprep.mubr.f32.mxu0 0.0
          %5632 = vmatmul.mubr.f32.gmra.mxu0 %v5505
          %v5633 = vpop.f32.mrf.mxu0
          %v5634 = vadd.f32 0.0, %v5633
          %v5635 = vpop.f32.mrf.mxu0
          %5636 = vmatprep.mubr.f32.mxu0 0.0
          %5637 = vmatmul.mubr.f32.gmra.mxu0 %v5508
          %v5638 = vpop.f32.mrf.mxu0
          %v5639 = vadd.f32 0.0, %v5638
          %v5640 = vpop.f32.mrf.mxu0
          %5641 = vmatprep.mubr.f32.mxu0 0.0
          %5642 = vmatmul.mubr.f32.gmra.mxu0 %v5511
          %v5643 = vpop.f32.mrf.mxu0
          %v5644 = vadd.f32 0.0, %v5643
          %v5645 = vpop.f32.mrf.mxu0
          %5646 = vmatprep.mubr.f32.mxu0 0.0
          %5647 = vmatmul.mubr.f32.gmra.mxu0 %v5514
          %v5648 = vpop.f32.mrf.mxu0
          %v5649 = vadd.f32 0.0, %v5648
          %v5650 = vpop.f32.mrf.mxu0
          %5651 = vmatprep.mubr.f32.mxu0 0.0
          %5652 = vmatmul.mubr.f32.gmra.mxu0 %v5517
          %v5653 = vpop.f32.mrf.mxu0
          %v5654 = vadd.f32 0.0, %v5653
          %v5655 = vpop.f32.mrf.mxu0
          %5656 = vmatprep.mubr.f32.mxu0 0.0
          %5657 = vmatmul.mubr.f32.gmra.mxu0 %v5520
          %v5658 = vpop.f32.mrf.mxu0
          %v5659 = vadd.f32 0.0, %v5658
          %v5660 = vpop.f32.mrf.mxu0
          %5661 = vmatprep.mubr.f32.mxu0 0.0
          %5662 = vmatmul.mubr.f32.gmra.mxu0 %v5523
          %v5663 = vpop.f32.mrf.mxu0
          %v5664 = vadd.f32 0.0, %v5663
          %v5665 = vpop.f32.mrf.mxu0
          %5666 = vmatprep.mubr.f32.mxu0 0.0
          %5667 = vmatmul.mubr.f32.gmra.mxu0 %v5526
          %v5668 = vpop.f32.mrf.mxu0
          %v5669 = vadd.f32 0.0, %v5668
          %v5670 = vpop.f32.mrf.mxu0
          %5671 = vmatprep.mubr.f32.mxu0 0.0
          %5672 = vmatmul.mubr.f32.gmra.mxu0 %v5529
          %v5673 = vpop.f32.mrf.mxu0
          %v5674 = vadd.f32 0.0, %v5673
          %v5675 = vpop.f32.mrf.mxu0
          %5676 = vmatprep.mubr.f32.mxu0 0.0
          %5677 = vmatmul.mubr.f32.gmra.mxu0 %v5532
          %v5678 = vpop.f32.mrf.mxu0
          %v5679 = vadd.f32 0.0, %v5678
          %v5680 = vpop.f32.mrf.mxu0
          %5681 = vmatprep.mubr.f32.mxu0 0.0
          %5682 = vmatmul.mubr.f32.gmra.mxu0 %v5535
          %v5683 = vpop.f32.mrf.mxu0
          %v5684 = vadd.f32 0.0, %v5683
          %v5685 = vpop.f32.mrf.mxu0
          %5686 = vdwg.mxu0
          %v5687 = vadd.f32 %v4559, %v5604
          %v5688 = vadd.f32 %v4564, %v5609
          %v5689 = vadd.f32 %v4569, %v5614
          %v5690 = vadd.f32 %v4574, %v5619
          %v5691 = vadd.f32 %v4579, %v5624
          %v5692 = vadd.f32 %v4584, %v5629
          %v5693 = vadd.f32 %v4589, %v5634
          %v5694 = vadd.f32 %v4594, %v5639
          %v5695 = vadd.f32 %v4599, %v5644
          %v5696 = vadd.f32 %v4604, %v5649
          %v5697 = vadd.f32 %v4609, %v5654
          %v5698 = vadd.f32 %v4614, %v5659
          %v5699 = vadd.f32 %v4619, %v5664
          %v5700 = vadd.f32 %v4624, %v5669
          %v5701 = vadd.f32 %v4629, %v5674
          %v5702 = vadd.f32 %v4634, %v5679
          %v5703 = vadd.f32 %v4639, %v5684
          %5704 = vrot.lane.b32.xlu0 %v2480, 104
          %v5705 = vpop.permute.xlu0 %5704
          %5706 = vrot.lane.b32.xlu0 %v2485, 104
          %v5707 = vpop.permute.xlu0 %5706
          %5708 = vrot.lane.b32.xlu0 %v2490, 104
          %v5709 = vpop.permute.xlu0 %5708
          %5710 = vrot.lane.b32.xlu0 %v2495, 104
          %v5711 = vpop.permute.xlu0 %5710
          %5712 = vrot.lane.b32.xlu0 %v2500, 104
          %v5713 = vpop.permute.xlu0 %5712
          %5714 = vrot.lane.b32.xlu0 %v2505, 104
          %v5715 = vpop.permute.xlu0 %5714
          %5716 = vrot.lane.b32.xlu0 %v2510, 104
          %v5717 = vpop.permute.xlu0 %5716
          %5718 = vrot.lane.b32.xlu0 %v2515, 104
          %v5719 = vpop.permute.xlu0 %5718
          %5720 = vrot.lane.b32.xlu0 %v2520, 104
          %v5721 = vpop.permute.xlu0 %5720
          %5722 = vrot.lane.b32.xlu0 %v2525, 104
          %v5723 = vpop.permute.xlu0 %5722
          %5724 = vrot.lane.b32.xlu0 %v2530, 104
          %v5725 = vpop.permute.xlu0 %5724
          %5726 = vrot.lane.b32.xlu0 %v2535, 104
          %v5727 = vpop.permute.xlu0 %5726
          %5728 = vrot.lane.b32.xlu0 %v2540, 104
          %v5729 = vpop.permute.xlu0 %5728
          %5730 = vrot.lane.b32.xlu0 %v2545, 104
          %v5731 = vpop.permute.xlu0 %5730
          %5732 = vrot.lane.b32.xlu0 %v2550, 104
          %v5733 = vpop.permute.xlu0 %5732
          %5734 = vrot.lane.b32.xlu0 %v2555, 104
          %v5735 = vpop.permute.xlu0 %5734
          %5736 = vrot.lane.b32.xlu0 %v2560, 104
          %v5737 = vpop.permute.xlu0 %5736
          %5738 = vrot.lane.b32.xlu0 %v2480, 72
          %v5739 = vpop.permute.xlu0 %5738
          %5740 = vrot.lane.b32.xlu0 %v2485, 72
          %v5741 = vpop.permute.xlu0 %5740
          %5742 = vrot.lane.b32.xlu0 %v2490, 72
          %v5743 = vpop.permute.xlu0 %5742
          %5744 = vrot.lane.b32.xlu0 %v2495, 72
          %v5745 = vpop.permute.xlu0 %5744
          %5746 = vrot.lane.b32.xlu0 %v2500, 72
          %v5747 = vpop.permute.xlu0 %5746
          %5748 = vrot.lane.b32.xlu0 %v2505, 72
          %v5749 = vpop.permute.xlu0 %5748
          %5750 = vrot.lane.b32.xlu0 %v2510, 72
          %v5751 = vpop.permute.xlu0 %5750
          %5752 = vrot.lane.b32.xlu0 %v2515, 72
          %v5753 = vpop.permute.xlu0 %5752
          %5754 = vrot.lane.b32.xlu0 %v2520, 72
          %v5755 = vpop.permute.xlu0 %5754
          %5756 = vrot.lane.b32.xlu0 %v2525, 72
          %v5757 = vpop.permute.xlu0 %5756
          %5758 = vrot.lane.b32.xlu0 %v2530, 72
          %v5759 = vpop.permute.xlu0 %5758
          %5760 = vrot.lane.b32.xlu0 %v2535, 72
          %v5761 = vpop.permute.xlu0 %5760
          %5762 = vrot.lane.b32.xlu0 %v2540, 72
          %v5763 = vpop.permute.xlu0 %5762
          %5764 = vrot.lane.b32.xlu0 %v2545, 72
          %v5765 = vpop.permute.xlu0 %5764
          %5766 = vrot.lane.b32.xlu0 %v2550, 72
          %v5767 = vpop.permute.xlu0 %5766
          %5768 = vrot.lane.b32.xlu0 %v2555, 72
          %v5769 = vpop.permute.xlu0 %5768
          %5770 = vrot.lane.b32.xlu0 %v2560, 72
          %v5771 = vpop.permute.xlu0 %5770
          %v5772 = vsel %vm2619, %v5705, 0
          %v5774 = vsel %vm2619, %v5707, 0
          %v5776 = vsel %vm2619, %v5709, 0
          %v5778 = vsel %vm2619, %v5711, 0
          %v5780 = vsel %vm2619, %v5713, 0
          %v5782 = vsel %vm2619, %v5715, 0
          %v5784 = vsel %vm2619, %v5717, 0
          %v5786 = vsel %vm2619, %v5719, 0
          %v5788 = vsel %vm2619, %v5721, 0
          %v5790 = vsel %vm2619, %v5723, 0
          %v5792 = vsel %vm2619, %v5725, 0
          %v5794 = vsel %vm2619, %v5727, 0
          %v5796 = vsel %vm2619, %v5729, 0
          %v5798 = vsel %vm2619, %v5731, 0
          %v5800 = vsel %vm2619, %v5733, 0
          %v5802 = vsel %vm2619, %v5735, 0
          %v5804 = vsel %vm2619, %v5737, 0
          %v5806 = vsel %vm2619, %v5739, 0
          %v5808 = vsel %vm2619, %v5741, 0
          %v5810 = vsel %vm2619, %v5743, 0
          %v5812 = vsel %vm2619, %v5745, 0
          %v5814 = vsel %vm2619, %v5747, 0
          %v5816 = vsel %vm2619, %v5749, 0
          %v5818 = vsel %vm2619, %v5751, 0
          %v5820 = vsel %vm2619, %v5753, 0
          %v5822 = vsel %vm2619, %v5755, 0
          %v5824 = vsel %vm2619, %v5757, 0
          %v5826 = vsel %vm2619, %v5759, 0
          %v5828 = vsel %vm2619, %v5761, 0
          %v5830 = vsel %vm2619, %v5763, 0
          %v5832 = vsel %vm2619, %v5765, 0
          %v5834 = vsel %vm2619, %v5767, 0
          %v5836 = vsel %vm2619, %v5769, 0
          %v5838 = vsel %vm2619, %v5771, 0
          %5840 = vmatprep.subr.mxu0 0.0
          %5841 = vmatpush1.xpose.msra.mxu0 %v5836
          %5842 = vmatprep.subr.mxu0 0.0
          %5843 = vmatpush1.xpose.msra.mxu0 %v5834
          %5844 = vmatprep.subr.mxu0 0.0
          %5845 = vmatpush1.xpose.msra.mxu0 %v5832
          %5846 = vmatprep.subr.mxu0 0.0
          %5847 = vmatpush1.xpose.msra.mxu0 %v5830
          %5848 = vmatprep.subr.mxu0 0.0
          %5849 = vmatpush1.xpose.msra.mxu0 %v5828
          %5850 = vmatprep.subr.mxu0 0.0
          %5851 = vmatpush1.xpose.msra.mxu0 %v5826
          %5852 = vmatprep.subr.mxu0 0.0
          %5853 = vmatpush1.xpose.msra.mxu0 %v5824
          %5854 = vmatprep.subr.mxu0 0.0
          %5855 = vmatpush1.xpose.msra.mxu0 %v5822
          %5856 = vmatprep.subr.mxu0 0.0
          %5857 = vmatpush1.xpose.msra.mxu0 %v5820
          %5858 = vmatprep.subr.mxu0 0.0
          %5859 = vmatpush1.xpose.msra.mxu0 %v5818
          %5860 = vmatprep.subr.mxu0 0.0
          %5861 = vmatpush1.xpose.msra.mxu0 %v5816
          %5862 = vmatprep.subr.mxu0 0.0
          %5863 = vmatpush1.xpose.msra.mxu0 %v5814
          %5864 = vmatprep.subr.mxu0 0.0
          %5865 = vmatpush1.xpose.msra.mxu0 %v5812
          %5866 = vmatprep.subr.mxu0 0.0
          %5867 = vmatpush1.xpose.msra.mxu0 %v5810
          %5868 = vmatprep.subr.mxu0 0.0
          %5869 = vmatpush1.xpose.msra.mxu0 %v5808
          %5870 = vmatprep.subr.mxu0 0.0
          %5871 = vmatpush1.xpose.msra.mxu0 %v5806
          %5872 = vmatprep.subr.mxu0 0.0
          %5873 = vmatpush2.xpose.msra.mxu0 0.0
          %5874 = vmatprep.subr.mxu0 0.0
          %5875 = vmatpush2.xpose.msra.mxu0 0.0
          %5876 = vmatprep.subr.mxu0 0.0
          %5877 = vmatpush2.xpose.msra.mxu0 0.0
          %5878 = vmatprep.subr.mxu0 0.0
          %5879 = vmatpush2.xpose.msra.mxu0 0.0
          %5880 = vmatprep.subr.mxu0 0.0
          %5881 = vmatpush2.xpose.msra.mxu0 0.0
          %5882 = vmatprep.subr.mxu0 0.0
          %5883 = vmatpush2.xpose.msra.mxu0 0.0
          %5884 = vmatprep.subr.mxu0 0.0
          %5885 = vmatpush2.xpose.msra.mxu0 0.0
          %5886 = vmatprep.subr.mxu0 0.0
          %5887 = vmatpush2.xpose.msra.mxu0 0.0
          %5888 = vmatprep.subr.mxu0 0.0
          %5889 = vmatpush2.xpose.msra.mxu0 0.0
          %5890 = vmatprep.subr.mxu0 0.0
          %5891 = vmatpush2.xpose.msra.mxu0 0.0
          %5892 = vmatprep.subr.mxu0 0.0
          %5893 = vmatpush2.xpose.msra.mxu0 0.0
          %5894 = vmatprep.subr.mxu0 0.0
          %5895 = vmatpush2.xpose.msra.mxu0 0.0
          %5896 = vmatprep.subr.mxu0 0.0
          %5897 = vmatpush2.xpose.msra.mxu0 0.0
          %5898 = vmatprep.subr.mxu0 0.0
          %5899 = vmatpush2.xpose.msra.mxu0 0.0
          %5900 = vmatprep.subr.mxu0 0.0
          %5901 = vmatpush2.xpose.msra.mxu0 0.0
          %5902 = vmatprep.subr.mxu0 0.0
          %5903 = vmatpush2.xpose.msra.mxu0 %v5838
          %5904 = vmatprep.mubr.f32.mxu0 0.0
          %5905 = vmatmul.mubr.f32.gmra.mxu0 %v5772
          %v5906 = vpop.f32.mrf.mxu0
          %v5907 = vadd.f32 %v2025, %v5906
          %v5908 = vpop.f32.mrf.mxu0
          %v5909 = vadd.f32 %v2026, %v5908
          %5910 = vmatprep.mubr.f32.mxu0 0.0
          %5911 = vmatmul.mubr.f32.gmra.mxu0 %v5774
          %v5912 = vpop.f32.mrf.mxu0
          %v5913 = vadd.f32 %v2027, %v5912
          %v5914 = vpop.f32.mrf.mxu0
          %v5915 = vadd.f32 %v2028, %v5914
          %5916 = vmatprep.mubr.f32.mxu0 0.0
          %5917 = vmatmul.mubr.f32.gmra.mxu0 %v5776
          %v5918 = vpop.f32.mrf.mxu0
          %v5919 = vadd.f32 %v2029, %v5918
          %v5920 = vpop.f32.mrf.mxu0
          %v5921 = vadd.f32 %v2030, %v5920
          %5922 = vmatprep.mubr.f32.mxu0 0.0
          %5923 = vmatmul.mubr.f32.gmra.mxu0 %v5778
          %v5924 = vpop.f32.mrf.mxu0
          %v5925 = vadd.f32 %v2031, %v5924
          %v5926 = vpop.f32.mrf.mxu0
          %v5927 = vadd.f32 %v2032, %v5926
          %5928 = vmatprep.mubr.f32.mxu0 0.0
          %5929 = vmatmul.mubr.f32.gmra.mxu0 %v5780
          %v5930 = vpop.f32.mrf.mxu0
          %v5931 = vadd.f32 %v2033, %v5930
          %v5932 = vpop.f32.mrf.mxu0
          %v5933 = vadd.f32 %v2034, %v5932
          %5934 = vmatprep.mubr.f32.mxu0 0.0
          %5935 = vmatmul.mubr.f32.gmra.mxu0 %v5782
          %v5936 = vpop.f32.mrf.mxu0
          %v5937 = vadd.f32 %v2035, %v5936
          %v5938 = vpop.f32.mrf.mxu0
          %v5939 = vadd.f32 %v2036, %v5938
          %5940 = vmatprep.mubr.f32.mxu0 0.0
          %5941 = vmatmul.mubr.f32.gmra.mxu0 %v5784
          %v5942 = vpop.f32.mrf.mxu0
          %v5943 = vadd.f32 %v2037, %v5942
          %v5944 = vpop.f32.mrf.mxu0
          %v5945 = vadd.f32 %v2038, %v5944
          %5946 = vmatprep.mubr.f32.mxu0 0.0
          %5947 = vmatmul.mubr.f32.gmra.mxu0 %v5786
          %v5948 = vpop.f32.mrf.mxu0
          %v5949 = vadd.f32 %v2039, %v5948
          %v5950 = vpop.f32.mrf.mxu0
          %v5951 = vadd.f32 %v2040, %v5950
          %5952 = vmatprep.mubr.f32.mxu0 0.0
          %5953 = vmatmul.mubr.f32.gmra.mxu0 %v5788
          %v5954 = vpop.f32.mrf.mxu0
          %v5955 = vadd.f32 %v2041, %v5954
          %v5956 = vpop.f32.mrf.mxu0
          %v5957 = vadd.f32 %v2042, %v5956
          %5958 = vmatprep.mubr.f32.mxu0 0.0
          %5959 = vmatmul.mubr.f32.gmra.mxu0 %v5790
          %v5960 = vpop.f32.mrf.mxu0
          %v5961 = vadd.f32 %v2043, %v5960
          %v5962 = vpop.f32.mrf.mxu0
          %v5963 = vadd.f32 %v2044, %v5962
          %5964 = vmatprep.mubr.f32.mxu0 0.0
          %5965 = vmatmul.mubr.f32.gmra.mxu0 %v5792
          %v5966 = vpop.f32.mrf.mxu0
          %v5967 = vadd.f32 %v2045, %v5966
          %v5968 = vpop.f32.mrf.mxu0
          %v5969 = vadd.f32 %v2046, %v5968
          %5970 = vmatprep.mubr.f32.mxu0 0.0
          %5971 = vmatmul.mubr.f32.gmra.mxu0 %v5794
          %v5972 = vpop.f32.mrf.mxu0
          %v5973 = vadd.f32 %v2047, %v5972
          %v5974 = vpop.f32.mrf.mxu0
          %v5975 = vadd.f32 %v2048, %v5974
          %5976 = vmatprep.mubr.f32.mxu0 0.0
          %5977 = vmatmul.mubr.f32.gmra.mxu0 %v5796
          %v5978 = vpop.f32.mrf.mxu0
          %v5979 = vadd.f32 %v2049, %v5978
          %v5980 = vpop.f32.mrf.mxu0
          %v5981 = vadd.f32 %v2050, %v5980
          %5982 = vmatprep.mubr.f32.mxu0 0.0
          %5983 = vmatmul.mubr.f32.gmra.mxu0 %v5798
          %v5984 = vpop.f32.mrf.mxu0
          %v5985 = vadd.f32 %v2051, %v5984
          %v5986 = vpop.f32.mrf.mxu0
          %v5987 = vadd.f32 %v2052, %v5986
          %5988 = vmatprep.mubr.f32.mxu0 0.0
          %5989 = vmatmul.mubr.f32.gmra.mxu0 %v5800
          %v5990 = vpop.f32.mrf.mxu0
          %v5991 = vadd.f32 %v2053, %v5990
          %v5992 = vpop.f32.mrf.mxu0
          %v5993 = vadd.f32 %v2054, %v5992
          %5994 = vmatprep.mubr.f32.mxu0 0.0
          %5995 = vmatmul.mubr.f32.gmra.mxu0 %v5802
          %v5996 = vpop.f32.mrf.mxu0
          %v5997 = vadd.f32 %v2055, %v5996
          %v5998 = vpop.f32.mrf.mxu0
          %v5999 = vadd.f32 %v2056, %v5998
          %6000 = vmatprep.mubr.f32.mxu0 0.0
          %6001 = vmatmul.mubr.f32.gmra.mxu0 %v5804
          %v6002 = vpop.f32.mrf.mxu0
          %v6003 = vadd.f32 %v2057, %v6002
          %v6004 = vpop.f32.mrf.mxu0
          %v6005 = vadd.f32 %v2058, %v6004
          %6006 = vdwg.mxu0
          %v6007 = vsel %vm2619, %v5909, -inf
          %v6008 = vmax.f32 %v5907, %v6007
          %6009 = vmax.xlane.f32.xlu0 %v6008
          %v6010 = vpop.xlane.xlu0 %6009
          %v6011 = vsel %vm2619, %v5915, -inf
          %v6012 = vmax.f32 %v5913, %v6011
          %6013 = vmax.xlane.f32.xlu0 %v6012
          %v6014 = vpop.xlane.xlu0 %6013
          %v6015 = vsel %vm2619, %v5921, -inf
          %v6016 = vmax.f32 %v5919, %v6015
          %6017 = vmax.xlane.f32.xlu0 %v6016
          %v6018 = vpop.xlane.xlu0 %6017
          %v6019 = vsel %vm2619, %v5927, -inf
          %v6020 = vmax.f32 %v5925, %v6019
          %6021 = vmax.xlane.f32.xlu0 %v6020
          %v6022 = vpop.xlane.xlu0 %6021
          %v6023 = vsel %vm2619, %v5933, -inf
          %v6024 = vmax.f32 %v5931, %v6023
          %6025 = vmax.xlane.f32.xlu0 %v6024
          %v6026 = vpop.xlane.xlu0 %6025
          %v6027 = vsel %vm2619, %v5939, -inf
          %v6028 = vmax.f32 %v5937, %v6027
          %6029 = vmax.xlane.f32.xlu0 %v6028
          %v6030 = vpop.xlane.xlu0 %6029
          %v6031 = vsel %vm2619, %v5945, -inf
          %v6032 = vmax.f32 %v5943, %v6031
          %6033 = vmax.xlane.f32.xlu0 %v6032
          %v6034 = vpop.xlane.xlu0 %6033
          %v6035 = vsel %vm2619, %v5951, -inf
          %v6036 = vmax.f32 %v5949, %v6035
          %6037 = vmax.xlane.f32.xlu0 %v6036
          %v6038 = vpop.xlane.xlu0 %6037
          %v6039 = vsel %vm2619, %v5957, -inf
          %v6040 = vmax.f32 %v5955, %v6039
          %6041 = vmax.xlane.f32.xlu0 %v6040
          %v6042 = vpop.xlane.xlu0 %6041
          %v6043 = vsel %vm2619, %v5963, -inf
          %v6044 = vmax.f32 %v5961, %v6043
          %6045 = vmax.xlane.f32.xlu0 %v6044
          %v6046 = vpop.xlane.xlu0 %6045
          %v6047 = vsel %vm2619, %v5969, -inf
          %v6048 = vmax.f32 %v5967, %v6047
          %6049 = vmax.xlane.f32.xlu0 %v6048
          %v6050 = vpop.xlane.xlu0 %6049
          %v6051 = vsel %vm2619, %v5975, -inf
          %v6052 = vmax.f32 %v5973, %v6051
          %6053 = vmax.xlane.f32.xlu0 %v6052
          %v6054 = vpop.xlane.xlu0 %6053
          %v6055 = vsel %vm2619, %v5981, -inf
          %v6056 = vmax.f32 %v5979, %v6055
          %6057 = vmax.xlane.f32.xlu0 %v6056
          %v6058 = vpop.xlane.xlu0 %6057
          %v6059 = vsel %vm2619, %v5987, -inf
          %v6060 = vmax.f32 %v5985, %v6059
          %6061 = vmax.xlane.f32.xlu0 %v6060
          %v6062 = vpop.xlane.xlu0 %6061
          %v6063 = vsel %vm2619, %v5993, -inf
          %v6064 = vmax.f32 %v5991, %v6063
          %6065 = vmax.xlane.f32.xlu0 %v6064
          %v6066 = vpop.xlane.xlu0 %6065
          %v6067 = vsel %vm2619, %v5999, -inf
          %v6068 = vmax.f32 %v5997, %v6067
          %6069 = vmax.xlane.f32.xlu0 %v6068
          %v6070 = vpop.xlane.xlu0 %6069
          %v6071 = vsel %vm2619, %v6005, -inf
          %v6072 = vmax.f32 %v6003, %v6071
          %6073 = vmax.xlane.f32.xlu0 %v6072
          %v6074 = vpop.xlane.xlu0 %6073
          %v6075 = vsub.f32 %v5907, %v6010
          %v6076 = vsub.f32 %v5909, %v6010
          %v6077 = vsub.f32 %v5913, %v6014
          %v6078 = vsub.f32 %v5915, %v6014
          %v6079 = vsub.f32 %v5919, %v6018
          %v6080 = vsub.f32 %v5921, %v6018
          %v6081 = vsub.f32 %v5925, %v6022
          %v6082 = vsub.f32 %v5927, %v6022
          %v6083 = vsub.f32 %v5931, %v6026
          %v6084 = vsub.f32 %v5933, %v6026
          %v6085 = vsub.f32 %v5937, %v6030
          %v6086 = vsub.f32 %v5939, %v6030
          %v6087 = vsub.f32 %v5943, %v6034
          %v6088 = vsub.f32 %v5945, %v6034
          %v6089 = vsub.f32 %v5949, %v6038
          %v6090 = vsub.f32 %v5951, %v6038
          %v6091 = vsub.f32 %v5955, %v6042
          %v6092 = vsub.f32 %v5957, %v6042
          %v6093 = vsub.f32 %v5961, %v6046
          %v6094 = vsub.f32 %v5963, %v6046
          %v6095 = vsub.f32 %v5967, %v6050
          %v6096 = vsub.f32 %v5969, %v6050
          %v6097 = vsub.f32 %v5973, %v6054
          %v6098 = vsub.f32 %v5975, %v6054
          %v6099 = vsub.f32 %v5979, %v6058
          %v6100 = vsub.f32 %v5981, %v6058
          %v6101 = vsub.f32 %v5985, %v6062
          %v6102 = vsub.f32 %v5987, %v6062
          %v6103 = vsub.f32 %v5991, %v6066
          %v6104 = vsub.f32 %v5993, %v6066
          %v6105 = vsub.f32 %v5997, %v6070
          %v6106 = vsub.f32 %v5999, %v6070
          %v6107 = vsub.f32 %v6003, %v6074
          %v6108 = vsub.f32 %v6005, %v6074
          %v6109 = vmul.f32 %v6075, 1.442695
          %v6110 = vpow.pop %v6109
          %v6111 = vmul.f32 %v6076, 1.442695
          %v6112 = vpow.pop %v6111
          %v6113 = vmul.f32 %v6077, 1.442695
          %v6114 = vpow.pop %v6113
          %v6115 = vmul.f32 %v6078, 1.442695
          %v6116 = vpow.pop %v6115
          %v6117 = vmul.f32 %v6079, 1.442695
          %v6118 = vpow.pop %v6117
          %v6119 = vmul.f32 %v6080, 1.442695
          %v6120 = vpow.pop %v6119
          %v6121 = vmul.f32 %v6081, 1.442695
          %v6122 = vpow.pop %v6121
          %v6123 = vmul.f32 %v6082, 1.442695
          %v6124 = vpow.pop %v6123
          %v6125 = vmul.f32 %v6083, 1.442695
          %v6126 = vpow.pop %v6125
          %v6127 = vmul.f32 %v6084, 1.442695
          %v6128 = vpow.pop %v6127
          %v6129 = vmul.f32 %v6085, 1.442695
          %v6130 = vpow.pop %v6129
          %v6131 = vmul.f32 %v6086, 1.442695
          %v6132 = vpow.pop %v6131
          %v6133 = vmul.f32 %v6087, 1.442695
          %v6134 = vpow.pop %v6133
          %v6135 = vmul.f32 %v6088, 1.442695
          %v6136 = vpow.pop %v6135
          %v6137 = vmul.f32 %v6089, 1.442695
          %v6138 = vpow.pop %v6137
          %v6139 = vmul.f32 %v6090, 1.442695
          %v6140 = vpow.pop %v6139
          %v6141 = vmul.f32 %v6091, 1.442695
          %v6142 = vpow.pop %v6141
          %v6143 = vmul.f32 %v6092, 1.442695
          %v6144 = vpow.pop %v6143
          %v6145 = vmul.f32 %v6093, 1.442695
          %v6146 = vpow.pop %v6145
          %v6147 = vmul.f32 %v6094, 1.442695
          %v6148 = vpow.pop %v6147
          %v6149 = vmul.f32 %v6095, 1.442695
          %v6150 = vpow.pop %v6149
          %v6151 = vmul.f32 %v6096, 1.442695
          %v6152 = vpow.pop %v6151
          %v6153 = vmul.f32 %v6097, 1.442695
          %v6154 = vpow.pop %v6153
          %v6155 = vmul.f32 %v6098, 1.442695
          %v6156 = vpow.pop %v6155
          %v6157 = vmul.f32 %v6099, 1.442695
          %v6158 = vpow.pop %v6157
          %v6159 = vmul.f32 %v6100, 1.442695
          %v6160 = vpow.pop %v6159
          %v6161 = vmul.f32 %v6101, 1.442695
          %v6162 = vpow.pop %v6161
          %v6163 = vmul.f32 %v6102, 1.442695
          %v6164 = vpow.pop %v6163
          %v6165 = vmul.f32 %v6103, 1.442695
          %v6166 = vpow.pop %v6165
          %v6167 = vmul.f32 %v6104, 1.442695
          %v6168 = vpow.pop %v6167
          %v6169 = vmul.f32 %v6105, 1.442695
          %v6170 = vpow.pop %v6169
          %v6171 = vmul.f32 %v6106, 1.442695
          %v6172 = vpow.pop %v6171
          %v6173 = vmul.f32 %v6107, 1.442695
          %v6174 = vpow.pop %v6173
          %v6175 = vmul.f32 %v6108, 1.442695
          %v6176 = vpow.pop %v6175
          %v6177 = vsel %vm2619, %v6112, 0.0
          %v6178 = vadd.f32 %v6110, %v6177
          %6179 = vadd.xlane.f32.xlu0 %v6178
          %v6180 = vpop.xlane.xlu0 %6179
          %v6181 = vsel %vm2619, %v6116, 0.0
          %v6182 = vadd.f32 %v6114, %v6181
          %6183 = vadd.xlane.f32.xlu0 %v6182
          %v6184 = vpop.xlane.xlu0 %6183
          %v6185 = vsel %vm2619, %v6120, 0.0
          %v6186 = vadd.f32 %v6118, %v6185
          %6187 = vadd.xlane.f32.xlu0 %v6186
          %v6188 = vpop.xlane.xlu0 %6187
          %v6189 = vsel %vm2619, %v6124, 0.0
          %v6190 = vadd.f32 %v6122, %v6189
          %6191 = vadd.xlane.f32.xlu0 %v6190
          %v6192 = vpop.xlane.xlu0 %6191
          %v6193 = vsel %vm2619, %v6128, 0.0
          %v6194 = vadd.f32 %v6126, %v6193
          %6195 = vadd.xlane.f32.xlu0 %v6194
          %v6196 = vpop.xlane.xlu0 %6195
          %v6197 = vsel %vm2619, %v6132, 0.0
          %v6198 = vadd.f32 %v6130, %v6197
          %6199 = vadd.xlane.f32.xlu0 %v6198
          %v6200 = vpop.xlane.xlu0 %6199
          %v6201 = vsel %vm2619, %v6136, 0.0
          %v6202 = vadd.f32 %v6134, %v6201
          %6203 = vadd.xlane.f32.xlu0 %v6202
          %v6204 = vpop.xlane.xlu0 %6203
          %v6205 = vsel %vm2619, %v6140, 0.0
          %v6206 = vadd.f32 %v6138, %v6205
          %6207 = vadd.xlane.f32.xlu0 %v6206
          %v6208 = vpop.xlane.xlu0 %6207
          %v6209 = vsel %vm2619, %v6144, 0.0
          %v6210 = vadd.f32 %v6142, %v6209
          %6211 = vadd.xlane.f32.xlu0 %v6210
          %v6212 = vpop.xlane.xlu0 %6211
          %v6213 = vsel %vm2619, %v6148, 0.0
          %v6214 = vadd.f32 %v6146, %v6213
          %6215 = vadd.xlane.f32.xlu0 %v6214
          %v6216 = vpop.xlane.xlu0 %6215
          %v6217 = vsel %vm2619, %v6152, 0.0
          %v6218 = vadd.f32 %v6150, %v6217
          %6219 = vadd.xlane.f32.xlu0 %v6218
          %v6220 = vpop.xlane.xlu0 %6219
          %v6221 = vsel %vm2619, %v6156, 0.0
          %v6222 = vadd.f32 %v6154, %v6221
          %6223 = vadd.xlane.f32.xlu0 %v6222
          %v6224 = vpop.xlane.xlu0 %6223
          %v6225 = vsel %vm2619, %v6160, 0.0
          %v6226 = vadd.f32 %v6158, %v6225
          %6227 = vadd.xlane.f32.xlu0 %v6226
          %v6228 = vpop.xlane.xlu0 %6227
          %v6229 = vsel %vm2619, %v6164, 0.0
          %v6230 = vadd.f32 %v6162, %v6229
          %6231 = vadd.xlane.f32.xlu0 %v6230
          %v6232 = vpop.xlane.xlu0 %6231
          %v6233 = vsel %vm2619, %v6168, 0.0
          %v6234 = vadd.f32 %v6166, %v6233
          %6235 = vadd.xlane.f32.xlu0 %v6234
          %v6236 = vpop.xlane.xlu0 %6235
          %v6237 = vsel %vm2619, %v6172, 0.0
          %v6238 = vadd.f32 %v6170, %v6237
          %6239 = vadd.xlane.f32.xlu0 %v6238
          %v6240 = vpop.xlane.xlu0 %6239
          %v6241 = vsel %vm2619, %v6176, 0.0
          %v6242 = vadd.f32 %v6174, %v6241
          %6243 = vadd.xlane.f32.xlu0 %v6242
          %v6244 = vpop.xlane.xlu0 %6243
          %v6245 = vrcp.pop %v6180
          %v6246 = vrcp.pop %v6184
          %v6247 = vrcp.pop %v6188
          %v6248 = vrcp.pop %v6192
          %v6249 = vrcp.pop %v6196
          %v6250 = vrcp.pop %v6200
          %v6251 = vrcp.pop %v6204
          %v6252 = vrcp.pop %v6208
          %v6253 = vrcp.pop %v6212
          %v6254 = vrcp.pop %v6216
          %v6255 = vrcp.pop %v6220
          %v6256 = vrcp.pop %v6224
          %v6257 = vrcp.pop %v6228
          %v6258 = vrcp.pop %v6232
          %v6259 = vrcp.pop %v6236
          %v6260 = vrcp.pop %v6240
          %v6261 = vrcp.pop %v6244
          %v6262 = vmul.f32 %v6110, %v6245
          %v6263 = vmul.f32 %v6112, %v6245
          %v6264 = vmul.f32 %v6114, %v6246
          %v6265 = vmul.f32 %v6116, %v6246
          %v6266 = vmul.f32 %v6118, %v6247
          %v6267 = vmul.f32 %v6120, %v6247
          %v6268 = vmul.f32 %v6122, %v6248
          %v6269 = vmul.f32 %v6124, %v6248
          %v6270 = vmul.f32 %v6126, %v6249
          %v6271 = vmul.f32 %v6128, %v6249
          %v6272 = vmul.f32 %v6130, %v6250
          %v6273 = vmul.f32 %v6132, %v6250
          %v6274 = vmul.f32 %v6134, %v6251
          %v6275 = vmul.f32 %v6136, %v6251
          %v6276 = vmul.f32 %v6138, %v6252
          %v6277 = vmul.f32 %v6140, %v6252
          %v6278 = vmul.f32 %v6142, %v6253
          %v6279 = vmul.f32 %v6144, %v6253
          %v6280 = vmul.f32 %v6146, %v6254
          %v6281 = vmul.f32 %v6148, %v6254
          %v6282 = vmul.f32 %v6150, %v6255
          %v6283 = vmul.f32 %v6152, %v6255
          %v6284 = vmul.f32 %v6154, %v6256
          %v6285 = vmul.f32 %v6156, %v6256
          %v6286 = vmul.f32 %v6158, %v6257
          %v6287 = vmul.f32 %v6160, %v6257
          %v6288 = vmul.f32 %v6162, %v6258
          %v6289 = vmul.f32 %v6164, %v6258
          %v6290 = vmul.f32 %v6166, %v6259
          %v6291 = vmul.f32 %v6168, %v6259
          %v6292 = vmul.f32 %v6170, %v6260
          %v6293 = vmul.f32 %v6172, %v6260
          %v6294 = vmul.f32 %v6174, %v6261
          %v6295 = vmul.f32 %v6176, %v6261
          %6296 = vrot.lane.b32.xlu0 %v2480, 40
          %v6297 = vpop.permute.xlu0 %6296
          %6298 = vrot.lane.b32.xlu0 %v2485, 40
          %v6299 = vpop.permute.xlu0 %6298
          %6300 = vrot.lane.b32.xlu0 %v2490, 40
          %v6301 = vpop.permute.xlu0 %6300
          %6302 = vrot.lane.b32.xlu0 %v2495, 40
          %v6303 = vpop.permute.xlu0 %6302
          %6304 = vrot.lane.b32.xlu0 %v2500, 40
          %v6305 = vpop.permute.xlu0 %6304
          %6306 = vrot.lane.b32.xlu0 %v2505, 40
          %v6307 = vpop.permute.xlu0 %6306
          %6308 = vrot.lane.b32.xlu0 %v2510, 40
          %v6309 = vpop.permute.xlu0 %6308
          %6310 = vrot.lane.b32.xlu0 %v2515, 40
          %v6311 = vpop.permute.xlu0 %6310
          %6312 = vrot.lane.b32.xlu0 %v2520, 40
          %v6313 = vpop.permute.xlu0 %6312
          %6314 = vrot.lane.b32.xlu0 %v2525, 40
          %v6315 = vpop.permute.xlu0 %6314
          %6316 = vrot.lane.b32.xlu0 %v2530, 40
          %v6317 = vpop.permute.xlu0 %6316
          %6318 = vrot.lane.b32.xlu0 %v2535, 40
          %v6319 = vpop.permute.xlu0 %6318
          %6320 = vrot.lane.b32.xlu0 %v2540, 40
          %v6321 = vpop.permute.xlu0 %6320
          %6322 = vrot.lane.b32.xlu0 %v2545, 40
          %v6323 = vpop.permute.xlu0 %6322
          %6324 = vrot.lane.b32.xlu0 %v2550, 40
          %v6325 = vpop.permute.xlu0 %6324
          %6326 = vrot.lane.b32.xlu0 %v2555, 40
          %v6327 = vpop.permute.xlu0 %6326
          %6328 = vrot.lane.b32.xlu0 %v2560, 40
          %v6329 = vpop.permute.xlu0 %6328
          %v6348 = vsel %vm2619, %v6263, 0
          %v6351 = vsel %vm2619, %v6265, 0
          %v6354 = vsel %vm2619, %v6267, 0
          %v6357 = vsel %vm2619, %v6269, 0
          %v6360 = vsel %vm2619, %v6271, 0
          %v6363 = vsel %vm2619, %v6273, 0
          %v6366 = vsel %vm2619, %v6275, 0
          %v6369 = vsel %vm2619, %v6277, 0
          %v6372 = vsel %vm2619, %v6279, 0
          %v6375 = vsel %vm2619, %v6281, 0
          %v6378 = vsel %vm2619, %v6283, 0
          %v6381 = vsel %vm2619, %v6285, 0
          %v6384 = vsel %vm2619, %v6287, 0
          %v6387 = vsel %vm2619, %v6289, 0
          %v6390 = vsel %vm2619, %v6291, 0
          %v6393 = vsel %vm2619, %v6293, 0
          %v6396 = vsel %vm2619, %v6295, 0
          %6398 = vmatprep.subr.mxu0 0.0
          %6399 = vmatpush1.msra.mxu0 %v6327
          %6400 = vmatprep.subr.mxu0 0.0
          %6401 = vmatpush1.msra.mxu0 %v6325
          %6402 = vmatprep.subr.mxu0 0.0
          %6403 = vmatpush1.msra.mxu0 %v6323
          %6404 = vmatprep.subr.mxu0 0.0
          %6405 = vmatpush1.msra.mxu0 %v6321
          %6406 = vmatprep.subr.mxu0 0.0
          %6407 = vmatpush1.msra.mxu0 %v6319
          %6408 = vmatprep.subr.mxu0 0.0
          %6409 = vmatpush1.msra.mxu0 %v6317
          %6410 = vmatprep.subr.mxu0 0.0
          %6411 = vmatpush1.msra.mxu0 %v6315
          %6412 = vmatprep.subr.mxu0 0.0
          %6413 = vmatpush1.msra.mxu0 %v6313
          %6414 = vmatprep.subr.mxu0 0.0
          %6415 = vmatpush1.msra.mxu0 %v6311
          %6416 = vmatprep.subr.mxu0 0.0
          %6417 = vmatpush1.msra.mxu0 %v6309
          %6418 = vmatprep.subr.mxu0 0.0
          %6419 = vmatpush1.msra.mxu0 %v6307
          %6420 = vmatprep.subr.mxu0 0.0
          %6421 = vmatpush1.msra.mxu0 %v6305
          %6422 = vmatprep.subr.mxu0 0.0
          %6423 = vmatpush1.msra.mxu0 %v6303
          %6424 = vmatprep.subr.mxu0 0.0
          %6425 = vmatpush1.msra.mxu0 %v6301
          %6426 = vmatprep.subr.mxu0 0.0
          %6427 = vmatpush1.msra.mxu0 %v6299
          %6428 = vmatprep.subr.mxu0 0.0
          %6429 = vmatpush1.msra.mxu0 %v6297
          %6430 = vmatprep.subr.mxu0 0.0
          %6431 = vmatpush2.msra.mxu0 0.0
          %6432 = vmatprep.subr.mxu0 0.0
          %6433 = vmatpush2.msra.mxu0 0.0
          %6434 = vmatprep.subr.mxu0 0.0
          %6435 = vmatpush2.msra.mxu0 0.0
          %6436 = vmatprep.subr.mxu0 0.0
          %6437 = vmatpush2.msra.mxu0 0.0
          %6438 = vmatprep.subr.mxu0 0.0
          %6439 = vmatpush2.msra.mxu0 0.0
          %6440 = vmatprep.subr.mxu0 0.0
          %6441 = vmatpush2.msra.mxu0 0.0
          %6442 = vmatprep.subr.mxu0 0.0
          %6443 = vmatpush2.msra.mxu0 0.0
          %6444 = vmatprep.subr.mxu0 0.0
          %6445 = vmatpush2.msra.mxu0 0.0
          %6446 = vmatprep.subr.mxu0 0.0
          %6447 = vmatpush2.msra.mxu0 0.0
          %6448 = vmatprep.subr.mxu0 0.0
          %6449 = vmatpush2.msra.mxu0 0.0
          %6450 = vmatprep.subr.mxu0 0.0
          %6451 = vmatpush2.msra.mxu0 0.0
          %6452 = vmatprep.subr.mxu0 0.0
          %6453 = vmatpush2.msra.mxu0 0.0
          %6454 = vmatprep.subr.mxu0 0.0
          %6455 = vmatpush2.msra.mxu0 0.0
          %6456 = vmatprep.subr.mxu0 0.0
          %6457 = vmatpush2.msra.mxu0 0.0
          %6458 = vmatprep.subr.mxu0 0.0
          %6459 = vmatpush2.msra.mxu0 0.0
          %6460 = vmatprep.subr.mxu0 0.0
          %6461 = vmatpush2.msra.mxu0 %v6329
          %6462 = vmatprep.mubr.f32.mxu0 %v6348
          %6463 = vmatmul.mubr.f32.gmra.mxu0 %v6262
          %v6464 = vpop.f32.mrf.mxu0
          %v6465 = vadd.f32 0.0, %v6464
          %v6466 = vpop.f32.mrf.mxu0
          %6467 = vmatprep.mubr.f32.mxu0 %v6351
          %6468 = vmatmul.mubr.f32.gmra.mxu0 %v6264
          %v6469 = vpop.f32.mrf.mxu0
          %v6470 = vadd.f32 0.0, %v6469
          %v6471 = vpop.f32.mrf.mxu0
          %6472 = vmatprep.mubr.f32.mxu0 %v6354
          %6473 = vmatmul.mubr.f32.gmra.mxu0 %v6266
          %v6474 = vpop.f32.mrf.mxu0
          %v6475 = vadd.f32 0.0, %v6474
          %v6476 = vpop.f32.mrf.mxu0
          %6477 = vmatprep.mubr.f32.mxu0 %v6357
          %6478 = vmatmul.mubr.f32.gmra.mxu0 %v6268
          %v6479 = vpop.f32.mrf.mxu0
          %v6480 = vadd.f32 0.0, %v6479
          %v6481 = vpop.f32.mrf.mxu0
          %6482 = vmatprep.mubr.f32.mxu0 %v6360
          %6483 = vmatmul.mubr.f32.gmra.mxu0 %v6270
          %v6484 = vpop.f32.mrf.mxu0
          %v6485 = vadd.f32 0.0, %v6484
          %v6486 = vpop.f32.mrf.mxu0
          %6487 = vmatprep.mubr.f32.mxu0 %v6363
          %6488 = vmatmul.mubr.f32.gmra.mxu0 %v6272
          %v6489 = vpop.f32.mrf.mxu0
          %v6490 = vadd.f32 0.0, %v6489
          %v6491 = vpop.f32.mrf.mxu0
          %6492 = vmatprep.mubr.f32.mxu0 %v6366
          %6493 = vmatmul.mubr.f32.gmra.mxu0 %v6274
          %v6494 = vpop.f32.mrf.mxu0
          %v6495 = vadd.f32 0.0, %v6494
          %v6496 = vpop.f32.mrf.mxu0
          %6497 = vmatprep.mubr.f32.mxu0 %v6369
          %6498 = vmatmul.mubr.f32.gmra.mxu0 %v6276
          %v6499 = vpop.f32.mrf.mxu0
          %v6500 = vadd.f32 0.0, %v6499
          %v6501 = vpop.f32.mrf.mxu0
          %6502 = vmatprep.mubr.f32.mxu0 %v6372
          %6503 = vmatmul.mubr.f32.gmra.mxu0 %v6278
          %v6504 = vpop.f32.mrf.mxu0
          %v6505 = vadd.f32 0.0, %v6504
          %v6506 = vpop.f32.mrf.mxu0
          %6507 = vmatprep.mubr.f32.mxu0 %v6375
          %6508 = vmatmul.mubr.f32.gmra.mxu0 %v6280
          %v6509 = vpop.f32.mrf.mxu0
          %v6510 = vadd.f32 0.0, %v6509
          %v6511 = vpop.f32.mrf.mxu0
          %6512 = vmatprep.mubr.f32.mxu0 %v6378
          %6513 = vmatmul.mubr.f32.gmra.mxu0 %v6282
          %v6514 = vpop.f32.mrf.mxu0
          %v6515 = vadd.f32 0.0, %v6514
          %v6516 = vpop.f32.mrf.mxu0
          %6517 = vmatprep.mubr.f32.mxu0 %v6381
          %6518 = vmatmul.mubr.f32.gmra.mxu0 %v6284
          %v6519 = vpop.f32.mrf.mxu0
          %v6520 = vadd.f32 0.0, %v6519
          %v6521 = vpop.f32.mrf.mxu0
          %6522 = vmatprep.mubr.f32.mxu0 %v6384
          %6523 = vmatmul.mubr.f32.gmra.mxu0 %v6286
          %v6524 = vpop.f32.mrf.mxu0
          %v6525 = vadd.f32 0.0, %v6524
          %v6526 = vpop.f32.mrf.mxu0
          %6527 = vmatprep.mubr.f32.mxu0 %v6387
          %6528 = vmatmul.mubr.f32.gmra.mxu0 %v6288
          %v6529 = vpop.f32.mrf.mxu0
          %v6530 = vadd.f32 0.0, %v6529
          %v6531 = vpop.f32.mrf.mxu0
          %6532 = vmatprep.mubr.f32.mxu0 %v6390
          %6533 = vmatmul.mubr.f32.gmra.mxu0 %v6290
          %v6534 = vpop.f32.mrf.mxu0
          %v6535 = vadd.f32 0.0, %v6534
          %v6536 = vpop.f32.mrf.mxu0
          %6537 = vmatprep.mubr.f32.mxu0 %v6393
          %6538 = vmatmul.mubr.f32.gmra.mxu0 %v6292
          %v6539 = vpop.f32.mrf.mxu0
          %v6540 = vadd.f32 0.0, %v6539
          %v6541 = vpop.f32.mrf.mxu0
          %6542 = vmatprep.mubr.f32.mxu0 %v6396
          %6543 = vmatmul.mubr.f32.gmra.mxu0 %v6294
          %v6544 = vpop.f32.mrf.mxu0
          %v6545 = vadd.f32 0.0, %v6544
          %v6546 = vpop.f32.mrf.mxu0
          %6547 = vdwg.mxu0
          %v6549 = vsel %vm2619, %v6465, 0
          %v6552 = vsel %vm2619, %v6470, 0
          %v6555 = vsel %vm2619, %v6475, 0
          %v6558 = vsel %vm2619, %v6480, 0
          %v6561 = vsel %vm2619, %v6485, 0
          %v6564 = vsel %vm2619, %v6490, 0
          %v6567 = vsel %vm2619, %v6495, 0
          %v6570 = vsel %vm2619, %v6500, 0
          %v6573 = vsel %vm2619, %v6505, 0
          %v6576 = vsel %vm2619, %v6510, 0
          %v6579 = vsel %vm2619, %v6515, 0
          %v6582 = vsel %vm2619, %v6520, 0
          %v6585 = vsel %vm2619, %v6525, 0
          %v6588 = vsel %vm2619, %v6530, 0
          %v6591 = vsel %vm2619, %v6535, 0
          %v6594 = vsel %vm2619, %v6540, 0
          %v6597 = vsel %vm2619, %v6545, 0
          %6599 = vmatprep.subr.mxu0 0.0
          %6600 = vmatpush1.msra.mxu0 0.0
          %6601 = vmatprep.subr.mxu0 0.0
          %6602 = vmatpush1.msra.mxu0 0.0
          %6603 = vmatprep.subr.mxu0 0.0
          %6604 = vmatpush1.msra.mxu0 0.0
          %6605 = vmatprep.subr.mxu0 0.0
          %6606 = vmatpush1.msra.mxu0 0.0
          %6607 = vmatprep.subr.mxu0 0.0
          %6608 = vmatpush1.msra.mxu0 0.0
          %6609 = vmatprep.subr.mxu0 0.0
          %6610 = vmatpush1.msra.mxu0 0.0
          %6611 = vmatprep.subr.mxu0 0.0
          %6612 = vmatpush1.msra.mxu0 0.0
          %6613 = vmatprep.subr.mxu0 0.0
          %6614 = vmatpush1.msra.mxu0 0.0
          %6615 = vmatprep.subr.mxu0 0.0
          %6616 = vmatpush1.msra.mxu0 0.0
          %6617 = vmatprep.subr.mxu0 0.0
          %6618 = vmatpush1.msra.mxu0 0.0
          %6619 = vmatprep.subr.mxu0 0.0
          %6620 = vmatpush1.msra.mxu0 0.0
          %6621 = vmatprep.subr.mxu0 0.0
          %6622 = vmatpush1.msra.mxu0 0.0
          %6623 = vmatprep.subr.mxu0 0.0
          %6624 = vmatpush1.msra.mxu0 0.0
          %6625 = vmatprep.subr.mxu0 0.0
          %6626 = vmatpush1.msra.mxu0 0.0
          %6627 = vmatprep.subr.mxu0 0.0
          %6628 = vmatpush1.msra.mxu0 0.0
          %6629 = vmatprep.subr.mxu0 0.0
          %6630 = vmatpush1.msra.mxu0 %v2567
          %6631 = vmatprep.subr.mxu0 0.0
          %6632 = vmatpush2.msra.mxu0 0.0
          %6633 = vmatprep.subr.mxu0 0.0
          %6634 = vmatpush2.msra.mxu0 0.0
          %6635 = vmatprep.subr.mxu0 0.0
          %6636 = vmatpush2.msra.mxu0 0.0
          %6637 = vmatprep.subr.mxu0 0.0
          %6638 = vmatpush2.msra.mxu0 0.0
          %6639 = vmatprep.subr.mxu0 0.0
          %6640 = vmatpush2.msra.mxu0 0.0
          %6641 = vmatprep.subr.mxu0 0.0
          %6642 = vmatpush2.msra.mxu0 0.0
          %6643 = vmatprep.subr.mxu0 0.0
          %6644 = vmatpush2.msra.mxu0 0.0
          %6645 = vmatprep.subr.mxu0 0.0
          %6646 = vmatpush2.msra.mxu0 0.0
          %6647 = vmatprep.subr.mxu0 0.0
          %6648 = vmatpush2.msra.mxu0 0.0
          %6649 = vmatprep.subr.mxu0 0.0
          %6650 = vmatpush2.msra.mxu0 0.0
          %6651 = vmatprep.subr.mxu0 0.0
          %6652 = vmatpush2.msra.mxu0 0.0
          %6653 = vmatprep.subr.mxu0 0.0
          %6654 = vmatpush2.msra.mxu0 0.0
          %6655 = vmatprep.subr.mxu0 0.0
          %6656 = vmatpush2.msra.mxu0 0.0
          %6657 = vmatprep.subr.mxu0 0.0
          %6658 = vmatpush2.msra.mxu0 0.0
          %6659 = vmatprep.subr.mxu0 0.0
          %6660 = vmatpush2.msra.mxu0 0.0
          %6661 = vmatprep.subr.mxu0 0.0
          %6662 = vmatpush2.msra.mxu0 0.0
          %6663 = vmatprep.mubr.f32.mxu0 0.0
          %6664 = vmatmul.mubr.f32.gmra.mxu0 %v6549
          %v6665 = vpop.f32.mrf.mxu0
          %v6666 = vadd.f32 0.0, %v6665
          %v6667 = vpop.f32.mrf.mxu0
          %6668 = vmatprep.mubr.f32.mxu0 0.0
          %6669 = vmatmul.mubr.f32.gmra.mxu0 %v6552
          %v6670 = vpop.f32.mrf.mxu0
          %v6671 = vadd.f32 0.0, %v6670
          %v6672 = vpop.f32.mrf.mxu0
          %6673 = vmatprep.mubr.f32.mxu0 0.0
          %6674 = vmatmul.mubr.f32.gmra.mxu0 %v6555
          %v6675 = vpop.f32.mrf.mxu0
          %v6676 = vadd.f32 0.0, %v6675
          %v6677 = vpop.f32.mrf.mxu0
          %6678 = vmatprep.mubr.f32.mxu0 0.0
          %6679 = vmatmul.mubr.f32.gmra.mxu0 %v6558
          %v6680 = vpop.f32.mrf.mxu0
          %v6681 = vadd.f32 0.0, %v6680
          %v6682 = vpop.f32.mrf.mxu0
          %6683 = vmatprep.mubr.f32.mxu0 0.0
          %6684 = vmatmul.mubr.f32.gmra.mxu0 %v6561
          %v6685 = vpop.f32.mrf.mxu0
          %v6686 = vadd.f32 0.0, %v6685
          %v6687 = vpop.f32.mrf.mxu0
          %6688 = vmatprep.mubr.f32.mxu0 0.0
          %6689 = vmatmul.mubr.f32.gmra.mxu0 %v6564
          %v6690 = vpop.f32.mrf.mxu0
          %v6691 = vadd.f32 0.0, %v6690
          %v6692 = vpop.f32.mrf.mxu0
          %6693 = vmatprep.mubr.f32.mxu0 0.0
          %6694 = vmatmul.mubr.f32.gmra.mxu0 %v6567
          %v6695 = vpop.f32.mrf.mxu0
          %v6696 = vadd.f32 0.0, %v6695
          %v6697 = vpop.f32.mrf.mxu0
          %6698 = vmatprep.mubr.f32.mxu0 0.0
          %6699 = vmatmul.mubr.f32.gmra.mxu0 %v6570
          %v6700 = vpop.f32.mrf.mxu0
          %v6701 = vadd.f32 0.0, %v6700
          %v6702 = vpop.f32.mrf.mxu0
          %6703 = vmatprep.mubr.f32.mxu0 0.0
          %6704 = vmatmul.mubr.f32.gmra.mxu0 %v6573
          %v6705 = vpop.f32.mrf.mxu0
          %v6706 = vadd.f32 0.0, %v6705
          %v6707 = vpop.f32.mrf.mxu0
          %6708 = vmatprep.mubr.f32.mxu0 0.0
          %6709 = vmatmul.mubr.f32.gmra.mxu0 %v6576
          %v6710 = vpop.f32.mrf.mxu0
          %v6711 = vadd.f32 0.0, %v6710
          %v6712 = vpop.f32.mrf.mxu0
          %6713 = vmatprep.mubr.f32.mxu0 0.0
          %6714 = vmatmul.mubr.f32.gmra.mxu0 %v6579
          %v6715 = vpop.f32.mrf.mxu0
          %v6716 = vadd.f32 0.0, %v6715
          %v6717 = vpop.f32.mrf.mxu0
          %6718 = vmatprep.mubr.f32.mxu0 0.0
          %6719 = vmatmul.mubr.f32.gmra.mxu0 %v6582
          %v6720 = vpop.f32.mrf.mxu0
          %v6721 = vadd.f32 0.0, %v6720
          %v6722 = vpop.f32.mrf.mxu0
          %6723 = vmatprep.mubr.f32.mxu0 0.0
          %6724 = vmatmul.mubr.f32.gmra.mxu0 %v6585
          %v6725 = vpop.f32.mrf.mxu0
          %v6726 = vadd.f32 0.0, %v6725
          %v6727 = vpop.f32.mrf.mxu0
          %6728 = vmatprep.mubr.f32.mxu0 0.0
          %6729 = vmatmul.mubr.f32.gmra.mxu0 %v6588
          %v6730 = vpop.f32.mrf.mxu0
          %v6731 = vadd.f32 0.0, %v6730
          %v6732 = vpop.f32.mrf.mxu0
          %6733 = vmatprep.mubr.f32.mxu0 0.0
          %6734 = vmatmul.mubr.f32.gmra.mxu0 %v6591
          %v6735 = vpop.f32.mrf.mxu0
          %v6736 = vadd.f32 0.0, %v6735
          %v6737 = vpop.f32.mrf.mxu0
          %6738 = vmatprep.mubr.f32.mxu0 0.0
          %6739 = vmatmul.mubr.f32.gmra.mxu0 %v6594
          %v6740 = vpop.f32.mrf.mxu0
          %v6741 = vadd.f32 0.0, %v6740
          %v6742 = vpop.f32.mrf.mxu0
          %6743 = vmatprep.mubr.f32.mxu0 0.0
          %6744 = vmatmul.mubr.f32.gmra.mxu0 %v6597
          %v6745 = vpop.f32.mrf.mxu0
          %v6746 = vadd.f32 0.0, %v6745
          %v6747 = vpop.f32.mrf.mxu0
          %6748 = vdwg.mxu0
          %v6749 = vadd.f32 %v5687, %v6666
          %v6750 = vadd.f32 %v5688, %v6671
          %v6751 = vadd.f32 %v5689, %v6676
          %v6752 = vadd.f32 %v5690, %v6681
          %v6753 = vadd.f32 %v5691, %v6686
          %v6754 = vadd.f32 %v5692, %v6691
          %v6755 = vadd.f32 %v5693, %v6696
          %v6756 = vadd.f32 %v5694, %v6701
          %v6757 = vadd.f32 %v5695, %v6706
          %v6758 = vadd.f32 %v5696, %v6711
          %v6759 = vadd.f32 %v5697, %v6716
          %v6760 = vadd.f32 %v5698, %v6721
          %v6761 = vadd.f32 %v5699, %v6726
          %v6762 = vadd.f32 %v5700, %v6731
          %v6763 = vadd.f32 %v5701, %v6736
          %v6764 = vadd.f32 %v5702, %v6741
          %v6765 = vadd.f32 %v5703, %v6746
          %v6766 = vadd.f32 %v2065, %v6749
          %v6767 = vadd.f32 %v2066, %v6750
          %v6768 = vadd.f32 %v2067, %v6751
          %v6769 = vadd.f32 %v2068, %v6752
          %v6770 = vadd.f32 %v2069, %v6753
          %v6771 = vadd.f32 %v2070, %v6754
          %v6772 = vadd.f32 %v2071, %v6755
          %v6773 = vadd.f32 %v2072, %v6756
          %v6774 = vadd.f32 %v2073, %v6757
          %v6775 = vadd.f32 %v2074, %v6758
          %v6776 = vadd.f32 %v2075, %v6759
          %v6777 = vadd.f32 %v2076, %v6760
          %v6778 = vadd.f32 %v2077, %v6761
          %v6779 = vadd.f32 %v2078, %v6762
          %v6780 = vadd.f32 %v2079, %v6763
          %v6781 = vadd.f32 %v2080, %v6764
          %v6782 = vadd.f32 %v2081, %v6765
          %s6783 = scalar_lea.vmem %s11, %s2060
          %v6784 = vld [vmem:[%s6783] sm:$0x1]
          %v6786 = vlaneseq
          %v6787 = vshrl.u32 %v6786, 7
          %v6788 = vsub.s32 0, %v6787
          %v6789 = vrot.slane %v6784, %v6788
          %v6791 = vadd.f32 %v6766, %v6789
          %v6792 = vadd.f32 %v6767, %v6789
          %v6793 = vadd.f32 %v6768, %v6789
          %v6794 = vadd.f32 %v6769, %v6789
          %v6795 = vadd.f32 %v6770, %v6789
          %v6796 = vadd.f32 %v6771, %v6789
          %v6797 = vadd.f32 %v6772, %v6789
          %v6798 = vadd.f32 %v6773, %v6789
          %v6799 = vadd.f32 %v6774, %v6789
          %v6800 = vadd.f32 %v6775, %v6789
          %v6801 = vadd.f32 %v6776, %v6789
          %v6802 = vadd.f32 %v6777, %v6789
          %v6803 = vadd.f32 %v6778, %v6789
          %v6804 = vadd.f32 %v6779, %v6789
          %v6805 = vadd.f32 %v6780, %v6789
          %v6806 = vadd.f32 %v6781, %v6789
          %v6807 = vadd.f32 %v6782, %v6789
          %s6808 = scalar_lea.vmem %s7, %s2082
          %v6809 = vld [vmem:[%s6808] sm:$0x3]
          %v6810 = vsel %vm1669, %v6791, 0.0
          %6811 = vadd.xlane.f32.xlu0 %v6810
          %v6812 = vpop.xlane.xlu0 %6811
          %v6813 = vsel %vm1669, %v6792, 0.0
          %6814 = vadd.xlane.f32.xlu0 %v6813
          %v6815 = vpop.xlane.xlu0 %6814
          %v6816 = vsel %vm1669, %v6793, 0.0
          %6817 = vadd.xlane.f32.xlu0 %v6816
          %v6818 = vpop.xlane.xlu0 %6817
          %v6819 = vsel %vm1669, %v6794, 0.0
          %6820 = vadd.xlane.f32.xlu0 %v6819
          %v6821 = vpop.xlane.xlu0 %6820
          %v6822 = vsel %vm1669, %v6795, 0.0
          %6823 = vadd.xlane.f32.xlu0 %v6822
          %v6824 = vpop.xlane.xlu0 %6823
          %v6825 = vsel %vm1669, %v6796, 0.0
          %6826 = vadd.xlane.f32.xlu0 %v6825
          %v6827 = vpop.xlane.xlu0 %6826
          %v6828 = vsel %vm1669, %v6797, 0.0
          %6829 = vadd.xlane.f32.xlu0 %v6828
          %v6830 = vpop.xlane.xlu0 %6829
          %v6831 = vsel %vm1669, %v6798, 0.0
          %6832 = vadd.xlane.f32.xlu0 %v6831
          %v6833 = vpop.xlane.xlu0 %6832
          %v6834 = vsel %vm1669, %v6799, 0.0
          %6835 = vadd.xlane.f32.xlu0 %v6834
          %v6836 = vpop.xlane.xlu0 %6835
          %v6837 = vsel %vm1669, %v6800, 0.0
          %6838 = vadd.xlane.f32.xlu0 %v6837
          %v6839 = vpop.xlane.xlu0 %6838
          %v6840 = vsel %vm1669, %v6801, 0.0
          %6841 = vadd.xlane.f32.xlu0 %v6840
          %v6842 = vpop.xlane.xlu0 %6841
          %v6843 = vsel %vm1669, %v6802, 0.0
          %6844 = vadd.xlane.f32.xlu0 %v6843
          %v6845 = vpop.xlane.xlu0 %6844
          %v6846 = vsel %vm1669, %v6803, 0.0
          %6847 = vadd.xlane.f32.xlu0 %v6846
          %v6848 = vpop.xlane.xlu0 %6847
          %v6849 = vsel %vm1669, %v6804, 0.0
          %6850 = vadd.xlane.f32.xlu0 %v6849
          %v6851 = vpop.xlane.xlu0 %6850
          %v6852 = vsel %vm1669, %v6805, 0.0
          %6853 = vadd.xlane.f32.xlu0 %v6852
          %v6854 = vpop.xlane.xlu0 %6853
          %v6855 = vsel %vm1669, %v6806, 0.0
          %6856 = vadd.xlane.f32.xlu0 %v6855
          %v6857 = vpop.xlane.xlu0 %6856
          %v6858 = vsel %vm1669, %v6807, 0.0
          %6859 = vadd.xlane.f32.xlu0 %v6858
          %v6860 = vpop.xlane.xlu0 %6859
          %v6861 = vmul.f32 %v6812, %v1812
          %v6862 = vmul.f32 %v6815, %v1812
          %v6863 = vmul.f32 %v6818, %v1812
          %v6864 = vmul.f32 %v6821, %v1812
          %v6865 = vmul.f32 %v6824, %v1812
          %v6866 = vmul.f32 %v6827, %v1812
          %v6867 = vmul.f32 %v6830, %v1812
          %v6868 = vmul.f32 %v6833, %v1812
          %v6869 = vmul.f32 %v6836, %v1812
          %v6870 = vmul.f32 %v6839, %v1812
          %v6871 = vmul.f32 %v6842, %v1812
          %v6872 = vmul.f32 %v6845, %v1812
          %v6873 = vmul.f32 %v6848, %v1812
          %v6874 = vmul.f32 %v6851, %v1812
          %v6875 = vmul.f32 %v6854, %v1812
          %v6876 = vmul.f32 %v6857, %v1812
          %v6877 = vmul.f32 %v6860, %v1812
          %v6878 = vsub.f32 %v6791, %v6861
          %v6879 = vsub.f32 %v6792, %v6862
          %v6880 = vsub.f32 %v6793, %v6863
          %v6881 = vsub.f32 %v6794, %v6864
          %v6882 = vsub.f32 %v6795, %v6865
          %v6883 = vsub.f32 %v6796, %v6866
          %v6884 = vsub.f32 %v6797, %v6867
          %v6885 = vsub.f32 %v6798, %v6868
          %v6886 = vsub.f32 %v6799, %v6869
          %v6887 = vsub.f32 %v6800, %v6870
          %v6888 = vsub.f32 %v6801, %v6871
          %v6889 = vsub.f32 %v6802, %v6872
          %v6890 = vsub.f32 %v6803, %v6873
          %v6891 = vsub.f32 %v6804, %v6874
          %v6892 = vsub.f32 %v6805, %v6875
          %v6893 = vsub.f32 %v6806, %v6876
          %v6894 = vsub.f32 %v6807, %v6877
          %v6895 = vmul.f32 %v6878, %v6878
          %v6896 = vmul.f32 %v6879, %v6879
          %v6897 = vmul.f32 %v6880, %v6880
          %v6898 = vmul.f32 %v6881, %v6881
          %v6899 = vmul.f32 %v6882, %v6882
          %v6900 = vmul.f32 %v6883, %v6883
          %v6901 = vmul.f32 %v6884, %v6884
          %v6902 = vmul.f32 %v6885, %v6885
          %v6903 = vmul.f32 %v6886, %v6886
          %v6904 = vmul.f32 %v6887, %v6887
          %v6905 = vmul.f32 %v6888, %v6888
          %v6906 = vmul.f32 %v6889, %v6889
          %v6907 = vmul.f32 %v6890, %v6890
          %v6908 = vmul.f32 %v6891, %v6891
          %v6909 = vmul.f32 %v6892, %v6892
          %v6910 = vmul.f32 %v6893, %v6893
          %v6911 = vmul.f32 %v6894, %v6894
          %v6912 = vsel %vm1669, %v6895, 0.0
          %6913 = vadd.xlane.f32.xlu0 %v6912
          %v6914 = vpop.xlane.xlu0 %6913
          %v6915 = vsel %vm1669, %v6896, 0.0
          %6916 = vadd.xlane.f32.xlu0 %v6915
          %v6917 = vpop.xlane.xlu0 %6916
          %v6918 = vsel %vm1669, %v6897, 0.0
          %6919 = vadd.xlane.f32.xlu0 %v6918
          %v6920 = vpop.xlane.xlu0 %6919
          %v6921 = vsel %vm1669, %v6898, 0.0
          %6922 = vadd.xlane.f32.xlu0 %v6921
          %v6923 = vpop.xlane.xlu0 %6922
          %v6924 = vsel %vm1669, %v6899, 0.0
          %6925 = vadd.xlane.f32.xlu0 %v6924
          %v6926 = vpop.xlane.xlu0 %6925
          %v6927 = vsel %vm1669, %v6900, 0.0
          %6928 = vadd.xlane.f32.xlu0 %v6927
          %v6929 = vpop.xlane.xlu0 %6928
          %v6930 = vsel %vm1669, %v6901, 0.0
          %6931 = vadd.xlane.f32.xlu0 %v6930
          %v6932 = vpop.xlane.xlu0 %6931
          %v6933 = vsel %vm1669, %v6902, 0.0
          %6934 = vadd.xlane.f32.xlu0 %v6933
          %v6935 = vpop.xlane.xlu0 %6934
          %v6936 = vsel %vm1669, %v6903, 0.0
          %6937 = vadd.xlane.f32.xlu0 %v6936
          %v6938 = vpop.xlane.xlu0 %6937
          %v6939 = vsel %vm1669, %v6904, 0.0
          %6940 = vadd.xlane.f32.xlu0 %v6939
          %v6941 = vpop.xlane.xlu0 %6940
          %v6942 = vsel %vm1669, %v6905, 0.0
          %6943 = vadd.xlane.f32.xlu0 %v6942
          %v6944 = vpop.xlane.xlu0 %6943
          %v6945 = vsel %vm1669, %v6906, 0.0
          %6946 = vadd.xlane.f32.xlu0 %v6945
          %v6947 = vpop.xlane.xlu0 %6946
          %v6948 = vsel %vm1669, %v6907, 0.0
          %6949 = vadd.xlane.f32.xlu0 %v6948
          %v6950 = vpop.xlane.xlu0 %6949
          %v6951 = vsel %vm1669, %v6908, 0.0
          %6952 = vadd.xlane.f32.xlu0 %v6951
          %v6953 = vpop.xlane.xlu0 %6952
          %v6954 = vsel %vm1669, %v6909, 0.0
          %6955 = vadd.xlane.f32.xlu0 %v6954
          %v6956 = vpop.xlane.xlu0 %6955
          %v6957 = vsel %vm1669, %v6910, 0.0
          %6958 = vadd.xlane.f32.xlu0 %v6957
          %v6959 = vpop.xlane.xlu0 %6958
          %v6960 = vsel %vm1669, %v6911, 0.0
          %6961 = vadd.xlane.f32.xlu0 %v6960
          %v6962 = vpop.xlane.xlu0 %6961
          %v6963 = vmul.f32 %v6914, %v1812
          %v6964 = vmul.f32 %v6917, %v1812
          %v6965 = vmul.f32 %v6920, %v1812
          %v6966 = vmul.f32 %v6923, %v1812
          %v6967 = vmul.f32 %v6926, %v1812
          %v6968 = vmul.f32 %v6929, %v1812
          %v6969 = vmul.f32 %v6932, %v1812
          %v6970 = vmul.f32 %v6935, %v1812
          %v6971 = vmul.f32 %v6938, %v1812
          %v6972 = vmul.f32 %v6941, %v1812
          %v6973 = vmul.f32 %v6944, %v1812
          %v6974 = vmul.f32 %v6947, %v1812
          %v6975 = vmul.f32 %v6950, %v1812
          %v6976 = vmul.f32 %v6953, %v1812
          %v6977 = vmul.f32 %v6956, %v1812
          %v6978 = vmul.f32 %v6959, %v1812
          %v6979 = vmul.f32 %v6962, %v1812
          %v6980 = vadd.f32 %v6963, 1e-05
          %v6981 = vadd.f32 %v6964, 1e-05
          %v6982 = vadd.f32 %v6965, 1e-05
          %v6983 = vadd.f32 %v6966, 1e-05
          %v6984 = vadd.f32 %v6967, 1e-05
          %v6985 = vadd.f32 %v6968, 1e-05
          %v6986 = vadd.f32 %v6969, 1e-05
          %v6987 = vadd.f32 %v6970, 1e-05
          %v6988 = vadd.f32 %v6971, 1e-05
          %v6989 = vadd.f32 %v6972, 1e-05
          %v6990 = vadd.f32 %v6973, 1e-05
          %v6991 = vadd.f32 %v6974, 1e-05
          %v6992 = vadd.f32 %v6975, 1e-05
          %v6993 = vadd.f32 %v6976, 1e-05
          %v6994 = vadd.f32 %v6977, 1e-05
          %v6995 = vadd.f32 %v6978, 1e-05
          %v6996 = vadd.f32 %v6979, 1e-05
          %v6997 = vrsqrt.pop %v6980
          %v6998 = vrsqrt.pop %v6981
          %v6999 = vrsqrt.pop %v6982
          %v7000 = vrsqrt.pop %v6983
          %v7001 = vrsqrt.pop %v6984
          %v7002 = vrsqrt.pop %v6985
          %v7003 = vrsqrt.pop %v6986
          %v7004 = vrsqrt.pop %v6987
          %v7005 = vrsqrt.pop %v6988
          %v7006 = vrsqrt.pop %v6989
          %v7007 = vrsqrt.pop %v6990
          %v7008 = vrsqrt.pop %v6991
          %v7009 = vrsqrt.pop %v6992
          %v7010 = vrsqrt.pop %v6993
          %v7011 = vrsqrt.pop %v6994
          %v7012 = vrsqrt.pop %v6995
          %v7013 = vrsqrt.pop %v6996
          %v7014 = vmul.f32 %v6878, %v6997
          %v7015 = vmul.f32 %v6879, %v6998
          %v7016 = vmul.f32 %v6880, %v6999
          %v7017 = vmul.f32 %v6881, %v7000
          %v7018 = vmul.f32 %v6882, %v7001
          %v7019 = vmul.f32 %v6883, %v7002
          %v7020 = vmul.f32 %v6884, %v7003
          %v7021 = vmul.f32 %v6885, %v7004
          %v7022 = vmul.f32 %v6886, %v7005
          %v7023 = vmul.f32 %v6887, %v7006
          %v7024 = vmul.f32 %v6888, %v7007
          %v7025 = vmul.f32 %v6889, %v7008
          %v7026 = vmul.f32 %v6890, %v7009
          %v7027 = vmul.f32 %v6891, %v7010
          %v7028 = vmul.f32 %v6892, %v7011
          %v7029 = vmul.f32 %v6893, %v7012
          %v7030 = vmul.f32 %v6894, %v7013
          %v7031 = vlaneseq
          %v7032 = vshrl.u32 %v7031, 7
          %v7033 = vsub.s32 0, %v7032
          %v7034 = vrot.slane %v6809, %v7033
          %v7035 = vmul.f32 %v7014, %v7034
          %v7036 = vmul.f32 %v7015, %v7034
          %v7037 = vmul.f32 %v7016, %v7034
          %v7038 = vmul.f32 %v7017, %v7034
          %v7039 = vmul.f32 %v7018, %v7034
          %v7040 = vmul.f32 %v7019, %v7034
          %v7041 = vmul.f32 %v7020, %v7034
          %v7042 = vmul.f32 %v7021, %v7034
          %v7043 = vmul.f32 %v7022, %v7034
          %v7044 = vmul.f32 %v7023, %v7034
          %v7045 = vmul.f32 %v7024, %v7034
          %v7046 = vmul.f32 %v7025, %v7034
          %v7047 = vmul.f32 %v7026, %v7034
          %v7048 = vmul.f32 %v7027, %v7034
          %v7049 = vmul.f32 %v7028, %v7034
          %v7050 = vmul.f32 %v7029, %v7034
          %v7051 = vmul.f32 %v7030, %v7034
          %v7052 = vlaneseq
          %v7053 = vshrl.u32 %v7052, 7
          %v7054 = vsub.s32 1, %v7053
          %v7055 = vrot.slane %v6809, %v7054
          %v7056 = vadd.f32 %v7035, %v7055
          %v7057 = vadd.f32 %v7036, %v7055
          %v7058 = vadd.f32 %v7037, %v7055
          %v7059 = vadd.f32 %v7038, %v7055
          %v7060 = vadd.f32 %v7039, %v7055
          %v7061 = vadd.f32 %v7040, %v7055
          %v7062 = vadd.f32 %v7041, %v7055
          %v7063 = vadd.f32 %v7042, %v7055
          %v7064 = vadd.f32 %v7043, %v7055
          %v7065 = vadd.f32 %v7044, %v7055
          %v7066 = vadd.f32 %v7045, %v7055
          %v7067 = vadd.f32 %v7046, %v7055
          %v7068 = vadd.f32 %v7047, %v7055
          %v7069 = vadd.f32 %v7048, %v7055
          %v7070 = vadd.f32 %v7049, %v7055
          %v7071 = vadd.f32 %v7050, %v7055
          %v7072 = vadd.f32 %v7051, %v7055
          %s7073 = scalar_lea.vmem %s12, %s2348
          %v7074 = vld [vmem:[%s7073] sm:$0xff]
          %v7075 = vld [vmem:[%s7073 + $0x8] sm:$0xff]
          %v7076 = vld [vmem:[%s7073 + $0x10] sm:$0xff]
          %v7077 = vld [vmem:[%s7073 + $0x18] sm:$0xff]
          %s7078 = scalar_lea.vmem %s13, %s2060
          %v7079 = vld [vmem:[%s7078] sm:$0x1]
          %v7081 = vlaneseq
          %v7082 = vshrl.u32 %v7081, 7
          %v7083 = vsub.s32 0, %v7082
          %v7084 = vrot.slane %v7079, %v7083
          %v7087 = vsel %vm1669, %v7056, 0
          %v7090 = vsel %vm1669, %v7057, 0
          %v7093 = vsel %vm1669, %v7058, 0
          %v7096 = vsel %vm1669, %v7059, 0
          %v7099 = vsel %vm1669, %v7060, 0
          %v7102 = vsel %vm1669, %v7061, 0
          %v7105 = vsel %vm1669, %v7062, 0
          %v7108 = vsel %vm1669, %v7063, 0
          %v7111 = vsel %vm1669, %v7064, 0
          %v7114 = vsel %vm1669, %v7065, 0
          %v7117 = vsel %vm1669, %v7066, 0
          %v7120 = vsel %vm1669, %v7067, 0
          %v7123 = vsel %vm1669, %v7068, 0
          %v7126 = vsel %vm1669, %v7069, 0
          %v7129 = vsel %vm1669, %v7070, 0
          %v7132 = vsel %vm1669, %v7071, 0
          %v7135 = vsel %vm1669, %v7072, 0
          %7137 = vmatprep.subr.mxu0 0.0
          %7138 = vmatpush1.msra.mxu0 0.0
          %7139 = vmatprep.subr.mxu0 0.0
          %7140 = vmatpush1.msra.mxu0 0.0
          %7141 = vmatprep.subr.mxu0 0.0
          %7142 = vmatpush1.msra.mxu0 0.0
          %7143 = vmatprep.subr.mxu0 0.0
          %7144 = vmatpush1.msra.mxu0 0.0
          %7145 = vmatprep.subr.mxu0 0.0
          %7146 = vmatpush1.msra.mxu0 0.0
          %7147 = vmatprep.subr.mxu0 0.0
          %7148 = vmatpush1.msra.mxu0 0.0
          %7149 = vmatprep.subr.mxu0 0.0
          %7150 = vmatpush1.msra.mxu0 0.0
          %7151 = vmatprep.subr.mxu0 0.0
          %7152 = vmatpush1.msra.mxu0 0.0
          %7153 = vmatprep.subr.mxu0 0.0
          %7154 = vmatpush1.msra.mxu0 0.0
          %7155 = vmatprep.subr.mxu0 0.0
          %7156 = vmatpush1.msra.mxu0 0.0
          %7157 = vmatprep.subr.mxu0 0.0
          %7158 = vmatpush1.msra.mxu0 0.0
          %7159 = vmatprep.subr.mxu0 0.0
          %7160 = vmatpush1.msra.mxu0 0.0
          %7161 = vmatprep.subr.mxu0 0.0
          %7162 = vmatpush1.msra.mxu0 %v7077
          %7163 = vmatprep.subr.mxu0 0.0
          %7164 = vmatpush1.msra.mxu0 %v7076
          %7165 = vmatprep.subr.mxu0 0.0
          %7166 = vmatpush1.msra.mxu0 %v7075
          %7167 = vmatprep.subr.mxu0 0.0
          %7168 = vmatpush1.msra.mxu0 %v7074
          %7169 = vmatprep.subr.mxu0 0.0
          %7170 = vmatpush2.msra.mxu0 0.0
          %7171 = vmatprep.subr.mxu0 0.0
          %7172 = vmatpush2.msra.mxu0 0.0
          %7173 = vmatprep.subr.mxu0 0.0
          %7174 = vmatpush2.msra.mxu0 0.0
          %7175 = vmatprep.subr.mxu0 0.0
          %7176 = vmatpush2.msra.mxu0 0.0
          %7177 = vmatprep.subr.mxu0 0.0
          %7178 = vmatpush2.msra.mxu0 0.0
          %7179 = vmatprep.subr.mxu0 0.0
          %7180 = vmatpush2.msra.mxu0 0.0
          %7181 = vmatprep.subr.mxu0 0.0
          %7182 = vmatpush2.msra.mxu0 0.0
          %7183 = vmatprep.subr.mxu0 0.0
          %7184 = vmatpush2.msra.mxu0 0.0
          %7185 = vmatprep.subr.mxu0 0.0
          %7186 = vmatpush2.msra.mxu0 0.0
          %7187 = vmatprep.subr.mxu0 0.0
          %7188 = vmatpush2.msra.mxu0 0.0
          %7189 = vmatprep.subr.mxu0 0.0
          %7190 = vmatpush2.msra.mxu0 0.0
          %7191 = vmatprep.subr.mxu0 0.0
          %7192 = vmatpush2.msra.mxu0 0.0
          %7193 = vmatprep.subr.mxu0 0.0
          %7194 = vmatpush2.msra.mxu0 0.0
          %7195 = vmatprep.subr.mxu0 0.0
          %7196 = vmatpush2.msra.mxu0 0.0
          %7197 = vmatprep.subr.mxu0 0.0
          %7198 = vmatpush2.msra.mxu0 0.0
          %7199 = vmatprep.subr.mxu0 0.0
          %7200 = vmatpush2.msra.mxu0 0.0
          %7201 = vmatprep.mubr.f32.mxu0 0.0
          %7202 = vmatmul.mubr.f32.gmra.mxu0 %v7087
          %v7203 = vpop.f32.mrf.mxu0
          %v7204 = vadd.f32 %v7084, %v7203
          %v7205 = vpop.f32.mrf.mxu0
          %7206 = vmatprep.mubr.f32.mxu0 0.0
          %7207 = vmatmul.mubr.f32.gmra.mxu0 %v7090
          %v7208 = vpop.f32.mrf.mxu0
          %v7209 = vadd.f32 %v7084, %v7208
          %v7210 = vpop.f32.mrf.mxu0
          %7211 = vmatprep.mubr.f32.mxu0 0.0
          %7212 = vmatmul.mubr.f32.gmra.mxu0 %v7093
          %v7213 = vpop.f32.mrf.mxu0
          %v7214 = vadd.f32 %v7084, %v7213
          %v7215 = vpop.f32.mrf.mxu0
          %7216 = vmatprep.mubr.f32.mxu0 0.0
          %7217 = vmatmul.mubr.f32.gmra.mxu0 %v7096
          %v7218 = vpop.f32.mrf.mxu0
          %v7219 = vadd.f32 %v7084, %v7218
          %v7220 = vpop.f32.mrf.mxu0
          %7221 = vmatprep.mubr.f32.mxu0 0.0
          %7222 = vmatmul.mubr.f32.gmra.mxu0 %v7099
          %v7223 = vpop.f32.mrf.mxu0
          %v7224 = vadd.f32 %v7084, %v7223
          %v7225 = vpop.f32.mrf.mxu0
          %7226 = vmatprep.mubr.f32.mxu0 0.0
          %7227 = vmatmul.mubr.f32.gmra.mxu0 %v7102
          %v7228 = vpop.f32.mrf.mxu0
          %v7229 = vadd.f32 %v7084, %v7228
          %v7230 = vpop.f32.mrf.mxu0
          %7231 = vmatprep.mubr.f32.mxu0 0.0
          %7232 = vmatmul.mubr.f32.gmra.mxu0 %v7105
          %v7233 = vpop.f32.mrf.mxu0
          %v7234 = vadd.f32 %v7084, %v7233
          %v7235 = vpop.f32.mrf.mxu0
          %7236 = vmatprep.mubr.f32.mxu0 0.0
          %7237 = vmatmul.mubr.f32.gmra.mxu0 %v7108
          %v7238 = vpop.f32.mrf.mxu0
          %v7239 = vadd.f32 %v7084, %v7238
          %v7240 = vpop.f32.mrf.mxu0
          %7241 = vmatprep.mubr.f32.mxu0 0.0
          %7242 = vmatmul.mubr.f32.gmra.mxu0 %v7111
          %v7243 = vpop.f32.mrf.mxu0
          %v7244 = vadd.f32 %v7084, %v7243
          %v7245 = vpop.f32.mrf.mxu0
          %7246 = vmatprep.mubr.f32.mxu0 0.0
          %7247 = vmatmul.mubr.f32.gmra.mxu0 %v7114
          %v7248 = vpop.f32.mrf.mxu0
          %v7249 = vadd.f32 %v7084, %v7248
          %v7250 = vpop.f32.mrf.mxu0
          %7251 = vmatprep.mubr.f32.mxu0 0.0
          %7252 = vmatmul.mubr.f32.gmra.mxu0 %v7117
          %v7253 = vpop.f32.mrf.mxu0
          %v7254 = vadd.f32 %v7084, %v7253
          %v7255 = vpop.f32.mrf.mxu0
          %7256 = vmatprep.mubr.f32.mxu0 0.0
          %7257 = vmatmul.mubr.f32.gmra.mxu0 %v7120
          %v7258 = vpop.f32.mrf.mxu0
          %v7259 = vadd.f32 %v7084, %v7258
          %v7260 = vpop.f32.mrf.mxu0
          %7261 = vmatprep.mubr.f32.mxu0 0.0
          %7262 = vmatmul.mubr.f32.gmra.mxu0 %v7123
          %v7263 = vpop.f32.mrf.mxu0
          %v7264 = vadd.f32 %v7084, %v7263
          %v7265 = vpop.f32.mrf.mxu0
          %7266 = vmatprep.mubr.f32.mxu0 0.0
          %7267 = vmatmul.mubr.f32.gmra.mxu0 %v7126
          %v7268 = vpop.f32.mrf.mxu0
          %v7269 = vadd.f32 %v7084, %v7268
          %v7270 = vpop.f32.mrf.mxu0
          %7271 = vmatprep.mubr.f32.mxu0 0.0
          %7272 = vmatmul.mubr.f32.gmra.mxu0 %v7129
          %v7273 = vpop.f32.mrf.mxu0
          %v7274 = vadd.f32 %v7084, %v7273
          %v7275 = vpop.f32.mrf.mxu0
          %7276 = vmatprep.mubr.f32.mxu0 0.0
          %7277 = vmatmul.mubr.f32.gmra.mxu0 %v7132
          %v7278 = vpop.f32.mrf.mxu0
          %v7279 = vadd.f32 %v7084, %v7278
          %v7280 = vpop.f32.mrf.mxu0
          %7281 = vmatprep.mubr.f32.mxu0 0.0
          %7282 = vmatmul.mubr.f32.gmra.mxu0 %v7135
          %v7283 = vpop.f32.mrf.mxu0
          %v7284 = vadd.f32 %v7084, %v7283
          %v7285 = vpop.f32.mrf.mxu0
          %7286 = vdwg.mxu0
          %v7287 = vmul.f32 %v7204, 1.702
          %v7288 = vmul.f32 %v7209, 1.702
          %v7289 = vmul.f32 %v7214, 1.702
          %v7290 = vmul.f32 %v7219, 1.702
          %v7291 = vmul.f32 %v7224, 1.702
          %v7292 = vmul.f32 %v7229, 1.702
          %v7293 = vmul.f32 %v7234, 1.702
          %v7294 = vmul.f32 %v7239, 1.702
          %v7295 = vmul.f32 %v7244, 1.702
          %v7296 = vmul.f32 %v7249, 1.702
          %v7297 = vmul.f32 %v7254, 1.702
          %v7298 = vmul.f32 %v7259, 1.702
          %v7299 = vmul.f32 %v7264, 1.702
          %v7300 = vmul.f32 %v7269, 1.702
          %v7301 = vmul.f32 %v7274, 1.702
          %v7302 = vmul.f32 %v7279, 1.702
          %v7303 = vmul.f32 %v7284, 1.702
          %v7304 = vxor.u32 %v7287, 2147483648
          %v7305 = vxor.u32 %v7288, 2147483648
          %v7306 = vxor.u32 %v7289, 2147483648
          %v7307 = vxor.u32 %v7290, 2147483648
          %v7308 = vxor.u32 %v7291, 2147483648
          %v7309 = vxor.u32 %v7292, 2147483648
          %v7310 = vxor.u32 %v7293, 2147483648
          %v7311 = vxor.u32 %v7294, 2147483648
          %v7312 = vxor.u32 %v7295, 2147483648
          %v7313 = vxor.u32 %v7296, 2147483648
          %v7314 = vxor.u32 %v7297, 2147483648
          %v7315 = vxor.u32 %v7298, 2147483648
          %v7316 = vxor.u32 %v7299, 2147483648
          %v7317 = vxor.u32 %v7300, 2147483648
          %v7318 = vxor.u32 %v7301, 2147483648
          %v7319 = vxor.u32 %v7302, 2147483648
          %v7320 = vxor.u32 %v7303, 2147483648
          %v7321 = vmul.f32 %v7304, 1.442695
          %v7322 = vpow.pop %v7321
          %v7323 = vmul.f32 %v7305, 1.442695
          %v7324 = vpow.pop %v7323
          %v7325 = vmul.f32 %v7306, 1.442695
          %v7326 = vpow.pop %v7325
          %v7327 = vmul.f32 %v7307, 1.442695
          %v7328 = vpow.pop %v7327
          %v7329 = vmul.f32 %v7308, 1.442695
          %v7330 = vpow.pop %v7329
          %v7331 = vmul.f32 %v7309, 1.442695
          %v7332 = vpow.pop %v7331
          %v7333 = vmul.f32 %v7310, 1.442695
          %v7334 = vpow.pop %v7333
          %v7335 = vmul.f32 %v7311, 1.442695
          %v7336 = vpow.pop %v7335
          %v7337 = vmul.f32 %v7312, 1.442695
          %v7338 = vpow.pop %v7337
          %v7339 = vmul.f32 %v7313, 1.442695
          %v7340 = vpow.pop %v7339
          %v7341 = vmul.f32 %v7314, 1.442695
          %v7342 = vpow.pop %v7341
          %v7343 = vmul.f32 %v7315, 1.442695
          %v7344 = vpow.pop %v7343
          %v7345 = vmul.f32 %v7316, 1.442695
          %v7346 = vpow.pop %v7345
          %v7347 = vmul.f32 %v7317, 1.442695
          %v7348 = vpow.pop %v7347
          %v7349 = vmul.f32 %v7318, 1.442695
          %v7350 = vpow.pop %v7349
          %v7351 = vmul.f32 %v7319, 1.442695
          %v7352 = vpow.pop %v7351
          %v7353 = vmul.f32 %v7320, 1.442695
          %v7354 = vpow.pop %v7353
          %v7355 = vadd.f32 %v7322, 1.0
          %v7356 = vadd.f32 %v7324, 1.0
          %v7357 = vadd.f32 %v7326, 1.0
          %v7358 = vadd.f32 %v7328, 1.0
          %v7359 = vadd.f32 %v7330, 1.0
          %v7360 = vadd.f32 %v7332, 1.0
          %v7361 = vadd.f32 %v7334, 1.0
          %v7362 = vadd.f32 %v7336, 1.0
          %v7363 = vadd.f32 %v7338, 1.0
          %v7364 = vadd.f32 %v7340, 1.0
          %v7365 = vadd.f32 %v7342, 1.0
          %v7366 = vadd.f32 %v7344, 1.0
          %v7367 = vadd.f32 %v7346, 1.0
          %v7368 = vadd.f32 %v7348, 1.0
          %v7369 = vadd.f32 %v7350, 1.0
          %v7370 = vadd.f32 %v7352, 1.0
          %v7371 = vadd.f32 %v7354, 1.0
          %v7372 = vrcp.pop %v7355
          %v7373 = vmul.f32 1.0, %v7372
          %v7374 = vrcp.pop %v7356
          %v7375 = vmul.f32 1.0, %v7374
          %v7376 = vrcp.pop %v7357
          %v7377 = vmul.f32 1.0, %v7376
          %v7378 = vrcp.pop %v7358
          %v7379 = vmul.f32 1.0, %v7378
          %v7380 = vrcp.pop %v7359
          %v7381 = vmul.f32 1.0, %v7380
          %v7382 = vrcp.pop %v7360
          %v7383 = vmul.f32 1.0, %v7382
          %v7384 = vrcp.pop %v7361
          %v7385 = vmul.f32 1.0, %v7384
          %v7386 = vrcp.pop %v7362
          %v7387 = vmul.f32 1.0, %v7386
          %v7388 = vrcp.pop %v7363
          %v7389 = vmul.f32 1.0, %v7388
          %v7390 = vrcp.pop %v7364
          %v7391 = vmul.f32 1.0, %v7390
          %v7392 = vrcp.pop %v7365
          %v7393 = vmul.f32 1.0, %v7392
          %v7394 = vrcp.pop %v7366
          %v7395 = vmul.f32 1.0, %v7394
          %v7396 = vrcp.pop %v7367
          %v7397 = vmul.f32 1.0, %v7396
          %v7398 = vrcp.pop %v7368
          %v7399 = vmul.f32 1.0, %v7398
          %v7400 = vrcp.pop %v7369
          %v7401 = vmul.f32 1.0, %v7400
          %v7402 = vrcp.pop %v7370
          %v7403 = vmul.f32 1.0, %v7402
          %v7404 = vrcp.pop %v7371
          %v7405 = vmul.f32 1.0, %v7404
          %v7406 = vmul.f32 %v7204, %v7373
          %v7407 = vmul.f32 %v7209, %v7375
          %v7408 = vmul.f32 %v7214, %v7377
          %v7409 = vmul.f32 %v7219, %v7379
          %v7410 = vmul.f32 %v7224, %v7381
          %v7411 = vmul.f32 %v7229, %v7383
          %v7412 = vmul.f32 %v7234, %v7385
          %v7413 = vmul.f32 %v7239, %v7387
          %v7414 = vmul.f32 %v7244, %v7389
          %v7415 = vmul.f32 %v7249, %v7391
          %v7416 = vmul.f32 %v7254, %v7393
          %v7417 = vmul.f32 %v7259, %v7395
          %v7418 = vmul.f32 %v7264, %v7397
          %v7419 = vmul.f32 %v7269, %v7399
          %v7420 = vmul.f32 %v7274, %v7401
          %v7421 = vmul.f32 %v7279, %v7403
          %v7422 = vmul.f32 %v7284, %v7405
          %s7423 = smul.u32 %s2060, 64
          %s7424 = scalar_lea.vmem %s14, %s7423
          %v7425 = vld [vmem:[%s7424] sm:$0xff]
          %v7426 = vld [vmem:[%s7424 + $0x8] sm:$0xff]
          %v7427 = vld [vmem:[%s7424 + $0x10] sm:$0xff]
          %v7428 = vld [vmem:[%s7424 + $0x18] sm:$0xff]
          %v7429 = vld [vmem:[%s7424 + $0x20] sm:$0xff]
          %v7430 = vld [vmem:[%s7424 + $0x28] sm:$0xff]
          %v7431 = vld [vmem:[%s7424 + $0x30] sm:$0xff]
          %v7432 = vld [vmem:[%s7424 + $0x38] sm:$0xff]
          %vm7433 = vcmask 523264
          %v7435 = vsel %vm7433, %v7406, 0
          %v7438 = vsel %vm7433, %v7407, 0
          %v7441 = vsel %vm7433, %v7408, 0
          %v7444 = vsel %vm7433, %v7409, 0
          %v7447 = vsel %vm7433, %v7410, 0
          %v7450 = vsel %vm7433, %v7411, 0
          %v7453 = vsel %vm7433, %v7412, 0
          %v7456 = vsel %vm7433, %v7413, 0
          %v7459 = vsel %vm7433, %v7414, 0
          %v7462 = vsel %vm7433, %v7415, 0
          %v7465 = vsel %vm7433, %v7416, 0
          %v7468 = vsel %vm7433, %v7417, 0
          %v7471 = vsel %vm7433, %v7418, 0
          %v7474 = vsel %vm7433, %v7419, 0
          %v7477 = vsel %vm7433, %v7420, 0
          %v7480 = vsel %vm7433, %v7421, 0
          %v7483 = vsel %vm7433, %v7422, 0
          %7485 = vmatprep.subr.mxu0 0.0
          %7486 = vmatpush1.msra.mxu0 0.0
          %7487 = vmatprep.subr.mxu0 0.0
          %7488 = vmatpush1.msra.mxu0 0.0
          %7489 = vmatprep.subr.mxu0 0.0
          %7490 = vmatpush1.msra.mxu0 0.0
          %7491 = vmatprep.subr.mxu0 0.0
          %7492 = vmatpush1.msra.mxu0 0.0
          %7493 = vmatprep.subr.mxu0 0.0
          %7494 = vmatpush1.msra.mxu0 0.0
          %7495 = vmatprep.subr.mxu0 0.0
          %7496 = vmatpush1.msra.mxu0 0.0
          %7497 = vmatprep.subr.mxu0 0.0
          %7498 = vmatpush1.msra.mxu0 0.0
          %7499 = vmatprep.subr.mxu0 0.0
          %7500 = vmatpush1.msra.mxu0 0.0
          %7501 = vmatprep.subr.mxu0 0.0
          %7502 = vmatpush1.msra.mxu0 %v7432
          %7503 = vmatprep.subr.mxu0 0.0
          %7504 = vmatpush1.msra.mxu0 %v7431
          %7505 = vmatprep.subr.mxu0 0.0
          %7506 = vmatpush1.msra.mxu0 %v7430
          %7507 = vmatprep.subr.mxu0 0.0
          %7508 = vmatpush1.msra.mxu0 %v7429
          %7509 = vmatprep.subr.mxu0 0.0
          %7510 = vmatpush1.msra.mxu0 %v7428
          %7511 = vmatprep.subr.mxu0 0.0
          %7512 = vmatpush1.msra.mxu0 %v7427
          %7513 = vmatprep.subr.mxu0 0.0
          %7514 = vmatpush1.msra.mxu0 %v7426
          %7515 = vmatprep.subr.mxu0 0.0
          %7516 = vmatpush1.msra.mxu0 %v7425
          %7517 = vmatprep.subr.mxu0 0.0
          %7518 = vmatpush2.msra.mxu0 0.0
          %7519 = vmatprep.subr.mxu0 0.0
          %7520 = vmatpush2.msra.mxu0 0.0
          %7521 = vmatprep.subr.mxu0 0.0
          %7522 = vmatpush2.msra.mxu0 0.0
          %7523 = vmatprep.subr.mxu0 0.0
          %7524 = vmatpush2.msra.mxu0 0.0
          %7525 = vmatprep.subr.mxu0 0.0
          %7526 = vmatpush2.msra.mxu0 0.0
          %7527 = vmatprep.subr.mxu0 0.0
          %7528 = vmatpush2.msra.mxu0 0.0
          %7529 = vmatprep.subr.mxu0 0.0
          %7530 = vmatpush2.msra.mxu0 0.0
          %7531 = vmatprep.subr.mxu0 0.0
          %7532 = vmatpush2.msra.mxu0 0.0
          %7533 = vmatprep.subr.mxu0 0.0
          %7534 = vmatpush2.msra.mxu0 0.0
          %7535 = vmatprep.subr.mxu0 0.0
          %7536 = vmatpush2.msra.mxu0 0.0
          %7537 = vmatprep.subr.mxu0 0.0
          %7538 = vmatpush2.msra.mxu0 0.0
          %7539 = vmatprep.subr.mxu0 0.0
          %7540 = vmatpush2.msra.mxu0 0.0
          %7541 = vmatprep.subr.mxu0 0.0
          %7542 = vmatpush2.msra.mxu0 0.0
          %7543 = vmatprep.subr.mxu0 0.0
          %7544 = vmatpush2.msra.mxu0 0.0
          %7545 = vmatprep.subr.mxu0 0.0
          %7546 = vmatpush2.msra.mxu0 0.0
          %7547 = vmatprep.subr.mxu0 0.0
          %7548 = vmatpush2.msra.mxu0 0.0
          %7549 = vmatprep.mubr.f32.mxu0 0.0
          %7550 = vmatmul.mubr.f32.gmra.mxu0 %v7435
          %v7551 = vpop.f32.mrf.mxu0
          %v7552 = vadd.f32 0.0, %v7551
          %v7553 = vpop.f32.mrf.mxu0
          %7554 = vmatprep.mubr.f32.mxu0 0.0
          %7555 = vmatmul.mubr.f32.gmra.mxu0 %v7438
          %v7556 = vpop.f32.mrf.mxu0
          %v7557 = vadd.f32 0.0, %v7556
          %v7558 = vpop.f32.mrf.mxu0
          %7559 = vmatprep.mubr.f32.mxu0 0.0
          %7560 = vmatmul.mubr.f32.gmra.mxu0 %v7441
          %v7561 = vpop.f32.mrf.mxu0
          %v7562 = vadd.f32 0.0, %v7561
          %v7563 = vpop.f32.mrf.mxu0
          %7564 = vmatprep.mubr.f32.mxu0 0.0
          %7565 = vmatmul.mubr.f32.gmra.mxu0 %v7444
          %v7566 = vpop.f32.mrf.mxu0
          %v7567 = vadd.f32 0.0, %v7566
          %v7568 = vpop.f32.mrf.mxu0
          %7569 = vmatprep.mubr.f32.mxu0 0.0
          %7570 = vmatmul.mubr.f32.gmra.mxu0 %v7447
          %v7571 = vpop.f32.mrf.mxu0
          %v7572 = vadd.f32 0.0, %v7571
          %v7573 = vpop.f32.mrf.mxu0
          %7574 = vmatprep.mubr.f32.mxu0 0.0
          %7575 = vmatmul.mubr.f32.gmra.mxu0 %v7450
          %v7576 = vpop.f32.mrf.mxu0
          %v7577 = vadd.f32 0.0, %v7576
          %v7578 = vpop.f32.mrf.mxu0
          %7579 = vmatprep.mubr.f32.mxu0 0.0
          %7580 = vmatmul.mubr.f32.gmra.mxu0 %v7453
          %v7581 = vpop.f32.mrf.mxu0
          %v7582 = vadd.f32 0.0, %v7581
          %v7583 = vpop.f32.mrf.mxu0
          %7584 = vmatprep.mubr.f32.mxu0 0.0
          %7585 = vmatmul.mubr.f32.gmra.mxu0 %v7456
          %v7586 = vpop.f32.mrf.mxu0
          %v7587 = vadd.f32 0.0, %v7586
          %v7588 = vpop.f32.mrf.mxu0
          %7589 = vmatprep.mubr.f32.mxu0 0.0
          %7590 = vmatmul.mubr.f32.gmra.mxu0 %v7459
          %v7591 = vpop.f32.mrf.mxu0
          %v7592 = vadd.f32 0.0, %v7591
          %v7593 = vpop.f32.mrf.mxu0
          %7594 = vmatprep.mubr.f32.mxu0 0.0
          %7595 = vmatmul.mubr.f32.gmra.mxu0 %v7462
          %v7596 = vpop.f32.mrf.mxu0
          %v7597 = vadd.f32 0.0, %v7596
          %v7598 = vpop.f32.mrf.mxu0
          %7599 = vmatprep.mubr.f32.mxu0 0.0
          %7600 = vmatmul.mubr.f32.gmra.mxu0 %v7465
          %v7601 = vpop.f32.mrf.mxu0
          %v7602 = vadd.f32 0.0, %v7601
          %v7603 = vpop.f32.mrf.mxu0
          %7604 = vmatprep.mubr.f32.mxu0 0.0
          %7605 = vmatmul.mubr.f32.gmra.mxu0 %v7468
          %v7606 = vpop.f32.mrf.mxu0
          %v7607 = vadd.f32 0.0, %v7606
          %v7608 = vpop.f32.mrf.mxu0
          %7609 = vmatprep.mubr.f32.mxu0 0.0
          %7610 = vmatmul.mubr.f32.gmra.mxu0 %v7471
          %v7611 = vpop.f32.mrf.mxu0
          %v7612 = vadd.f32 0.0, %v7611
          %v7613 = vpop.f32.mrf.mxu0
          %7614 = vmatprep.mubr.f32.mxu0 0.0
          %7615 = vmatmul.mubr.f32.gmra.mxu0 %v7474
          %v7616 = vpop.f32.mrf.mxu0
          %v7617 = vadd.f32 0.0, %v7616
          %v7618 = vpop.f32.mrf.mxu0
          %7619 = vmatprep.mubr.f32.mxu0 0.0
          %7620 = vmatmul.mubr.f32.gmra.mxu0 %v7477
          %v7621 = vpop.f32.mrf.mxu0
          %v7622 = vadd.f32 0.0, %v7621
          %v7623 = vpop.f32.mrf.mxu0
          %7624 = vmatprep.mubr.f32.mxu0 0.0
          %7625 = vmatmul.mubr.f32.gmra.mxu0 %v7480
          %v7626 = vpop.f32.mrf.mxu0
          %v7627 = vadd.f32 0.0, %v7626
          %v7628 = vpop.f32.mrf.mxu0
          %7629 = vmatprep.mubr.f32.mxu0 0.0
          %7630 = vmatmul.mubr.f32.gmra.mxu0 %v7483
          %v7631 = vpop.f32.mrf.mxu0
          %v7632 = vadd.f32 0.0, %v7631
          %v7633 = vpop.f32.mrf.mxu0
          %7634 = vdwg.mxu0
          %v7635 = vadd.f32 %v6791, %v7552
          %v7636 = vadd.f32 %v6792, %v7557
          %v7637 = vadd.f32 %v6793, %v7562
          %v7638 = vadd.f32 %v6794, %v7567
          %v7639 = vadd.f32 %v6795, %v7572
          %v7640 = vadd.f32 %v6796, %v7577
          %v7641 = vadd.f32 %v6797, %v7582
          %v7642 = vadd.f32 %v6798, %v7587
          %v7643 = vadd.f32 %v6799, %v7592
          %v7644 = vadd.f32 %v6800, %v7597
          %v7645 = vadd.f32 %v6801, %v7602
          %v7646 = vadd.f32 %v6802, %v7607
          %v7647 = vadd.f32 %v6803, %v7612
          %v7648 = vadd.f32 %v6804, %v7617
          %v7649 = vadd.f32 %v6805, %v7622
          %v7650 = vadd.f32 %v6806, %v7627
          %v7651 = vadd.f32 %v6807, %v7632
          %s7652 = scalar_lea.vmem %s15, %s2060
          %v7653 = vld [vmem:[%s7652] sm:$0x1]
          %v7655 = vlaneseq
          %v7656 = vshrl.u32 %v7655, 7
          %v7657 = vsub.s32 0, %v7656
          %v7658 = vrot.slane %v7653, %v7657
          %v7660 = vadd.f32 %v7635, %v7658
          %v7661 = vadd.f32 %v7636, %v7658
          %v7662 = vadd.f32 %v7637, %v7658
          %v7663 = vadd.f32 %v7638, %v7658
          %v7664 = vadd.f32 %v7639, %v7658
          %v7665 = vadd.f32 %v7640, %v7658
          %v7666 = vadd.f32 %v7641, %v7658
          %v7667 = vadd.f32 %v7642, %v7658
          %v7668 = vadd.f32 %v7643, %v7658
          %v7669 = vadd.f32 %v7644, %v7658
          %v7670 = vadd.f32 %v7645, %v7658
          %v7671 = vadd.f32 %v7646, %v7658
          %v7672 = vadd.f32 %v7647, %v7658
          %v7673 = vadd.f32 %v7648, %v7658
          %v7674 = vadd.f32 %v7649, %v7658
          %v7675 = vadd.f32 %v7650, %v7658
          %v7676 = vadd.f32 %v7651, %v7658
        $region89: #{frozen_image_to_clip_embedder.1} parent=83 // loop_footer
          %s2064 = sadd.s32 1, %s2060
        $region90: #{frozen_image_to_clip_embedder.1} parent=83 // loop_footer_branch
          %2059 = sbr.rel target = $region86
        $region91: #{frozen_image_to_clip_embedder.1} parent=83 // loop_exit
          _
        %v7677 = vld [vmem:[%s5] sm:$0x3]
        %v7678 = vsel %vm1669, %v2065, 0.0
        %7679 = vadd.xlane.f32.xlu0 %v7678
        %v7680 = vpop.xlane.xlu0 %7679
        %v7681 = vmul.f32 %v7680, %v1812
        %v7682 = vsub.f32 %v2065, %v7681
        %v7683 = vmul.f32 %v7682, %v7682
        %v7684 = vsel %vm1669, %v7683, 0.0
        %7685 = vadd.xlane.f32.xlu0 %v7684
        %v7686 = vpop.xlane.xlu0 %7685
        %v7687 = vmul.f32 %v7686, %v1812
        %v7688 = vadd.f32 %v7687, 1e-05
        %v7689 = vrsqrt.pop %v7688
        %v7690 = vmul.f32 %v7682, %v7689
        %v7691 = vlaneseq
        %v7692 = vshrl.u32 %v7691, 7
        %v7693 = vsub.s32 0, %v7692
        %v7694 = vrot.slane %v7677, %v7693
        %v7695 = vmul.f32 %v7690, %v7694
        %v7696 = vlaneseq
        %v7697 = vshrl.u32 %v7696, 7
        %v7698 = vsub.s32 1, %v7697
        %v7699 = vrot.slane %v7677, %v7698
        %v7700 = vadd.f32 %v7695, %v7699
        %7701 = vst.msk [vmem:[%s514] sm:$0xff] %vm1669, %v7700
        %s7702 = sand.u32 %s379, 1
        %s7703 = scalar_lea.sflag [#allocation4], %s7702
        %s7704 = sand.u32 %s379, 1
        %s7705 = smul.addr %s7704, 8
        %s7706 = scalar_lea.vmem [#allocation3], %s7705
        // Predicated region
        $region92: #{frozen_image_to_clip_embedder.1} parent=83 // pred_check
          %p7707 = pneg %p389
        $region93: #{frozen_image_to_clip_embedder.1} parent=83 // pred_check_branch
          %7709 = sbr.rel (%p7707) target = $region95
        $region94: #{frozen_image_to_clip_embedder.1} parent=83 // pred_region
          %s7711 = ssub.s32 128, 128
          %7712 = vsyncadd %s7703, %s7711
          %s7713 = smul.addr %s30, 128
          %s7714 = scalar_lea.hbm %s16, %s7713
          %s7716 = sshll.u32 %s7706, 4
          %s7717 = int_to_ptr.vmem [resolvable:$true] %s7716
          %7719 = dma.vmem_to_hbm [thread:$0]  %s7717, 128, %s7714, %s7703
        $region95: #{frozen_image_to_clip_embedder.1} parent=83 // pred_fallthru
          _
      $region84: #{frozen_image_to_clip_embedder.1} parent=5 // pred_fallthru
        _
      %p7720 = scmp.le.s32.totalorder 2, %s25
      // Predicated region
      $region96: #{frozen_image_to_clip_embedder.1} parent=5 // pred_check
        %p7721 = pneg %p7720
      $region97: #{frozen_image_to_clip_embedder.1} parent=5 // pred_check_branch
        %7723 = sbr.rel (%p7721) target = $region99
      $region98: #{frozen_image_to_clip_embedder.1} parent=5 // pred_region
        %s7724 = ssub.s32 %s25, 2
        // Predicated region
        $region100: #{frozen_image_to_clip_embedder.1} parent=98 // pred_check
          %p7725 = pneg %p395
        $region101: #{frozen_image_to_clip_embedder.1} parent=98 // pred_check_branch
          %7727 = sbr.rel (%p7725) target = $region103
        $region102: #{frozen_image_to_clip_embedder.1} parent=98 // pred_region
          %s7728 = sand.u32 %s380, 1
          %s7729 = scalar_lea.sflag [#allocation4], %s7728
          %s7730 = sand.u32 %s380, 1
          %s7731 = smul.addr %s7730, 8
          %s7732 = scalar_lea.vmem [#allocation3], %s7731
          %7733 = dma.done %s7729, 128
        $region103: #{frozen_image_to_clip_embedder.1} parent=98 // pred_fallthru
          _
      $region99: #{frozen_image_to_clip_embedder.1} parent=5 // pred_fallthru
        _
    $region6: #{frozen_image_to_clip_embedder.1} parent=1 // loop_footer
      %s29 = sadd.s32 1, %s25
    $region7: #{frozen_image_to_clip_embedder.1} parent=1 // loop_footer_branch
      %24 = sbr.rel target = $region3
    $region8: #{frozen_image_to_clip_embedder.1} parent=1 // loop_exit
      _
    %7734 = vsyncpa [#allocation4], 1
    %s7735 = scalar_lea.sflag [#allocation4], 1
    %7736 = vsyncpa %s7735, 1

</llo_original>
